<compile_context>
chip_gen: v7x
topology: tpu7x:2x2x1
jax: 0.10.0
libtpu: 0.0.40
codegen_flags: <defaults>
</compile_context>

<pallas_src>
import jax
import jax.numpy as jnp
from jax import lax
from jax.experimental import pallas as pl
from jax.experimental.pallas import tpu as pltpu

H = W = 16
C_IN = 4
C_FEAT = 128   # stand-in for resnet.fc.in_features (2048 in real ResNet-50)
EMBED = 32     # embed_size
N_BATCH = 2
HC = 64        # conv M-tile (spatial positions per chunk); divides H*W, multiple of W
PAD = W + 1    # zero rows added to the flattened image = one SAME-padding ring


def _encoder_kernel(x_ref, wconv_ref, bconv_ref, wemb_ref, bemb_ref, out_ref):
    n_img = out_ref.shape[0]
    n_chunks = (H * W) // HC

    # Masks that zero the two taps where a flattened-row shift wraps across image rows;
    # together with the zero rows in x_ref this equals the 3x3 conv's SAME zero padding.
    w_id = jnp.mod(lax.broadcasted_iota(jnp.int32, (HC, 1), 0), W)
    not_left = (w_id != 0).astype(jnp.float32)       # kills wrapped w-1 neighbour at w == 0
    not_right = (w_id != W - 1).astype(jnp.float32)  # kills wrapped w+1 neighbour at w == W-1

    bconv = bconv_ref[...]                            # (1, C_FEAT)
    inv_hw = 1.0 / (H * W)

    for n in range(n_img):                            # static python loops, fully unrolled
        pooled = jnp.zeros((1, C_FEAT), jnp.float32)  # running spatial sum (AdaptiveAvgPool2d)
        for c in range(n_chunks):
            base = c * HC
            acc = jnp.zeros((HC, C_FEAT), jnp.float32)
            for dy in range(3):
                for dx in range(3):
                    t = dy * 3 + dx
                    # tap (dy,dx): HC consecutive positions of the flattened padded image.
                    tap = x_ref[n, pl.ds(base + dy * W + dx, HC), :]       # (HC, C_IN) f32
                    if dx == 0:
                        tap = tap * not_left
                    elif dx == 2:
                        tap = tap * not_right
                    w_t = wconv_ref[pl.ds(t * C_IN, C_IN), :]              # (C_IN, C_FEAT)
                    acc = acc + jnp.dot(tap, w_t, preferred_element_type=jnp.float32)
            feat = jnp.maximum(acc + bconv, 0.0)                           # bias + ReLU (f32 VPU)
            pooled = pooled + jnp.sum(feat, axis=0, keepdims=True)         # fused pooling
        # AdaptiveAvgPool2d((1,1)) + .view(N,-1) + nn.Linear(C_FEAT, EMBED)
        emb = jnp.dot(pooled * inv_hw, wemb_ref[...],
                      preferred_element_type=jnp.float32) + bemb_ref[...]  # (1, EMBED)
        out_ref[n:n + 1, :] = emb.astype(out_ref.dtype)


def encoder_cnn_forward(images_nchw, wconv_hwio, bconv, wemb, bemb):
    n, cin, h, w = images_nchw.shape
    assert (h, w, cin) == (H, W, C_IN)
    # NHWC -> flatten spatial -> add W+1 zero rows at both ends (SAME padding, see kernel masks).
    x = jnp.transpose(images_nchw, (0, 2, 3, 1)).reshape(n, h * w, cin)
    xflat = jnp.pad(x, ((0, 0), (PAD, PAD), (0, 0)))                 # (N, H*W + 2*(W+1), C_IN)
    wconv2 = wconv_hwio.reshape(9 * cin, C_FEAT)                     # rows ordered (dy, dx, ci)
    bconv2 = bconv.reshape(1, C_FEAT)
    bemb2 = bemb.reshape(1, EMBED)

    flat_len = h * w + 2 * PAD
    return pl.pallas_call(
        _encoder_kernel,
        out_shape=jax.ShapeDtypeStruct((n, EMBED), jnp.float32),
        grid=(1,),                                                   # whole batch, one invocation
        in_specs=[
            pl.BlockSpec((n, flat_len, cin), lambda i: (0, 0, 0)),   # padded flat image (~9 KB)
            pl.BlockSpec((9 * cin, C_FEAT), lambda i: (0, 0)),       # conv weight
            pl.BlockSpec((1, C_FEAT), lambda i: (0, 0)),             # conv bias
            pl.BlockSpec((C_FEAT, EMBED), lambda i: (0, 0)),         # embed weight
            pl.BlockSpec((1, EMBED), lambda i: (0, 0)),              # embed bias
        ],
        out_specs=pl.BlockSpec((n, EMBED), lambda i: (0, 0)),
        compiler_params=pltpu.CompilerParams(dimension_semantics=("arbitrary",)),
    )(xflat, wconv2, bconv2, wemb, bemb2)


def _reference(images_nchw, wconv_hwio, bconv, wemb, bemb):
    x = jnp.transpose(images_nchw, (0, 2, 3, 1))
    feat = lax.conv_general_dilated(
        x, wconv_hwio, window_strides=(1, 1), padding="SAME",
        dimension_numbers=("NHWC", "HWIO", "NHWC"),
        precision=lax.Precision.HIGHEST)
    feat = jax.nn.relu(feat + bconv.reshape(1, 1, 1, -1))
    pooled = feat.mean(axis=(1, 2))                                  # AdaptiveAvgPool2d + flatten
    return jnp.dot(pooled, wemb, precision=lax.Precision.HIGHEST) + bemb.reshape(1, -1)


if __name__ == "__main__":
    key = jax.random.PRNGKey(0)
    k_img, k_wc, k_bc, k_we, k_be = jax.random.split(key, 5)
    images = jax.random.normal(k_img, (N_BATCH, C_IN, H, W), jnp.float32)      # NCHW like PyTorch
    wconv = jax.random.normal(k_wc, (3, 3, C_IN, C_FEAT), jnp.float32) * 0.1   # HWIO
    bconv = jax.random.normal(k_bc, (C_FEAT,), jnp.float32) * 0.1
    wemb = jax.random.normal(k_we, (C_FEAT, EMBED), jnp.float32) * 0.1         # Linear weight^T
    bemb = jax.random.normal(k_be, (EMBED,), jnp.float32) * 0.1

    out = jax.block_until_ready(encoder_cnn_forward(images, wconv, bconv, wemb, bemb))
    ref = _reference(images, wconv, bconv, wemb, bemb)

    assert out.shape == (N_BATCH, EMBED), out.shape
    assert jnp.allclose(out, ref, rtol=1e-2, atol=1e-2), "kernel output mismatch vs JAX reference"
    print("KERNEL_OK")
</pallas_src>

<mosaic_0001>
module attributes {stable_mosaic.version = 11 : i64} {
  func.func @_encoder_kernel(%arg0: i32, %arg1: memref<2x290x4xf32, #tpu.memory_space<vmem>>, %arg2: memref<36x128xf32, #tpu.memory_space<vmem>>, %arg3: memref<1x128xf32, #tpu.memory_space<vmem>>, %arg4: memref<128x32xf32, #tpu.memory_space<vmem>>, %arg5: memref<1x32xf32, #tpu.memory_space<vmem>>, %arg6: memref<2x32xf32, #tpu.memory_space<vmem>>) attributes {dimension_semantics = [#tpu.dimension_semantics<arbitrary>], iteration_bounds = array<i64: 1>, scalar_prefetch = 0 : i64, scratch_operands = 0 : i64, tpu.core_type = #tpu.core_type<tc>, window_params = [{pipeline_mode = #tpu.pipeline_mode<synchronous>, transform_indices = @transform_0, window_bounds = array<i64: 2, 290, 4>}, {pipeline_mode = #tpu.pipeline_mode<synchronous>, transform_indices = @transform_1, window_bounds = array<i64: 36, 128>}, {pipeline_mode = #tpu.pipeline_mode<synchronous>, transform_indices = @transform_2, window_bounds = array<i64: 1, 128>}, {pipeline_mode = #tpu.pipeline_mode<synchronous>, transform_indices = @transform_3, window_bounds = array<i64: 128, 32>}, {pipeline_mode = #tpu.pipeline_mode<synchronous>, transform_indices = @transform_4, window_bounds = array<i64: 1, 32>}, {pipeline_mode = #tpu.pipeline_mode<synchronous>, transform_indices = @transform_5, window_bounds = array<i64: 2, 32>}]} {
    %0 = tpu.iota {dimensions = array<i32: 0>} : vector<64x1xi32>
    %c16_i32 = arith.constant 16 : i32
    %c0_i32 = arith.constant 0 : i32
    %1 = arith.cmpi eq, %c16_i32, %c0_i32 : i32
    %c1_i32 = arith.constant 1 : i32
    %2 = arith.select %1, %c1_i32, %c16_i32 : i32
    %3 = vector.broadcast %2 : i32 to vector<64x1xi32>
    %4 = arith.remsi %0, %3 : vector<64x1xi32>
    %c0_i32_0 = arith.constant 0 : i32
    %5 = vector.broadcast %c0_i32_0 : i32 to vector<64x1xi32>
    %6 = arith.cmpi ne, %4, %5 : vector<64x1xi32>
    %c0_i32_1 = arith.constant 0 : i32
    %7 = vector.broadcast %c0_i32_1 : i32 to vector<64x1xi32>
    %8 = arith.cmpi slt, %4, %7 : vector<64x1xi32>
    %c0_i32_2 = arith.constant 0 : i32
    %9 = arith.cmpi slt, %2, %c0_i32_2 : i32
    %10 = vector.broadcast %9 : i1 to vector<64x1xi1>
    %11 = vector.broadcast %10 : vector<64x1xi1> to vector<64x1xi1>
    %12 = arith.xori %8, %11 : vector<64x1xi1>
    %13 = arith.andi %12, %6 : vector<64x1xi1>
    %14 = vector.broadcast %2 : i32 to vector<64x1xi32>
    %15 = arith.addi %4, %14 : vector<64x1xi32>
    %16 = arith.select %13, %15, %4 : vector<64x1xi1>, vector<64x1xi32>
    %c0_i32_3 = arith.constant 0 : i32
    %17 = vector.broadcast %c0_i32_3 : i32 to vector<64x1xi32>
    %18 = arith.cmpi ne, %16, %17 : vector<64x1xi32>
    %19 = arith.extui %18 : vector<64x1xi1> to vector<64x1xi32>
    %20 = arith.sitofp %19 : vector<64x1xi32> to vector<64x1xf32>
    %c15_i32 = arith.constant 15 : i32
    %21 = vector.broadcast %c15_i32 : i32 to vector<64x1xi32>
    %22 = arith.cmpi ne, %16, %21 : vector<64x1xi32>
    %23 = arith.extui %22 : vector<64x1xi1> to vector<64x1xi32>
    %24 = arith.sitofp %23 : vector<64x1xi32> to vector<64x1xf32>
    %c0 = arith.constant 0 : index
    %c0_4 = arith.constant 0 : index
    %25 = vector.load %arg3[%c0, %c0_4] : memref<1x128xf32, #tpu.memory_space<vmem>>, vector<1x128xf32>
    %cst = arith.constant 0.000000e+00 : f32
    %26 = vector.broadcast %cst : f32 to vector<1x128xf32>
    %cst_5 = arith.constant 0.000000e+00 : f32
    %27 = vector.broadcast %cst_5 : f32 to vector<64x128xf32>
    %c0_6 = arith.constant 0 : index
    %c0_7 = arith.constant 0 : index
    %c0_8 = arith.constant 0 : index
    %28 = vector.load %arg1[%c0_6, %c0_7, %c0_8] : memref<2x290x4xf32, #tpu.memory_space<vmem>>, vector<1x64x4xf32>
    %29 = vector.shape_cast %28 : vector<1x64x4xf32> to vector<64x4xf32>
    %30 = vector.broadcast %20 : vector<64x1xf32> to vector<64x4xf32>
    %31 = arith.mulf %29, %30 : vector<64x4xf32>
    %c0_9 = arith.constant 0 : index
    %c0_10 = arith.constant 0 : index
    %32 = vector.load %arg2[%c0_9, %c0_10] : memref<36x128xf32, #tpu.memory_space<vmem>>, vector<4x128xf32>
    %cst_11 = arith.constant dense<0.000000e+00> : vector<64x128xf32>
    %33 = tpu.matmul %31, %32, %cst_11 {dimension_numbers = #tpu.dot_dimension_numbers<[1], [0], [0], [1], [0, 0, 1, 1], [], []>} : vector<64x4xf32>, vector<4x128xf32>, vector<64x128xf32> -> vector<64x128xf32>
    %34 = arith.addf %27, %33 : vector<64x128xf32>
    %c0_12 = arith.constant 0 : index
    %c1 = arith.constant 1 : index
    %c0_13 = arith.constant 0 : index
    %35 = vector.load %arg1[%c0_12, %c1, %c0_13] : memref<2x290x4xf32, #tpu.memory_space<vmem>>, vector<1x64x4xf32>
    %36 = vector.shape_cast %35 : vector<1x64x4xf32> to vector<64x4xf32>
    %c4 = arith.constant 4 : index
    %c0_14 = arith.constant 0 : index
    %37 = vector.load %arg2[%c4, %c0_14] : memref<36x128xf32, #tpu.memory_space<vmem>>, vector<4x128xf32>
    %cst_15 = arith.constant dense<0.000000e+00> : vector<64x128xf32>
    %38 = tpu.matmul %36, %37, %cst_15 {dimension_numbers = #tpu.dot_dimension_numbers<[1], [0], [0], [1], [0, 0, 1, 1], [], []>} : vector<64x4xf32>, vector<4x128xf32>, vector<64x128xf32> -> vector<64x128xf32>
    %39 = arith.addf %34, %38 : vector<64x128xf32>
    %c0_16 = arith.constant 0 : index
    %c2 = arith.constant 2 : index
    %c0_17 = arith.constant 0 : index
    %40 = vector.load %arg1[%c0_16, %c2, %c0_17] : memref<2x290x4xf32, #tpu.memory_space<vmem>>, vector<1x64x4xf32>
    %41 = vector.shape_cast %40 : vector<1x64x4xf32> to vector<64x4xf32>
    %42 = vector.broadcast %24 : vector<64x1xf32> to vector<64x4xf32>
    %43 = arith.mulf %41, %42 : vector<64x4xf32>
    %c8 = arith.constant 8 : index
    %c0_18 = arith.constant 0 : index
    %44 = vector.load %arg2[%c8, %c0_18] : memref<36x128xf32, #tpu.memory_space<vmem>>, vector<4x128xf32>
    %cst_19 = arith.constant dense<0.000000e+00> : vector<64x128xf32>
    %45 = tpu.matmul %43, %44, %cst_19 {dimension_numbers = #tpu.dot_dimension_numbers<[1], [0], [0], [1], [0, 0, 1, 1], [], []>} : vector<64x4xf32>, vector<4x128xf32>, vector<64x128xf32> -> vector<64x128xf32>
    %46 = arith.addf %39, %45 : vector<64x128xf32>
    %c0_20 = arith.constant 0 : index
    %c16 = arith.constant 16 : index
    %c0_21 = arith.constant 0 : index
    %47 = vector.load %arg1[%c0_20, %c16, %c0_21] : memref<2x290x4xf32, #tpu.memory_space<vmem>>, vector<1x64x4xf32>
    %48 = vector.shape_cast %47 : vector<1x64x4xf32> to vector<64x4xf32>
    %49 = vector.broadcast %20 : vector<64x1xf32> to vector<64x4xf32>
    %50 = arith.mulf %48, %49 : vector<64x4xf32>
    %c12 = arith.constant 12 : index
    %c0_22 = arith.constant 0 : index
    %51 = vector.load %arg2[%c12, %c0_22] : memref<36x128xf32, #tpu.memory_space<vmem>>, vector<4x128xf32>
    %cst_23 = arith.constant dense<0.000000e+00> : vector<64x128xf32>
    %52 = tpu.matmul %50, %51, %cst_23 {dimension_numbers = #tpu.dot_dimension_numbers<[1], [0], [0], [1], [0, 0, 1, 1], [], []>} : vector<64x4xf32>, vector<4x128xf32>, vector<64x128xf32> -> vector<64x128xf32>
    %53 = arith.addf %46, %52 : vector<64x128xf32>
    %c0_24 = arith.constant 0 : index
    %c17 = arith.constant 17 : index
    %c0_25 = arith.constant 0 : index
    %54 = vector.load %arg1[%c0_24, %c17, %c0_25] : memref<2x290x4xf32, #tpu.memory_space<vmem>>, vector<1x64x4xf32>
    %55 = vector.shape_cast %54 : vector<1x64x4xf32> to vector<64x4xf32>
    %c16_26 = arith.constant 16 : index
    %c0_27 = arith.constant 0 : index
    %56 = vector.load %arg2[%c16_26, %c0_27] : memref<36x128xf32, #tpu.memory_space<vmem>>, vector<4x128xf32>
    %cst_28 = arith.constant dense<0.000000e+00> : vector<64x128xf32>
    %57 = tpu.matmul %55, %56, %cst_28 {dimension_numbers = #tpu.dot_dimension_numbers<[1], [0], [0], [1], [0, 0, 1, 1], [], []>} : vector<64x4xf32>, vector<4x128xf32>, vector<64x128xf32> -> vector<64x128xf32>
    %58 = arith.addf %53, %57 : vector<64x128xf32>
    %c0_29 = arith.constant 0 : index
    %c18 = arith.constant 18 : index
    %c0_30 = arith.constant 0 : index
    %59 = vector.load %arg1[%c0_29, %c18, %c0_30] : memref<2x290x4xf32, #tpu.memory_space<vmem>>, vector<1x64x4xf32>
    %60 = vector.shape_cast %59 : vector<1x64x4xf32> to vector<64x4xf32>
    %61 = vector.broadcast %24 : vector<64x1xf32> to vector<64x4xf32>
    %62 = arith.mulf %60, %61 : vector<64x4xf32>
    %c20 = arith.constant 20 : index
    %c0_31 = arith.constant 0 : index
    %63 = vector.load %arg2[%c20, %c0_31] : memref<36x128xf32, #tpu.memory_space<vmem>>, vector<4x128xf32>
    %cst_32 = arith.constant dense<0.000000e+00> : vector<64x128xf32>
    %64 = tpu.matmul %62, %63, %cst_32 {dimension_numbers = #tpu.dot_dimension_numbers<[1], [0], [0], [1], [0, 0, 1, 1], [], []>} : vector<64x4xf32>, vector<4x128xf32>, vector<64x128xf32> -> vector<64x128xf32>
    %65 = arith.addf %58, %64 : vector<64x128xf32>
    %c0_33 = arith.constant 0 : index
    %c32 = arith.constant 32 : index
    %c0_34 = arith.constant 0 : index
    %66 = vector.load %arg1[%c0_33, %c32, %c0_34] : memref<2x290x4xf32, #tpu.memory_space<vmem>>, vector<1x64x4xf32>
    %67 = vector.shape_cast %66 : vector<1x64x4xf32> to vector<64x4xf32>
    %68 = vector.broadcast %20 : vector<64x1xf32> to vector<64x4xf32>
    %69 = arith.mulf %67, %68 : vector<64x4xf32>
    %c24 = arith.constant 24 : index
    %c0_35 = arith.constant 0 : index
    %70 = vector.load %arg2[%c24, %c0_35] : memref<36x128xf32, #tpu.memory_space<vmem>>, vector<4x128xf32>
    %cst_36 = arith.constant dense<0.000000e+00> : vector<64x128xf32>
    %71 = tpu.matmul %69, %70, %cst_36 {dimension_numbers = #tpu.dot_dimension_numbers<[1], [0], [0], [1], [0, 0, 1, 1], [], []>} : vector<64x4xf32>, vector<4x128xf32>, vector<64x128xf32> -> vector<64x128xf32>
    %72 = arith.addf %65, %71 : vector<64x128xf32>
    %c0_37 = arith.constant 0 : index
    %c33 = arith.constant 33 : index
    %c0_38 = arith.constant 0 : index
    %73 = vector.load %arg1[%c0_37, %c33, %c0_38] : memref<2x290x4xf32, #tpu.memory_space<vmem>>, vector<1x64x4xf32>
    %74 = vector.shape_cast %73 : vector<1x64x4xf32> to vector<64x4xf32>
    %c28 = arith.constant 28 : index
    %c0_39 = arith.constant 0 : index
    %75 = vector.load %arg2[%c28, %c0_39] : memref<36x128xf32, #tpu.memory_space<vmem>>, vector<4x128xf32>
    %cst_40 = arith.constant dense<0.000000e+00> : vector<64x128xf32>
    %76 = tpu.matmul %74, %75, %cst_40 {dimension_numbers = #tpu.dot_dimension_numbers<[1], [0], [0], [1], [0, 0, 1, 1], [], []>} : vector<64x4xf32>, vector<4x128xf32>, vector<64x128xf32> -> vector<64x128xf32>
    %77 = arith.addf %72, %76 : vector<64x128xf32>
    %c0_41 = arith.constant 0 : index
    %c34 = arith.constant 34 : index
    %c0_42 = arith.constant 0 : index
    %78 = vector.load %arg1[%c0_41, %c34, %c0_42] : memref<2x290x4xf32, #tpu.memory_space<vmem>>, vector<1x64x4xf32>
    %79 = vector.shape_cast %78 : vector<1x64x4xf32> to vector<64x4xf32>
    %80 = vector.broadcast %24 : vector<64x1xf32> to vector<64x4xf32>
    %81 = arith.mulf %79, %80 : vector<64x4xf32>
    %c32_43 = arith.constant 32 : index
    %c0_44 = arith.constant 0 : index
    %82 = vector.load %arg2[%c32_43, %c0_44] : memref<36x128xf32, #tpu.memory_space<vmem>>, vector<4x128xf32>
    %cst_45 = arith.constant dense<0.000000e+00> : vector<64x128xf32>
    %83 = tpu.matmul %81, %82, %cst_45 {dimension_numbers = #tpu.dot_dimension_numbers<[1], [0], [0], [1], [0, 0, 1, 1], [], []>} : vector<64x4xf32>, vector<4x128xf32>, vector<64x128xf32> -> vector<64x128xf32>
    %84 = arith.addf %77, %83 : vector<64x128xf32>
    %85 = vector.broadcast %25 : vector<1x128xf32> to vector<64x128xf32>
    %86 = arith.addf %84, %85 : vector<64x128xf32>
    %cst_46 = arith.constant 0.000000e+00 : f32
    %87 = vector.broadcast %cst_46 : f32 to vector<64x128xf32>
    %88 = arith.maximumf %86, %87 : vector<64x128xf32>
    %cst_47 = arith.constant dense<0.000000e+00> : vector<128xf32>
    %89 = vector.multi_reduction <add>, %88, %cst_47 [0] : vector<64x128xf32> to vector<128xf32>
    %90 = vector.shape_cast %89 : vector<128xf32> to vector<1x128xf32>
    %91 = arith.addf %26, %90 : vector<1x128xf32>
    %cst_48 = arith.constant 0.000000e+00 : f32
    %92 = vector.broadcast %cst_48 : f32 to vector<64x128xf32>
    %c0_49 = arith.constant 0 : index
    %c64 = arith.constant 64 : index
    %c0_50 = arith.constant 0 : index
    %93 = vector.load %arg1[%c0_49, %c64, %c0_50] : memref<2x290x4xf32, #tpu.memory_space<vmem>>, vector<1x64x4xf32>
    %94 = vector.shape_cast %93 : vector<1x64x4xf32> to vector<64x4xf32>
    %95 = vector.broadcast %20 : vector<64x1xf32> to vector<64x4xf32>
    %96 = arith.mulf %94, %95 : vector<64x4xf32>
    %c0_51 = arith.constant 0 : index
    %c0_52 = arith.constant 0 : index
    %97 = vector.load %arg2[%c0_51, %c0_52] : memref<36x128xf32, #tpu.memory_space<vmem>>, vector<4x128xf32>
    %cst_53 = arith.constant dense<0.000000e+00> : vector<64x128xf32>
    %98 = tpu.matmul %96, %97, %cst_53 {dimension_numbers = #tpu.dot_dimension_numbers<[1], [0], [0], [1], [0, 0, 1, 1], [], []>} : vector<64x4xf32>, vector<4x128xf32>, vector<64x128xf32> -> vector<64x128xf32>
    %99 = arith.addf %92, %98 : vector<64x128xf32>
    %c0_54 = arith.constant 0 : index
    %c65 = arith.constant 65 : index
    %c0_55 = arith.constant 0 : index
    %100 = vector.load %arg1[%c0_54, %c65, %c0_55] : memref<2x290x4xf32, #tpu.memory_space<vmem>>, vector<1x64x4xf32>
    %101 = vector.shape_cast %100 : vector<1x64x4xf32> to vector<64x4xf32>
    %c4_56 = arith.constant 4 : index
    %c0_57 = arith.constant 0 : index
    %102 = vector.load %arg2[%c4_56, %c0_57] : memref<36x128xf32, #tpu.memory_space<vmem>>, vector<4x128xf32>
    %cst_58 = arith.constant dense<0.000000e+00> : vector<64x128xf32>
    %103 = tpu.matmul %101, %102, %cst_58 {dimension_numbers = #tpu.dot_dimension_numbers<[1], [0], [0], [1], [0, 0, 1, 1], [], []>} : vector<64x4xf32>, vector<4x128xf32>, vector<64x128xf32> -> vector<64x128xf32>
    %104 = arith.addf %99, %103 : vector<64x128xf32>
    %c0_59 = arith.constant 0 : index
    %c66 = arith.constant 66 : index
    %c0_60 = arith.constant 0 : index
    %105 = vector.load %arg1[%c0_59, %c66, %c0_60] : memref<2x290x4xf32, #tpu.memory_space<vmem>>, vector<1x64x4xf32>
    %106 = vector.shape_cast %105 : vector<1x64x4xf32> to vector<64x4xf32>
    %107 = vector.broadcast %24 : vector<64x1xf32> to vector<64x4xf32>
    %108 = arith.mulf %106, %107 : vector<64x4xf32>
    %c8_61 = arith.constant 8 : index
    %c0_62 = arith.constant 0 : index
    %109 = vector.load %arg2[%c8_61, %c0_62] : memref<36x128xf32, #tpu.memory_space<vmem>>, vector<4x128xf32>
    %cst_63 = arith.constant dense<0.000000e+00> : vector<64x128xf32>
    %110 = tpu.matmul %108, %109, %cst_63 {dimension_numbers = #tpu.dot_dimension_numbers<[1], [0], [0], [1], [0, 0, 1, 1], [], []>} : vector<64x4xf32>, vector<4x128xf32>, vector<64x128xf32> -> vector<64x128xf32>
    %111 = arith.addf %104, %110 : vector<64x128xf32>
    %c0_64 = arith.constant 0 : index
    %c80 = arith.constant 80 : index
    %c0_65 = arith.constant 0 : index
    %112 = vector.load %arg1[%c0_64, %c80, %c0_65] : memref<2x290x4xf32, #tpu.memory_space<vmem>>, vector<1x64x4xf32>
    %113 = vector.shape_cast %112 : vector<1x64x4xf32> to vector<64x4xf32>
    %114 = vector.broadcast %20 : vector<64x1xf32> to vector<64x4xf32>
    %115 = arith.mulf %113, %114 : vector<64x4xf32>
    %c12_66 = arith.constant 12 : index
    %c0_67 = arith.constant 0 : index
    %116 = vector.load %arg2[%c12_66, %c0_67] : memref<36x128xf32, #tpu.memory_space<vmem>>, vector<4x128xf32>
    %cst_68 = arith.constant dense<0.000000e+00> : vector<64x128xf32>
    %117 = tpu.matmul %115, %116, %cst_68 {dimension_numbers = #tpu.dot_dimension_numbers<[1], [0], [0], [1], [0, 0, 1, 1], [], []>} : vector<64x4xf32>, vector<4x128xf32>, vector<64x128xf32> -> vector<64x128xf32>
    %118 = arith.addf %111, %117 : vector<64x128xf32>
    %c0_69 = arith.constant 0 : index
    %c81 = arith.constant 81 : index
    %c0_70 = arith.constant 0 : index
    %119 = vector.load %arg1[%c0_69, %c81, %c0_70] : memref<2x290x4xf32, #tpu.memory_space<vmem>>, vector<1x64x4xf32>
    %120 = vector.shape_cast %119 : vector<1x64x4xf32> to vector<64x4xf32>
    %c16_71 = arith.constant 16 : index
    %c0_72 = arith.constant 0 : index
    %121 = vector.load %arg2[%c16_71, %c0_72] : memref<36x128xf32, #tpu.memory_space<vmem>>, vector<4x128xf32>
    %cst_73 = arith.constant dense<0.000000e+00> : vector<64x128xf32>
    %122 = tpu.matmul %120, %121, %cst_73 {dimension_numbers = #tpu.dot_dimension_numbers<[1], [0], [0], [1], [0, 0, 1, 1], [], []>} : vector<64x4xf32>, vector<4x128xf32>, vector<64x128xf32> -> vector<64x128xf32>
    %123 = arith.addf %118, %122 : vector<64x128xf32>
    %c0_74 = arith.constant 0 : index
    %c82 = arith.constant 82 : index
    %c0_75 = arith.constant 0 : index
    %124 = vector.load %arg1[%c0_74, %c82, %c0_75] : memref<2x290x4xf32, #tpu.memory_space<vmem>>, vector<1x64x4xf32>
    %125 = vector.shape_cast %124 : vector<1x64x4xf32> to vector<64x4xf32>
    %126 = vector.broadcast %24 : vector<64x1xf32> to vector<64x4xf32>
    %127 = arith.mulf %125, %126 : vector<64x4xf32>
    %c20_76 = arith.constant 20 : index
    %c0_77 = arith.constant 0 : index
    %128 = vector.load %arg2[%c20_76, %c0_77] : memref<36x128xf32, #tpu.memory_space<vmem>>, vector<4x128xf32>
    %cst_78 = arith.constant dense<0.000000e+00> : vector<64x128xf32>
    %129 = tpu.matmul %127, %128, %cst_78 {dimension_numbers = #tpu.dot_dimension_numbers<[1], [0], [0], [1], [0, 0, 1, 1], [], []>} : vector<64x4xf32>, vector<4x128xf32>, vector<64x128xf32> -> vector<64x128xf32>
    %130 = arith.addf %123, %129 : vector<64x128xf32>
    %c0_79 = arith.constant 0 : index
    %c96 = arith.constant 96 : index
    %c0_80 = arith.constant 0 : index
    %131 = vector.load %arg1[%c0_79, %c96, %c0_80] : memref<2x290x4xf32, #tpu.memory_space<vmem>>, vector<1x64x4xf32>
    %132 = vector.shape_cast %131 : vector<1x64x4xf32> to vector<64x4xf32>
    %133 = vector.broadcast %20 : vector<64x1xf32> to vector<64x4xf32>
    %134 = arith.mulf %132, %133 : vector<64x4xf32>
    %c24_81 = arith.constant 24 : index
    %c0_82 = arith.constant 0 : index
    %135 = vector.load %arg2[%c24_81, %c0_82] : memref<36x128xf32, #tpu.memory_space<vmem>>, vector<4x128xf32>
    %cst_83 = arith.constant dense<0.000000e+00> : vector<64x128xf32>
    %136 = tpu.matmul %134, %135, %cst_83 {dimension_numbers = #tpu.dot_dimension_numbers<[1], [0], [0], [1], [0, 0, 1, 1], [], []>} : vector<64x4xf32>, vector<4x128xf32>, vector<64x128xf32> -> vector<64x128xf32>
    %137 = arith.addf %130, %136 : vector<64x128xf32>
    %c0_84 = arith.constant 0 : index
    %c97 = arith.constant 97 : index
    %c0_85 = arith.constant 0 : index
    %138 = vector.load %arg1[%c0_84, %c97, %c0_85] : memref<2x290x4xf32, #tpu.memory_space<vmem>>, vector<1x64x4xf32>
    %139 = vector.shape_cast %138 : vector<1x64x4xf32> to vector<64x4xf32>
    %c28_86 = arith.constant 28 : index
    %c0_87 = arith.constant 0 : index
    %140 = vector.load %arg2[%c28_86, %c0_87] : memref<36x128xf32, #tpu.memory_space<vmem>>, vector<4x128xf32>
    %cst_88 = arith.constant dense<0.000000e+00> : vector<64x128xf32>
    %141 = tpu.matmul %139, %140, %cst_88 {dimension_numbers = #tpu.dot_dimension_numbers<[1], [0], [0], [1], [0, 0, 1, 1], [], []>} : vector<64x4xf32>, vector<4x128xf32>, vector<64x128xf32> -> vector<64x128xf32>
    %142 = arith.addf %137, %141 : vector<64x128xf32>
    %c0_89 = arith.constant 0 : index
    %c98 = arith.constant 98 : index
    %c0_90 = arith.constant 0 : index
    %143 = vector.load %arg1[%c0_89, %c98, %c0_90] : memref<2x290x4xf32, #tpu.memory_space<vmem>>, vector<1x64x4xf32>
    %144 = vector.shape_cast %143 : vector<1x64x4xf32> to vector<64x4xf32>
    %145 = vector.broadcast %24 : vector<64x1xf32> to vector<64x4xf32>
    %146 = arith.mulf %144, %145 : vector<64x4xf32>
    %c32_91 = arith.constant 32 : index
    %c0_92 = arith.constant 0 : index
    %147 = vector.load %arg2[%c32_91, %c0_92] : memref<36x128xf32, #tpu.memory_space<vmem>>, vector<4x128xf32>
    %cst_93 = arith.constant dense<0.000000e+00> : vector<64x128xf32>
    %148 = tpu.matmul %146, %147, %cst_93 {dimension_numbers = #tpu.dot_dimension_numbers<[1], [0], [0], [1], [0, 0, 1, 1], [], []>} : vector<64x4xf32>, vector<4x128xf32>, vector<64x128xf32> -> vector<64x128xf32>
    %149 = arith.addf %142, %148 : vector<64x128xf32>
    %150 = vector.broadcast %25 : vector<1x128xf32> to vector<64x128xf32>
    %151 = arith.addf %149, %150 : vector<64x128xf32>
    %cst_94 = arith.constant 0.000000e+00 : f32
    %152 = vector.broadcast %cst_94 : f32 to vector<64x128xf32>
    %153 = arith.maximumf %151, %152 : vector<64x128xf32>
    %cst_95 = arith.constant dense<0.000000e+00> : vector<128xf32>
    %154 = vector.multi_reduction <add>, %153, %cst_95 [0] : vector<64x128xf32> to vector<128xf32>
    %155 = vector.shape_cast %154 : vector<128xf32> to vector<1x128xf32>
    %156 = arith.addf %91, %155 : vector<1x128xf32>
    %cst_96 = arith.constant 0.000000e+00 : f32
    %157 = vector.broadcast %cst_96 : f32 to vector<64x128xf32>
    %c0_97 = arith.constant 0 : index
    %c128 = arith.constant 128 : index
    %c0_98 = arith.constant 0 : index
    %158 = vector.load %arg1[%c0_97, %c128, %c0_98] : memref<2x290x4xf32, #tpu.memory_space<vmem>>, vector<1x64x4xf32>
    %159 = vector.shape_cast %158 : vector<1x64x4xf32> to vector<64x4xf32>
    %160 = vector.broadcast %20 : vector<64x1xf32> to vector<64x4xf32>
    %161 = arith.mulf %159, %160 : vector<64x4xf32>
    %c0_99 = arith.constant 0 : index
    %c0_100 = arith.constant 0 : index
    %162 = vector.load %arg2[%c0_99, %c0_100] : memref<36x128xf32, #tpu.memory_space<vmem>>, vector<4x128xf32>
    %cst_101 = arith.constant dense<0.000000e+00> : vector<64x128xf32>
    %163 = tpu.matmul %161, %162, %cst_101 {dimension_numbers = #tpu.dot_dimension_numbers<[1], [0], [0], [1], [0, 0, 1, 1], [], []>} : vector<64x4xf32>, vector<4x128xf32>, vector<64x128xf32> -> vector<64x128xf32>
    %164 = arith.addf %157, %163 : vector<64x128xf32>
    %c0_102 = arith.constant 0 : index
    %c129 = arith.constant 129 : index
    %c0_103 = arith.constant 0 : index
    %165 = vector.load %arg1[%c0_102, %c129, %c0_103] : memref<2x290x4xf32, #tpu.memory_space<vmem>>, vector<1x64x4xf32>
    %166 = vector.shape_cast %165 : vector<1x64x4xf32> to vector<64x4xf32>
    %c4_104 = arith.constant 4 : index
    %c0_105 = arith.constant 0 : index
    %167 = vector.load %arg2[%c4_104, %c0_105] : memref<36x128xf32, #tpu.memory_space<vmem>>, vector<4x128xf32>
    %cst_106 = arith.constant dense<0.000000e+00> : vector<64x128xf32>
    %168 = tpu.matmul %166, %167, %cst_106 {dimension_numbers = #tpu.dot_dimension_numbers<[1], [0], [0], [1], [0, 0, 1, 1], [], []>} : vector<64x4xf32>, vector<4x128xf32>, vector<64x128xf32> -> vector<64x128xf32>
    %169 = arith.addf %164, %168 : vector<64x128xf32>
    %c0_107 = arith.constant 0 : index
    %c130 = arith.constant 130 : index
    %c0_108 = arith.constant 0 : index
    %170 = vector.load %arg1[%c0_107, %c130, %c0_108] : memref<2x290x4xf32, #tpu.memory_space<vmem>>, vector<1x64x4xf32>
    %171 = vector.shape_cast %170 : vector<1x64x4xf32> to vector<64x4xf32>
    %172 = vector.broadcast %24 : vector<64x1xf32> to vector<64x4xf32>
    %173 = arith.mulf %171, %172 : vector<64x4xf32>
    %c8_109 = arith.constant 8 : index
    %c0_110 = arith.constant 0 : index
    %174 = vector.load %arg2[%c8_109, %c0_110] : memref<36x128xf32, #tpu.memory_space<vmem>>, vector<4x128xf32>
    %cst_111 = arith.constant dense<0.000000e+00> : vector<64x128xf32>
    %175 = tpu.matmul %173, %174, %cst_111 {dimension_numbers = #tpu.dot_dimension_numbers<[1], [0], [0], [1], [0, 0, 1, 1], [], []>} : vector<64x4xf32>, vector<4x128xf32>, vector<64x128xf32> -> vector<64x128xf32>
    %176 = arith.addf %169, %175 : vector<64x128xf32>
    %c0_112 = arith.constant 0 : index
    %c144 = arith.constant 144 : index
    %c0_113 = arith.constant 0 : index
    %177 = vector.load %arg1[%c0_112, %c144, %c0_113] : memref<2x290x4xf32, #tpu.memory_space<vmem>>, vector<1x64x4xf32>
    %178 = vector.shape_cast %177 : vector<1x64x4xf32> to vector<64x4xf32>
    %179 = vector.broadcast %20 : vector<64x1xf32> to vector<64x4xf32>
    %180 = arith.mulf %178, %179 : vector<64x4xf32>
    %c12_114 = arith.constant 12 : index
    %c0_115 = arith.constant 0 : index
    %181 = vector.load %arg2[%c12_114, %c0_115] : memref<36x128xf32, #tpu.memory_space<vmem>>, vector<4x128xf32>
    %cst_116 = arith.constant dense<0.000000e+00> : vector<64x128xf32>
    %182 = tpu.matmul %180, %181, %cst_116 {dimension_numbers = #tpu.dot_dimension_numbers<[1], [0], [0], [1], [0, 0, 1, 1], [], []>} : vector<64x4xf32>, vector<4x128xf32>, vector<64x128xf32> -> vector<64x128xf32>
    %183 = arith.addf %176, %182 : vector<64x128xf32>
    %c0_117 = arith.constant 0 : index
    %c145 = arith.constant 145 : index
    %c0_118 = arith.constant 0 : index
    %184 = vector.load %arg1[%c0_117, %c145, %c0_118] : memref<2x290x4xf32, #tpu.memory_space<vmem>>, vector<1x64x4xf32>
    %185 = vector.shape_cast %184 : vector<1x64x4xf32> to vector<64x4xf32>
    %c16_119 = arith.constant 16 : index
    %c0_120 = arith.constant 0 : index
    %186 = vector.load %arg2[%c16_119, %c0_120] : memref<36x128xf32, #tpu.memory_space<vmem>>, vector<4x128xf32>
    %cst_121 = arith.constant dense<0.000000e+00> : vector<64x128xf32>
    %187 = tpu.matmul %185, %186, %cst_121 {dimension_numbers = #tpu.dot_dimension_numbers<[1], [0], [0], [1], [0, 0, 1, 1], [], []>} : vector<64x4xf32>, vector<4x128xf32>, vector<64x128xf32> -> vector<64x128xf32>
    %188 = arith.addf %183, %187 : vector<64x128xf32>
    %c0_122 = arith.constant 0 : index
    %c146 = arith.constant 146 : index
    %c0_123 = arith.constant 0 : index
    %189 = vector.load %arg1[%c0_122, %c146, %c0_123] : memref<2x290x4xf32, #tpu.memory_space<vmem>>, vector<1x64x4xf32>
    %190 = vector.shape_cast %189 : vector<1x64x4xf32> to vector<64x4xf32>
    %191 = vector.broadcast %24 : vector<64x1xf32> to vector<64x4xf32>
    %192 = arith.mulf %190, %191 : vector<64x4xf32>
    %c20_124 = arith.constant 20 : index
    %c0_125 = arith.constant 0 : index
    %193 = vector.load %arg2[%c20_124, %c0_125] : memref<36x128xf32, #tpu.memory_space<vmem>>, vector<4x128xf32>
    %cst_126 = arith.constant dense<0.000000e+00> : vector<64x128xf32>
    %194 = tpu.matmul %192, %193, %cst_126 {dimension_numbers = #tpu.dot_dimension_numbers<[1], [0], [0], [1], [0, 0, 1, 1], [], []>} : vector<64x4xf32>, vector<4x128xf32>, vector<64x128xf32> -> vector<64x128xf32>
    %195 = arith.addf %188, %194 : vector<64x128xf32>
    %c0_127 = arith.constant 0 : index
    %c160 = arith.constant 160 : index
    %c0_128 = arith.constant 0 : index
    %196 = vector.load %arg1[%c0_127, %c160, %c0_128] : memref<2x290x4xf32, #tpu.memory_space<vmem>>, vector<1x64x4xf32>
    %197 = vector.shape_cast %196 : vector<1x64x4xf32> to vector<64x4xf32>
    %198 = vector.broadcast %20 : vector<64x1xf32> to vector<64x4xf32>
    %199 = arith.mulf %197, %198 : vector<64x4xf32>
    %c24_129 = arith.constant 24 : index
    %c0_130 = arith.constant 0 : index
    %200 = vector.load %arg2[%c24_129, %c0_130] : memref<36x128xf32, #tpu.memory_space<vmem>>, vector<4x128xf32>
    %cst_131 = arith.constant dense<0.000000e+00> : vector<64x128xf32>
    %201 = tpu.matmul %199, %200, %cst_131 {dimension_numbers = #tpu.dot_dimension_numbers<[1], [0], [0], [1], [0, 0, 1, 1], [], []>} : vector<64x4xf32>, vector<4x128xf32>, vector<64x128xf32> -> vector<64x128xf32>
    %202 = arith.addf %195, %201 : vector<64x128xf32>
    %c0_132 = arith.constant 0 : index
    %c161 = arith.constant 161 : index
    %c0_133 = arith.constant 0 : index
    %203 = vector.load %arg1[%c0_132, %c161, %c0_133] : memref<2x290x4xf32, #tpu.memory_space<vmem>>, vector<1x64x4xf32>
    %204 = vector.shape_cast %203 : vector<1x64x4xf32> to vector<64x4xf32>
    %c28_134 = arith.constant 28 : index
    %c0_135 = arith.constant 0 : index
    %205 = vector.load %arg2[%c28_134, %c0_135] : memref<36x128xf32, #tpu.memory_space<vmem>>, vector<4x128xf32>
    %cst_136 = arith.constant dense<0.000000e+00> : vector<64x128xf32>
    %206 = tpu.matmul %204, %205, %cst_136 {dimension_numbers = #tpu.dot_dimension_numbers<[1], [0], [0], [1], [0, 0, 1, 1], [], []>} : vector<64x4xf32>, vector<4x128xf32>, vector<64x128xf32> -> vector<64x128xf32>
    %207 = arith.addf %202, %206 : vector<64x128xf32>
    %c0_137 = arith.constant 0 : index
    %c162 = arith.constant 162 : index
    %c0_138 = arith.constant 0 : index
    %208 = vector.load %arg1[%c0_137, %c162, %c0_138] : memref<2x290x4xf32, #tpu.memory_space<vmem>>, vector<1x64x4xf32>
    %209 = vector.shape_cast %208 : vector<1x64x4xf32> to vector<64x4xf32>
    %210 = vector.broadcast %24 : vector<64x1xf32> to vector<64x4xf32>
    %211 = arith.mulf %209, %210 : vector<64x4xf32>
    %c32_139 = arith.constant 32 : index
    %c0_140 = arith.constant 0 : index
    %212 = vector.load %arg2[%c32_139, %c0_140] : memref<36x128xf32, #tpu.memory_space<vmem>>, vector<4x128xf32>
    %cst_141 = arith.constant dense<0.000000e+00> : vector<64x128xf32>
    %213 = tpu.matmul %211, %212, %cst_141 {dimension_numbers = #tpu.dot_dimension_numbers<[1], [0], [0], [1], [0, 0, 1, 1], [], []>} : vector<64x4xf32>, vector<4x128xf32>, vector<64x128xf32> -> vector<64x128xf32>
    %214 = arith.addf %207, %213 : vector<64x128xf32>
    %215 = vector.broadcast %25 : vector<1x128xf32> to vector<64x128xf32>
    %216 = arith.addf %214, %215 : vector<64x128xf32>
    %cst_142 = arith.constant 0.000000e+00 : f32
    %217 = vector.broadcast %cst_142 : f32 to vector<64x128xf32>
    %218 = arith.maximumf %216, %217 : vector<64x128xf32>
    %cst_143 = arith.constant dense<0.000000e+00> : vector<128xf32>
    %219 = vector.multi_reduction <add>, %218, %cst_143 [0] : vector<64x128xf32> to vector<128xf32>
    %220 = vector.shape_cast %219 : vector<128xf32> to vector<1x128xf32>
    %221 = arith.addf %156, %220 : vector<1x128xf32>
    %cst_144 = arith.constant 0.000000e+00 : f32
    %222 = vector.broadcast %cst_144 : f32 to vector<64x128xf32>
    %c0_145 = arith.constant 0 : index
    %c192 = arith.constant 192 : index
    %c0_146 = arith.constant 0 : index
    %223 = vector.load %arg1[%c0_145, %c192, %c0_146] : memref<2x290x4xf32, #tpu.memory_space<vmem>>, vector<1x64x4xf32>
    %224 = vector.shape_cast %223 : vector<1x64x4xf32> to vector<64x4xf32>
    %225 = vector.broadcast %20 : vector<64x1xf32> to vector<64x4xf32>
    %226 = arith.mulf %224, %225 : vector<64x4xf32>
    %c0_147 = arith.constant 0 : index
    %c0_148 = arith.constant 0 : index
    %227 = vector.load %arg2[%c0_147, %c0_148] : memref<36x128xf32, #tpu.memory_space<vmem>>, vector<4x128xf32>
    %cst_149 = arith.constant dense<0.000000e+00> : vector<64x128xf32>
    %228 = tpu.matmul %226, %227, %cst_149 {dimension_numbers = #tpu.dot_dimension_numbers<[1], [0], [0], [1], [0, 0, 1, 1], [], []>} : vector<64x4xf32>, vector<4x128xf32>, vector<64x128xf32> -> vector<64x128xf32>
    %229 = arith.addf %222, %228 : vector<64x128xf32>
    %c0_150 = arith.constant 0 : index
    %c193 = arith.constant 193 : index
    %c0_151 = arith.constant 0 : index
    %230 = vector.load %arg1[%c0_150, %c193, %c0_151] : memref<2x290x4xf32, #tpu.memory_space<vmem>>, vector<1x64x4xf32>
    %231 = vector.shape_cast %230 : vector<1x64x4xf32> to vector<64x4xf32>
    %c4_152 = arith.constant 4 : index
    %c0_153 = arith.constant 0 : index
    %232 = vector.load %arg2[%c4_152, %c0_153] : memref<36x128xf32, #tpu.memory_space<vmem>>, vector<4x128xf32>
    %cst_154 = arith.constant dense<0.000000e+00> : vector<64x128xf32>
    %233 = tpu.matmul %231, %232, %cst_154 {dimension_numbers = #tpu.dot_dimension_numbers<[1], [0], [0], [1], [0, 0, 1, 1], [], []>} : vector<64x4xf32>, vector<4x128xf32>, vector<64x128xf32> -> vector<64x128xf32>
    %234 = arith.addf %229, %233 : vector<64x128xf32>
    %c0_155 = arith.constant 0 : index
    %c194 = arith.constant 194 : index
    %c0_156 = arith.constant 0 : index
    %235 = vector.load %arg1[%c0_155, %c194, %c0_156] : memref<2x290x4xf32, #tpu.memory_space<vmem>>, vector<1x64x4xf32>
    %236 = vector.shape_cast %235 : vector<1x64x4xf32> to vector<64x4xf32>
    %237 = vector.broadcast %24 : vector<64x1xf32> to vector<64x4xf32>
    %238 = arith.mulf %236, %237 : vector<64x4xf32>
    %c8_157 = arith.constant 8 : index
    %c0_158 = arith.constant 0 : index
    %239 = vector.load %arg2[%c8_157, %c0_158] : memref<36x128xf32, #tpu.memory_space<vmem>>, vector<4x128xf32>
    %cst_159 = arith.constant dense<0.000000e+00> : vector<64x128xf32>
    %240 = tpu.matmul %238, %239, %cst_159 {dimension_numbers = #tpu.dot_dimension_numbers<[1], [0], [0], [1], [0, 0, 1, 1], [], []>} : vector<64x4xf32>, vector<4x128xf32>, vector<64x128xf32> -> vector<64x128xf32>
    %241 = arith.addf %234, %240 : vector<64x128xf32>
    %c0_160 = arith.constant 0 : index
    %c208 = arith.constant 208 : index
    %c0_161 = arith.constant 0 : index
    %242 = vector.load %arg1[%c0_160, %c208, %c0_161] : memref<2x290x4xf32, #tpu.memory_space<vmem>>, vector<1x64x4xf32>
    %243 = vector.shape_cast %242 : vector<1x64x4xf32> to vector<64x4xf32>
    %244 = vector.broadcast %20 : vector<64x1xf32> to vector<64x4xf32>
    %245 = arith.mulf %243, %244 : vector<64x4xf32>
    %c12_162 = arith.constant 12 : index
    %c0_163 = arith.constant 0 : index
    %246 = vector.load %arg2[%c12_162, %c0_163] : memref<36x128xf32, #tpu.memory_space<vmem>>, vector<4x128xf32>
    %cst_164 = arith.constant dense<0.000000e+00> : vector<64x128xf32>
    %247 = tpu.matmul %245, %246, %cst_164 {dimension_numbers = #tpu.dot_dimension_numbers<[1], [0], [0], [1], [0, 0, 1, 1], [], []>} : vector<64x4xf32>, vector<4x128xf32>, vector<64x128xf32> -> vector<64x128xf32>
    %248 = arith.addf %241, %247 : vector<64x128xf32>
    %c0_165 = arith.constant 0 : index
    %c209 = arith.constant 209 : index
    %c0_166 = arith.constant 0 : index
    %249 = vector.load %arg1[%c0_165, %c209, %c0_166] : memref<2x290x4xf32, #tpu.memory_space<vmem>>, vector<1x64x4xf32>
    %250 = vector.shape_cast %249 : vector<1x64x4xf32> to vector<64x4xf32>
    %c16_167 = arith.constant 16 : index
    %c0_168 = arith.constant 0 : index
    %251 = vector.load %arg2[%c16_167, %c0_168] : memref<36x128xf32, #tpu.memory_space<vmem>>, vector<4x128xf32>
    %cst_169 = arith.constant dense<0.000000e+00> : vector<64x128xf32>
    %252 = tpu.matmul %250, %251, %cst_169 {dimension_numbers = #tpu.dot_dimension_numbers<[1], [0], [0], [1], [0, 0, 1, 1], [], []>} : vector<64x4xf32>, vector<4x128xf32>, vector<64x128xf32> -> vector<64x128xf32>
    %253 = arith.addf %248, %252 : vector<64x128xf32>
    %c0_170 = arith.constant 0 : index
    %c210 = arith.constant 210 : index
    %c0_171 = arith.constant 0 : index
    %254 = vector.load %arg1[%c0_170, %c210, %c0_171] : memref<2x290x4xf32, #tpu.memory_space<vmem>>, vector<1x64x4xf32>
    %255 = vector.shape_cast %254 : vector<1x64x4xf32> to vector<64x4xf32>
    %256 = vector.broadcast %24 : vector<64x1xf32> to vector<64x4xf32>
    %257 = arith.mulf %255, %256 : vector<64x4xf32>
    %c20_172 = arith.constant 20 : index
    %c0_173 = arith.constant 0 : index
    %258 = vector.load %arg2[%c20_172, %c0_173] : memref<36x128xf32, #tpu.memory_space<vmem>>, vector<4x128xf32>
    %cst_174 = arith.constant dense<0.000000e+00> : vector<64x128xf32>
    %259 = tpu.matmul %257, %258, %cst_174 {dimension_numbers = #tpu.dot_dimension_numbers<[1], [0], [0], [1], [0, 0, 1, 1], [], []>} : vector<64x4xf32>, vector<4x128xf32>, vector<64x128xf32> -> vector<64x128xf32>
    %260 = arith.addf %253, %259 : vector<64x128xf32>
    %c0_175 = arith.constant 0 : index
    %c224 = arith.constant 224 : index
    %c0_176 = arith.constant 0 : index
    %261 = vector.load %arg1[%c0_175, %c224, %c0_176] : memref<2x290x4xf32, #tpu.memory_space<vmem>>, vector<1x64x4xf32>
    %262 = vector.shape_cast %261 : vector<1x64x4xf32> to vector<64x4xf32>
    %263 = vector.broadcast %20 : vector<64x1xf32> to vector<64x4xf32>
    %264 = arith.mulf %262, %263 : vector<64x4xf32>
    %c24_177 = arith.constant 24 : index
    %c0_178 = arith.constant 0 : index
    %265 = vector.load %arg2[%c24_177, %c0_178] : memref<36x128xf32, #tpu.memory_space<vmem>>, vector<4x128xf32>
    %cst_179 = arith.constant dense<0.000000e+00> : vector<64x128xf32>
    %266 = tpu.matmul %264, %265, %cst_179 {dimension_numbers = #tpu.dot_dimension_numbers<[1], [0], [0], [1], [0, 0, 1, 1], [], []>} : vector<64x4xf32>, vector<4x128xf32>, vector<64x128xf32> -> vector<64x128xf32>
    %267 = arith.addf %260, %266 : vector<64x128xf32>
    %c0_180 = arith.constant 0 : index
    %c225 = arith.constant 225 : index
    %c0_181 = arith.constant 0 : index
    %268 = vector.load %arg1[%c0_180, %c225, %c0_181] : memref<2x290x4xf32, #tpu.memory_space<vmem>>, vector<1x64x4xf32>
    %269 = vector.shape_cast %268 : vector<1x64x4xf32> to vector<64x4xf32>
    %c28_182 = arith.constant 28 : index
    %c0_183 = arith.constant 0 : index
    %270 = vector.load %arg2[%c28_182, %c0_183] : memref<36x128xf32, #tpu.memory_space<vmem>>, vector<4x128xf32>
    %cst_184 = arith.constant dense<0.000000e+00> : vector<64x128xf32>
    %271 = tpu.matmul %269, %270, %cst_184 {dimension_numbers = #tpu.dot_dimension_numbers<[1], [0], [0], [1], [0, 0, 1, 1], [], []>} : vector<64x4xf32>, vector<4x128xf32>, vector<64x128xf32> -> vector<64x128xf32>
    %272 = arith.addf %267, %271 : vector<64x128xf32>
    %c0_185 = arith.constant 0 : index
    %c226 = arith.constant 226 : index
    %c0_186 = arith.constant 0 : index
    %273 = vector.load %arg1[%c0_185, %c226, %c0_186] : memref<2x290x4xf32, #tpu.memory_space<vmem>>, vector<1x64x4xf32>
    %274 = vector.shape_cast %273 : vector<1x64x4xf32> to vector<64x4xf32>
    %275 = vector.broadcast %24 : vector<64x1xf32> to vector<64x4xf32>
    %276 = arith.mulf %274, %275 : vector<64x4xf32>
    %c32_187 = arith.constant 32 : index
    %c0_188 = arith.constant 0 : index
    %277 = vector.load %arg2[%c32_187, %c0_188] : memref<36x128xf32, #tpu.memory_space<vmem>>, vector<4x128xf32>
    %cst_189 = arith.constant dense<0.000000e+00> : vector<64x128xf32>
    %278 = tpu.matmul %276, %277, %cst_189 {dimension_numbers = #tpu.dot_dimension_numbers<[1], [0], [0], [1], [0, 0, 1, 1], [], []>} : vector<64x4xf32>, vector<4x128xf32>, vector<64x128xf32> -> vector<64x128xf32>
    %279 = arith.addf %272, %278 : vector<64x128xf32>
    %280 = vector.broadcast %25 : vector<1x128xf32> to vector<64x128xf32>
    %281 = arith.addf %279, %280 : vector<64x128xf32>
    %cst_190 = arith.constant 0.000000e+00 : f32
    %282 = vector.broadcast %cst_190 : f32 to vector<64x128xf32>
    %283 = arith.maximumf %281, %282 : vector<64x128xf32>
    %cst_191 = arith.constant dense<0.000000e+00> : vector<128xf32>
    %284 = vector.multi_reduction <add>, %283, %cst_191 [0] : vector<64x128xf32> to vector<128xf32>
    %285 = vector.shape_cast %284 : vector<128xf32> to vector<1x128xf32>
    %286 = arith.addf %221, %285 : vector<1x128xf32>
    %cst_192 = arith.constant 3.906250e-03 : f32
    %287 = vector.broadcast %cst_192 : f32 to vector<1x128xf32>
    %288 = arith.mulf %286, %287 : vector<1x128xf32>
    %c0_193 = arith.constant 0 : index
    %c0_194 = arith.constant 0 : index
    %289 = vector.load %arg4[%c0_193, %c0_194] : memref<128x32xf32, #tpu.memory_space<vmem>>, vector<128x32xf32>
    %cst_195 = arith.constant dense<0.000000e+00> : vector<1x32xf32>
    %290 = tpu.matmul %288, %289, %cst_195 {dimension_numbers = #tpu.dot_dimension_numbers<[1], [0], [0], [1], [0, 0, 1, 1], [], []>} : vector<1x128xf32>, vector<128x32xf32>, vector<1x32xf32> -> vector<1x32xf32>
    %c0_196 = arith.constant 0 : index
    %c0_197 = arith.constant 0 : index
    %291 = vector.load %arg5[%c0_196, %c0_197] : memref<1x32xf32, #tpu.memory_space<vmem>>, vector<1x32xf32>
    %292 = arith.addf %290, %291 : vector<1x32xf32>
    %c0_198 = arith.constant 0 : index
    %c0_199 = arith.constant 0 : index
    %293 = vector.load %arg6[%c0_198, %c0_199] : memref<2x32xf32, #tpu.memory_space<vmem>>, vector<1x32xf32>
    tpu.vector_store %arg6[%c0_198, %c0_199], %292 {strides = array<i32>} : memref<2x32xf32, #tpu.memory_space<vmem>>, vector<1x32xf32>,
    %cst_200 = arith.constant 0.000000e+00 : f32
    %294 = vector.broadcast %cst_200 : f32 to vector<1x128xf32>
    %cst_201 = arith.constant 0.000000e+00 : f32
    %295 = vector.broadcast %cst_201 : f32 to vector<64x128xf32>
    %c1_202 = arith.constant 1 : index
    %c0_203 = arith.constant 0 : index
    %c0_204 = arith.constant 0 : index
    %296 = vector.load %arg1[%c1_202, %c0_203, %c0_204] : memref<2x290x4xf32, #tpu.memory_space<vmem>>, vector<1x64x4xf32>
    %297 = vector.shape_cast %296 : vector<1x64x4xf32> to vector<64x4xf32>
    %298 = vector.broadcast %20 : vector<64x1xf32> to vector<64x4xf32>
    %299 = arith.mulf %297, %298 : vector<64x4xf32>
    %c0_205 = arith.constant 0 : index
    %c0_206 = arith.constant 0 : index
    %300 = vector.load %arg2[%c0_205, %c0_206] : memref<36x128xf32, #tpu.memory_space<vmem>>, vector<4x128xf32>
    %cst_207 = arith.constant dense<0.000000e+00> : vector<64x128xf32>
    %301 = tpu.matmul %299, %300, %cst_207 {dimension_numbers = #tpu.dot_dimension_numbers<[1], [0], [0], [1], [0, 0, 1, 1], [], []>} : vector<64x4xf32>, vector<4x128xf32>, vector<64x128xf32> -> vector<64x128xf32>
    %302 = arith.addf %295, %301 : vector<64x128xf32>
    %c1_208 = arith.constant 1 : index
    %c1_209 = arith.constant 1 : index
    %c0_210 = arith.constant 0 : index
    %303 = vector.load %arg1[%c1_208, %c1_209, %c0_210] : memref<2x290x4xf32, #tpu.memory_space<vmem>>, vector<1x64x4xf32>
    %304 = vector.shape_cast %303 : vector<1x64x4xf32> to vector<64x4xf32>
    %c4_211 = arith.constant 4 : index
    %c0_212 = arith.constant 0 : index
    %305 = vector.load %arg2[%c4_211, %c0_212] : memref<36x128xf32, #tpu.memory_space<vmem>>, vector<4x128xf32>
    %cst_213 = arith.constant dense<0.000000e+00> : vector<64x128xf32>
    %306 = tpu.matmul %304, %305, %cst_213 {dimension_numbers = #tpu.dot_dimension_numbers<[1], [0], [0], [1], [0, 0, 1, 1], [], []>} : vector<64x4xf32>, vector<4x128xf32>, vector<64x128xf32> -> vector<64x128xf32>
    %307 = arith.addf %302, %306 : vector<64x128xf32>
    %c1_214 = arith.constant 1 : index
    %c2_215 = arith.constant 2 : index
    %c0_216 = arith.constant 0 : index
    %308 = vector.load %arg1[%c1_214, %c2_215, %c0_216] : memref<2x290x4xf32, #tpu.memory_space<vmem>>, vector<1x64x4xf32>
    %309 = vector.shape_cast %308 : vector<1x64x4xf32> to vector<64x4xf32>
    %310 = vector.broadcast %24 : vector<64x1xf32> to vector<64x4xf32>
    %311 = arith.mulf %309, %310 : vector<64x4xf32>
    %c8_217 = arith.constant 8 : index
    %c0_218 = arith.constant 0 : index
    %312 = vector.load %arg2[%c8_217, %c0_218] : memref<36x128xf32, #tpu.memory_space<vmem>>, vector<4x128xf32>
    %cst_219 = arith.constant dense<0.000000e+00> : vector<64x128xf32>
    %313 = tpu.matmul %311, %312, %cst_219 {dimension_numbers = #tpu.dot_dimension_numbers<[1], [0], [0], [1], [0, 0, 1, 1], [], []>} : vector<64x4xf32>, vector<4x128xf32>, vector<64x128xf32> -> vector<64x128xf32>
    %314 = arith.addf %307, %313 : vector<64x128xf32>
    %c1_220 = arith.constant 1 : index
    %c16_221 = arith.constant 16 : index
    %c0_222 = arith.constant 0 : index
    %315 = vector.load %arg1[%c1_220, %c16_221, %c0_222] : memref<2x290x4xf32, #tpu.memory_space<vmem>>, vector<1x64x4xf32>
    %316 = vector.shape_cast %315 : vector<1x64x4xf32> to vector<64x4xf32>
    %317 = vector.broadcast %20 : vector<64x1xf32> to vector<64x4xf32>
    %318 = arith.mulf %316, %317 : vector<64x4xf32>
    %c12_223 = arith.constant 12 : index
    %c0_224 = arith.constant 0 : index
    %319 = vector.load %arg2[%c12_223, %c0_224] : memref<36x128xf32, #tpu.memory_space<vmem>>, vector<4x128xf32>
    %cst_225 = arith.constant dense<0.000000e+00> : vector<64x128xf32>
    %320 = tpu.matmul %318, %319, %cst_225 {dimension_numbers = #tpu.dot_dimension_numbers<[1], [0], [0], [1], [0, 0, 1, 1], [], []>} : vector<64x4xf32>, vector<4x128xf32>, vector<64x128xf32> -> vector<64x128xf32>
    %321 = arith.addf %314, %320 : vector<64x128xf32>
    %c1_226 = arith.constant 1 : index
    %c17_227 = arith.constant 17 : index
    %c0_228 = arith.constant 0 : index
    %322 = vector.load %arg1[%c1_226, %c17_227, %c0_228] : memref<2x290x4xf32, #tpu.memory_space<vmem>>, vector<1x64x4xf32>
    %323 = vector.shape_cast %322 : vector<1x64x4xf32> to vector<64x4xf32>
    %c16_229 = arith.constant 16 : index
    %c0_230 = arith.constant 0 : index
    %324 = vector.load %arg2[%c16_229, %c0_230] : memref<36x128xf32, #tpu.memory_space<vmem>>, vector<4x128xf32>
    %cst_231 = arith.constant dense<0.000000e+00> : vector<64x128xf32>
    %325 = tpu.matmul %323, %324, %cst_231 {dimension_numbers = #tpu.dot_dimension_numbers<[1], [0], [0], [1], [0, 0, 1, 1], [], []>} : vector<64x4xf32>, vector<4x128xf32>, vector<64x128xf32> -> vector<64x128xf32>
    %326 = arith.addf %321, %325 : vector<64x128xf32>
    %c1_232 = arith.constant 1 : index
    %c18_233 = arith.constant 18 : index
    %c0_234 = arith.constant 0 : index
    %327 = vector.load %arg1[%c1_232, %c18_233, %c0_234] : memref<2x290x4xf32, #tpu.memory_space<vmem>>, vector<1x64x4xf32>
    %328 = vector.shape_cast %327 : vector<1x64x4xf32> to vector<64x4xf32>
    %329 = vector.broadcast %24 : vector<64x1xf32> to vector<64x4xf32>
    %330 = arith.mulf %328, %329 : vector<64x4xf32>
    %c20_235 = arith.constant 20 : index
    %c0_236 = arith.constant 0 : index
    %331 = vector.load %arg2[%c20_235, %c0_236] : memref<36x128xf32, #tpu.memory_space<vmem>>, vector<4x128xf32>
    %cst_237 = arith.constant dense<0.000000e+00> : vector<64x128xf32>
    %332 = tpu.matmul %330, %331, %cst_237 {dimension_numbers = #tpu.dot_dimension_numbers<[1], [0], [0], [1], [0, 0, 1, 1], [], []>} : vector<64x4xf32>, vector<4x128xf32>, vector<64x128xf32> -> vector<64x128xf32>
    %333 = arith.addf %326, %332 : vector<64x128xf32>
    %c1_238 = arith.constant 1 : index
    %c32_239 = arith.constant 32 : index
    %c0_240 = arith.constant 0 : index
    %334 = vector.load %arg1[%c1_238, %c32_239, %c0_240] : memref<2x290x4xf32, #tpu.memory_space<vmem>>, vector<1x64x4xf32>
    %335 = vector.shape_cast %334 : vector<1x64x4xf32> to vector<64x4xf32>
    %336 = vector.broadcast %20 : vector<64x1xf32> to vector<64x4xf32>
    %337 = arith.mulf %335, %336 : vector<64x4xf32>
    %c24_241 = arith.constant 24 : index
    %c0_242 = arith.constant 0 : index
    %338 = vector.load %arg2[%c24_241, %c0_242] : memref<36x128xf32, #tpu.memory_space<vmem>>, vector<4x128xf32>
    %cst_243 = arith.constant dense<0.000000e+00> : vector<64x128xf32>
    %339 = tpu.matmul %337, %338, %cst_243 {dimension_numbers = #tpu.dot_dimension_numbers<[1], [0], [0], [1], [0, 0, 1, 1], [], []>} : vector<64x4xf32>, vector<4x128xf32>, vector<64x128xf32> -> vector<64x128xf32>
    %340 = arith.addf %333, %339 : vector<64x128xf32>
    %c1_244 = arith.constant 1 : index
    %c33_245 = arith.constant 33 : index
    %c0_246 = arith.constant 0 : index
    %341 = vector.load %arg1[%c1_244, %c33_245, %c0_246] : memref<2x290x4xf32, #tpu.memory_space<vmem>>, vector<1x64x4xf32>
    %342 = vector.shape_cast %341 : vector<1x64x4xf32> to vector<64x4xf32>
    %c28_247 = arith.constant 28 : index
    %c0_248 = arith.constant 0 : index
    %343 = vector.load %arg2[%c28_247, %c0_248] : memref<36x128xf32, #tpu.memory_space<vmem>>, vector<4x128xf32>
    %cst_249 = arith.constant dense<0.000000e+00> : vector<64x128xf32>
    %344 = tpu.matmul %342, %343, %cst_249 {dimension_numbers = #tpu.dot_dimension_numbers<[1], [0], [0], [1], [0, 0, 1, 1], [], []>} : vector<64x4xf32>, vector<4x128xf32>, vector<64x128xf32> -> vector<64x128xf32>
    %345 = arith.addf %340, %344 : vector<64x128xf32>
    %c1_250 = arith.constant 1 : index
    %c34_251 = arith.constant 34 : index
    %c0_252 = arith.constant 0 : index
    %346 = vector.load %arg1[%c1_250, %c34_251, %c0_252] : memref<2x290x4xf32, #tpu.memory_space<vmem>>, vector<1x64x4xf32>
    %347 = vector.shape_cast %346 : vector<1x64x4xf32> to vector<64x4xf32>
    %348 = vector.broadcast %24 : vector<64x1xf32> to vector<64x4xf32>
    %349 = arith.mulf %347, %348 : vector<64x4xf32>
    %c32_253 = arith.constant 32 : index
    %c0_254 = arith.constant 0 : index
    %350 = vector.load %arg2[%c32_253, %c0_254] : memref<36x128xf32, #tpu.memory_space<vmem>>, vector<4x128xf32>
    %cst_255 = arith.constant dense<0.000000e+00> : vector<64x128xf32>
    %351 = tpu.matmul %349, %350, %cst_255 {dimension_numbers = #tpu.dot_dimension_numbers<[1], [0], [0], [1], [0, 0, 1, 1], [], []>} : vector<64x4xf32>, vector<4x128xf32>, vector<64x128xf32> -> vector<64x128xf32>
    %352 = arith.addf %345, %351 : vector<64x128xf32>
    %353 = vector.broadcast %25 : vector<1x128xf32> to vector<64x128xf32>
    %354 = arith.addf %352, %353 : vector<64x128xf32>
    %cst_256 = arith.constant 0.000000e+00 : f32
    %355 = vector.broadcast %cst_256 : f32 to vector<64x128xf32>
    %356 = arith.maximumf %354, %355 : vector<64x128xf32>
    %cst_257 = arith.constant dense<0.000000e+00> : vector<128xf32>
    %357 = vector.multi_reduction <add>, %356, %cst_257 [0] : vector<64x128xf32> to vector<128xf32>
    %358 = vector.shape_cast %357 : vector<128xf32> to vector<1x128xf32>
    %359 = arith.addf %294, %358 : vector<1x128xf32>
    %cst_258 = arith.constant 0.000000e+00 : f32
    %360 = vector.broadcast %cst_258 : f32 to vector<64x128xf32>
    %c1_259 = arith.constant 1 : index
    %c64_260 = arith.constant 64 : index
    %c0_261 = arith.constant 0 : index
    %361 = vector.load %arg1[%c1_259, %c64_260, %c0_261] : memref<2x290x4xf32, #tpu.memory_space<vmem>>, vector<1x64x4xf32>
    %362 = vector.shape_cast %361 : vector<1x64x4xf32> to vector<64x4xf32>
    %363 = vector.broadcast %20 : vector<64x1xf32> to vector<64x4xf32>
    %364 = arith.mulf %362, %363 : vector<64x4xf32>
    %c0_262 = arith.constant 0 : index
    %c0_263 = arith.constant 0 : index
    %365 = vector.load %arg2[%c0_262, %c0_263] : memref<36x128xf32, #tpu.memory_space<vmem>>, vector<4x128xf32>
    %cst_264 = arith.constant dense<0.000000e+00> : vector<64x128xf32>
    %366 = tpu.matmul %364, %365, %cst_264 {dimension_numbers = #tpu.dot_dimension_numbers<[1], [0], [0], [1], [0, 0, 1, 1], [], []>} : vector<64x4xf32>, vector<4x128xf32>, vector<64x128xf32> -> vector<64x128xf32>
    %367 = arith.addf %360, %366 : vector<64x128xf32>
    %c1_265 = arith.constant 1 : index
    %c65_266 = arith.constant 65 : index
    %c0_267 = arith.constant 0 : index
    %368 = vector.load %arg1[%c1_265, %c65_266, %c0_267] : memref<2x290x4xf32, #tpu.memory_space<vmem>>, vector<1x64x4xf32>
    %369 = vector.shape_cast %368 : vector<1x64x4xf32> to vector<64x4xf32>
    %c4_268 = arith.constant 4 : index
    %c0_269 = arith.constant 0 : index
    %370 = vector.load %arg2[%c4_268, %c0_269] : memref<36x128xf32, #tpu.memory_space<vmem>>, vector<4x128xf32>
    %cst_270 = arith.constant dense<0.000000e+00> : vector<64x128xf32>
    %371 = tpu.matmul %369, %370, %cst_270 {dimension_numbers = #tpu.dot_dimension_numbers<[1], [0], [0], [1], [0, 0, 1, 1], [], []>} : vector<64x4xf32>, vector<4x128xf32>, vector<64x128xf32> -> vector<64x128xf32>
    %372 = arith.addf %367, %371 : vector<64x128xf32>
    %c1_271 = arith.constant 1 : index
    %c66_272 = arith.constant 66 : index
    %c0_273 = arith.constant 0 : index
    %373 = vector.load %arg1[%c1_271, %c66_272, %c0_273] : memref<2x290x4xf32, #tpu.memory_space<vmem>>, vector<1x64x4xf32>
    %374 = vector.shape_cast %373 : vector<1x64x4xf32> to vector<64x4xf32>
    %375 = vector.broadcast %24 : vector<64x1xf32> to vector<64x4xf32>
    %376 = arith.mulf %374, %375 : vector<64x4xf32>
    %c8_274 = arith.constant 8 : index
    %c0_275 = arith.constant 0 : index
    %377 = vector.load %arg2[%c8_274, %c0_275] : memref<36x128xf32, #tpu.memory_space<vmem>>, vector<4x128xf32>
    %cst_276 = arith.constant dense<0.000000e+00> : vector<64x128xf32>
    %378 = tpu.matmul %376, %377, %cst_276 {dimension_numbers = #tpu.dot_dimension_numbers<[1], [0], [0], [1], [0, 0, 1, 1], [], []>} : vector<64x4xf32>, vector<4x128xf32>, vector<64x128xf32> -> vector<64x128xf32>
    %379 = arith.addf %372, %378 : vector<64x128xf32>
    %c1_277 = arith.constant 1 : index
    %c80_278 = arith.constant 80 : index
    %c0_279 = arith.constant 0 : index
    %380 = vector.load %arg1[%c1_277, %c80_278, %c0_279] : memref<2x290x4xf32, #tpu.memory_space<vmem>>, vector<1x64x4xf32>
    %381 = vector.shape_cast %380 : vector<1x64x4xf32> to vector<64x4xf32>
    %382 = vector.broadcast %20 : vector<64x1xf32> to vector<64x4xf32>
    %383 = arith.mulf %381, %382 : vector<64x4xf32>
    %c12_280 = arith.constant 12 : index
    %c0_281 = arith.constant 0 : index
    %384 = vector.load %arg2[%c12_280, %c0_281] : memref<36x128xf32, #tpu.memory_space<vmem>>, vector<4x128xf32>
    %cst_282 = arith.constant dense<0.000000e+00> : vector<64x128xf32>
    %385 = tpu.matmul %383, %384, %cst_282 {dimension_numbers = #tpu.dot_dimension_numbers<[1], [0], [0], [1], [0, 0, 1, 1], [], []>} : vector<64x4xf32>, vector<4x128xf32>, vector<64x128xf32> -> vector<64x128xf32>
    %386 = arith.addf %379, %385 : vector<64x128xf32>
    %c1_283 = arith.constant 1 : index
    %c81_284 = arith.constant 81 : index
    %c0_285 = arith.constant 0 : index
    %387 = vector.load %arg1[%c1_283, %c81_284, %c0_285] : memref<2x290x4xf32, #tpu.memory_space<vmem>>, vector<1x64x4xf32>
    %388 = vector.shape_cast %387 : vector<1x64x4xf32> to vector<64x4xf32>
    %c16_286 = arith.constant 16 : index
    %c0_287 = arith.constant 0 : index
    %389 = vector.load %arg2[%c16_286, %c0_287] : memref<36x128xf32, #tpu.memory_space<vmem>>, vector<4x128xf32>
    %cst_288 = arith.constant dense<0.000000e+00> : vector<64x128xf32>
    %390 = tpu.matmul %388, %389, %cst_288 {dimension_numbers = #tpu.dot_dimension_numbers<[1], [0], [0], [1], [0, 0, 1, 1], [], []>} : vector<64x4xf32>, vector<4x128xf32>, vector<64x128xf32> -> vector<64x128xf32>
    %391 = arith.addf %386, %390 : vector<64x128xf32>
    %c1_289 = arith.constant 1 : index
    %c82_290 = arith.constant 82 : index
    %c0_291 = arith.constant 0 : index
    %392 = vector.load %arg1[%c1_289, %c82_290, %c0_291] : memref<2x290x4xf32, #tpu.memory_space<vmem>>, vector<1x64x4xf32>
    %393 = vector.shape_cast %392 : vector<1x64x4xf32> to vector<64x4xf32>
    %394 = vector.broadcast %24 : vector<64x1xf32> to vector<64x4xf32>
    %395 = arith.mulf %393, %394 : vector<64x4xf32>
    %c20_292 = arith.constant 20 : index
    %c0_293 = arith.constant 0 : index
    %396 = vector.load %arg2[%c20_292, %c0_293] : memref<36x128xf32, #tpu.memory_space<vmem>>, vector<4x128xf32>
    %cst_294 = arith.constant dense<0.000000e+00> : vector<64x128xf32>
    %397 = tpu.matmul %395, %396, %cst_294 {dimension_numbers = #tpu.dot_dimension_numbers<[1], [0], [0], [1], [0, 0, 1, 1], [], []>} : vector<64x4xf32>, vector<4x128xf32>, vector<64x128xf32> -> vector<64x128xf32>
    %398 = arith.addf %391, %397 : vector<64x128xf32>
    %c1_295 = arith.constant 1 : index
    %c96_296 = arith.constant 96 : index
    %c0_297 = arith.constant 0 : index
    %399 = vector.load %arg1[%c1_295, %c96_296, %c0_297] : memref<2x290x4xf32, #tpu.memory_space<vmem>>, vector<1x64x4xf32>
    %400 = vector.shape_cast %399 : vector<1x64x4xf32> to vector<64x4xf32>
    %401 = vector.broadcast %20 : vector<64x1xf32> to vector<64x4xf32>
    %402 = arith.mulf %400, %401 : vector<64x4xf32>
    %c24_298 = arith.constant 24 : index
    %c0_299 = arith.constant 0 : index
    %403 = vector.load %arg2[%c24_298, %c0_299] : memref<36x128xf32, #tpu.memory_space<vmem>>, vector<4x128xf32>
    %cst_300 = arith.constant dense<0.000000e+00> : vector<64x128xf32>
    %404 = tpu.matmul %402, %403, %cst_300 {dimension_numbers = #tpu.dot_dimension_numbers<[1], [0], [0], [1], [0, 0, 1, 1], [], []>} : vector<64x4xf32>, vector<4x128xf32>, vector<64x128xf32> -> vector<64x128xf32>
    %405 = arith.addf %398, %404 : vector<64x128xf32>
    %c1_301 = arith.constant 1 : index
    %c97_302 = arith.constant 97 : index
    %c0_303 = arith.constant 0 : index
    %406 = vector.load %arg1[%c1_301, %c97_302, %c0_303] : memref<2x290x4xf32, #tpu.memory_space<vmem>>, vector<1x64x4xf32>
    %407 = vector.shape_cast %406 : vector<1x64x4xf32> to vector<64x4xf32>
    %c28_304 = arith.constant 28 : index
    %c0_305 = arith.constant 0 : index
    %408 = vector.load %arg2[%c28_304, %c0_305] : memref<36x128xf32, #tpu.memory_space<vmem>>, vector<4x128xf32>
    %cst_306 = arith.constant dense<0.000000e+00> : vector<64x128xf32>
    %409 = tpu.matmul %407, %408, %cst_306 {dimension_numbers = #tpu.dot_dimension_numbers<[1], [0], [0], [1], [0, 0, 1, 1], [], []>} : vector<64x4xf32>, vector<4x128xf32>, vector<64x128xf32> -> vector<64x128xf32>
    %410 = arith.addf %405, %409 : vector<64x128xf32>
    %c1_307 = arith.constant 1 : index
    %c98_308 = arith.constant 98 : index
    %c0_309 = arith.constant 0 : index
    %411 = vector.load %arg1[%c1_307, %c98_308, %c0_309] : memref<2x290x4xf32, #tpu.memory_space<vmem>>, vector<1x64x4xf32>
    %412 = vector.shape_cast %411 : vector<1x64x4xf32> to vector<64x4xf32>
    %413 = vector.broadcast %24 : vector<64x1xf32> to vector<64x4xf32>
    %414 = arith.mulf %412, %413 : vector<64x4xf32>
    %c32_310 = arith.constant 32 : index
    %c0_311 = arith.constant 0 : index
    %415 = vector.load %arg2[%c32_310, %c0_311] : memref<36x128xf32, #tpu.memory_space<vmem>>, vector<4x128xf32>
    %cst_312 = arith.constant dense<0.000000e+00> : vector<64x128xf32>
    %416 = tpu.matmul %414, %415, %cst_312 {dimension_numbers = #tpu.dot_dimension_numbers<[1], [0], [0], [1], [0, 0, 1, 1], [], []>} : vector<64x4xf32>, vector<4x128xf32>, vector<64x128xf32> -> vector<64x128xf32>
    %417 = arith.addf %410, %416 : vector<64x128xf32>
    %418 = vector.broadcast %25 : vector<1x128xf32> to vector<64x128xf32>
    %419 = arith.addf %417, %418 : vector<64x128xf32>
    %cst_313 = arith.constant 0.000000e+00 : f32
    %420 = vector.broadcast %cst_313 : f32 to vector<64x128xf32>
    %421 = arith.maximumf %419, %420 : vector<64x128xf32>
    %cst_314 = arith.constant dense<0.000000e+00> : vector<128xf32>
    %422 = vector.multi_reduction <add>, %421, %cst_314 [0] : vector<64x128xf32> to vector<128xf32>
    %423 = vector.shape_cast %422 : vector<128xf32> to vector<1x128xf32>
    %424 = arith.addf %359, %423 : vector<1x128xf32>
    %cst_315 = arith.constant 0.000000e+00 : f32
    %425 = vector.broadcast %cst_315 : f32 to vector<64x128xf32>
    %c1_316 = arith.constant 1 : index
    %c128_317 = arith.constant 128 : index
    %c0_318 = arith.constant 0 : index
    %426 = vector.load %arg1[%c1_316, %c128_317, %c0_318] : memref<2x290x4xf32, #tpu.memory_space<vmem>>, vector<1x64x4xf32>
    %427 = vector.shape_cast %426 : vector<1x64x4xf32> to vector<64x4xf32>
    %428 = vector.broadcast %20 : vector<64x1xf32> to vector<64x4xf32>
    %429 = arith.mulf %427, %428 : vector<64x4xf32>
    %c0_319 = arith.constant 0 : index
    %c0_320 = arith.constant 0 : index
    %430 = vector.load %arg2[%c0_319, %c0_320] : memref<36x128xf32, #tpu.memory_space<vmem>>, vector<4x128xf32>
    %cst_321 = arith.constant dense<0.000000e+00> : vector<64x128xf32>
    %431 = tpu.matmul %429, %430, %cst_321 {dimension_numbers = #tpu.dot_dimension_numbers<[1], [0], [0], [1], [0, 0, 1, 1], [], []>} : vector<64x4xf32>, vector<4x128xf32>, vector<64x128xf32> -> vector<64x128xf32>
    %432 = arith.addf %425, %431 : vector<64x128xf32>
    %c1_322 = arith.constant 1 : index
    %c129_323 = arith.constant 129 : index
    %c0_324 = arith.constant 0 : index
    %433 = vector.load %arg1[%c1_322, %c129_323, %c0_324] : memref<2x290x4xf32, #tpu.memory_space<vmem>>, vector<1x64x4xf32>
    %434 = vector.shape_cast %433 : vector<1x64x4xf32> to vector<64x4xf32>
    %c4_325 = arith.constant 4 : index
    %c0_326 = arith.constant 0 : index
    %435 = vector.load %arg2[%c4_325, %c0_326] : memref<36x128xf32, #tpu.memory_space<vmem>>, vector<4x128xf32>
    %cst_327 = arith.constant dense<0.000000e+00> : vector<64x128xf32>
    %436 = tpu.matmul %434, %435, %cst_327 {dimension_numbers = #tpu.dot_dimension_numbers<[1], [0], [0], [1], [0, 0, 1, 1], [], []>} : vector<64x4xf32>, vector<4x128xf32>, vector<64x128xf32> -> vector<64x128xf32>
    %437 = arith.addf %432, %436 : vector<64x128xf32>
    %c1_328 = arith.constant 1 : index
    %c130_329 = arith.constant 130 : index
    %c0_330 = arith.constant 0 : index
    %438 = vector.load %arg1[%c1_328, %c130_329, %c0_330] : memref<2x290x4xf32, #tpu.memory_space<vmem>>, vector<1x64x4xf32>
    %439 = vector.shape_cast %438 : vector<1x64x4xf32> to vector<64x4xf32>
    %440 = vector.broadcast %24 : vector<64x1xf32> to vector<64x4xf32>
    %441 = arith.mulf %439, %440 : vector<64x4xf32>
    %c8_331 = arith.constant 8 : index
    %c0_332 = arith.constant 0 : index
    %442 = vector.load %arg2[%c8_331, %c0_332] : memref<36x128xf32, #tpu.memory_space<vmem>>, vector<4x128xf32>
    %cst_333 = arith.constant dense<0.000000e+00> : vector<64x128xf32>
    %443 = tpu.matmul %441, %442, %cst_333 {dimension_numbers = #tpu.dot_dimension_numbers<[1], [0], [0], [1], [0, 0, 1, 1], [], []>} : vector<64x4xf32>, vector<4x128xf32>, vector<64x128xf32> -> vector<64x128xf32>
    %444 = arith.addf %437, %443 : vector<64x128xf32>
    %c1_334 = arith.constant 1 : index
    %c144_335 = arith.constant 144 : index
    %c0_336 = arith.constant 0 : index
    %445 = vector.load %arg1[%c1_334, %c144_335, %c0_336] : memref<2x290x4xf32, #tpu.memory_space<vmem>>, vector<1x64x4xf32>
    %446 = vector.shape_cast %445 : vector<1x64x4xf32> to vector<64x4xf32>
    %447 = vector.broadcast %20 : vector<64x1xf32> to vector<64x4xf32>
    %448 = arith.mulf %446, %447 : vector<64x4xf32>
    %c12_337 = arith.constant 12 : index
    %c0_338 = arith.constant 0 : index
    %449 = vector.load %arg2[%c12_337, %c0_338] : memref<36x128xf32, #tpu.memory_space<vmem>>, vector<4x128xf32>
    %cst_339 = arith.constant dense<0.000000e+00> : vector<64x128xf32>
    %450 = tpu.matmul %448, %449, %cst_339 {dimension_numbers = #tpu.dot_dimension_numbers<[1], [0], [0], [1], [0, 0, 1, 1], [], []>} : vector<64x4xf32>, vector<4x128xf32>, vector<64x128xf32> -> vector<64x128xf32>
    %451 = arith.addf %444, %450 : vector<64x128xf32>
    %c1_340 = arith.constant 1 : index
    %c145_341 = arith.constant 145 : index
    %c0_342 = arith.constant 0 : index
    %452 = vector.load %arg1[%c1_340, %c145_341, %c0_342] : memref<2x290x4xf32, #tpu.memory_space<vmem>>, vector<1x64x4xf32>
    %453 = vector.shape_cast %452 : vector<1x64x4xf32> to vector<64x4xf32>
    %c16_343 = arith.constant 16 : index
    %c0_344 = arith.constant 0 : index
    %454 = vector.load %arg2[%c16_343, %c0_344] : memref<36x128xf32, #tpu.memory_space<vmem>>, vector<4x128xf32>
    %cst_345 = arith.constant dense<0.000000e+00> : vector<64x128xf32>
    %455 = tpu.matmul %453, %454, %cst_345 {dimension_numbers = #tpu.dot_dimension_numbers<[1], [0], [0], [1], [0, 0, 1, 1], [], []>} : vector<64x4xf32>, vector<4x128xf32>, vector<64x128xf32> -> vector<64x128xf32>
    %456 = arith.addf %451, %455 : vector<64x128xf32>
    %c1_346 = arith.constant 1 : index
    %c146_347 = arith.constant 146 : index
    %c0_348 = arith.constant 0 : index
    %457 = vector.load %arg1[%c1_346, %c146_347, %c0_348] : memref<2x290x4xf32, #tpu.memory_space<vmem>>, vector<1x64x4xf32>
    %458 = vector.shape_cast %457 : vector<1x64x4xf32> to vector<64x4xf32>
    %459 = vector.broadcast %24 : vector<64x1xf32> to vector<64x4xf32>
    %460 = arith.mulf %458, %459 : vector<64x4xf32>
    %c20_349 = arith.constant 20 : index
    %c0_350 = arith.constant 0 : index
    %461 = vector.load %arg2[%c20_349, %c0_350] : memref<36x128xf32, #tpu.memory_space<vmem>>, vector<4x128xf32>
    %cst_351 = arith.constant dense<0.000000e+00> : vector<64x128xf32>
    %462 = tpu.matmul %460, %461, %cst_351 {dimension_numbers = #tpu.dot_dimension_numbers<[1], [0], [0], [1], [0, 0, 1, 1], [], []>} : vector<64x4xf32>, vector<4x128xf32>, vector<64x128xf32> -> vector<64x128xf32>
    %463 = arith.addf %456, %462 : vector<64x128xf32>
    %c1_352 = arith.constant 1 : index
    %c160_353 = arith.constant 160 : index
    %c0_354 = arith.constant 0 : index
    %464 = vector.load %arg1[%c1_352, %c160_353, %c0_354] : memref<2x290x4xf32, #tpu.memory_space<vmem>>, vector<1x64x4xf32>
    %465 = vector.shape_cast %464 : vector<1x64x4xf32> to vector<64x4xf32>
    %466 = vector.broadcast %20 : vector<64x1xf32> to vector<64x4xf32>
    %467 = arith.mulf %465, %466 : vector<64x4xf32>
    %c24_355 = arith.constant 24 : index
    %c0_356 = arith.constant 0 : index
    %468 = vector.load %arg2[%c24_355, %c0_356] : memref<36x128xf32, #tpu.memory_space<vmem>>, vector<4x128xf32>
    %cst_357 = arith.constant dense<0.000000e+00> : vector<64x128xf32>
    %469 = tpu.matmul %467, %468, %cst_357 {dimension_numbers = #tpu.dot_dimension_numbers<[1], [0], [0], [1], [0, 0, 1, 1], [], []>} : vector<64x4xf32>, vector<4x128xf32>, vector<64x128xf32> -> vector<64x128xf32>
    %470 = arith.addf %463, %469 : vector<64x128xf32>
    %c1_358 = arith.constant 1 : index
    %c161_359 = arith.constant 161 : index
    %c0_360 = arith.constant 0 : index
    %471 = vector.load %arg1[%c1_358, %c161_359, %c0_360] : memref<2x290x4xf32, #tpu.memory_space<vmem>>, vector<1x64x4xf32>
    %472 = vector.shape_cast %471 : vector<1x64x4xf32> to vector<64x4xf32>
    %c28_361 = arith.constant 28 : index
    %c0_362 = arith.constant 0 : index
    %473 = vector.load %arg2[%c28_361, %c0_362] : memref<36x128xf32, #tpu.memory_space<vmem>>, vector<4x128xf32>
    %cst_363 = arith.constant dense<0.000000e+00> : vector<64x128xf32>
    %474 = tpu.matmul %472, %473, %cst_363 {dimension_numbers = #tpu.dot_dimension_numbers<[1], [0], [0], [1], [0, 0, 1, 1], [], []>} : vector<64x4xf32>, vector<4x128xf32>, vector<64x128xf32> -> vector<64x128xf32>
    %475 = arith.addf %470, %474 : vector<64x128xf32>
    %c1_364 = arith.constant 1 : index
    %c162_365 = arith.constant 162 : index
    %c0_366 = arith.constant 0 : index
    %476 = vector.load %arg1[%c1_364, %c162_365, %c0_366] : memref<2x290x4xf32, #tpu.memory_space<vmem>>, vector<1x64x4xf32>
    %477 = vector.shape_cast %476 : vector<1x64x4xf32> to vector<64x4xf32>
    %478 = vector.broadcast %24 : vector<64x1xf32> to vector<64x4xf32>
    %479 = arith.mulf %477, %478 : vector<64x4xf32>
    %c32_367 = arith.constant 32 : index
    %c0_368 = arith.constant 0 : index
    %480 = vector.load %arg2[%c32_367, %c0_368] : memref<36x128xf32, #tpu.memory_space<vmem>>, vector<4x128xf32>
    %cst_369 = arith.constant dense<0.000000e+00> : vector<64x128xf32>
    %481 = tpu.matmul %479, %480, %cst_369 {dimension_numbers = #tpu.dot_dimension_numbers<[1], [0], [0], [1], [0, 0, 1, 1], [], []>} : vector<64x4xf32>, vector<4x128xf32>, vector<64x128xf32> -> vector<64x128xf32>
    %482 = arith.addf %475, %481 : vector<64x128xf32>
    %483 = vector.broadcast %25 : vector<1x128xf32> to vector<64x128xf32>
    %484 = arith.addf %482, %483 : vector<64x128xf32>
    %cst_370 = arith.constant 0.000000e+00 : f32
    %485 = vector.broadcast %cst_370 : f32 to vector<64x128xf32>
    %486 = arith.maximumf %484, %485 : vector<64x128xf32>
    %cst_371 = arith.constant dense<0.000000e+00> : vector<128xf32>
    %487 = vector.multi_reduction <add>, %486, %cst_371 [0] : vector<64x128xf32> to vector<128xf32>
    %488 = vector.shape_cast %487 : vector<128xf32> to vector<1x128xf32>
    %489 = arith.addf %424, %488 : vector<1x128xf32>
    %cst_372 = arith.constant 0.000000e+00 : f32
    %490 = vector.broadcast %cst_372 : f32 to vector<64x128xf32>
    %c1_373 = arith.constant 1 : index
    %c192_374 = arith.constant 192 : index
    %c0_375 = arith.constant 0 : index
    %491 = vector.load %arg1[%c1_373, %c192_374, %c0_375] : memref<2x290x4xf32, #tpu.memory_space<vmem>>, vector<1x64x4xf32>
    %492 = vector.shape_cast %491 : vector<1x64x4xf32> to vector<64x4xf32>
    %493 = vector.broadcast %20 : vector<64x1xf32> to vector<64x4xf32>
    %494 = arith.mulf %492, %493 : vector<64x4xf32>
    %c0_376 = arith.constant 0 : index
    %c0_377 = arith.constant 0 : index
    %495 = vector.load %arg2[%c0_376, %c0_377] : memref<36x128xf32, #tpu.memory_space<vmem>>, vector<4x128xf32>
    %cst_378 = arith.constant dense<0.000000e+00> : vector<64x128xf32>
    %496 = tpu.matmul %494, %495, %cst_378 {dimension_numbers = #tpu.dot_dimension_numbers<[1], [0], [0], [1], [0, 0, 1, 1], [], []>} : vector<64x4xf32>, vector<4x128xf32>, vector<64x128xf32> -> vector<64x128xf32>
    %497 = arith.addf %490, %496 : vector<64x128xf32>
    %c1_379 = arith.constant 1 : index
    %c193_380 = arith.constant 193 : index
    %c0_381 = arith.constant 0 : index
    %498 = vector.load %arg1[%c1_379, %c193_380, %c0_381] : memref<2x290x4xf32, #tpu.memory_space<vmem>>, vector<1x64x4xf32>
    %499 = vector.shape_cast %498 : vector<1x64x4xf32> to vector<64x4xf32>
    %c4_382 = arith.constant 4 : index
    %c0_383 = arith.constant 0 : index
    %500 = vector.load %arg2[%c4_382, %c0_383] : memref<36x128xf32, #tpu.memory_space<vmem>>, vector<4x128xf32>
    %cst_384 = arith.constant dense<0.000000e+00> : vector<64x128xf32>
    %501 = tpu.matmul %499, %500, %cst_384 {dimension_numbers = #tpu.dot_dimension_numbers<[1], [0], [0], [1], [0, 0, 1, 1], [], []>} : vector<64x4xf32>, vector<4x128xf32>, vector<64x128xf32> -> vector<64x128xf32>
    %502 = arith.addf %497, %501 : vector<64x128xf32>
    %c1_385 = arith.constant 1 : index
    %c194_386 = arith.constant 194 : index
    %c0_387 = arith.constant 0 : index
    %503 = vector.load %arg1[%c1_385, %c194_386, %c0_387] : memref<2x290x4xf32, #tpu.memory_space<vmem>>, vector<1x64x4xf32>
    %504 = vector.shape_cast %503 : vector<1x64x4xf32> to vector<64x4xf32>
    %505 = vector.broadcast %24 : vector<64x1xf32> to vector<64x4xf32>
    %506 = arith.mulf %504, %505 : vector<64x4xf32>
    %c8_388 = arith.constant 8 : index
    %c0_389 = arith.constant 0 : index
    %507 = vector.load %arg2[%c8_388, %c0_389] : memref<36x128xf32, #tpu.memory_space<vmem>>, vector<4x128xf32>
    %cst_390 = arith.constant dense<0.000000e+00> : vector<64x128xf32>
    %508 = tpu.matmul %506, %507, %cst_390 {dimension_numbers = #tpu.dot_dimension_numbers<[1], [0], [0], [1], [0, 0, 1, 1], [], []>} : vector<64x4xf32>, vector<4x128xf32>, vector<64x128xf32> -> vector<64x128xf32>
    %509 = arith.addf %502, %508 : vector<64x128xf32>
    %c1_391 = arith.constant 1 : index
    %c208_392 = arith.constant 208 : index
    %c0_393 = arith.constant 0 : index
    %510 = vector.load %arg1[%c1_391, %c208_392, %c0_393] : memref<2x290x4xf32, #tpu.memory_space<vmem>>, vector<1x64x4xf32>
    %511 = vector.shape_cast %510 : vector<1x64x4xf32> to vector<64x4xf32>
    %512 = vector.broadcast %20 : vector<64x1xf32> to vector<64x4xf32>
    %513 = arith.mulf %511, %512 : vector<64x4xf32>
    %c12_394 = arith.constant 12 : index
    %c0_395 = arith.constant 0 : index
    %514 = vector.load %arg2[%c12_394, %c0_395] : memref<36x128xf32, #tpu.memory_space<vmem>>, vector<4x128xf32>
    %cst_396 = arith.constant dense<0.000000e+00> : vector<64x128xf32>
    %515 = tpu.matmul %513, %514, %cst_396 {dimension_numbers = #tpu.dot_dimension_numbers<[1], [0], [0], [1], [0, 0, 1, 1], [], []>} : vector<64x4xf32>, vector<4x128xf32>, vector<64x128xf32> -> vector<64x128xf32>
    %516 = arith.addf %509, %515 : vector<64x128xf32>
    %c1_397 = arith.constant 1 : index
    %c209_398 = arith.constant 209 : index
    %c0_399 = arith.constant 0 : index
    %517 = vector.load %arg1[%c1_397, %c209_398, %c0_399] : memref<2x290x4xf32, #tpu.memory_space<vmem>>, vector<1x64x4xf32>
    %518 = vector.shape_cast %517 : vector<1x64x4xf32> to vector<64x4xf32>
    %c16_400 = arith.constant 16 : index
    %c0_401 = arith.constant 0 : index
    %519 = vector.load %arg2[%c16_400, %c0_401] : memref<36x128xf32, #tpu.memory_space<vmem>>, vector<4x128xf32>
    %cst_402 = arith.constant dense<0.000000e+00> : vector<64x128xf32>
    %520 = tpu.matmul %518, %519, %cst_402 {dimension_numbers = #tpu.dot_dimension_numbers<[1], [0], [0], [1], [0, 0, 1, 1], [], []>} : vector<64x4xf32>, vector<4x128xf32>, vector<64x128xf32> -> vector<64x128xf32>
    %521 = arith.addf %516, %520 : vector<64x128xf32>
    %c1_403 = arith.constant 1 : index
    %c210_404 = arith.constant 210 : index
    %c0_405 = arith.constant 0 : index
    %522 = vector.load %arg1[%c1_403, %c210_404, %c0_405] : memref<2x290x4xf32, #tpu.memory_space<vmem>>, vector<1x64x4xf32>
    %523 = vector.shape_cast %522 : vector<1x64x4xf32> to vector<64x4xf32>
    %524 = vector.broadcast %24 : vector<64x1xf32> to vector<64x4xf32>
    %525 = arith.mulf %523, %524 : vector<64x4xf32>
    %c20_406 = arith.constant 20 : index
    %c0_407 = arith.constant 0 : index
    %526 = vector.load %arg2[%c20_406, %c0_407] : memref<36x128xf32, #tpu.memory_space<vmem>>, vector<4x128xf32>
    %cst_408 = arith.constant dense<0.000000e+00> : vector<64x128xf32>
    %527 = tpu.matmul %525, %526, %cst_408 {dimension_numbers = #tpu.dot_dimension_numbers<[1], [0], [0], [1], [0, 0, 1, 1], [], []>} : vector<64x4xf32>, vector<4x128xf32>, vector<64x128xf32> -> vector<64x128xf32>
    %528 = arith.addf %521, %527 : vector<64x128xf32>
    %c1_409 = arith.constant 1 : index
    %c224_410 = arith.constant 224 : index
    %c0_411 = arith.constant 0 : index
    %529 = vector.load %arg1[%c1_409, %c224_410, %c0_411] : memref<2x290x4xf32, #tpu.memory_space<vmem>>, vector<1x64x4xf32>
    %530 = vector.shape_cast %529 : vector<1x64x4xf32> to vector<64x4xf32>
    %531 = vector.broadcast %20 : vector<64x1xf32> to vector<64x4xf32>
    %532 = arith.mulf %530, %531 : vector<64x4xf32>
    %c24_412 = arith.constant 24 : index
    %c0_413 = arith.constant 0 : index
    %533 = vector.load %arg2[%c24_412, %c0_413] : memref<36x128xf32, #tpu.memory_space<vmem>>, vector<4x128xf32>
    %cst_414 = arith.constant dense<0.000000e+00> : vector<64x128xf32>
    %534 = tpu.matmul %532, %533, %cst_414 {dimension_numbers = #tpu.dot_dimension_numbers<[1], [0], [0], [1], [0, 0, 1, 1], [], []>} : vector<64x4xf32>, vector<4x128xf32>, vector<64x128xf32> -> vector<64x128xf32>
    %535 = arith.addf %528, %534 : vector<64x128xf32>
    %c1_415 = arith.constant 1 : index
    %c225_416 = arith.constant 225 : index
    %c0_417 = arith.constant 0 : index
    %536 = vector.load %arg1[%c1_415, %c225_416, %c0_417] : memref<2x290x4xf32, #tpu.memory_space<vmem>>, vector<1x64x4xf32>
    %537 = vector.shape_cast %536 : vector<1x64x4xf32> to vector<64x4xf32>
    %c28_418 = arith.constant 28 : index
    %c0_419 = arith.constant 0 : index
    %538 = vector.load %arg2[%c28_418, %c0_419] : memref<36x128xf32, #tpu.memory_space<vmem>>, vector<4x128xf32>
    %cst_420 = arith.constant dense<0.000000e+00> : vector<64x128xf32>
    %539 = tpu.matmul %537, %538, %cst_420 {dimension_numbers = #tpu.dot_dimension_numbers<[1], [0], [0], [1], [0, 0, 1, 1], [], []>} : vector<64x4xf32>, vector<4x128xf32>, vector<64x128xf32> -> vector<64x128xf32>
    %540 = arith.addf %535, %539 : vector<64x128xf32>
    %c1_421 = arith.constant 1 : index
    %c226_422 = arith.constant 226 : index
    %c0_423 = arith.constant 0 : index
    %541 = vector.load %arg1[%c1_421, %c226_422, %c0_423] : memref<2x290x4xf32, #tpu.memory_space<vmem>>, vector<1x64x4xf32>
    %542 = vector.shape_cast %541 : vector<1x64x4xf32> to vector<64x4xf32>
    %543 = vector.broadcast %24 : vector<64x1xf32> to vector<64x4xf32>
    %544 = arith.mulf %542, %543 : vector<64x4xf32>
    %c32_424 = arith.constant 32 : index
    %c0_425 = arith.constant 0 : index
    %545 = vector.load %arg2[%c32_424, %c0_425] : memref<36x128xf32, #tpu.memory_space<vmem>>, vector<4x128xf32>
    %cst_426 = arith.constant dense<0.000000e+00> : vector<64x128xf32>
    %546 = tpu.matmul %544, %545, %cst_426 {dimension_numbers = #tpu.dot_dimension_numbers<[1], [0], [0], [1], [0, 0, 1, 1], [], []>} : vector<64x4xf32>, vector<4x128xf32>, vector<64x128xf32> -> vector<64x128xf32>
    %547 = arith.addf %540, %546 : vector<64x128xf32>
    %548 = vector.broadcast %25 : vector<1x128xf32> to vector<64x128xf32>
    %549 = arith.addf %547, %548 : vector<64x128xf32>
    %cst_427 = arith.constant 0.000000e+00 : f32
    %550 = vector.broadcast %cst_427 : f32 to vector<64x128xf32>
    %551 = arith.maximumf %549, %550 : vector<64x128xf32>
    %cst_428 = arith.constant dense<0.000000e+00> : vector<128xf32>
    %552 = vector.multi_reduction <add>, %551, %cst_428 [0] : vector<64x128xf32> to vector<128xf32>
    %553 = vector.shape_cast %552 : vector<128xf32> to vector<1x128xf32>
    %554 = arith.addf %489, %553 : vector<1x128xf32>
    %cst_429 = arith.constant 3.906250e-03 : f32
    %555 = vector.broadcast %cst_429 : f32 to vector<1x128xf32>
    %556 = arith.mulf %554, %555 : vector<1x128xf32>
    %c0_430 = arith.constant 0 : index
    %c0_431 = arith.constant 0 : index
    %557 = vector.load %arg4[%c0_430, %c0_431] : memref<128x32xf32, #tpu.memory_space<vmem>>, vector<128x32xf32>
    %cst_432 = arith.constant dense<0.000000e+00> : vector<1x32xf32>
    %558 = tpu.matmul %556, %557, %cst_432 {dimension_numbers = #tpu.dot_dimension_numbers<[1], [0], [0], [1], [0, 0, 1, 1], [], []>} : vector<1x128xf32>, vector<128x32xf32>, vector<1x32xf32> -> vector<1x32xf32>
    %c0_433 = arith.constant 0 : index
    %c0_434 = arith.constant 0 : index
    %559 = vector.load %arg5[%c0_433, %c0_434] : memref<1x32xf32, #tpu.memory_space<vmem>>, vector<1x32xf32>
    %560 = arith.addf %558, %559 : vector<1x32xf32>
    %c1_435 = arith.constant 1 : index
    %c0_436 = arith.constant 0 : index
    %561 = vector.load %arg6[%c1_435, %c0_436] : memref<2x32xf32, #tpu.memory_space<vmem>>, vector<1x32xf32>
    tpu.vector_store %arg6[%c1_435, %c0_436], %560 {strides = array<i32>} : memref<2x32xf32, #tpu.memory_space<vmem>>, vector<1x32xf32>,
    return
  }
  func.func @transform_0(%arg0: i32) -> (i32, i32, i32) {
    %c0_i32 = arith.constant 0 : i32
    %c0_i32_0 = arith.constant 0 : i32
    %c0_i32_1 = arith.constant 0 : i32
    %c0_i32_2 = arith.constant 0 : i32
    return %c0_i32, %c0_i32_0, %c0_i32_1 : i32, i32, i32
  }
  func.func @transform_1(%arg0: i32) -> (i32, i32) {
    %c0_i32 = arith.constant 0 : i32
    %c0_i32_0 = arith.constant 0 : i32
    %c0_i32_1 = arith.constant 0 : i32
    return %c0_i32, %c0_i32_0 : i32, i32
  }
  func.func @transform_2(%arg0: i32) -> (i32, i32) {
    %c0_i32 = arith.constant 0 : i32
    %c0_i32_0 = arith.constant 0 : i32
    %c0_i32_1 = arith.constant 0 : i32
    return %c0_i32, %c0_i32_0 : i32, i32
  }
  func.func @transform_3(%arg0: i32) -> (i32, i32) {
    %c0_i32 = arith.constant 0 : i32
    %c0_i32_0 = arith.constant 0 : i32
    %c0_i32_1 = arith.constant 0 : i32
    return %c0_i32, %c0_i32_0 : i32, i32
  }
  func.func @transform_4(%arg0: i32) -> (i32, i32) {
    %c0_i32 = arith.constant 0 : i32
    %c0_i32_0 = arith.constant 0 : i32
    %c0_i32_1 = arith.constant 0 : i32
    return %c0_i32, %c0_i32_0 : i32, i32
  }
  func.func @transform_5(%arg0: i32) -> (i32, i32) {
    %c0_i32 = arith.constant 0 : i32
    %c0_i32_0 = arith.constant 0 : i32
    %c0_i32_1 = arith.constant 0 : i32
    return %c0_i32, %c0_i32_0 : i32, i32
  }
}

</mosaic_0001>

<llo_original>
// kernel: tpu_custom_call.1
$region0: #{tpu_custom_call.1}
  #allocation0 [shape = 'u32[]', space=smem, size = 0x4, offset = 0x4, fixed_abs, tag = 'smem constant byte address 0x4 - core index']
  #allocation1 [shape = 'u32[144,128]{1,0:T(1,128)}', space=vmem, size = 0x12000, scoped, tag = 'internal scratch']
  %s0 = inlined_call_operand.vmem [shape: f32[2,290,4], index: 0, kind: input, shape index: {}]
  %s1 = inlined_call_operand.vmem [shape: f32[36,128], index: 1, kind: input, shape index: {}]
  %s2 = inlined_call_operand.vmem [shape: f32[1,128], index: 2, kind: input, shape index: {}]
  %s3 = inlined_call_operand.vmem [shape: f32[128,32], index: 3, kind: input, shape index: {}]
  %s4 = inlined_call_operand.vmem [shape: f32[1,32], index: 4, kind: input, shape index: {}]
  %s5 = inlined_call_operand.hbm [shape: f32[2,32], index: 5, kind: output, shape index: {}]
  %s6 = sld [smem:[#allocation0]]
  $region30: #{tpu_custom_call.1} parent=0
    _
  %s8 = ssub.s32 1, %s6
  %s9 = scalar_select 0, %s8, %s6
  $region1: #{tpu_custom_call.1} parent=0
    #allocation2 [shape = 'u8[1024]{0}', space=vmem, size = 0x400, scoped, tag = 'output window, operand 0, single buffered']
    #allocation3 [shape = 's32[1]{0}', space=sflag, size = 0x4, scoped, tag = 'scoped memory for tpu_custom_call.1']
    %10 = vsyncpa [#allocation3], 0
    // Predicated region
    $region2: #{tpu_custom_call.1} parent=1 // pred_check
      _
    $region3: #{tpu_custom_call.1} parent=1 // pred_check_branch
      %12 = sbr.rel (0) target = $region5
    $region4: #{tpu_custom_call.1} parent=1 // pred_region
      _
    $region5: #{tpu_custom_call.1} parent=1 // pred_fallthru
      _
    // Predicated region
    $region6: #{tpu_custom_call.1} parent=1 // pred_check
      _
    $region7: #{tpu_custom_call.1} parent=1 // pred_check_branch
      %14 = sbr.rel (0) target = $region9
    $region8: #{tpu_custom_call.1} parent=1 // pred_region
      _
    $region9: #{tpu_custom_call.1} parent=1 // pred_fallthru
      _
    // Predicated region
    $region10: #{tpu_custom_call.1} parent=1 // pred_check
      _
    $region11: #{tpu_custom_call.1} parent=1 // pred_check_branch
      %16 = sbr.rel (0) target = $region13
    $region12: #{tpu_custom_call.1} parent=1 // pred_region
      _
    $region13: #{tpu_custom_call.1} parent=1 // pred_fallthru
      _
    // Predicated region
    $region14: #{tpu_custom_call.1} parent=1 // pred_check
      _
    $region15: #{tpu_custom_call.1} parent=1 // pred_check_branch
      %18 = sbr.rel (0) target = $region17
    $region16: #{tpu_custom_call.1} parent=1 // pred_region
      _
    $region17: #{tpu_custom_call.1} parent=1 // pred_fallthru
      _
    // Predicated region
    $region18: #{tpu_custom_call.1} parent=1 // pred_check
      _
    $region19: #{tpu_custom_call.1} parent=1 // pred_check_branch
      %20 = sbr.rel (0) target = $region21
    $region20: #{tpu_custom_call.1} parent=1 // pred_region
      _
    $region21: #{tpu_custom_call.1} parent=1 // pred_fallthru
      _
    %v21 = vlaneseq
    %v22 = vshrl.u32 %v21, 7
    %v23 = vadd.s32 %v22, 8
    %v24 = vadd.s32 %v22, 16
    %v25 = vadd.s32 %v22, 24
    %v26 = vadd.s32 %v22, 32
    %v27 = vadd.s32 %v22, 40
    %v28 = vadd.s32 %v22, 48
    %v29 = vadd.s32 %v22, 56
    %vm30 = vcmp.lt.s32.totalorder %v22, 0
    %v31 = vsub.s32 0, %v22
    %v32 = vsel %vm30, %v31, %v22
    %v33 = vshrl.u32 %v32, 4
    %v34 = vand.u32 %v32, 15
    %v35 = vsub.s32 0, %v34
    %v36 = vsel %vm30, %v35, %v34
    %vm37 = vcmp.lt.s32.totalorder %v23, 0
    %v38 = vsub.s32 0, %v23
    %v39 = vsel %vm37, %v38, %v23
    %v40 = vshrl.u32 %v39, 4
    %v41 = vand.u32 %v39, 15
    %v42 = vsub.s32 0, %v41
    %v43 = vsel %vm37, %v42, %v41
    %vm44 = vcmp.lt.s32.totalorder %v24, 0
    %v45 = vsub.s32 0, %v24
    %v46 = vsel %vm44, %v45, %v24
    %v47 = vshrl.u32 %v46, 4
    %v48 = vand.u32 %v46, 15
    %v49 = vsub.s32 0, %v48
    %v50 = vsel %vm44, %v49, %v48
    %vm51 = vcmp.lt.s32.totalorder %v25, 0
    %v52 = vsub.s32 0, %v25
    %v53 = vsel %vm51, %v52, %v25
    %v54 = vshrl.u32 %v53, 4
    %v55 = vand.u32 %v53, 15
    %v56 = vsub.s32 0, %v55
    %v57 = vsel %vm51, %v56, %v55
    %vm58 = vcmp.lt.s32.totalorder %v26, 0
    %v59 = vsub.s32 0, %v26
    %v60 = vsel %vm58, %v59, %v26
    %v61 = vshrl.u32 %v60, 4
    %v62 = vand.u32 %v60, 15
    %v63 = vsub.s32 0, %v62
    %v64 = vsel %vm58, %v63, %v62
    %vm65 = vcmp.lt.s32.totalorder %v27, 0
    %v66 = vsub.s32 0, %v27
    %v67 = vsel %vm65, %v66, %v27
    %v68 = vshrl.u32 %v67, 4
    %v69 = vand.u32 %v67, 15
    %v70 = vsub.s32 0, %v69
    %v71 = vsel %vm65, %v70, %v69
    %vm72 = vcmp.lt.s32.totalorder %v28, 0
    %v73 = vsub.s32 0, %v28
    %v74 = vsel %vm72, %v73, %v28
    %v75 = vshrl.u32 %v74, 4
    %v76 = vand.u32 %v74, 15
    %v77 = vsub.s32 0, %v76
    %v78 = vsel %vm72, %v77, %v76
    %vm79 = vcmp.lt.s32.totalorder %v29, 0
    %v80 = vsub.s32 0, %v29
    %v81 = vsel %vm79, %v80, %v29
    %v82 = vshrl.u32 %v81, 4
    %v83 = vand.u32 %v81, 15
    %v84 = vsub.s32 0, %v83
    %v85 = vsel %vm79, %v84, %v83
    %vm86 = vcmp.ne.s32.totalorder %v36, 0
    %vm87 = vcmp.ne.s32.totalorder %v43, 0
    %vm88 = vcmp.ne.s32.totalorder %v50, 0
    %vm89 = vcmp.ne.s32.totalorder %v57, 0
    %vm90 = vcmp.ne.s32.totalorder %v64, 0
    %vm91 = vcmp.ne.s32.totalorder %v71, 0
    %vm92 = vcmp.ne.s32.totalorder %v78, 0
    %vm93 = vcmp.ne.s32.totalorder %v85, 0
    %vm94 = vcmp.lt.s32.totalorder %v36, 0
    %vm95 = vcmp.lt.s32.totalorder %v43, 0
    %vm96 = vcmp.lt.s32.totalorder %v50, 0
    %vm97 = vcmp.lt.s32.totalorder %v57, 0
    %vm98 = vcmp.lt.s32.totalorder %v64, 0
    %vm99 = vcmp.lt.s32.totalorder %v71, 0
    %vm100 = vcmp.lt.s32.totalorder %v78, 0
    %vm101 = vcmp.lt.s32.totalorder %v85, 0
    %vm102 = vmand %vm94, %vm86
    %vm103 = vmand %vm95, %vm87
    %vm104 = vmand %vm96, %vm88
    %vm105 = vmand %vm97, %vm89
    %vm106 = vmand %vm98, %vm90
    %vm107 = vmand %vm99, %vm91
    %vm108 = vmand %vm100, %vm92
    %vm109 = vmand %vm101, %vm93
    %v110 = vadd.s32 %v36, 16
    %v111 = vadd.s32 %v43, 16
    %v112 = vadd.s32 %v50, 16
    %v113 = vadd.s32 %v57, 16
    %v114 = vadd.s32 %v64, 16
    %v115 = vadd.s32 %v71, 16
    %v116 = vadd.s32 %v78, 16
    %v117 = vadd.s32 %v85, 16
    %v118 = vsel %vm102, %v110, %v36
    %v119 = vsel %vm103, %v111, %v43
    %v120 = vsel %vm104, %v112, %v50
    %v121 = vsel %vm105, %v113, %v57
    %v122 = vsel %vm106, %v114, %v64
    %v123 = vsel %vm107, %v115, %v71
    %v124 = vsel %vm108, %v116, %v78
    %v125 = vsel %vm109, %v117, %v85
    %vm126 = vcmp.ne.s32.totalorder %v118, 0
    %vm127 = vcmp.ne.s32.totalorder %v119, 0
    %vm128 = vcmp.ne.s32.totalorder %v120, 0
    %vm129 = vcmp.ne.s32.totalorder %v121, 0
    %vm130 = vcmp.ne.s32.totalorder %v122, 0
    %vm131 = vcmp.ne.s32.totalorder %v123, 0
    %vm132 = vcmp.ne.s32.totalorder %v124, 0
    %vm133 = vcmp.ne.s32.totalorder %v125, 0
    %v134 = vsel %vm126, 1, 0
    %v135 = vsel %vm127, 1, 0
    %v136 = vsel %vm128, 1, 0
    %v137 = vsel %vm129, 1, 0
    %v138 = vsel %vm130, 1, 0
    %v139 = vsel %vm131, 1, 0
    %v140 = vsel %vm132, 1, 0
    %v141 = vsel %vm133, 1, 0
    %v142 = vcvt.s32.f32 %v134
    %v143 = vcvt.s32.f32 %v135
    %v144 = vcvt.s32.f32 %v136
    %v145 = vcvt.s32.f32 %v137
    %v146 = vcvt.s32.f32 %v138
    %v147 = vcvt.s32.f32 %v139
    %v148 = vcvt.s32.f32 %v140
    %v149 = vcvt.s32.f32 %v141
    %vm150 = vcmp.ne.s32.totalorder %v118, 15
    %vm151 = vcmp.ne.s32.totalorder %v119, 15
    %vm152 = vcmp.ne.s32.totalorder %v120, 15
    %vm153 = vcmp.ne.s32.totalorder %v121, 15
    %vm154 = vcmp.ne.s32.totalorder %v122, 15
    %vm155 = vcmp.ne.s32.totalorder %v123, 15
    %vm156 = vcmp.ne.s32.totalorder %v124, 15
    %vm157 = vcmp.ne.s32.totalorder %v125, 15
    %v158 = vsel %vm150, 1, 0
    %v159 = vsel %vm151, 1, 0
    %v160 = vsel %vm152, 1, 0
    %v161 = vsel %vm153, 1, 0
    %v162 = vsel %vm154, 1, 0
    %v163 = vsel %vm155, 1, 0
    %v164 = vsel %vm156, 1, 0
    %v165 = vsel %vm157, 1, 0
    %v166 = vcvt.s32.f32 %v158
    %v167 = vcvt.s32.f32 %v159
    %v168 = vcvt.s32.f32 %v160
    %v169 = vcvt.s32.f32 %v161
    %v170 = vcvt.s32.f32 %v162
    %v171 = vcvt.s32.f32 %v163
    %v172 = vcvt.s32.f32 %v164
    %v173 = vcvt.s32.f32 %v165
    %v174 = vld [vmem:[%s2] sm:$0x1]
    %v175 = vld [vmem:[%s0] sm:$0xff]
    %v176 = vld [vmem:[%s0 + $0x8] sm:$0xff]
    %v177 = vld [vmem:[%s0 + $0x10] sm:$0xff]
    %v178 = vld [vmem:[%s0 + $0x18] sm:$0xff]
    %v179 = vld [vmem:[%s0 + $0x20] sm:$0xff]
    %v180 = vld [vmem:[%s0 + $0x28] sm:$0xff]
    %v181 = vld [vmem:[%s0 + $0x30] sm:$0xff]
    %v182 = vld [vmem:[%s0 + $0x38] sm:$0xff]
    %v183 = vmul.f32 %v175, %v142
    %v184 = vmul.f32 %v176, %v143
    %v185 = vmul.f32 %v177, %v144
    %v186 = vmul.f32 %v178, %v145
    %v187 = vmul.f32 %v179, %v146
    %v188 = vmul.f32 %v180, %v147
    %v189 = vmul.f32 %v181, %v148
    %v190 = vmul.f32 %v182, %v149
    %v191 = vld [vmem:[%s1] sm:$0xf]
    %v192 = vld [vmem:[%s0 + $0x1] sm:$0xff]
    %v193 = vld [vmem:[%s0 + $0x9] sm:$0xff]
    %v194 = vld [vmem:[%s0 + $0x11] sm:$0xff]
    %v195 = vld [vmem:[%s0 + $0x19] sm:$0xff]
    %v196 = vld [vmem:[%s0 + $0x21] sm:$0xff]
    %v197 = vld [vmem:[%s0 + $0x29] sm:$0xff]
    %v198 = vld [vmem:[%s0 + $0x31] sm:$0xff]
    %v199 = vld [vmem:[%s0 + $0x39] sm:$0xff]
    %v200 = vld [vmem:[%s1 + $0x4] sm:$0xf]
    %vm201 = vcmask 31744
    %v203 = vsel %vm201, %v192, 0
    %v206 = vsel %vm201, %v193, 0
    %v209 = vsel %vm201, %v194, 0
    %v212 = vsel %vm201, %v195, 0
    %v215 = vsel %vm201, %v196, 0
    %v218 = vsel %vm201, %v197, 0
    %v221 = vsel %vm201, %v198, 0
    %v224 = vsel %vm201, %v199, 0
    %vm226 = vcmask 1043456
    %v228 = vsel %vm226, %v200, 0
    %230 = vmatprep.subr.mxu0 0.0
    %231 = vmatpush1.msra.mxu0 %v228
    %232 = vmatprep.subr.mxu0 0.0
    %233 = vmatpush1.msra.mxu0 0.0
    %234 = vmatprep.subr.mxu0 0.0
    %235 = vmatpush1.msra.mxu0 0.0
    %236 = vmatprep.subr.mxu0 0.0
    %237 = vmatpush1.msra.mxu0 0.0
    %238 = vmatprep.subr.mxu0 0.0
    %239 = vmatpush1.msra.mxu0 0.0
    %240 = vmatprep.subr.mxu0 0.0
    %241 = vmatpush1.msra.mxu0 0.0
    %242 = vmatprep.subr.mxu0 0.0
    %243 = vmatpush1.msra.mxu0 0.0
    %244 = vmatprep.subr.mxu0 0.0
    %245 = vmatpush1.msra.mxu0 0.0
    %246 = vmatprep.subr.mxu0 0.0
    %247 = vmatpush1.msra.mxu0 0.0
    %248 = vmatprep.subr.mxu0 0.0
    %249 = vmatpush1.msra.mxu0 0.0
    %250 = vmatprep.subr.mxu0 0.0
    %251 = vmatpush1.msra.mxu0 0.0
    %252 = vmatprep.subr.mxu0 0.0
    %253 = vmatpush1.msra.mxu0 0.0
    %254 = vmatprep.subr.mxu0 0.0
    %255 = vmatpush1.msra.mxu0 0.0
    %256 = vmatprep.subr.mxu0 0.0
    %257 = vmatpush1.msra.mxu0 0.0
    %258 = vmatprep.subr.mxu0 0.0
    %259 = vmatpush1.msra.mxu0 0.0
    %260 = vmatprep.subr.mxu0 0.0
    %261 = vmatpush1.msra.mxu0 0.0
    %262 = vmatprep.subr.mxu0 0.0
    %263 = vmatpush1.msra.mxu0 0.0
    %264 = vmatprep.subr.mxu0 0.0
    %265 = vmatpush1.msra.mxu0 0.0
    %266 = vmatprep.subr.mxu0 0.0
    %267 = vmatpush1.msra.mxu0 0.0
    %268 = vmatprep.subr.mxu0 0.0
    %269 = vmatpush1.msra.mxu0 0.0
    %270 = vmatprep.subr.mxu0 0.0
    %271 = vmatpush1.msra.mxu0 0.0
    %272 = vmatprep.subr.mxu0 0.0
    %273 = vmatpush1.msra.mxu0 0.0
    %274 = vmatprep.subr.mxu0 0.0
    %275 = vmatpush1.msra.mxu0 0.0
    %276 = vmatprep.subr.mxu0 0.0
    %277 = vmatpush1.msra.mxu0 0.0
    %278 = vmatprep.subr.mxu0 0.0
    %279 = vmatpush1.msra.mxu0 0.0
    %280 = vmatprep.subr.mxu0 0.0
    %281 = vmatpush1.msra.mxu0 0.0
    %282 = vmatprep.subr.mxu0 0.0
    %283 = vmatpush1.msra.mxu0 0.0
    %284 = vmatprep.subr.mxu0 0.0
    %285 = vmatpush1.msra.mxu0 0.0
    %286 = vmatprep.subr.mxu0 0.0
    %287 = vmatpush1.msra.mxu0 0.0
    %288 = vmatprep.subr.mxu0 0.0
    %289 = vmatpush1.msra.mxu0 0.0
    %290 = vmatprep.subr.mxu0 0.0
    %291 = vmatpush1.msra.mxu0 0.0
    %292 = vmatprep.subr.mxu0 0.0
    %293 = vmatpush1.msra.mxu0 0.0
    %294 = vmatprep.mubr.f32.mxu0 0.0
    %295 = vmatmul.mubr.f32.gmra.mrb[0].mxu0 %v203
    %v296 = vpop.f32.mrb[0].mxu0
    %v297 = vadd.f32 0.0, %v296
    %v298 = vpop.f32.mrb[0].mxu0
    %299 = vmatprep.mubr.f32.mxu0 0.0
    %300 = vmatmul.mubr.f32.gmra.mrb[0].mxu0 %v206
    %v301 = vpop.f32.mrb[0].mxu0
    %v302 = vadd.f32 0.0, %v301
    %v303 = vpop.f32.mrb[0].mxu0
    %304 = vmatprep.mubr.f32.mxu0 0.0
    %305 = vmatmul.mubr.f32.gmra.mrb[0].mxu0 %v209
    %v306 = vpop.f32.mrb[0].mxu0
    %v307 = vadd.f32 0.0, %v306
    %v308 = vpop.f32.mrb[0].mxu0
    %309 = vmatprep.mubr.f32.mxu0 0.0
    %310 = vmatmul.mubr.f32.gmra.mrb[0].mxu0 %v212
    %v311 = vpop.f32.mrb[0].mxu0
    %v312 = vadd.f32 0.0, %v311
    %v313 = vpop.f32.mrb[0].mxu0
    %314 = vmatprep.mubr.f32.mxu0 0.0
    %315 = vmatmul.mubr.f32.gmra.mrb[0].mxu0 %v215
    %v316 = vpop.f32.mrb[0].mxu0
    %v317 = vadd.f32 0.0, %v316
    %v318 = vpop.f32.mrb[0].mxu0
    %319 = vmatprep.mubr.f32.mxu0 0.0
    %320 = vmatmul.mubr.f32.gmra.mrb[0].mxu0 %v218
    %v321 = vpop.f32.mrb[0].mxu0
    %v322 = vadd.f32 0.0, %v321
    %v323 = vpop.f32.mrb[0].mxu0
    %324 = vmatprep.mubr.f32.mxu0 0.0
    %325 = vmatmul.mubr.f32.gmra.mrb[0].mxu0 %v221
    %v326 = vpop.f32.mrb[0].mxu0
    %v327 = vadd.f32 0.0, %v326
    %v328 = vpop.f32.mrb[0].mxu0
    %329 = vmatprep.mubr.f32.mxu0 0.0
    %330 = vmatmul.mubr.f32.gmra.mrb[0].mxu0 %v224
    %v331 = vpop.f32.mrb[0].mxu0
    %v332 = vadd.f32 0.0, %v331
    %v333 = vpop.f32.mrb[0].mxu0
    %334 = vdwg.mxu0
    %v336 = vsel %vm201, %v183, 0
    %v339 = vsel %vm201, %v184, 0
    %v342 = vsel %vm201, %v185, 0
    %v345 = vsel %vm201, %v186, 0
    %v348 = vsel %vm201, %v187, 0
    %v351 = vsel %vm201, %v188, 0
    %v354 = vsel %vm201, %v189, 0
    %v357 = vsel %vm201, %v190, 0
    %v360 = vsel %vm226, %v191, 0
    %362 = vmatprep.subr.mxu0 0.0
    %363 = vmatpush1.msra.mxu0 %v360
    %364 = vmatprep.subr.mxu0 0.0
    %365 = vmatpush1.msra.mxu0 0.0
    %366 = vmatprep.subr.mxu0 0.0
    %367 = vmatpush1.msra.mxu0 0.0
    %368 = vmatprep.subr.mxu0 0.0
    %369 = vmatpush1.msra.mxu0 0.0
    %370 = vmatprep.subr.mxu0 0.0
    %371 = vmatpush1.msra.mxu0 0.0
    %372 = vmatprep.subr.mxu0 0.0
    %373 = vmatpush1.msra.mxu0 0.0
    %374 = vmatprep.subr.mxu0 0.0
    %375 = vmatpush1.msra.mxu0 0.0
    %376 = vmatprep.subr.mxu0 0.0
    %377 = vmatpush1.msra.mxu0 0.0
    %378 = vmatprep.subr.mxu0 0.0
    %379 = vmatpush1.msra.mxu0 0.0
    %380 = vmatprep.subr.mxu0 0.0
    %381 = vmatpush1.msra.mxu0 0.0
    %382 = vmatprep.subr.mxu0 0.0
    %383 = vmatpush1.msra.mxu0 0.0
    %384 = vmatprep.subr.mxu0 0.0
    %385 = vmatpush1.msra.mxu0 0.0
    %386 = vmatprep.subr.mxu0 0.0
    %387 = vmatpush1.msra.mxu0 0.0
    %388 = vmatprep.subr.mxu0 0.0
    %389 = vmatpush1.msra.mxu0 0.0
    %390 = vmatprep.subr.mxu0 0.0
    %391 = vmatpush1.msra.mxu0 0.0
    %392 = vmatprep.subr.mxu0 0.0
    %393 = vmatpush1.msra.mxu0 0.0
    %394 = vmatprep.subr.mxu0 0.0
    %395 = vmatpush1.msra.mxu0 0.0
    %396 = vmatprep.subr.mxu0 0.0
    %397 = vmatpush1.msra.mxu0 0.0
    %398 = vmatprep.subr.mxu0 0.0
    %399 = vmatpush1.msra.mxu0 0.0
    %400 = vmatprep.subr.mxu0 0.0
    %401 = vmatpush1.msra.mxu0 0.0
    %402 = vmatprep.subr.mxu0 0.0
    %403 = vmatpush1.msra.mxu0 0.0
    %404 = vmatprep.subr.mxu0 0.0
    %405 = vmatpush1.msra.mxu0 0.0
    %406 = vmatprep.subr.mxu0 0.0
    %407 = vmatpush1.msra.mxu0 0.0
    %408 = vmatprep.subr.mxu0 0.0
    %409 = vmatpush1.msra.mxu0 0.0
    %410 = vmatprep.subr.mxu0 0.0
    %411 = vmatpush1.msra.mxu0 0.0
    %412 = vmatprep.subr.mxu0 0.0
    %413 = vmatpush1.msra.mxu0 0.0
    %414 = vmatprep.subr.mxu0 0.0
    %415 = vmatpush1.msra.mxu0 0.0
    %416 = vmatprep.subr.mxu0 0.0
    %417 = vmatpush1.msra.mxu0 0.0
    %418 = vmatprep.subr.mxu0 0.0
    %419 = vmatpush1.msra.mxu0 0.0
    %420 = vmatprep.subr.mxu0 0.0
    %421 = vmatpush1.msra.mxu0 0.0
    %422 = vmatprep.subr.mxu0 0.0
    %423 = vmatpush1.msra.mxu0 0.0
    %424 = vmatprep.subr.mxu0 0.0
    %425 = vmatpush1.msra.mxu0 0.0
    %426 = vmatprep.mubr.f32.mxu0 0.0
    %427 = vmatmul.mubr.f32.gmra.mrb[0].mxu0 %v336
    %v428 = vpop.f32.mrb[0].mxu0
    %v429 = vadd.f32 %v297, %v428
    %v430 = vpop.f32.mrb[0].mxu0
    %431 = vmatprep.mubr.f32.mxu0 0.0
    %432 = vmatmul.mubr.f32.gmra.mrb[0].mxu0 %v339
    %v433 = vpop.f32.mrb[0].mxu0
    %v434 = vadd.f32 %v302, %v433
    %v435 = vpop.f32.mrb[0].mxu0
    %436 = vmatprep.mubr.f32.mxu0 0.0
    %437 = vmatmul.mubr.f32.gmra.mrb[0].mxu0 %v342
    %v438 = vpop.f32.mrb[0].mxu0
    %v439 = vadd.f32 %v307, %v438
    %v440 = vpop.f32.mrb[0].mxu0
    %441 = vmatprep.mubr.f32.mxu0 0.0
    %442 = vmatmul.mubr.f32.gmra.mrb[0].mxu0 %v345
    %v443 = vpop.f32.mrb[0].mxu0
    %v444 = vadd.f32 %v312, %v443
    %v445 = vpop.f32.mrb[0].mxu0
    %446 = vmatprep.mubr.f32.mxu0 0.0
    %447 = vmatmul.mubr.f32.gmra.mrb[0].mxu0 %v348
    %v448 = vpop.f32.mrb[0].mxu0
    %v449 = vadd.f32 %v317, %v448
    %v450 = vpop.f32.mrb[0].mxu0
    %451 = vmatprep.mubr.f32.mxu0 0.0
    %452 = vmatmul.mubr.f32.gmra.mrb[0].mxu0 %v351
    %v453 = vpop.f32.mrb[0].mxu0
    %v454 = vadd.f32 %v322, %v453
    %v455 = vpop.f32.mrb[0].mxu0
    %456 = vmatprep.mubr.f32.mxu0 0.0
    %457 = vmatmul.mubr.f32.gmra.mrb[0].mxu0 %v354
    %v458 = vpop.f32.mrb[0].mxu0
    %v459 = vadd.f32 %v327, %v458
    %v460 = vpop.f32.mrb[0].mxu0
    %461 = vmatprep.mubr.f32.mxu0 0.0
    %462 = vmatmul.mubr.f32.gmra.mrb[0].mxu0 %v357
    %v463 = vpop.f32.mrb[0].mxu0
    %v464 = vadd.f32 %v332, %v463
    %v465 = vpop.f32.mrb[0].mxu0
    %466 = vdwg.mxu0
    %v467 = vld [vmem:[%s0 + $0x2] sm:$0xff]
    %v468 = vld [vmem:[%s0 + $0xa] sm:$0xff]
    %v469 = vld [vmem:[%s0 + $0x12] sm:$0xff]
    %v470 = vld [vmem:[%s0 + $0x1a] sm:$0xff]
    %v471 = vld [vmem:[%s0 + $0x22] sm:$0xff]
    %v472 = vld [vmem:[%s0 + $0x2a] sm:$0xff]
    %v473 = vld [vmem:[%s0 + $0x32] sm:$0xff]
    %v474 = vld [vmem:[%s0 + $0x3a] sm:$0xff]
    %v475 = vmul.f32 %v467, %v166
    %v476 = vmul.f32 %v468, %v167
    %v477 = vmul.f32 %v469, %v168
    %v478 = vmul.f32 %v470, %v169
    %v479 = vmul.f32 %v471, %v170
    %v480 = vmul.f32 %v472, %v171
    %v481 = vmul.f32 %v473, %v172
    %v482 = vmul.f32 %v474, %v173
    %v483 = vld [vmem:[%s1 + $0x8] sm:$0xf]
    %v485 = vsel %vm201, %v475, 0
    %v488 = vsel %vm201, %v476, 0
    %v491 = vsel %vm201, %v477, 0
    %v494 = vsel %vm201, %v478, 0
    %v497 = vsel %vm201, %v479, 0
    %v500 = vsel %vm201, %v480, 0
    %v503 = vsel %vm201, %v481, 0
    %v506 = vsel %vm201, %v482, 0
    %v509 = vsel %vm226, %v483, 0
    %511 = vmatprep.subr.mxu0 0.0
    %512 = vmatpush1.msra.mxu0 %v509
    %513 = vmatprep.subr.mxu0 0.0
    %514 = vmatpush1.msra.mxu0 0.0
    %515 = vmatprep.subr.mxu0 0.0
    %516 = vmatpush1.msra.mxu0 0.0
    %517 = vmatprep.subr.mxu0 0.0
    %518 = vmatpush1.msra.mxu0 0.0
    %519 = vmatprep.subr.mxu0 0.0
    %520 = vmatpush1.msra.mxu0 0.0
    %521 = vmatprep.subr.mxu0 0.0
    %522 = vmatpush1.msra.mxu0 0.0
    %523 = vmatprep.subr.mxu0 0.0
    %524 = vmatpush1.msra.mxu0 0.0
    %525 = vmatprep.subr.mxu0 0.0
    %526 = vmatpush1.msra.mxu0 0.0
    %527 = vmatprep.subr.mxu0 0.0
    %528 = vmatpush1.msra.mxu0 0.0
    %529 = vmatprep.subr.mxu0 0.0
    %530 = vmatpush1.msra.mxu0 0.0
    %531 = vmatprep.subr.mxu0 0.0
    %532 = vmatpush1.msra.mxu0 0.0
    %533 = vmatprep.subr.mxu0 0.0
    %534 = vmatpush1.msra.mxu0 0.0
    %535 = vmatprep.subr.mxu0 0.0
    %536 = vmatpush1.msra.mxu0 0.0
    %537 = vmatprep.subr.mxu0 0.0
    %538 = vmatpush1.msra.mxu0 0.0
    %539 = vmatprep.subr.mxu0 0.0
    %540 = vmatpush1.msra.mxu0 0.0
    %541 = vmatprep.subr.mxu0 0.0
    %542 = vmatpush1.msra.mxu0 0.0
    %543 = vmatprep.subr.mxu0 0.0
    %544 = vmatpush1.msra.mxu0 0.0
    %545 = vmatprep.subr.mxu0 0.0
    %546 = vmatpush1.msra.mxu0 0.0
    %547 = vmatprep.subr.mxu0 0.0
    %548 = vmatpush1.msra.mxu0 0.0
    %549 = vmatprep.subr.mxu0 0.0
    %550 = vmatpush1.msra.mxu0 0.0
    %551 = vmatprep.subr.mxu0 0.0
    %552 = vmatpush1.msra.mxu0 0.0
    %553 = vmatprep.subr.mxu0 0.0
    %554 = vmatpush1.msra.mxu0 0.0
    %555 = vmatprep.subr.mxu0 0.0
    %556 = vmatpush1.msra.mxu0 0.0
    %557 = vmatprep.subr.mxu0 0.0
    %558 = vmatpush1.msra.mxu0 0.0
    %559 = vmatprep.subr.mxu0 0.0
    %560 = vmatpush1.msra.mxu0 0.0
    %561 = vmatprep.subr.mxu0 0.0
    %562 = vmatpush1.msra.mxu0 0.0
    %563 = vmatprep.subr.mxu0 0.0
    %564 = vmatpush1.msra.mxu0 0.0
    %565 = vmatprep.subr.mxu0 0.0
    %566 = vmatpush1.msra.mxu0 0.0
    %567 = vmatprep.subr.mxu0 0.0
    %568 = vmatpush1.msra.mxu0 0.0
    %569 = vmatprep.subr.mxu0 0.0
    %570 = vmatpush1.msra.mxu0 0.0
    %571 = vmatprep.subr.mxu0 0.0
    %572 = vmatpush1.msra.mxu0 0.0
    %573 = vmatprep.subr.mxu0 0.0
    %574 = vmatpush1.msra.mxu0 0.0
    %575 = vmatprep.mubr.f32.mxu0 0.0
    %576 = vmatmul.mubr.f32.gmra.mrb[0].mxu0 %v485
    %v577 = vpop.f32.mrb[0].mxu0
    %v578 = vadd.f32 0.0, %v577
    %v579 = vpop.f32.mrb[0].mxu0
    %580 = vmatprep.mubr.f32.mxu0 0.0
    %581 = vmatmul.mubr.f32.gmra.mrb[0].mxu0 %v488
    %v582 = vpop.f32.mrb[0].mxu0
    %v583 = vadd.f32 0.0, %v582
    %v584 = vpop.f32.mrb[0].mxu0
    %585 = vmatprep.mubr.f32.mxu0 0.0
    %586 = vmatmul.mubr.f32.gmra.mrb[0].mxu0 %v491
    %v587 = vpop.f32.mrb[0].mxu0
    %v588 = vadd.f32 0.0, %v587
    %v589 = vpop.f32.mrb[0].mxu0
    %590 = vmatprep.mubr.f32.mxu0 0.0
    %591 = vmatmul.mubr.f32.gmra.mrb[0].mxu0 %v494
    %v592 = vpop.f32.mrb[0].mxu0
    %v593 = vadd.f32 0.0, %v592
    %v594 = vpop.f32.mrb[0].mxu0
    %595 = vmatprep.mubr.f32.mxu0 0.0
    %596 = vmatmul.mubr.f32.gmra.mrb[0].mxu0 %v497
    %v597 = vpop.f32.mrb[0].mxu0
    %v598 = vadd.f32 0.0, %v597
    %v599 = vpop.f32.mrb[0].mxu0
    %600 = vmatprep.mubr.f32.mxu0 0.0
    %601 = vmatmul.mubr.f32.gmra.mrb[0].mxu0 %v500
    %v602 = vpop.f32.mrb[0].mxu0
    %v603 = vadd.f32 0.0, %v602
    %v604 = vpop.f32.mrb[0].mxu0
    %605 = vmatprep.mubr.f32.mxu0 0.0
    %606 = vmatmul.mubr.f32.gmra.mrb[0].mxu0 %v503
    %v607 = vpop.f32.mrb[0].mxu0
    %v608 = vadd.f32 0.0, %v607
    %v609 = vpop.f32.mrb[0].mxu0
    %610 = vmatprep.mubr.f32.mxu0 0.0
    %611 = vmatmul.mubr.f32.gmra.mrb[0].mxu0 %v506
    %v612 = vpop.f32.mrb[0].mxu0
    %v613 = vadd.f32 0.0, %v612
    %v614 = vpop.f32.mrb[0].mxu0
    %615 = vdwg.mxu0
    %v616 = vadd.f32 %v429, %v578
    %v617 = vadd.f32 %v434, %v583
    %v618 = vadd.f32 %v439, %v588
    %v619 = vadd.f32 %v444, %v593
    %v620 = vadd.f32 %v449, %v598
    %v621 = vadd.f32 %v454, %v603
    %v622 = vadd.f32 %v459, %v608
    %v623 = vadd.f32 %v464, %v613
    %v624 = vld [vmem:[%s0 + $0x10] sm:$0xff]
    %v625 = vld [vmem:[%s0 + $0x18] sm:$0xff]
    %v626 = vld [vmem:[%s0 + $0x20] sm:$0xff]
    %v627 = vld [vmem:[%s0 + $0x28] sm:$0xff]
    %v628 = vld [vmem:[%s0 + $0x30] sm:$0xff]
    %v629 = vld [vmem:[%s0 + $0x38] sm:$0xff]
    %v630 = vld [vmem:[%s0 + $0x40] sm:$0xff]
    %v631 = vld [vmem:[%s0 + $0x48] sm:$0xff]
    %v632 = vmul.f32 %v624, %v142
    %v633 = vmul.f32 %v625, %v143
    %v634 = vmul.f32 %v626, %v144
    %v635 = vmul.f32 %v627, %v145
    %v636 = vmul.f32 %v628, %v146
    %v637 = vmul.f32 %v629, %v147
    %v638 = vmul.f32 %v630, %v148
    %v639 = vmul.f32 %v631, %v149
    %v640 = vld [vmem:[%s1 + $0xc] sm:$0xf]
    %v642 = vsel %vm201, %v632, 0
    %v645 = vsel %vm201, %v633, 0
    %v648 = vsel %vm201, %v634, 0
    %v651 = vsel %vm201, %v635, 0
    %v654 = vsel %vm201, %v636, 0
    %v657 = vsel %vm201, %v637, 0
    %v660 = vsel %vm201, %v638, 0
    %v663 = vsel %vm201, %v639, 0
    %v666 = vsel %vm226, %v640, 0
    %668 = vmatprep.subr.mxu0 0.0
    %669 = vmatpush1.msra.mxu0 %v666
    %670 = vmatprep.subr.mxu0 0.0
    %671 = vmatpush1.msra.mxu0 0.0
    %672 = vmatprep.subr.mxu0 0.0
    %673 = vmatpush1.msra.mxu0 0.0
    %674 = vmatprep.subr.mxu0 0.0
    %675 = vmatpush1.msra.mxu0 0.0
    %676 = vmatprep.subr.mxu0 0.0
    %677 = vmatpush1.msra.mxu0 0.0
    %678 = vmatprep.subr.mxu0 0.0
    %679 = vmatpush1.msra.mxu0 0.0
    %680 = vmatprep.subr.mxu0 0.0
    %681 = vmatpush1.msra.mxu0 0.0
    %682 = vmatprep.subr.mxu0 0.0
    %683 = vmatpush1.msra.mxu0 0.0
    %684 = vmatprep.subr.mxu0 0.0
    %685 = vmatpush1.msra.mxu0 0.0
    %686 = vmatprep.subr.mxu0 0.0
    %687 = vmatpush1.msra.mxu0 0.0
    %688 = vmatprep.subr.mxu0 0.0
    %689 = vmatpush1.msra.mxu0 0.0
    %690 = vmatprep.subr.mxu0 0.0
    %691 = vmatpush1.msra.mxu0 0.0
    %692 = vmatprep.subr.mxu0 0.0
    %693 = vmatpush1.msra.mxu0 0.0
    %694 = vmatprep.subr.mxu0 0.0
    %695 = vmatpush1.msra.mxu0 0.0
    %696 = vmatprep.subr.mxu0 0.0
    %697 = vmatpush1.msra.mxu0 0.0
    %698 = vmatprep.subr.mxu0 0.0
    %699 = vmatpush1.msra.mxu0 0.0
    %700 = vmatprep.subr.mxu0 0.0
    %701 = vmatpush1.msra.mxu0 0.0
    %702 = vmatprep.subr.mxu0 0.0
    %703 = vmatpush1.msra.mxu0 0.0
    %704 = vmatprep.subr.mxu0 0.0
    %705 = vmatpush1.msra.mxu0 0.0
    %706 = vmatprep.subr.mxu0 0.0
    %707 = vmatpush1.msra.mxu0 0.0
    %708 = vmatprep.subr.mxu0 0.0
    %709 = vmatpush1.msra.mxu0 0.0
    %710 = vmatprep.subr.mxu0 0.0
    %711 = vmatpush1.msra.mxu0 0.0
    %712 = vmatprep.subr.mxu0 0.0
    %713 = vmatpush1.msra.mxu0 0.0
    %714 = vmatprep.subr.mxu0 0.0
    %715 = vmatpush1.msra.mxu0 0.0
    %716 = vmatprep.subr.mxu0 0.0
    %717 = vmatpush1.msra.mxu0 0.0
    %718 = vmatprep.subr.mxu0 0.0
    %719 = vmatpush1.msra.mxu0 0.0
    %720 = vmatprep.subr.mxu0 0.0
    %721 = vmatpush1.msra.mxu0 0.0
    %722 = vmatprep.subr.mxu0 0.0
    %723 = vmatpush1.msra.mxu0 0.0
    %724 = vmatprep.subr.mxu0 0.0
    %725 = vmatpush1.msra.mxu0 0.0
    %726 = vmatprep.subr.mxu0 0.0
    %727 = vmatpush1.msra.mxu0 0.0
    %728 = vmatprep.subr.mxu0 0.0
    %729 = vmatpush1.msra.mxu0 0.0
    %730 = vmatprep.subr.mxu0 0.0
    %731 = vmatpush1.msra.mxu0 0.0
    %732 = vmatprep.mubr.f32.mxu0 0.0
    %733 = vmatmul.mubr.f32.gmra.mrb[0].mxu0 %v642
    %v734 = vpop.f32.mrb[0].mxu0
    %v735 = vadd.f32 0.0, %v734
    %v736 = vpop.f32.mrb[0].mxu0
    %737 = vmatprep.mubr.f32.mxu0 0.0
    %738 = vmatmul.mubr.f32.gmra.mrb[0].mxu0 %v645
    %v739 = vpop.f32.mrb[0].mxu0
    %v740 = vadd.f32 0.0, %v739
    %v741 = vpop.f32.mrb[0].mxu0
    %742 = vmatprep.mubr.f32.mxu0 0.0
    %743 = vmatmul.mubr.f32.gmra.mrb[0].mxu0 %v648
    %v744 = vpop.f32.mrb[0].mxu0
    %v745 = vadd.f32 0.0, %v744
    %v746 = vpop.f32.mrb[0].mxu0
    %747 = vmatprep.mubr.f32.mxu0 0.0
    %748 = vmatmul.mubr.f32.gmra.mrb[0].mxu0 %v651
    %v749 = vpop.f32.mrb[0].mxu0
    %v750 = vadd.f32 0.0, %v749
    %v751 = vpop.f32.mrb[0].mxu0
    %752 = vmatprep.mubr.f32.mxu0 0.0
    %753 = vmatmul.mubr.f32.gmra.mrb[0].mxu0 %v654
    %v754 = vpop.f32.mrb[0].mxu0
    %v755 = vadd.f32 0.0, %v754
    %v756 = vpop.f32.mrb[0].mxu0
    %757 = vmatprep.mubr.f32.mxu0 0.0
    %758 = vmatmul.mubr.f32.gmra.mrb[0].mxu0 %v657
    %v759 = vpop.f32.mrb[0].mxu0
    %v760 = vadd.f32 0.0, %v759
    %v761 = vpop.f32.mrb[0].mxu0
    %762 = vmatprep.mubr.f32.mxu0 0.0
    %763 = vmatmul.mubr.f32.gmra.mrb[0].mxu0 %v660
    %v764 = vpop.f32.mrb[0].mxu0
    %v765 = vadd.f32 0.0, %v764
    %v766 = vpop.f32.mrb[0].mxu0
    %767 = vmatprep.mubr.f32.mxu0 0.0
    %768 = vmatmul.mubr.f32.gmra.mrb[0].mxu0 %v663
    %v769 = vpop.f32.mrb[0].mxu0
    %v770 = vadd.f32 0.0, %v769
    %v771 = vpop.f32.mrb[0].mxu0
    %772 = vdwg.mxu0
    %v773 = vadd.f32 %v616, %v735
    %v774 = vadd.f32 %v617, %v740
    %v775 = vadd.f32 %v618, %v745
    %v776 = vadd.f32 %v619, %v750
    %v777 = vadd.f32 %v620, %v755
    %v778 = vadd.f32 %v621, %v760
    %v779 = vadd.f32 %v622, %v765
    %v780 = vadd.f32 %v623, %v770
    %v781 = vld [vmem:[%s0 + $0x11] sm:$0xff]
    %v782 = vld [vmem:[%s0 + $0x19] sm:$0xff]
    %v783 = vld [vmem:[%s0 + $0x21] sm:$0xff]
    %v784 = vld [vmem:[%s0 + $0x29] sm:$0xff]
    %v785 = vld [vmem:[%s0 + $0x31] sm:$0xff]
    %v786 = vld [vmem:[%s0 + $0x39] sm:$0xff]
    %v787 = vld [vmem:[%s0 + $0x41] sm:$0xff]
    %v788 = vld [vmem:[%s0 + $0x49] sm:$0xff]
    %v789 = vld [vmem:[%s1 + $0x10] sm:$0xf]
    %v791 = vsel %vm201, %v781, 0
    %v794 = vsel %vm201, %v782, 0
    %v797 = vsel %vm201, %v783, 0
    %v800 = vsel %vm201, %v784, 0
    %v803 = vsel %vm201, %v785, 0
    %v806 = vsel %vm201, %v786, 0
    %v809 = vsel %vm201, %v787, 0
    %v812 = vsel %vm201, %v788, 0
    %v815 = vsel %vm226, %v789, 0
    %817 = vmatprep.subr.mxu0 0.0
    %818 = vmatpush1.msra.mxu0 %v815
    %819 = vmatprep.subr.mxu0 0.0
    %820 = vmatpush1.msra.mxu0 0.0
    %821 = vmatprep.subr.mxu0 0.0
    %822 = vmatpush1.msra.mxu0 0.0
    %823 = vmatprep.subr.mxu0 0.0
    %824 = vmatpush1.msra.mxu0 0.0
    %825 = vmatprep.subr.mxu0 0.0
    %826 = vmatpush1.msra.mxu0 0.0
    %827 = vmatprep.subr.mxu0 0.0
    %828 = vmatpush1.msra.mxu0 0.0
    %829 = vmatprep.subr.mxu0 0.0
    %830 = vmatpush1.msra.mxu0 0.0
    %831 = vmatprep.subr.mxu0 0.0
    %832 = vmatpush1.msra.mxu0 0.0
    %833 = vmatprep.subr.mxu0 0.0
    %834 = vmatpush1.msra.mxu0 0.0
    %835 = vmatprep.subr.mxu0 0.0
    %836 = vmatpush1.msra.mxu0 0.0
    %837 = vmatprep.subr.mxu0 0.0
    %838 = vmatpush1.msra.mxu0 0.0
    %839 = vmatprep.subr.mxu0 0.0
    %840 = vmatpush1.msra.mxu0 0.0
    %841 = vmatprep.subr.mxu0 0.0
    %842 = vmatpush1.msra.mxu0 0.0
    %843 = vmatprep.subr.mxu0 0.0
    %844 = vmatpush1.msra.mxu0 0.0
    %845 = vmatprep.subr.mxu0 0.0
    %846 = vmatpush1.msra.mxu0 0.0
    %847 = vmatprep.subr.mxu0 0.0
    %848 = vmatpush1.msra.mxu0 0.0
    %849 = vmatprep.subr.mxu0 0.0
    %850 = vmatpush1.msra.mxu0 0.0
    %851 = vmatprep.subr.mxu0 0.0
    %852 = vmatpush1.msra.mxu0 0.0
    %853 = vmatprep.subr.mxu0 0.0
    %854 = vmatpush1.msra.mxu0 0.0
    %855 = vmatprep.subr.mxu0 0.0
    %856 = vmatpush1.msra.mxu0 0.0
    %857 = vmatprep.subr.mxu0 0.0
    %858 = vmatpush1.msra.mxu0 0.0
    %859 = vmatprep.subr.mxu0 0.0
    %860 = vmatpush1.msra.mxu0 0.0
    %861 = vmatprep.subr.mxu0 0.0
    %862 = vmatpush1.msra.mxu0 0.0
    %863 = vmatprep.subr.mxu0 0.0
    %864 = vmatpush1.msra.mxu0 0.0
    %865 = vmatprep.subr.mxu0 0.0
    %866 = vmatpush1.msra.mxu0 0.0
    %867 = vmatprep.subr.mxu0 0.0
    %868 = vmatpush1.msra.mxu0 0.0
    %869 = vmatprep.subr.mxu0 0.0
    %870 = vmatpush1.msra.mxu0 0.0
    %871 = vmatprep.subr.mxu0 0.0
    %872 = vmatpush1.msra.mxu0 0.0
    %873 = vmatprep.subr.mxu0 0.0
    %874 = vmatpush1.msra.mxu0 0.0
    %875 = vmatprep.subr.mxu0 0.0
    %876 = vmatpush1.msra.mxu0 0.0
    %877 = vmatprep.subr.mxu0 0.0
    %878 = vmatpush1.msra.mxu0 0.0
    %879 = vmatprep.subr.mxu0 0.0
    %880 = vmatpush1.msra.mxu0 0.0
    %881 = vmatprep.mubr.f32.mxu0 0.0
    %882 = vmatmul.mubr.f32.gmra.mrb[0].mxu0 %v791
    %v883 = vpop.f32.mrb[0].mxu0
    %v884 = vadd.f32 0.0, %v883
    %v885 = vpop.f32.mrb[0].mxu0
    %886 = vmatprep.mubr.f32.mxu0 0.0
    %887 = vmatmul.mubr.f32.gmra.mrb[0].mxu0 %v794
    %v888 = vpop.f32.mrb[0].mxu0
    %v889 = vadd.f32 0.0, %v888
    %v890 = vpop.f32.mrb[0].mxu0
    %891 = vmatprep.mubr.f32.mxu0 0.0
    %892 = vmatmul.mubr.f32.gmra.mrb[0].mxu0 %v797
    %v893 = vpop.f32.mrb[0].mxu0
    %v894 = vadd.f32 0.0, %v893
    %v895 = vpop.f32.mrb[0].mxu0
    %896 = vmatprep.mubr.f32.mxu0 0.0
    %897 = vmatmul.mubr.f32.gmra.mrb[0].mxu0 %v800
    %v898 = vpop.f32.mrb[0].mxu0
    %v899 = vadd.f32 0.0, %v898
    %v900 = vpop.f32.mrb[0].mxu0
    %901 = vmatprep.mubr.f32.mxu0 0.0
    %902 = vmatmul.mubr.f32.gmra.mrb[0].mxu0 %v803
    %v903 = vpop.f32.mrb[0].mxu0
    %v904 = vadd.f32 0.0, %v903
    %v905 = vpop.f32.mrb[0].mxu0
    %906 = vmatprep.mubr.f32.mxu0 0.0
    %907 = vmatmul.mubr.f32.gmra.mrb[0].mxu0 %v806
    %v908 = vpop.f32.mrb[0].mxu0
    %v909 = vadd.f32 0.0, %v908
    %v910 = vpop.f32.mrb[0].mxu0
    %911 = vmatprep.mubr.f32.mxu0 0.0
    %912 = vmatmul.mubr.f32.gmra.mrb[0].mxu0 %v809
    %v913 = vpop.f32.mrb[0].mxu0
    %v914 = vadd.f32 0.0, %v913
    %v915 = vpop.f32.mrb[0].mxu0
    %916 = vmatprep.mubr.f32.mxu0 0.0
    %917 = vmatmul.mubr.f32.gmra.mrb[0].mxu0 %v812
    %v918 = vpop.f32.mrb[0].mxu0
    %v919 = vadd.f32 0.0, %v918
    %v920 = vpop.f32.mrb[0].mxu0
    %921 = vdwg.mxu0
    %v922 = vadd.f32 %v773, %v884
    %v923 = vadd.f32 %v774, %v889
    %v924 = vadd.f32 %v775, %v894
    %v925 = vadd.f32 %v776, %v899
    %v926 = vadd.f32 %v777, %v904
    %v927 = vadd.f32 %v778, %v909
    %v928 = vadd.f32 %v779, %v914
    %v929 = vadd.f32 %v780, %v919
    %v930 = vld [vmem:[%s0 + $0x12] sm:$0xff]
    %v931 = vld [vmem:[%s0 + $0x1a] sm:$0xff]
    %v932 = vld [vmem:[%s0 + $0x22] sm:$0xff]
    %v933 = vld [vmem:[%s0 + $0x2a] sm:$0xff]
    %v934 = vld [vmem:[%s0 + $0x32] sm:$0xff]
    %v935 = vld [vmem:[%s0 + $0x3a] sm:$0xff]
    %v936 = vld [vmem:[%s0 + $0x42] sm:$0xff]
    %v937 = vld [vmem:[%s0 + $0x4a] sm:$0xff]
    %v938 = vmul.f32 %v930, %v166
    %v939 = vmul.f32 %v931, %v167
    %v940 = vmul.f32 %v932, %v168
    %v941 = vmul.f32 %v933, %v169
    %v942 = vmul.f32 %v934, %v170
    %v943 = vmul.f32 %v935, %v171
    %v944 = vmul.f32 %v936, %v172
    %v945 = vmul.f32 %v937, %v173
    %v946 = vld [vmem:[%s1 + $0x14] sm:$0xf]
    %v948 = vsel %vm201, %v938, 0
    %v951 = vsel %vm201, %v939, 0
    %v954 = vsel %vm201, %v940, 0
    %v957 = vsel %vm201, %v941, 0
    %v960 = vsel %vm201, %v942, 0
    %v963 = vsel %vm201, %v943, 0
    %v966 = vsel %vm201, %v944, 0
    %v969 = vsel %vm201, %v945, 0
    %v972 = vsel %vm226, %v946, 0
    %974 = vmatprep.subr.mxu0 0.0
    %975 = vmatpush1.msra.mxu0 %v972
    %976 = vmatprep.subr.mxu0 0.0
    %977 = vmatpush1.msra.mxu0 0.0
    %978 = vmatprep.subr.mxu0 0.0
    %979 = vmatpush1.msra.mxu0 0.0
    %980 = vmatprep.subr.mxu0 0.0
    %981 = vmatpush1.msra.mxu0 0.0
    %982 = vmatprep.subr.mxu0 0.0
    %983 = vmatpush1.msra.mxu0 0.0
    %984 = vmatprep.subr.mxu0 0.0
    %985 = vmatpush1.msra.mxu0 0.0
    %986 = vmatprep.subr.mxu0 0.0
    %987 = vmatpush1.msra.mxu0 0.0
    %988 = vmatprep.subr.mxu0 0.0
    %989 = vmatpush1.msra.mxu0 0.0
    %990 = vmatprep.subr.mxu0 0.0
    %991 = vmatpush1.msra.mxu0 0.0
    %992 = vmatprep.subr.mxu0 0.0
    %993 = vmatpush1.msra.mxu0 0.0
    %994 = vmatprep.subr.mxu0 0.0
    %995 = vmatpush1.msra.mxu0 0.0
    %996 = vmatprep.subr.mxu0 0.0
    %997 = vmatpush1.msra.mxu0 0.0
    %998 = vmatprep.subr.mxu0 0.0
    %999 = vmatpush1.msra.mxu0 0.0
    %1000 = vmatprep.subr.mxu0 0.0
    %1001 = vmatpush1.msra.mxu0 0.0
    %1002 = vmatprep.subr.mxu0 0.0
    %1003 = vmatpush1.msra.mxu0 0.0
    %1004 = vmatprep.subr.mxu0 0.0
    %1005 = vmatpush1.msra.mxu0 0.0
    %1006 = vmatprep.subr.mxu0 0.0
    %1007 = vmatpush1.msra.mxu0 0.0
    %1008 = vmatprep.subr.mxu0 0.0
    %1009 = vmatpush1.msra.mxu0 0.0
    %1010 = vmatprep.subr.mxu0 0.0
    %1011 = vmatpush1.msra.mxu0 0.0
    %1012 = vmatprep.subr.mxu0 0.0
    %1013 = vmatpush1.msra.mxu0 0.0
    %1014 = vmatprep.subr.mxu0 0.0
    %1015 = vmatpush1.msra.mxu0 0.0
    %1016 = vmatprep.subr.mxu0 0.0
    %1017 = vmatpush1.msra.mxu0 0.0
    %1018 = vmatprep.subr.mxu0 0.0
    %1019 = vmatpush1.msra.mxu0 0.0
    %1020 = vmatprep.subr.mxu0 0.0
    %1021 = vmatpush1.msra.mxu0 0.0
    %1022 = vmatprep.subr.mxu0 0.0
    %1023 = vmatpush1.msra.mxu0 0.0
    %1024 = vmatprep.subr.mxu0 0.0
    %1025 = vmatpush1.msra.mxu0 0.0
    %1026 = vmatprep.subr.mxu0 0.0
    %1027 = vmatpush1.msra.mxu0 0.0
    %1028 = vmatprep.subr.mxu0 0.0
    %1029 = vmatpush1.msra.mxu0 0.0
    %1030 = vmatprep.subr.mxu0 0.0
    %1031 = vmatpush1.msra.mxu0 0.0
    %1032 = vmatprep.subr.mxu0 0.0
    %1033 = vmatpush1.msra.mxu0 0.0
    %1034 = vmatprep.subr.mxu0 0.0
    %1035 = vmatpush1.msra.mxu0 0.0
    %1036 = vmatprep.subr.mxu0 0.0
    %1037 = vmatpush1.msra.mxu0 0.0
    %1038 = vmatprep.mubr.f32.mxu0 0.0
    %1039 = vmatmul.mubr.f32.gmra.mrb[0].mxu0 %v948
    %v1040 = vpop.f32.mrb[0].mxu0
    %v1041 = vadd.f32 0.0, %v1040
    %v1042 = vpop.f32.mrb[0].mxu0
    %1043 = vmatprep.mubr.f32.mxu0 0.0
    %1044 = vmatmul.mubr.f32.gmra.mrb[0].mxu0 %v951
    %v1045 = vpop.f32.mrb[0].mxu0
    %v1046 = vadd.f32 0.0, %v1045
    %v1047 = vpop.f32.mrb[0].mxu0
    %1048 = vmatprep.mubr.f32.mxu0 0.0
    %1049 = vmatmul.mubr.f32.gmra.mrb[0].mxu0 %v954
    %v1050 = vpop.f32.mrb[0].mxu0
    %v1051 = vadd.f32 0.0, %v1050
    %v1052 = vpop.f32.mrb[0].mxu0
    %1053 = vmatprep.mubr.f32.mxu0 0.0
    %1054 = vmatmul.mubr.f32.gmra.mrb[0].mxu0 %v957
    %v1055 = vpop.f32.mrb[0].mxu0
    %v1056 = vadd.f32 0.0, %v1055
    %v1057 = vpop.f32.mrb[0].mxu0
    %1058 = vmatprep.mubr.f32.mxu0 0.0
    %1059 = vmatmul.mubr.f32.gmra.mrb[0].mxu0 %v960
    %v1060 = vpop.f32.mrb[0].mxu0
    %v1061 = vadd.f32 0.0, %v1060
    %v1062 = vpop.f32.mrb[0].mxu0
    %1063 = vmatprep.mubr.f32.mxu0 0.0
    %1064 = vmatmul.mubr.f32.gmra.mrb[0].mxu0 %v963
    %v1065 = vpop.f32.mrb[0].mxu0
    %v1066 = vadd.f32 0.0, %v1065
    %v1067 = vpop.f32.mrb[0].mxu0
    %1068 = vmatprep.mubr.f32.mxu0 0.0
    %1069 = vmatmul.mubr.f32.gmra.mrb[0].mxu0 %v966
    %v1070 = vpop.f32.mrb[0].mxu0
    %v1071 = vadd.f32 0.0, %v1070
    %v1072 = vpop.f32.mrb[0].mxu0
    %1073 = vmatprep.mubr.f32.mxu0 0.0
    %1074 = vmatmul.mubr.f32.gmra.mrb[0].mxu0 %v969
    %v1075 = vpop.f32.mrb[0].mxu0
    %v1076 = vadd.f32 0.0, %v1075
    %v1077 = vpop.f32.mrb[0].mxu0
    %1078 = vdwg.mxu0
    %v1079 = vadd.f32 %v922, %v1041
    %v1080 = vadd.f32 %v923, %v1046
    %v1081 = vadd.f32 %v924, %v1051
    %v1082 = vadd.f32 %v925, %v1056
    %v1083 = vadd.f32 %v926, %v1061
    %v1084 = vadd.f32 %v927, %v1066
    %v1085 = vadd.f32 %v928, %v1071
    %v1086 = vadd.f32 %v929, %v1076
    %v1087 = vld [vmem:[%s0 + $0x20] sm:$0xff]
    %v1088 = vld [vmem:[%s0 + $0x28] sm:$0xff]
    %v1089 = vld [vmem:[%s0 + $0x30] sm:$0xff]
    %v1090 = vld [vmem:[%s0 + $0x38] sm:$0xff]
    %v1091 = vld [vmem:[%s0 + $0x40] sm:$0xff]
    %v1092 = vld [vmem:[%s0 + $0x48] sm:$0xff]
    %v1093 = vld [vmem:[%s0 + $0x50] sm:$0xff]
    %v1094 = vld [vmem:[%s0 + $0x58] sm:$0xff]
    %v1095 = vmul.f32 %v1087, %v142
    %v1096 = vmul.f32 %v1088, %v143
    %v1097 = vmul.f32 %v1089, %v144
    %v1098 = vmul.f32 %v1090, %v145
    %v1099 = vmul.f32 %v1091, %v146
    %v1100 = vmul.f32 %v1092, %v147
    %v1101 = vmul.f32 %v1093, %v148
    %v1102 = vmul.f32 %v1094, %v149
    %v1103 = vld [vmem:[%s1 + $0x18] sm:$0xf]
    %v1105 = vsel %vm201, %v1095, 0
    %v1108 = vsel %vm201, %v1096, 0
    %v1111 = vsel %vm201, %v1097, 0
    %v1114 = vsel %vm201, %v1098, 0
    %v1117 = vsel %vm201, %v1099, 0
    %v1120 = vsel %vm201, %v1100, 0
    %v1123 = vsel %vm201, %v1101, 0
    %v1126 = vsel %vm201, %v1102, 0
    %v1129 = vsel %vm226, %v1103, 0
    %1131 = vmatprep.subr.mxu0 0.0
    %1132 = vmatpush1.msra.mxu0 %v1129
    %1133 = vmatprep.subr.mxu0 0.0
    %1134 = vmatpush1.msra.mxu0 0.0
    %1135 = vmatprep.subr.mxu0 0.0
    %1136 = vmatpush1.msra.mxu0 0.0
    %1137 = vmatprep.subr.mxu0 0.0
    %1138 = vmatpush1.msra.mxu0 0.0
    %1139 = vmatprep.subr.mxu0 0.0
    %1140 = vmatpush1.msra.mxu0 0.0
    %1141 = vmatprep.subr.mxu0 0.0
    %1142 = vmatpush1.msra.mxu0 0.0
    %1143 = vmatprep.subr.mxu0 0.0
    %1144 = vmatpush1.msra.mxu0 0.0
    %1145 = vmatprep.subr.mxu0 0.0
    %1146 = vmatpush1.msra.mxu0 0.0
    %1147 = vmatprep.subr.mxu0 0.0
    %1148 = vmatpush1.msra.mxu0 0.0
    %1149 = vmatprep.subr.mxu0 0.0
    %1150 = vmatpush1.msra.mxu0 0.0
    %1151 = vmatprep.subr.mxu0 0.0
    %1152 = vmatpush1.msra.mxu0 0.0
    %1153 = vmatprep.subr.mxu0 0.0
    %1154 = vmatpush1.msra.mxu0 0.0
    %1155 = vmatprep.subr.mxu0 0.0
    %1156 = vmatpush1.msra.mxu0 0.0
    %1157 = vmatprep.subr.mxu0 0.0
    %1158 = vmatpush1.msra.mxu0 0.0
    %1159 = vmatprep.subr.mxu0 0.0
    %1160 = vmatpush1.msra.mxu0 0.0
    %1161 = vmatprep.subr.mxu0 0.0
    %1162 = vmatpush1.msra.mxu0 0.0
    %1163 = vmatprep.subr.mxu0 0.0
    %1164 = vmatpush1.msra.mxu0 0.0
    %1165 = vmatprep.subr.mxu0 0.0
    %1166 = vmatpush1.msra.mxu0 0.0
    %1167 = vmatprep.subr.mxu0 0.0
    %1168 = vmatpush1.msra.mxu0 0.0
    %1169 = vmatprep.subr.mxu0 0.0
    %1170 = vmatpush1.msra.mxu0 0.0
    %1171 = vmatprep.subr.mxu0 0.0
    %1172 = vmatpush1.msra.mxu0 0.0
    %1173 = vmatprep.subr.mxu0 0.0
    %1174 = vmatpush1.msra.mxu0 0.0
    %1175 = vmatprep.subr.mxu0 0.0
    %1176 = vmatpush1.msra.mxu0 0.0
    %1177 = vmatprep.subr.mxu0 0.0
    %1178 = vmatpush1.msra.mxu0 0.0
    %1179 = vmatprep.subr.mxu0 0.0
    %1180 = vmatpush1.msra.mxu0 0.0
    %1181 = vmatprep.subr.mxu0 0.0
    %1182 = vmatpush1.msra.mxu0 0.0
    %1183 = vmatprep.subr.mxu0 0.0
    %1184 = vmatpush1.msra.mxu0 0.0
    %1185 = vmatprep.subr.mxu0 0.0
    %1186 = vmatpush1.msra.mxu0 0.0
    %1187 = vmatprep.subr.mxu0 0.0
    %1188 = vmatpush1.msra.mxu0 0.0
    %1189 = vmatprep.subr.mxu0 0.0
    %1190 = vmatpush1.msra.mxu0 0.0
    %1191 = vmatprep.subr.mxu0 0.0
    %1192 = vmatpush1.msra.mxu0 0.0
    %1193 = vmatprep.subr.mxu0 0.0
    %1194 = vmatpush1.msra.mxu0 0.0
    %1195 = vmatprep.mubr.f32.mxu0 0.0
    %1196 = vmatmul.mubr.f32.gmra.mrb[0].mxu0 %v1105
    %v1197 = vpop.f32.mrb[0].mxu0
    %v1198 = vadd.f32 0.0, %v1197
    %v1199 = vpop.f32.mrb[0].mxu0
    %1200 = vmatprep.mubr.f32.mxu0 0.0
    %1201 = vmatmul.mubr.f32.gmra.mrb[0].mxu0 %v1108
    %v1202 = vpop.f32.mrb[0].mxu0
    %v1203 = vadd.f32 0.0, %v1202
    %v1204 = vpop.f32.mrb[0].mxu0
    %1205 = vmatprep.mubr.f32.mxu0 0.0
    %1206 = vmatmul.mubr.f32.gmra.mrb[0].mxu0 %v1111
    %v1207 = vpop.f32.mrb[0].mxu0
    %v1208 = vadd.f32 0.0, %v1207
    %v1209 = vpop.f32.mrb[0].mxu0
    %1210 = vmatprep.mubr.f32.mxu0 0.0
    %1211 = vmatmul.mubr.f32.gmra.mrb[0].mxu0 %v1114
    %v1212 = vpop.f32.mrb[0].mxu0
    %v1213 = vadd.f32 0.0, %v1212
    %v1214 = vpop.f32.mrb[0].mxu0
    %1215 = vmatprep.mubr.f32.mxu0 0.0
    %1216 = vmatmul.mubr.f32.gmra.mrb[0].mxu0 %v1117
    %v1217 = vpop.f32.mrb[0].mxu0
    %v1218 = vadd.f32 0.0, %v1217
    %v1219 = vpop.f32.mrb[0].mxu0
    %1220 = vmatprep.mubr.f32.mxu0 0.0
    %1221 = vmatmul.mubr.f32.gmra.mrb[0].mxu0 %v1120
    %v1222 = vpop.f32.mrb[0].mxu0
    %v1223 = vadd.f32 0.0, %v1222
    %v1224 = vpop.f32.mrb[0].mxu0
    %1225 = vmatprep.mubr.f32.mxu0 0.0
    %1226 = vmatmul.mubr.f32.gmra.mrb[0].mxu0 %v1123
    %v1227 = vpop.f32.mrb[0].mxu0
    %v1228 = vadd.f32 0.0, %v1227
    %v1229 = vpop.f32.mrb[0].mxu0
    %1230 = vmatprep.mubr.f32.mxu0 0.0
    %1231 = vmatmul.mubr.f32.gmra.mrb[0].mxu0 %v1126
    %v1232 = vpop.f32.mrb[0].mxu0
    %v1233 = vadd.f32 0.0, %v1232
    %v1234 = vpop.f32.mrb[0].mxu0
    %1235 = vdwg.mxu0
    %v1236 = vadd.f32 %v1079, %v1198
    %v1237 = vadd.f32 %v1080, %v1203
    %v1238 = vadd.f32 %v1081, %v1208
    %v1239 = vadd.f32 %v1082, %v1213
    %v1240 = vadd.f32 %v1083, %v1218
    %v1241 = vadd.f32 %v1084, %v1223
    %v1242 = vadd.f32 %v1085, %v1228
    %v1243 = vadd.f32 %v1086, %v1233
    %v1244 = vld [vmem:[%s0 + $0x21] sm:$0xff]
    %v1245 = vld [vmem:[%s0 + $0x29] sm:$0xff]
    %v1246 = vld [vmem:[%s0 + $0x31] sm:$0xff]
    %v1247 = vld [vmem:[%s0 + $0x39] sm:$0xff]
    %v1248 = vld [vmem:[%s0 + $0x41] sm:$0xff]
    %v1249 = vld [vmem:[%s0 + $0x49] sm:$0xff]
    %v1250 = vld [vmem:[%s0 + $0x51] sm:$0xff]
    %v1251 = vld [vmem:[%s0 + $0x59] sm:$0xff]
    %v1252 = vld [vmem:[%s1 + $0x1c] sm:$0xf]
    %v1254 = vsel %vm201, %v1244, 0
    %v1257 = vsel %vm201, %v1245, 0
    %v1260 = vsel %vm201, %v1246, 0
    %v1263 = vsel %vm201, %v1247, 0
    %v1266 = vsel %vm201, %v1248, 0
    %v1269 = vsel %vm201, %v1249, 0
    %v1272 = vsel %vm201, %v1250, 0
    %v1275 = vsel %vm201, %v1251, 0
    %v1278 = vsel %vm226, %v1252, 0
    %1280 = vmatprep.subr.mxu0 0.0
    %1281 = vmatpush1.msra.mxu0 %v1278
    %1282 = vmatprep.subr.mxu0 0.0
    %1283 = vmatpush1.msra.mxu0 0.0
    %1284 = vmatprep.subr.mxu0 0.0
    %1285 = vmatpush1.msra.mxu0 0.0
    %1286 = vmatprep.subr.mxu0 0.0
    %1287 = vmatpush1.msra.mxu0 0.0
    %1288 = vmatprep.subr.mxu0 0.0
    %1289 = vmatpush1.msra.mxu0 0.0
    %1290 = vmatprep.subr.mxu0 0.0
    %1291 = vmatpush1.msra.mxu0 0.0
    %1292 = vmatprep.subr.mxu0 0.0
    %1293 = vmatpush1.msra.mxu0 0.0
    %1294 = vmatprep.subr.mxu0 0.0
    %1295 = vmatpush1.msra.mxu0 0.0
    %1296 = vmatprep.subr.mxu0 0.0
    %1297 = vmatpush1.msra.mxu0 0.0
    %1298 = vmatprep.subr.mxu0 0.0
    %1299 = vmatpush1.msra.mxu0 0.0
    %1300 = vmatprep.subr.mxu0 0.0
    %1301 = vmatpush1.msra.mxu0 0.0
    %1302 = vmatprep.subr.mxu0 0.0
    %1303 = vmatpush1.msra.mxu0 0.0
    %1304 = vmatprep.subr.mxu0 0.0
    %1305 = vmatpush1.msra.mxu0 0.0
    %1306 = vmatprep.subr.mxu0 0.0
    %1307 = vmatpush1.msra.mxu0 0.0
    %1308 = vmatprep.subr.mxu0 0.0
    %1309 = vmatpush1.msra.mxu0 0.0
    %1310 = vmatprep.subr.mxu0 0.0
    %1311 = vmatpush1.msra.mxu0 0.0
    %1312 = vmatprep.subr.mxu0 0.0
    %1313 = vmatpush1.msra.mxu0 0.0
    %1314 = vmatprep.subr.mxu0 0.0
    %1315 = vmatpush1.msra.mxu0 0.0
    %1316 = vmatprep.subr.mxu0 0.0
    %1317 = vmatpush1.msra.mxu0 0.0
    %1318 = vmatprep.subr.mxu0 0.0
    %1319 = vmatpush1.msra.mxu0 0.0
    %1320 = vmatprep.subr.mxu0 0.0
    %1321 = vmatpush1.msra.mxu0 0.0
    %1322 = vmatprep.subr.mxu0 0.0
    %1323 = vmatpush1.msra.mxu0 0.0
    %1324 = vmatprep.subr.mxu0 0.0
    %1325 = vmatpush1.msra.mxu0 0.0
    %1326 = vmatprep.subr.mxu0 0.0
    %1327 = vmatpush1.msra.mxu0 0.0
    %1328 = vmatprep.subr.mxu0 0.0
    %1329 = vmatpush1.msra.mxu0 0.0
    %1330 = vmatprep.subr.mxu0 0.0
    %1331 = vmatpush1.msra.mxu0 0.0
    %1332 = vmatprep.subr.mxu0 0.0
    %1333 = vmatpush1.msra.mxu0 0.0
    %1334 = vmatprep.subr.mxu0 0.0
    %1335 = vmatpush1.msra.mxu0 0.0
    %1336 = vmatprep.subr.mxu0 0.0
    %1337 = vmatpush1.msra.mxu0 0.0
    %1338 = vmatprep.subr.mxu0 0.0
    %1339 = vmatpush1.msra.mxu0 0.0
    %1340 = vmatprep.subr.mxu0 0.0
    %1341 = vmatpush1.msra.mxu0 0.0
    %1342 = vmatprep.subr.mxu0 0.0
    %1343 = vmatpush1.msra.mxu0 0.0
    %1344 = vmatprep.mubr.f32.mxu0 0.0
    %1345 = vmatmul.mubr.f32.gmra.mrb[0].mxu0 %v1254
    %v1346 = vpop.f32.mrb[0].mxu0
    %v1347 = vadd.f32 0.0, %v1346
    %v1348 = vpop.f32.mrb[0].mxu0
    %1349 = vmatprep.mubr.f32.mxu0 0.0
    %1350 = vmatmul.mubr.f32.gmra.mrb[0].mxu0 %v1257
    %v1351 = vpop.f32.mrb[0].mxu0
    %v1352 = vadd.f32 0.0, %v1351
    %v1353 = vpop.f32.mrb[0].mxu0
    %1354 = vmatprep.mubr.f32.mxu0 0.0
    %1355 = vmatmul.mubr.f32.gmra.mrb[0].mxu0 %v1260
    %v1356 = vpop.f32.mrb[0].mxu0
    %v1357 = vadd.f32 0.0, %v1356
    %v1358 = vpop.f32.mrb[0].mxu0
    %1359 = vmatprep.mubr.f32.mxu0 0.0
    %1360 = vmatmul.mubr.f32.gmra.mrb[0].mxu0 %v1263
    %v1361 = vpop.f32.mrb[0].mxu0
    %v1362 = vadd.f32 0.0, %v1361
    %v1363 = vpop.f32.mrb[0].mxu0
    %1364 = vmatprep.mubr.f32.mxu0 0.0
    %1365 = vmatmul.mubr.f32.gmra.mrb[0].mxu0 %v1266
    %v1366 = vpop.f32.mrb[0].mxu0
    %v1367 = vadd.f32 0.0, %v1366
    %v1368 = vpop.f32.mrb[0].mxu0
    %1369 = vmatprep.mubr.f32.mxu0 0.0
    %1370 = vmatmul.mubr.f32.gmra.mrb[0].mxu0 %v1269
    %v1371 = vpop.f32.mrb[0].mxu0
    %v1372 = vadd.f32 0.0, %v1371
    %v1373 = vpop.f32.mrb[0].mxu0
    %1374 = vmatprep.mubr.f32.mxu0 0.0
    %1375 = vmatmul.mubr.f32.gmra.mrb[0].mxu0 %v1272
    %v1376 = vpop.f32.mrb[0].mxu0
    %v1377 = vadd.f32 0.0, %v1376
    %v1378 = vpop.f32.mrb[0].mxu0
    %1379 = vmatprep.mubr.f32.mxu0 0.0
    %1380 = vmatmul.mubr.f32.gmra.mrb[0].mxu0 %v1275
    %v1381 = vpop.f32.mrb[0].mxu0
    %v1382 = vadd.f32 0.0, %v1381
    %v1383 = vpop.f32.mrb[0].mxu0
    %1384 = vdwg.mxu0
    %v1385 = vadd.f32 %v1236, %v1347
    %v1386 = vadd.f32 %v1237, %v1352
    %v1387 = vadd.f32 %v1238, %v1357
    %v1388 = vadd.f32 %v1239, %v1362
    %v1389 = vadd.f32 %v1240, %v1367
    %v1390 = vadd.f32 %v1241, %v1372
    %v1391 = vadd.f32 %v1242, %v1377
    %v1392 = vadd.f32 %v1243, %v1382
    %v1393 = vld [vmem:[%s0 + $0x22] sm:$0xff]
    %v1394 = vld [vmem:[%s0 + $0x2a] sm:$0xff]
    %v1395 = vld [vmem:[%s0 + $0x32] sm:$0xff]
    %v1396 = vld [vmem:[%s0 + $0x3a] sm:$0xff]
    %v1397 = vld [vmem:[%s0 + $0x42] sm:$0xff]
    %v1398 = vld [vmem:[%s0 + $0x4a] sm:$0xff]
    %v1399 = vld [vmem:[%s0 + $0x52] sm:$0xff]
    %v1400 = vld [vmem:[%s0 + $0x5a] sm:$0xff]
    %v1401 = vmul.f32 %v1393, %v166
    %v1402 = vmul.f32 %v1394, %v167
    %v1403 = vmul.f32 %v1395, %v168
    %v1404 = vmul.f32 %v1396, %v169
    %v1405 = vmul.f32 %v1397, %v170
    %v1406 = vmul.f32 %v1398, %v171
    %v1407 = vmul.f32 %v1399, %v172
    %v1408 = vmul.f32 %v1400, %v173
    %v1409 = vld [vmem:[%s1 + $0x20] sm:$0xf]
    %v1411 = vsel %vm201, %v1401, 0
    %v1414 = vsel %vm201, %v1402, 0
    %v1417 = vsel %vm201, %v1403, 0
    %v1420 = vsel %vm201, %v1404, 0
    %v1423 = vsel %vm201, %v1405, 0
    %v1426 = vsel %vm201, %v1406, 0
    %v1429 = vsel %vm201, %v1407, 0
    %v1432 = vsel %vm201, %v1408, 0
    %v1435 = vsel %vm226, %v1409, 0
    %1437 = vmatprep.subr.mxu0 0.0
    %1438 = vmatpush1.msra.mxu0 %v1435
    %1439 = vmatprep.subr.mxu0 0.0
    %1440 = vmatpush1.msra.mxu0 0.0
    %1441 = vmatprep.subr.mxu0 0.0
    %1442 = vmatpush1.msra.mxu0 0.0
    %1443 = vmatprep.subr.mxu0 0.0
    %1444 = vmatpush1.msra.mxu0 0.0
    %1445 = vmatprep.subr.mxu0 0.0
    %1446 = vmatpush1.msra.mxu0 0.0
    %1447 = vmatprep.subr.mxu0 0.0
    %1448 = vmatpush1.msra.mxu0 0.0
    %1449 = vmatprep.subr.mxu0 0.0
    %1450 = vmatpush1.msra.mxu0 0.0
    %1451 = vmatprep.subr.mxu0 0.0
    %1452 = vmatpush1.msra.mxu0 0.0
    %1453 = vmatprep.subr.mxu0 0.0
    %1454 = vmatpush1.msra.mxu0 0.0
    %1455 = vmatprep.subr.mxu0 0.0
    %1456 = vmatpush1.msra.mxu0 0.0
    %1457 = vmatprep.subr.mxu0 0.0
    %1458 = vmatpush1.msra.mxu0 0.0
    %1459 = vmatprep.subr.mxu0 0.0
    %1460 = vmatpush1.msra.mxu0 0.0
    %1461 = vmatprep.subr.mxu0 0.0
    %1462 = vmatpush1.msra.mxu0 0.0
    %1463 = vmatprep.subr.mxu0 0.0
    %1464 = vmatpush1.msra.mxu0 0.0
    %1465 = vmatprep.subr.mxu0 0.0
    %1466 = vmatpush1.msra.mxu0 0.0
    %1467 = vmatprep.subr.mxu0 0.0
    %1468 = vmatpush1.msra.mxu0 0.0
    %1469 = vmatprep.subr.mxu0 0.0
    %1470 = vmatpush1.msra.mxu0 0.0
    %1471 = vmatprep.subr.mxu0 0.0
    %1472 = vmatpush1.msra.mxu0 0.0
    %1473 = vmatprep.subr.mxu0 0.0
    %1474 = vmatpush1.msra.mxu0 0.0
    %1475 = vmatprep.subr.mxu0 0.0
    %1476 = vmatpush1.msra.mxu0 0.0
    %1477 = vmatprep.subr.mxu0 0.0
    %1478 = vmatpush1.msra.mxu0 0.0
    %1479 = vmatprep.subr.mxu0 0.0
    %1480 = vmatpush1.msra.mxu0 0.0
    %1481 = vmatprep.subr.mxu0 0.0
    %1482 = vmatpush1.msra.mxu0 0.0
    %1483 = vmatprep.subr.mxu0 0.0
    %1484 = vmatpush1.msra.mxu0 0.0
    %1485 = vmatprep.subr.mxu0 0.0
    %1486 = vmatpush1.msra.mxu0 0.0
    %1487 = vmatprep.subr.mxu0 0.0
    %1488 = vmatpush1.msra.mxu0 0.0
    %1489 = vmatprep.subr.mxu0 0.0
    %1490 = vmatpush1.msra.mxu0 0.0
    %1491 = vmatprep.subr.mxu0 0.0
    %1492 = vmatpush1.msra.mxu0 0.0
    %1493 = vmatprep.subr.mxu0 0.0
    %1494 = vmatpush1.msra.mxu0 0.0
    %1495 = vmatprep.subr.mxu0 0.0
    %1496 = vmatpush1.msra.mxu0 0.0
    %1497 = vmatprep.subr.mxu0 0.0
    %1498 = vmatpush1.msra.mxu0 0.0
    %1499 = vmatprep.subr.mxu0 0.0
    %1500 = vmatpush1.msra.mxu0 0.0
    %1501 = vmatprep.mubr.f32.mxu0 0.0
    %1502 = vmatmul.mubr.f32.gmra.mrb[0].mxu0 %v1411
    %v1503 = vpop.f32.mrb[0].mxu0
    %v1504 = vadd.f32 0.0, %v1503
    %v1505 = vpop.f32.mrb[0].mxu0
    %1506 = vmatprep.mubr.f32.mxu0 0.0
    %1507 = vmatmul.mubr.f32.gmra.mrb[0].mxu0 %v1414
    %v1508 = vpop.f32.mrb[0].mxu0
    %v1509 = vadd.f32 0.0, %v1508
    %v1510 = vpop.f32.mrb[0].mxu0
    %1511 = vmatprep.mubr.f32.mxu0 0.0
    %1512 = vmatmul.mubr.f32.gmra.mrb[0].mxu0 %v1417
    %v1513 = vpop.f32.mrb[0].mxu0
    %v1514 = vadd.f32 0.0, %v1513
    %v1515 = vpop.f32.mrb[0].mxu0
    %1516 = vmatprep.mubr.f32.mxu0 0.0
    %1517 = vmatmul.mubr.f32.gmra.mrb[0].mxu0 %v1420
    %v1518 = vpop.f32.mrb[0].mxu0
    %v1519 = vadd.f32 0.0, %v1518
    %v1520 = vpop.f32.mrb[0].mxu0
    %1521 = vmatprep.mubr.f32.mxu0 0.0
    %1522 = vmatmul.mubr.f32.gmra.mrb[0].mxu0 %v1423
    %v1523 = vpop.f32.mrb[0].mxu0
    %v1524 = vadd.f32 0.0, %v1523
    %v1525 = vpop.f32.mrb[0].mxu0
    %1526 = vmatprep.mubr.f32.mxu0 0.0
    %1527 = vmatmul.mubr.f32.gmra.mrb[0].mxu0 %v1426
    %v1528 = vpop.f32.mrb[0].mxu0
    %v1529 = vadd.f32 0.0, %v1528
    %v1530 = vpop.f32.mrb[0].mxu0
    %1531 = vmatprep.mubr.f32.mxu0 0.0
    %1532 = vmatmul.mubr.f32.gmra.mrb[0].mxu0 %v1429
    %v1533 = vpop.f32.mrb[0].mxu0
    %v1534 = vadd.f32 0.0, %v1533
    %v1535 = vpop.f32.mrb[0].mxu0
    %1536 = vmatprep.mubr.f32.mxu0 0.0
    %1537 = vmatmul.mubr.f32.gmra.mrb[0].mxu0 %v1432
    %v1538 = vpop.f32.mrb[0].mxu0
    %v1539 = vadd.f32 0.0, %v1538
    %v1540 = vpop.f32.mrb[0].mxu0
    %1541 = vdwg.mxu0
    %v1542 = vadd.f32 %v1385, %v1504
    %v1543 = vadd.f32 %v1386, %v1509
    %v1544 = vadd.f32 %v1387, %v1514
    %v1545 = vadd.f32 %v1388, %v1519
    %v1546 = vadd.f32 %v1389, %v1524
    %v1547 = vadd.f32 %v1390, %v1529
    %v1548 = vadd.f32 %v1391, %v1534
    %v1549 = vadd.f32 %v1392, %v1539
    %v1551 = vlaneseq
    %v1552 = vshrl.u32 %v1551, 7
    %v1553 = vsub.s32 0, %v1552
    %v1554 = vrot.slane %v174, %v1553
    %v1556 = vadd.f32 %v1542, %v1554
    %v1557 = vadd.f32 %v1543, %v1554
    %v1558 = vadd.f32 %v1544, %v1554
    %v1559 = vadd.f32 %v1545, %v1554
    %v1560 = vadd.f32 %v1546, %v1554
    %v1561 = vadd.f32 %v1547, %v1554
    %v1562 = vadd.f32 %v1548, %v1554
    %v1563 = vadd.f32 %v1549, %v1554
    %v1564 = vmax.f32 %v1556, 0.0
    %v1565 = vmax.f32 %v1557, 0.0
    %v1566 = vmax.f32 %v1558, 0.0
    %v1567 = vmax.f32 %v1559, 0.0
    %v1568 = vmax.f32 %v1560, 0.0
    %v1569 = vmax.f32 %v1561, 0.0
    %v1570 = vmax.f32 %v1562, 0.0
    %v1571 = vmax.f32 %v1563, 0.0
    %v1572 = vadd.f32 %v1564, %v1565
    %v1573 = vadd.f32 %v1572, %v1566
    %v1574 = vadd.f32 %v1573, %v1567
    %v1575 = vadd.f32 %v1574, %v1568
    %v1576 = vadd.f32 %v1575, %v1569
    %v1577 = vadd.f32 %v1576, %v1570
    %v1578 = vadd.f32 %v1577, %v1571
    %v1579 = vrot.slane %v1578, 4
    %v1580 = vadd.f32 %v1578, %v1579
    %v1581 = vrot.slane %v1580, 2
    %v1582 = vadd.f32 %v1580, %v1581
    %v1583 = vrot.slane %v1582, 1
    %v1584 = vadd.f32 %v1582, %v1583
    %v1585 = vadd.f32 %v1584, 0.0
    %v1586 = vld [vmem:[%s0 + $0x40] sm:$0xff]
    %v1587 = vld [vmem:[%s0 + $0x48] sm:$0xff]
    %v1588 = vld [vmem:[%s0 + $0x50] sm:$0xff]
    %v1589 = vld [vmem:[%s0 + $0x58] sm:$0xff]
    %v1590 = vld [vmem:[%s0 + $0x60] sm:$0xff]
    %v1591 = vld [vmem:[%s0 + $0x68] sm:$0xff]
    %v1592 = vld [vmem:[%s0 + $0x70] sm:$0xff]
    %v1593 = vld [vmem:[%s0 + $0x78] sm:$0xff]
    %v1594 = vmul.f32 %v1586, %v142
    %v1595 = vmul.f32 %v1587, %v143
    %v1596 = vmul.f32 %v1588, %v144
    %v1597 = vmul.f32 %v1589, %v145
    %v1598 = vmul.f32 %v1590, %v146
    %v1599 = vmul.f32 %v1591, %v147
    %v1600 = vmul.f32 %v1592, %v148
    %v1601 = vmul.f32 %v1593, %v149
    %v1602 = vld [vmem:[%s0 + $0x41] sm:$0xff]
    %v1603 = vld [vmem:[%s0 + $0x49] sm:$0xff]
    %v1604 = vld [vmem:[%s0 + $0x51] sm:$0xff]
    %v1605 = vld [vmem:[%s0 + $0x59] sm:$0xff]
    %v1606 = vld [vmem:[%s0 + $0x61] sm:$0xff]
    %v1607 = vld [vmem:[%s0 + $0x69] sm:$0xff]
    %v1608 = vld [vmem:[%s0 + $0x71] sm:$0xff]
    %v1609 = vld [vmem:[%s0 + $0x79] sm:$0xff]
    %v1611 = vsel %vm201, %v1602, 0
    %v1614 = vsel %vm201, %v1603, 0
    %v1617 = vsel %vm201, %v1604, 0
    %v1620 = vsel %vm201, %v1605, 0
    %v1623 = vsel %vm201, %v1606, 0
    %v1626 = vsel %vm201, %v1607, 0
    %v1629 = vsel %vm201, %v1608, 0
    %v1632 = vsel %vm201, %v1609, 0
    %1634 = vmatprep.subr.mxu0 0.0
    %1635 = vmatpush1.msra.mxu0 %v228
    %1636 = vmatprep.subr.mxu0 0.0
    %1637 = vmatpush1.msra.mxu0 0.0
    %1638 = vmatprep.subr.mxu0 0.0
    %1639 = vmatpush1.msra.mxu0 0.0
    %1640 = vmatprep.subr.mxu0 0.0
    %1641 = vmatpush1.msra.mxu0 0.0
    %1642 = vmatprep.subr.mxu0 0.0
    %1643 = vmatpush1.msra.mxu0 0.0
    %1644 = vmatprep.subr.mxu0 0.0
    %1645 = vmatpush1.msra.mxu0 0.0
    %1646 = vmatprep.subr.mxu0 0.0
    %1647 = vmatpush1.msra.mxu0 0.0
    %1648 = vmatprep.subr.mxu0 0.0
    %1649 = vmatpush1.msra.mxu0 0.0
    %1650 = vmatprep.subr.mxu0 0.0
    %1651 = vmatpush1.msra.mxu0 0.0
    %1652 = vmatprep.subr.mxu0 0.0
    %1653 = vmatpush1.msra.mxu0 0.0
    %1654 = vmatprep.subr.mxu0 0.0
    %1655 = vmatpush1.msra.mxu0 0.0
    %1656 = vmatprep.subr.mxu0 0.0
    %1657 = vmatpush1.msra.mxu0 0.0
    %1658 = vmatprep.subr.mxu0 0.0
    %1659 = vmatpush1.msra.mxu0 0.0
    %1660 = vmatprep.subr.mxu0 0.0
    %1661 = vmatpush1.msra.mxu0 0.0
    %1662 = vmatprep.subr.mxu0 0.0
    %1663 = vmatpush1.msra.mxu0 0.0
    %1664 = vmatprep.subr.mxu0 0.0
    %1665 = vmatpush1.msra.mxu0 0.0
    %1666 = vmatprep.subr.mxu0 0.0
    %1667 = vmatpush1.msra.mxu0 0.0
    %1668 = vmatprep.subr.mxu0 0.0
    %1669 = vmatpush1.msra.mxu0 0.0
    %1670 = vmatprep.subr.mxu0 0.0
    %1671 = vmatpush1.msra.mxu0 0.0
    %1672 = vmatprep.subr.mxu0 0.0
    %1673 = vmatpush1.msra.mxu0 0.0
    %1674 = vmatprep.subr.mxu0 0.0
    %1675 = vmatpush1.msra.mxu0 0.0
    %1676 = vmatprep.subr.mxu0 0.0
    %1677 = vmatpush1.msra.mxu0 0.0
    %1678 = vmatprep.subr.mxu0 0.0
    %1679 = vmatpush1.msra.mxu0 0.0
    %1680 = vmatprep.subr.mxu0 0.0
    %1681 = vmatpush1.msra.mxu0 0.0
    %1682 = vmatprep.subr.mxu0 0.0
    %1683 = vmatpush1.msra.mxu0 0.0
    %1684 = vmatprep.subr.mxu0 0.0
    %1685 = vmatpush1.msra.mxu0 0.0
    %1686 = vmatprep.subr.mxu0 0.0
    %1687 = vmatpush1.msra.mxu0 0.0
    %1688 = vmatprep.subr.mxu0 0.0
    %1689 = vmatpush1.msra.mxu0 0.0
    %1690 = vmatprep.subr.mxu0 0.0
    %1691 = vmatpush1.msra.mxu0 0.0
    %1692 = vmatprep.subr.mxu0 0.0
    %1693 = vmatpush1.msra.mxu0 0.0
    %1694 = vmatprep.subr.mxu0 0.0
    %1695 = vmatpush1.msra.mxu0 0.0
    %1696 = vmatprep.subr.mxu0 0.0
    %1697 = vmatpush1.msra.mxu0 0.0
    %1698 = vmatprep.mubr.f32.mxu0 0.0
    %1699 = vmatmul.mubr.f32.gmra.mrb[0].mxu0 %v1611
    %v1700 = vpop.f32.mrb[0].mxu0
    %v1701 = vadd.f32 0.0, %v1700
    %v1702 = vpop.f32.mrb[0].mxu0
    %1703 = vmatprep.mubr.f32.mxu0 0.0
    %1704 = vmatmul.mubr.f32.gmra.mrb[0].mxu0 %v1614
    %v1705 = vpop.f32.mrb[0].mxu0
    %v1706 = vadd.f32 0.0, %v1705
    %v1707 = vpop.f32.mrb[0].mxu0
    %1708 = vmatprep.mubr.f32.mxu0 0.0
    %1709 = vmatmul.mubr.f32.gmra.mrb[0].mxu0 %v1617
    %v1710 = vpop.f32.mrb[0].mxu0
    %v1711 = vadd.f32 0.0, %v1710
    %v1712 = vpop.f32.mrb[0].mxu0
    %1713 = vmatprep.mubr.f32.mxu0 0.0
    %1714 = vmatmul.mubr.f32.gmra.mrb[0].mxu0 %v1620
    %v1715 = vpop.f32.mrb[0].mxu0
    %v1716 = vadd.f32 0.0, %v1715
    %v1717 = vpop.f32.mrb[0].mxu0
    %1718 = vmatprep.mubr.f32.mxu0 0.0
    %1719 = vmatmul.mubr.f32.gmra.mrb[0].mxu0 %v1623
    %v1720 = vpop.f32.mrb[0].mxu0
    %v1721 = vadd.f32 0.0, %v1720
    %v1722 = vpop.f32.mrb[0].mxu0
    %1723 = vmatprep.mubr.f32.mxu0 0.0
    %1724 = vmatmul.mubr.f32.gmra.mrb[0].mxu0 %v1626
    %v1725 = vpop.f32.mrb[0].mxu0
    %v1726 = vadd.f32 0.0, %v1725
    %v1727 = vpop.f32.mrb[0].mxu0
    %1728 = vmatprep.mubr.f32.mxu0 0.0
    %1729 = vmatmul.mubr.f32.gmra.mrb[0].mxu0 %v1629
    %v1730 = vpop.f32.mrb[0].mxu0
    %v1731 = vadd.f32 0.0, %v1730
    %v1732 = vpop.f32.mrb[0].mxu0
    %1733 = vmatprep.mubr.f32.mxu0 0.0
    %1734 = vmatmul.mubr.f32.gmra.mrb[0].mxu0 %v1632
    %v1735 = vpop.f32.mrb[0].mxu0
    %v1736 = vadd.f32 0.0, %v1735
    %v1737 = vpop.f32.mrb[0].mxu0
    %1738 = vdwg.mxu0
    %v1740 = vsel %vm201, %v1594, 0
    %v1743 = vsel %vm201, %v1595, 0
    %v1746 = vsel %vm201, %v1596, 0
    %v1749 = vsel %vm201, %v1597, 0
    %v1752 = vsel %vm201, %v1598, 0
    %v1755 = vsel %vm201, %v1599, 0
    %v1758 = vsel %vm201, %v1600, 0
    %v1761 = vsel %vm201, %v1601, 0
    %1763 = vmatprep.subr.mxu0 0.0
    %1764 = vmatpush1.msra.mxu0 %v360
    %1765 = vmatprep.subr.mxu0 0.0
    %1766 = vmatpush1.msra.mxu0 0.0
    %1767 = vmatprep.subr.mxu0 0.0
    %1768 = vmatpush1.msra.mxu0 0.0
    %1769 = vmatprep.subr.mxu0 0.0
    %1770 = vmatpush1.msra.mxu0 0.0
    %1771 = vmatprep.subr.mxu0 0.0
    %1772 = vmatpush1.msra.mxu0 0.0
    %1773 = vmatprep.subr.mxu0 0.0
    %1774 = vmatpush1.msra.mxu0 0.0
    %1775 = vmatprep.subr.mxu0 0.0
    %1776 = vmatpush1.msra.mxu0 0.0
    %1777 = vmatprep.subr.mxu0 0.0
    %1778 = vmatpush1.msra.mxu0 0.0
    %1779 = vmatprep.subr.mxu0 0.0
    %1780 = vmatpush1.msra.mxu0 0.0
    %1781 = vmatprep.subr.mxu0 0.0
    %1782 = vmatpush1.msra.mxu0 0.0
    %1783 = vmatprep.subr.mxu0 0.0
    %1784 = vmatpush1.msra.mxu0 0.0
    %1785 = vmatprep.subr.mxu0 0.0
    %1786 = vmatpush1.msra.mxu0 0.0
    %1787 = vmatprep.subr.mxu0 0.0
    %1788 = vmatpush1.msra.mxu0 0.0
    %1789 = vmatprep.subr.mxu0 0.0
    %1790 = vmatpush1.msra.mxu0 0.0
    %1791 = vmatprep.subr.mxu0 0.0
    %1792 = vmatpush1.msra.mxu0 0.0
    %1793 = vmatprep.subr.mxu0 0.0
    %1794 = vmatpush1.msra.mxu0 0.0
    %1795 = vmatprep.subr.mxu0 0.0
    %1796 = vmatpush1.msra.mxu0 0.0
    %1797 = vmatprep.subr.mxu0 0.0
    %1798 = vmatpush1.msra.mxu0 0.0
    %1799 = vmatprep.subr.mxu0 0.0
    %1800 = vmatpush1.msra.mxu0 0.0
    %1801 = vmatprep.subr.mxu0 0.0
    %1802 = vmatpush1.msra.mxu0 0.0
    %1803 = vmatprep.subr.mxu0 0.0
    %1804 = vmatpush1.msra.mxu0 0.0
    %1805 = vmatprep.subr.mxu0 0.0
    %1806 = vmatpush1.msra.mxu0 0.0
    %1807 = vmatprep.subr.mxu0 0.0
    %1808 = vmatpush1.msra.mxu0 0.0
    %1809 = vmatprep.subr.mxu0 0.0
    %1810 = vmatpush1.msra.mxu0 0.0
    %1811 = vmatprep.subr.mxu0 0.0
    %1812 = vmatpush1.msra.mxu0 0.0
    %1813 = vmatprep.subr.mxu0 0.0
    %1814 = vmatpush1.msra.mxu0 0.0
    %1815 = vmatprep.subr.mxu0 0.0
    %1816 = vmatpush1.msra.mxu0 0.0
    %1817 = vmatprep.subr.mxu0 0.0
    %1818 = vmatpush1.msra.mxu0 0.0
    %1819 = vmatprep.subr.mxu0 0.0
    %1820 = vmatpush1.msra.mxu0 0.0
    %1821 = vmatprep.subr.mxu0 0.0
    %1822 = vmatpush1.msra.mxu0 0.0
    %1823 = vmatprep.subr.mxu0 0.0
    %1824 = vmatpush1.msra.mxu0 0.0
    %1825 = vmatprep.subr.mxu0 0.0
    %1826 = vmatpush1.msra.mxu0 0.0
    %1827 = vmatprep.mubr.f32.mxu0 0.0
    %1828 = vmatmul.mubr.f32.gmra.mrb[0].mxu0 %v1740
    %v1829 = vpop.f32.mrb[0].mxu0
    %v1830 = vadd.f32 %v1701, %v1829
    %v1831 = vpop.f32.mrb[0].mxu0
    %1832 = vmatprep.mubr.f32.mxu0 0.0
    %1833 = vmatmul.mubr.f32.gmra.mrb[0].mxu0 %v1743
    %v1834 = vpop.f32.mrb[0].mxu0
    %v1835 = vadd.f32 %v1706, %v1834
    %v1836 = vpop.f32.mrb[0].mxu0
    %1837 = vmatprep.mubr.f32.mxu0 0.0
    %1838 = vmatmul.mubr.f32.gmra.mrb[0].mxu0 %v1746
    %v1839 = vpop.f32.mrb[0].mxu0
    %v1840 = vadd.f32 %v1711, %v1839
    %v1841 = vpop.f32.mrb[0].mxu0
    %1842 = vmatprep.mubr.f32.mxu0 0.0
    %1843 = vmatmul.mubr.f32.gmra.mrb[0].mxu0 %v1749
    %v1844 = vpop.f32.mrb[0].mxu0
    %v1845 = vadd.f32 %v1716, %v1844
    %v1846 = vpop.f32.mrb[0].mxu0
    %1847 = vmatprep.mubr.f32.mxu0 0.0
    %1848 = vmatmul.mubr.f32.gmra.mrb[0].mxu0 %v1752
    %v1849 = vpop.f32.mrb[0].mxu0
    %v1850 = vadd.f32 %v1721, %v1849
    %v1851 = vpop.f32.mrb[0].mxu0
    %1852 = vmatprep.mubr.f32.mxu0 0.0
    %1853 = vmatmul.mubr.f32.gmra.mrb[0].mxu0 %v1755
    %v1854 = vpop.f32.mrb[0].mxu0
    %v1855 = vadd.f32 %v1726, %v1854
    %v1856 = vpop.f32.mrb[0].mxu0
    %1857 = vmatprep.mubr.f32.mxu0 0.0
    %1858 = vmatmul.mubr.f32.gmra.mrb[0].mxu0 %v1758
    %v1859 = vpop.f32.mrb[0].mxu0
    %v1860 = vadd.f32 %v1731, %v1859
    %v1861 = vpop.f32.mrb[0].mxu0
    %1862 = vmatprep.mubr.f32.mxu0 0.0
    %1863 = vmatmul.mubr.f32.gmra.mrb[0].mxu0 %v1761
    %v1864 = vpop.f32.mrb[0].mxu0
    %v1865 = vadd.f32 %v1736, %v1864
    %v1866 = vpop.f32.mrb[0].mxu0
    %1867 = vdwg.mxu0
    %v1868 = vld [vmem:[%s0 + $0x42] sm:$0xff]
    %v1869 = vld [vmem:[%s0 + $0x4a] sm:$0xff]
    %v1870 = vld [vmem:[%s0 + $0x52] sm:$0xff]
    %v1871 = vld [vmem:[%s0 + $0x5a] sm:$0xff]
    %v1872 = vld [vmem:[%s0 + $0x62] sm:$0xff]
    %v1873 = vld [vmem:[%s0 + $0x6a] sm:$0xff]
    %v1874 = vld [vmem:[%s0 + $0x72] sm:$0xff]
    %v1875 = vld [vmem:[%s0 + $0x7a] sm:$0xff]
    %v1876 = vmul.f32 %v1868, %v166
    %v1877 = vmul.f32 %v1869, %v167
    %v1878 = vmul.f32 %v1870, %v168
    %v1879 = vmul.f32 %v1871, %v169
    %v1880 = vmul.f32 %v1872, %v170
    %v1881 = vmul.f32 %v1873, %v171
    %v1882 = vmul.f32 %v1874, %v172
    %v1883 = vmul.f32 %v1875, %v173
    %v1885 = vsel %vm201, %v1876, 0
    %v1888 = vsel %vm201, %v1877, 0
    %v1891 = vsel %vm201, %v1878, 0
    %v1894 = vsel %vm201, %v1879, 0
    %v1897 = vsel %vm201, %v1880, 0
    %v1900 = vsel %vm201, %v1881, 0
    %v1903 = vsel %vm201, %v1882, 0
    %v1906 = vsel %vm201, %v1883, 0
    %1908 = vmatprep.subr.mxu0 0.0
    %1909 = vmatpush1.msra.mxu0 %v509
    %1910 = vmatprep.subr.mxu0 0.0
    %1911 = vmatpush1.msra.mxu0 0.0
    %1912 = vmatprep.subr.mxu0 0.0
    %1913 = vmatpush1.msra.mxu0 0.0
    %1914 = vmatprep.subr.mxu0 0.0
    %1915 = vmatpush1.msra.mxu0 0.0
    %1916 = vmatprep.subr.mxu0 0.0
    %1917 = vmatpush1.msra.mxu0 0.0
    %1918 = vmatprep.subr.mxu0 0.0
    %1919 = vmatpush1.msra.mxu0 0.0
    %1920 = vmatprep.subr.mxu0 0.0
    %1921 = vmatpush1.msra.mxu0 0.0
    %1922 = vmatprep.subr.mxu0 0.0
    %1923 = vmatpush1.msra.mxu0 0.0
    %1924 = vmatprep.subr.mxu0 0.0
    %1925 = vmatpush1.msra.mxu0 0.0
    %1926 = vmatprep.subr.mxu0 0.0
    %1927 = vmatpush1.msra.mxu0 0.0
    %1928 = vmatprep.subr.mxu0 0.0
    %1929 = vmatpush1.msra.mxu0 0.0
    %1930 = vmatprep.subr.mxu0 0.0
    %1931 = vmatpush1.msra.mxu0 0.0
    %1932 = vmatprep.subr.mxu0 0.0
    %1933 = vmatpush1.msra.mxu0 0.0
    %1934 = vmatprep.subr.mxu0 0.0
    %1935 = vmatpush1.msra.mxu0 0.0
    %1936 = vmatprep.subr.mxu0 0.0
    %1937 = vmatpush1.msra.mxu0 0.0
    %1938 = vmatprep.subr.mxu0 0.0
    %1939 = vmatpush1.msra.mxu0 0.0
    %1940 = vmatprep.subr.mxu0 0.0
    %1941 = vmatpush1.msra.mxu0 0.0
    %1942 = vmatprep.subr.mxu0 0.0
    %1943 = vmatpush1.msra.mxu0 0.0
    %1944 = vmatprep.subr.mxu0 0.0
    %1945 = vmatpush1.msra.mxu0 0.0
    %1946 = vmatprep.subr.mxu0 0.0
    %1947 = vmatpush1.msra.mxu0 0.0
    %1948 = vmatprep.subr.mxu0 0.0
    %1949 = vmatpush1.msra.mxu0 0.0
    %1950 = vmatprep.subr.mxu0 0.0
    %1951 = vmatpush1.msra.mxu0 0.0
    %1952 = vmatprep.subr.mxu0 0.0
    %1953 = vmatpush1.msra.mxu0 0.0
    %1954 = vmatprep.subr.mxu0 0.0
    %1955 = vmatpush1.msra.mxu0 0.0
    %1956 = vmatprep.subr.mxu0 0.0
    %1957 = vmatpush1.msra.mxu0 0.0
    %1958 = vmatprep.subr.mxu0 0.0
    %1959 = vmatpush1.msra.mxu0 0.0
    %1960 = vmatprep.subr.mxu0 0.0
    %1961 = vmatpush1.msra.mxu0 0.0
    %1962 = vmatprep.subr.mxu0 0.0
    %1963 = vmatpush1.msra.mxu0 0.0
    %1964 = vmatprep.subr.mxu0 0.0
    %1965 = vmatpush1.msra.mxu0 0.0
    %1966 = vmatprep.subr.mxu0 0.0
    %1967 = vmatpush1.msra.mxu0 0.0
    %1968 = vmatprep.subr.mxu0 0.0
    %1969 = vmatpush1.msra.mxu0 0.0
    %1970 = vmatprep.subr.mxu0 0.0
    %1971 = vmatpush1.msra.mxu0 0.0
    %1972 = vmatprep.mubr.f32.mxu0 0.0
    %1973 = vmatmul.mubr.f32.gmra.mrb[0].mxu0 %v1885
    %v1974 = vpop.f32.mrb[0].mxu0
    %v1975 = vadd.f32 0.0, %v1974
    %v1976 = vpop.f32.mrb[0].mxu0
    %1977 = vmatprep.mubr.f32.mxu0 0.0
    %1978 = vmatmul.mubr.f32.gmra.mrb[0].mxu0 %v1888
    %v1979 = vpop.f32.mrb[0].mxu0
    %v1980 = vadd.f32 0.0, %v1979
    %v1981 = vpop.f32.mrb[0].mxu0
    %1982 = vmatprep.mubr.f32.mxu0 0.0
    %1983 = vmatmul.mubr.f32.gmra.mrb[0].mxu0 %v1891
    %v1984 = vpop.f32.mrb[0].mxu0
    %v1985 = vadd.f32 0.0, %v1984
    %v1986 = vpop.f32.mrb[0].mxu0
    %1987 = vmatprep.mubr.f32.mxu0 0.0
    %1988 = vmatmul.mubr.f32.gmra.mrb[0].mxu0 %v1894
    %v1989 = vpop.f32.mrb[0].mxu0
    %v1990 = vadd.f32 0.0, %v1989
    %v1991 = vpop.f32.mrb[0].mxu0
    %1992 = vmatprep.mubr.f32.mxu0 0.0
    %1993 = vmatmul.mubr.f32.gmra.mrb[0].mxu0 %v1897
    %v1994 = vpop.f32.mrb[0].mxu0
    %v1995 = vadd.f32 0.0, %v1994
    %v1996 = vpop.f32.mrb[0].mxu0
    %1997 = vmatprep.mubr.f32.mxu0 0.0
    %1998 = vmatmul.mubr.f32.gmra.mrb[0].mxu0 %v1900
    %v1999 = vpop.f32.mrb[0].mxu0
    %v2000 = vadd.f32 0.0, %v1999
    %v2001 = vpop.f32.mrb[0].mxu0
    %2002 = vmatprep.mubr.f32.mxu0 0.0
    %2003 = vmatmul.mubr.f32.gmra.mrb[0].mxu0 %v1903
    %v2004 = vpop.f32.mrb[0].mxu0
    %v2005 = vadd.f32 0.0, %v2004
    %v2006 = vpop.f32.mrb[0].mxu0
    %2007 = vmatprep.mubr.f32.mxu0 0.0
    %2008 = vmatmul.mubr.f32.gmra.mrb[0].mxu0 %v1906
    %v2009 = vpop.f32.mrb[0].mxu0
    %v2010 = vadd.f32 0.0, %v2009
    %v2011 = vpop.f32.mrb[0].mxu0
    %2012 = vdwg.mxu0
    %v2013 = vadd.f32 %v1830, %v1975
    %v2014 = vadd.f32 %v1835, %v1980
    %v2015 = vadd.f32 %v1840, %v1985
    %v2016 = vadd.f32 %v1845, %v1990
    %v2017 = vadd.f32 %v1850, %v1995
    %v2018 = vadd.f32 %v1855, %v2000
    %v2019 = vadd.f32 %v1860, %v2005
    %v2020 = vadd.f32 %v1865, %v2010
    %v2021 = vld [vmem:[%s0 + $0x50] sm:$0xff]
    %v2022 = vld [vmem:[%s0 + $0x58] sm:$0xff]
    %v2023 = vld [vmem:[%s0 + $0x60] sm:$0xff]
    %v2024 = vld [vmem:[%s0 + $0x68] sm:$0xff]
    %v2025 = vld [vmem:[%s0 + $0x70] sm:$0xff]
    %v2026 = vld [vmem:[%s0 + $0x78] sm:$0xff]
    %v2027 = vld [vmem:[%s0 + $0x80] sm:$0xff]
    %v2028 = vld [vmem:[%s0 + $0x88] sm:$0xff]
    %v2029 = vmul.f32 %v2021, %v142
    %v2030 = vmul.f32 %v2022, %v143
    %v2031 = vmul.f32 %v2023, %v144
    %v2032 = vmul.f32 %v2024, %v145
    %v2033 = vmul.f32 %v2025, %v146
    %v2034 = vmul.f32 %v2026, %v147
    %v2035 = vmul.f32 %v2027, %v148
    %v2036 = vmul.f32 %v2028, %v149
    %v2038 = vsel %vm201, %v2029, 0
    %v2041 = vsel %vm201, %v2030, 0
    %v2044 = vsel %vm201, %v2031, 0
    %v2047 = vsel %vm201, %v2032, 0
    %v2050 = vsel %vm201, %v2033, 0
    %v2053 = vsel %vm201, %v2034, 0
    %v2056 = vsel %vm201, %v2035, 0
    %v2059 = vsel %vm201, %v2036, 0
    %2061 = vmatprep.subr.mxu0 0.0
    %2062 = vmatpush1.msra.mxu0 %v666
    %2063 = vmatprep.subr.mxu0 0.0
    %2064 = vmatpush1.msra.mxu0 0.0
    %2065 = vmatprep.subr.mxu0 0.0
    %2066 = vmatpush1.msra.mxu0 0.0
    %2067 = vmatprep.subr.mxu0 0.0
    %2068 = vmatpush1.msra.mxu0 0.0
    %2069 = vmatprep.subr.mxu0 0.0
    %2070 = vmatpush1.msra.mxu0 0.0
    %2071 = vmatprep.subr.mxu0 0.0
    %2072 = vmatpush1.msra.mxu0 0.0
    %2073 = vmatprep.subr.mxu0 0.0
    %2074 = vmatpush1.msra.mxu0 0.0
    %2075 = vmatprep.subr.mxu0 0.0
    %2076 = vmatpush1.msra.mxu0 0.0
    %2077 = vmatprep.subr.mxu0 0.0
    %2078 = vmatpush1.msra.mxu0 0.0
    %2079 = vmatprep.subr.mxu0 0.0
    %2080 = vmatpush1.msra.mxu0 0.0
    %2081 = vmatprep.subr.mxu0 0.0
    %2082 = vmatpush1.msra.mxu0 0.0
    %2083 = vmatprep.subr.mxu0 0.0
    %2084 = vmatpush1.msra.mxu0 0.0
    %2085 = vmatprep.subr.mxu0 0.0
    %2086 = vmatpush1.msra.mxu0 0.0
    %2087 = vmatprep.subr.mxu0 0.0
    %2088 = vmatpush1.msra.mxu0 0.0
    %2089 = vmatprep.subr.mxu0 0.0
    %2090 = vmatpush1.msra.mxu0 0.0
    %2091 = vmatprep.subr.mxu0 0.0
    %2092 = vmatpush1.msra.mxu0 0.0
    %2093 = vmatprep.subr.mxu0 0.0
    %2094 = vmatpush1.msra.mxu0 0.0
    %2095 = vmatprep.subr.mxu0 0.0
    %2096 = vmatpush1.msra.mxu0 0.0
    %2097 = vmatprep.subr.mxu0 0.0
    %2098 = vmatpush1.msra.mxu0 0.0
    %2099 = vmatprep.subr.mxu0 0.0
    %2100 = vmatpush1.msra.mxu0 0.0
    %2101 = vmatprep.subr.mxu0 0.0
    %2102 = vmatpush1.msra.mxu0 0.0
    %2103 = vmatprep.subr.mxu0 0.0
    %2104 = vmatpush1.msra.mxu0 0.0
    %2105 = vmatprep.subr.mxu0 0.0
    %2106 = vmatpush1.msra.mxu0 0.0
    %2107 = vmatprep.subr.mxu0 0.0
    %2108 = vmatpush1.msra.mxu0 0.0
    %2109 = vmatprep.subr.mxu0 0.0
    %2110 = vmatpush1.msra.mxu0 0.0
    %2111 = vmatprep.subr.mxu0 0.0
    %2112 = vmatpush1.msra.mxu0 0.0
    %2113 = vmatprep.subr.mxu0 0.0
    %2114 = vmatpush1.msra.mxu0 0.0
    %2115 = vmatprep.subr.mxu0 0.0
    %2116 = vmatpush1.msra.mxu0 0.0
    %2117 = vmatprep.subr.mxu0 0.0
    %2118 = vmatpush1.msra.mxu0 0.0
    %2119 = vmatprep.subr.mxu0 0.0
    %2120 = vmatpush1.msra.mxu0 0.0
    %2121 = vmatprep.subr.mxu0 0.0
    %2122 = vmatpush1.msra.mxu0 0.0
    %2123 = vmatprep.subr.mxu0 0.0
    %2124 = vmatpush1.msra.mxu0 0.0
    %2125 = vmatprep.mubr.f32.mxu0 0.0
    %2126 = vmatmul.mubr.f32.gmra.mrb[0].mxu0 %v2038
    %v2127 = vpop.f32.mrb[0].mxu0
    %v2128 = vadd.f32 0.0, %v2127
    %v2129 = vpop.f32.mrb[0].mxu0
    %2130 = vmatprep.mubr.f32.mxu0 0.0
    %2131 = vmatmul.mubr.f32.gmra.mrb[0].mxu0 %v2041
    %v2132 = vpop.f32.mrb[0].mxu0
    %v2133 = vadd.f32 0.0, %v2132
    %v2134 = vpop.f32.mrb[0].mxu0
    %2135 = vmatprep.mubr.f32.mxu0 0.0
    %2136 = vmatmul.mubr.f32.gmra.mrb[0].mxu0 %v2044
    %v2137 = vpop.f32.mrb[0].mxu0
    %v2138 = vadd.f32 0.0, %v2137
    %v2139 = vpop.f32.mrb[0].mxu0
    %2140 = vmatprep.mubr.f32.mxu0 0.0
    %2141 = vmatmul.mubr.f32.gmra.mrb[0].mxu0 %v2047
    %v2142 = vpop.f32.mrb[0].mxu0
    %v2143 = vadd.f32 0.0, %v2142
    %v2144 = vpop.f32.mrb[0].mxu0
    %2145 = vmatprep.mubr.f32.mxu0 0.0
    %2146 = vmatmul.mubr.f32.gmra.mrb[0].mxu0 %v2050
    %v2147 = vpop.f32.mrb[0].mxu0
    %v2148 = vadd.f32 0.0, %v2147
    %v2149 = vpop.f32.mrb[0].mxu0
    %2150 = vmatprep.mubr.f32.mxu0 0.0
    %2151 = vmatmul.mubr.f32.gmra.mrb[0].mxu0 %v2053
    %v2152 = vpop.f32.mrb[0].mxu0
    %v2153 = vadd.f32 0.0, %v2152
    %v2154 = vpop.f32.mrb[0].mxu0
    %2155 = vmatprep.mubr.f32.mxu0 0.0
    %2156 = vmatmul.mubr.f32.gmra.mrb[0].mxu0 %v2056
    %v2157 = vpop.f32.mrb[0].mxu0
    %v2158 = vadd.f32 0.0, %v2157
    %v2159 = vpop.f32.mrb[0].mxu0
    %2160 = vmatprep.mubr.f32.mxu0 0.0
    %2161 = vmatmul.mubr.f32.gmra.mrb[0].mxu0 %v2059
    %v2162 = vpop.f32.mrb[0].mxu0
    %v2163 = vadd.f32 0.0, %v2162
    %v2164 = vpop.f32.mrb[0].mxu0
    %2165 = vdwg.mxu0
    %v2166 = vadd.f32 %v2013, %v2128
    %v2167 = vadd.f32 %v2014, %v2133
    %v2168 = vadd.f32 %v2015, %v2138
    %v2169 = vadd.f32 %v2016, %v2143
    %v2170 = vadd.f32 %v2017, %v2148
    %v2171 = vadd.f32 %v2018, %v2153
    %v2172 = vadd.f32 %v2019, %v2158
    %v2173 = vadd.f32 %v2020, %v2163
    %v2174 = vld [vmem:[%s0 + $0x51] sm:$0xff]
    %v2175 = vld [vmem:[%s0 + $0x59] sm:$0xff]
    %v2176 = vld [vmem:[%s0 + $0x61] sm:$0xff]
    %v2177 = vld [vmem:[%s0 + $0x69] sm:$0xff]
    %v2178 = vld [vmem:[%s0 + $0x71] sm:$0xff]
    %v2179 = vld [vmem:[%s0 + $0x79] sm:$0xff]
    %v2180 = vld [vmem:[%s0 + $0x81] sm:$0xff]
    %v2181 = vld [vmem:[%s0 + $0x89] sm:$0xff]
    %v2183 = vsel %vm201, %v2174, 0
    %v2186 = vsel %vm201, %v2175, 0
    %v2189 = vsel %vm201, %v2176, 0
    %v2192 = vsel %vm201, %v2177, 0
    %v2195 = vsel %vm201, %v2178, 0
    %v2198 = vsel %vm201, %v2179, 0
    %v2201 = vsel %vm201, %v2180, 0
    %v2204 = vsel %vm201, %v2181, 0
    %2206 = vmatprep.subr.mxu0 0.0
    %2207 = vmatpush1.msra.mxu0 %v815
    %2208 = vmatprep.subr.mxu0 0.0
    %2209 = vmatpush1.msra.mxu0 0.0
    %2210 = vmatprep.subr.mxu0 0.0
    %2211 = vmatpush1.msra.mxu0 0.0
    %2212 = vmatprep.subr.mxu0 0.0
    %2213 = vmatpush1.msra.mxu0 0.0
    %2214 = vmatprep.subr.mxu0 0.0
    %2215 = vmatpush1.msra.mxu0 0.0
    %2216 = vmatprep.subr.mxu0 0.0
    %2217 = vmatpush1.msra.mxu0 0.0
    %2218 = vmatprep.subr.mxu0 0.0
    %2219 = vmatpush1.msra.mxu0 0.0
    %2220 = vmatprep.subr.mxu0 0.0
    %2221 = vmatpush1.msra.mxu0 0.0
    %2222 = vmatprep.subr.mxu0 0.0
    %2223 = vmatpush1.msra.mxu0 0.0
    %2224 = vmatprep.subr.mxu0 0.0
    %2225 = vmatpush1.msra.mxu0 0.0
    %2226 = vmatprep.subr.mxu0 0.0
    %2227 = vmatpush1.msra.mxu0 0.0
    %2228 = vmatprep.subr.mxu0 0.0
    %2229 = vmatpush1.msra.mxu0 0.0
    %2230 = vmatprep.subr.mxu0 0.0
    %2231 = vmatpush1.msra.mxu0 0.0
    %2232 = vmatprep.subr.mxu0 0.0
    %2233 = vmatpush1.msra.mxu0 0.0
    %2234 = vmatprep.subr.mxu0 0.0
    %2235 = vmatpush1.msra.mxu0 0.0
    %2236 = vmatprep.subr.mxu0 0.0
    %2237 = vmatpush1.msra.mxu0 0.0
    %2238 = vmatprep.subr.mxu0 0.0
    %2239 = vmatpush1.msra.mxu0 0.0
    %2240 = vmatprep.subr.mxu0 0.0
    %2241 = vmatpush1.msra.mxu0 0.0
    %2242 = vmatprep.subr.mxu0 0.0
    %2243 = vmatpush1.msra.mxu0 0.0
    %2244 = vmatprep.subr.mxu0 0.0
    %2245 = vmatpush1.msra.mxu0 0.0
    %2246 = vmatprep.subr.mxu0 0.0
    %2247 = vmatpush1.msra.mxu0 0.0
    %2248 = vmatprep.subr.mxu0 0.0
    %2249 = vmatpush1.msra.mxu0 0.0
    %2250 = vmatprep.subr.mxu0 0.0
    %2251 = vmatpush1.msra.mxu0 0.0
    %2252 = vmatprep.subr.mxu0 0.0
    %2253 = vmatpush1.msra.mxu0 0.0
    %2254 = vmatprep.subr.mxu0 0.0
    %2255 = vmatpush1.msra.mxu0 0.0
    %2256 = vmatprep.subr.mxu0 0.0
    %2257 = vmatpush1.msra.mxu0 0.0
    %2258 = vmatprep.subr.mxu0 0.0
    %2259 = vmatpush1.msra.mxu0 0.0
    %2260 = vmatprep.subr.mxu0 0.0
    %2261 = vmatpush1.msra.mxu0 0.0
    %2262 = vmatprep.subr.mxu0 0.0
    %2263 = vmatpush1.msra.mxu0 0.0
    %2264 = vmatprep.subr.mxu0 0.0
    %2265 = vmatpush1.msra.mxu0 0.0
    %2266 = vmatprep.subr.mxu0 0.0
    %2267 = vmatpush1.msra.mxu0 0.0
    %2268 = vmatprep.subr.mxu0 0.0
    %2269 = vmatpush1.msra.mxu0 0.0
    %2270 = vmatprep.mubr.f32.mxu0 0.0
    %2271 = vmatmul.mubr.f32.gmra.mrb[0].mxu0 %v2183
    %v2272 = vpop.f32.mrb[0].mxu0
    %v2273 = vadd.f32 0.0, %v2272
    %v2274 = vpop.f32.mrb[0].mxu0
    %2275 = vmatprep.mubr.f32.mxu0 0.0
    %2276 = vmatmul.mubr.f32.gmra.mrb[0].mxu0 %v2186
    %v2277 = vpop.f32.mrb[0].mxu0
    %v2278 = vadd.f32 0.0, %v2277
    %v2279 = vpop.f32.mrb[0].mxu0
    %2280 = vmatprep.mubr.f32.mxu0 0.0
    %2281 = vmatmul.mubr.f32.gmra.mrb[0].mxu0 %v2189
    %v2282 = vpop.f32.mrb[0].mxu0
    %v2283 = vadd.f32 0.0, %v2282
    %v2284 = vpop.f32.mrb[0].mxu0
    %2285 = vmatprep.mubr.f32.mxu0 0.0
    %2286 = vmatmul.mubr.f32.gmra.mrb[0].mxu0 %v2192
    %v2287 = vpop.f32.mrb[0].mxu0
    %v2288 = vadd.f32 0.0, %v2287
    %v2289 = vpop.f32.mrb[0].mxu0
    %2290 = vmatprep.mubr.f32.mxu0 0.0
    %2291 = vmatmul.mubr.f32.gmra.mrb[0].mxu0 %v2195
    %v2292 = vpop.f32.mrb[0].mxu0
    %v2293 = vadd.f32 0.0, %v2292
    %v2294 = vpop.f32.mrb[0].mxu0
    %2295 = vmatprep.mubr.f32.mxu0 0.0
    %2296 = vmatmul.mubr.f32.gmra.mrb[0].mxu0 %v2198
    %v2297 = vpop.f32.mrb[0].mxu0
    %v2298 = vadd.f32 0.0, %v2297
    %v2299 = vpop.f32.mrb[0].mxu0
    %2300 = vmatprep.mubr.f32.mxu0 0.0
    %2301 = vmatmul.mubr.f32.gmra.mrb[0].mxu0 %v2201
    %v2302 = vpop.f32.mrb[0].mxu0
    %v2303 = vadd.f32 0.0, %v2302
    %v2304 = vpop.f32.mrb[0].mxu0
    %2305 = vmatprep.mubr.f32.mxu0 0.0
    %2306 = vmatmul.mubr.f32.gmra.mrb[0].mxu0 %v2204
    %v2307 = vpop.f32.mrb[0].mxu0
    %v2308 = vadd.f32 0.0, %v2307
    %v2309 = vpop.f32.mrb[0].mxu0
    %2310 = vdwg.mxu0
    %v2311 = vadd.f32 %v2166, %v2273
    %v2312 = vadd.f32 %v2167, %v2278
    %v2313 = vadd.f32 %v2168, %v2283
    %v2314 = vadd.f32 %v2169, %v2288
    %v2315 = vadd.f32 %v2170, %v2293
    %v2316 = vadd.f32 %v2171, %v2298
    %v2317 = vadd.f32 %v2172, %v2303
    %v2318 = vadd.f32 %v2173, %v2308
    %v2319 = vld [vmem:[%s0 + $0x52] sm:$0xff]
    %v2320 = vld [vmem:[%s0 + $0x5a] sm:$0xff]
    %v2321 = vld [vmem:[%s0 + $0x62] sm:$0xff]
    %v2322 = vld [vmem:[%s0 + $0x6a] sm:$0xff]
    %v2323 = vld [vmem:[%s0 + $0x72] sm:$0xff]
    %v2324 = vld [vmem:[%s0 + $0x7a] sm:$0xff]
    %v2325 = vld [vmem:[%s0 + $0x82] sm:$0xff]
    %v2326 = vld [vmem:[%s0 + $0x8a] sm:$0xff]
    %v2327 = vmul.f32 %v2319, %v166
    %v2328 = vmul.f32 %v2320, %v167
    %v2329 = vmul.f32 %v2321, %v168
    %v2330 = vmul.f32 %v2322, %v169
    %v2331 = vmul.f32 %v2323, %v170
    %v2332 = vmul.f32 %v2324, %v171
    %v2333 = vmul.f32 %v2325, %v172
    %v2334 = vmul.f32 %v2326, %v173
    %v2336 = vsel %vm201, %v2327, 0
    %v2339 = vsel %vm201, %v2328, 0
    %v2342 = vsel %vm201, %v2329, 0
    %v2345 = vsel %vm201, %v2330, 0
    %v2348 = vsel %vm201, %v2331, 0
    %v2351 = vsel %vm201, %v2332, 0
    %v2354 = vsel %vm201, %v2333, 0
    %v2357 = vsel %vm201, %v2334, 0
    %2359 = vmatprep.subr.mxu0 0.0
    %2360 = vmatpush1.msra.mxu0 %v972
    %2361 = vmatprep.subr.mxu0 0.0
    %2362 = vmatpush1.msra.mxu0 0.0
    %2363 = vmatprep.subr.mxu0 0.0
    %2364 = vmatpush1.msra.mxu0 0.0
    %2365 = vmatprep.subr.mxu0 0.0
    %2366 = vmatpush1.msra.mxu0 0.0
    %2367 = vmatprep.subr.mxu0 0.0
    %2368 = vmatpush1.msra.mxu0 0.0
    %2369 = vmatprep.subr.mxu0 0.0
    %2370 = vmatpush1.msra.mxu0 0.0
    %2371 = vmatprep.subr.mxu0 0.0
    %2372 = vmatpush1.msra.mxu0 0.0
    %2373 = vmatprep.subr.mxu0 0.0
    %2374 = vmatpush1.msra.mxu0 0.0
    %2375 = vmatprep.subr.mxu0 0.0
    %2376 = vmatpush1.msra.mxu0 0.0
    %2377 = vmatprep.subr.mxu0 0.0
    %2378 = vmatpush1.msra.mxu0 0.0
    %2379 = vmatprep.subr.mxu0 0.0
    %2380 = vmatpush1.msra.mxu0 0.0
    %2381 = vmatprep.subr.mxu0 0.0
    %2382 = vmatpush1.msra.mxu0 0.0
    %2383 = vmatprep.subr.mxu0 0.0
    %2384 = vmatpush1.msra.mxu0 0.0
    %2385 = vmatprep.subr.mxu0 0.0
    %2386 = vmatpush1.msra.mxu0 0.0
    %2387 = vmatprep.subr.mxu0 0.0
    %2388 = vmatpush1.msra.mxu0 0.0
    %2389 = vmatprep.subr.mxu0 0.0
    %2390 = vmatpush1.msra.mxu0 0.0
    %2391 = vmatprep.subr.mxu0 0.0
    %2392 = vmatpush1.msra.mxu0 0.0
    %2393 = vmatprep.subr.mxu0 0.0
    %2394 = vmatpush1.msra.mxu0 0.0
    %2395 = vmatprep.subr.mxu0 0.0
    %2396 = vmatpush1.msra.mxu0 0.0
    %2397 = vmatprep.subr.mxu0 0.0
    %2398 = vmatpush1.msra.mxu0 0.0
    %2399 = vmatprep.subr.mxu0 0.0
    %2400 = vmatpush1.msra.mxu0 0.0
    %2401 = vmatprep.subr.mxu0 0.0
    %2402 = vmatpush1.msra.mxu0 0.0
    %2403 = vmatprep.subr.mxu0 0.0
    %2404 = vmatpush1.msra.mxu0 0.0
    %2405 = vmatprep.subr.mxu0 0.0
    %2406 = vmatpush1.msra.mxu0 0.0
    %2407 = vmatprep.subr.mxu0 0.0
    %2408 = vmatpush1.msra.mxu0 0.0
    %2409 = vmatprep.subr.mxu0 0.0
    %2410 = vmatpush1.msra.mxu0 0.0
    %2411 = vmatprep.subr.mxu0 0.0
    %2412 = vmatpush1.msra.mxu0 0.0
    %2413 = vmatprep.subr.mxu0 0.0
    %2414 = vmatpush1.msra.mxu0 0.0
    %2415 = vmatprep.subr.mxu0 0.0
    %2416 = vmatpush1.msra.mxu0 0.0
    %2417 = vmatprep.subr.mxu0 0.0
    %2418 = vmatpush1.msra.mxu0 0.0
    %2419 = vmatprep.subr.mxu0 0.0
    %2420 = vmatpush1.msra.mxu0 0.0
    %2421 = vmatprep.subr.mxu0 0.0
    %2422 = vmatpush1.msra.mxu0 0.0
    %2423 = vmatprep.mubr.f32.mxu0 0.0
    %2424 = vmatmul.mubr.f32.gmra.mrb[0].mxu0 %v2336
    %v2425 = vpop.f32.mrb[0].mxu0
    %v2426 = vadd.f32 0.0, %v2425
    %v2427 = vpop.f32.mrb[0].mxu0
    %2428 = vmatprep.mubr.f32.mxu0 0.0
    %2429 = vmatmul.mubr.f32.gmra.mrb[0].mxu0 %v2339
    %v2430 = vpop.f32.mrb[0].mxu0
    %v2431 = vadd.f32 0.0, %v2430
    %v2432 = vpop.f32.mrb[0].mxu0
    %2433 = vmatprep.mubr.f32.mxu0 0.0
    %2434 = vmatmul.mubr.f32.gmra.mrb[0].mxu0 %v2342
    %v2435 = vpop.f32.mrb[0].mxu0
    %v2436 = vadd.f32 0.0, %v2435
    %v2437 = vpop.f32.mrb[0].mxu0
    %2438 = vmatprep.mubr.f32.mxu0 0.0
    %2439 = vmatmul.mubr.f32.gmra.mrb[0].mxu0 %v2345
    %v2440 = vpop.f32.mrb[0].mxu0
    %v2441 = vadd.f32 0.0, %v2440
    %v2442 = vpop.f32.mrb[0].mxu0
    %2443 = vmatprep.mubr.f32.mxu0 0.0
    %2444 = vmatmul.mubr.f32.gmra.mrb[0].mxu0 %v2348
    %v2445 = vpop.f32.mrb[0].mxu0
    %v2446 = vadd.f32 0.0, %v2445
    %v2447 = vpop.f32.mrb[0].mxu0
    %2448 = vmatprep.mubr.f32.mxu0 0.0
    %2449 = vmatmul.mubr.f32.gmra.mrb[0].mxu0 %v2351
    %v2450 = vpop.f32.mrb[0].mxu0
    %v2451 = vadd.f32 0.0, %v2450
    %v2452 = vpop.f32.mrb[0].mxu0
    %2453 = vmatprep.mubr.f32.mxu0 0.0
    %2454 = vmatmul.mubr.f32.gmra.mrb[0].mxu0 %v2354
    %v2455 = vpop.f32.mrb[0].mxu0
    %v2456 = vadd.f32 0.0, %v2455
    %v2457 = vpop.f32.mrb[0].mxu0
    %2458 = vmatprep.mubr.f32.mxu0 0.0
    %2459 = vmatmul.mubr.f32.gmra.mrb[0].mxu0 %v2357
    %v2460 = vpop.f32.mrb[0].mxu0
    %v2461 = vadd.f32 0.0, %v2460
    %v2462 = vpop.f32.mrb[0].mxu0
    %2463 = vdwg.mxu0
    %v2464 = vadd.f32 %v2311, %v2426
    %v2465 = vadd.f32 %v2312, %v2431
    %v2466 = vadd.f32 %v2313, %v2436
    %v2467 = vadd.f32 %v2314, %v2441
    %v2468 = vadd.f32 %v2315, %v2446
    %v2469 = vadd.f32 %v2316, %v2451
    %v2470 = vadd.f32 %v2317, %v2456
    %v2471 = vadd.f32 %v2318, %v2461
    %v2472 = vld [vmem:[%s0 + $0x60] sm:$0xff]
    %v2473 = vld [vmem:[%s0 + $0x68] sm:$0xff]
    %v2474 = vld [vmem:[%s0 + $0x70] sm:$0xff]
    %v2475 = vld [vmem:[%s0 + $0x78] sm:$0xff]
    %v2476 = vld [vmem:[%s0 + $0x80] sm:$0xff]
    %v2477 = vld [vmem:[%s0 + $0x88] sm:$0xff]
    %v2478 = vld [vmem:[%s0 + $0x90] sm:$0xff]
    %v2479 = vld [vmem:[%s0 + $0x98] sm:$0xff]
    %v2480 = vmul.f32 %v2472, %v142
    %v2481 = vmul.f32 %v2473, %v143
    %v2482 = vmul.f32 %v2474, %v144
    %v2483 = vmul.f32 %v2475, %v145
    %v2484 = vmul.f32 %v2476, %v146
    %v2485 = vmul.f32 %v2477, %v147
    %v2486 = vmul.f32 %v2478, %v148
    %v2487 = vmul.f32 %v2479, %v149
    %v2489 = vsel %vm201, %v2480, 0
    %v2492 = vsel %vm201, %v2481, 0
    %v2495 = vsel %vm201, %v2482, 0
    %v2498 = vsel %vm201, %v2483, 0
    %v2501 = vsel %vm201, %v2484, 0
    %v2504 = vsel %vm201, %v2485, 0
    %v2507 = vsel %vm201, %v2486, 0
    %v2510 = vsel %vm201, %v2487, 0
    %2512 = vmatprep.subr.mxu0 0.0
    %2513 = vmatpush1.msra.mxu0 %v1129
    %2514 = vmatprep.subr.mxu0 0.0
    %2515 = vmatpush1.msra.mxu0 0.0
    %2516 = vmatprep.subr.mxu0 0.0
    %2517 = vmatpush1.msra.mxu0 0.0
    %2518 = vmatprep.subr.mxu0 0.0
    %2519 = vmatpush1.msra.mxu0 0.0
    %2520 = vmatprep.subr.mxu0 0.0
    %2521 = vmatpush1.msra.mxu0 0.0
    %2522 = vmatprep.subr.mxu0 0.0
    %2523 = vmatpush1.msra.mxu0 0.0
    %2524 = vmatprep.subr.mxu0 0.0
    %2525 = vmatpush1.msra.mxu0 0.0
    %2526 = vmatprep.subr.mxu0 0.0
    %2527 = vmatpush1.msra.mxu0 0.0
    %2528 = vmatprep.subr.mxu0 0.0
    %2529 = vmatpush1.msra.mxu0 0.0
    %2530 = vmatprep.subr.mxu0 0.0
    %2531 = vmatpush1.msra.mxu0 0.0
    %2532 = vmatprep.subr.mxu0 0.0
    %2533 = vmatpush1.msra.mxu0 0.0
    %2534 = vmatprep.subr.mxu0 0.0
    %2535 = vmatpush1.msra.mxu0 0.0
    %2536 = vmatprep.subr.mxu0 0.0
    %2537 = vmatpush1.msra.mxu0 0.0
    %2538 = vmatprep.subr.mxu0 0.0
    %2539 = vmatpush1.msra.mxu0 0.0
    %2540 = vmatprep.subr.mxu0 0.0
    %2541 = vmatpush1.msra.mxu0 0.0
    %2542 = vmatprep.subr.mxu0 0.0
    %2543 = vmatpush1.msra.mxu0 0.0
    %2544 = vmatprep.subr.mxu0 0.0
    %2545 = vmatpush1.msra.mxu0 0.0
    %2546 = vmatprep.subr.mxu0 0.0
    %2547 = vmatpush1.msra.mxu0 0.0
    %2548 = vmatprep.subr.mxu0 0.0
    %2549 = vmatpush1.msra.mxu0 0.0
    %2550 = vmatprep.subr.mxu0 0.0
    %2551 = vmatpush1.msra.mxu0 0.0
    %2552 = vmatprep.subr.mxu0 0.0
    %2553 = vmatpush1.msra.mxu0 0.0
    %2554 = vmatprep.subr.mxu0 0.0
    %2555 = vmatpush1.msra.mxu0 0.0
    %2556 = vmatprep.subr.mxu0 0.0
    %2557 = vmatpush1.msra.mxu0 0.0
    %2558 = vmatprep.subr.mxu0 0.0
    %2559 = vmatpush1.msra.mxu0 0.0
    %2560 = vmatprep.subr.mxu0 0.0
    %2561 = vmatpush1.msra.mxu0 0.0
    %2562 = vmatprep.subr.mxu0 0.0
    %2563 = vmatpush1.msra.mxu0 0.0
    %2564 = vmatprep.subr.mxu0 0.0
    %2565 = vmatpush1.msra.mxu0 0.0
    %2566 = vmatprep.subr.mxu0 0.0
    %2567 = vmatpush1.msra.mxu0 0.0
    %2568 = vmatprep.subr.mxu0 0.0
    %2569 = vmatpush1.msra.mxu0 0.0
    %2570 = vmatprep.subr.mxu0 0.0
    %2571 = vmatpush1.msra.mxu0 0.0
    %2572 = vmatprep.subr.mxu0 0.0
    %2573 = vmatpush1.msra.mxu0 0.0
    %2574 = vmatprep.subr.mxu0 0.0
    %2575 = vmatpush1.msra.mxu0 0.0
    %2576 = vmatprep.mubr.f32.mxu0 0.0
    %2577 = vmatmul.mubr.f32.gmra.mrb[0].mxu0 %v2489
    %v2578 = vpop.f32.mrb[0].mxu0
    %v2579 = vadd.f32 0.0, %v2578
    %v2580 = vpop.f32.mrb[0].mxu0
    %2581 = vmatprep.mubr.f32.mxu0 0.0
    %2582 = vmatmul.mubr.f32.gmra.mrb[0].mxu0 %v2492
    %v2583 = vpop.f32.mrb[0].mxu0
    %v2584 = vadd.f32 0.0, %v2583
    %v2585 = vpop.f32.mrb[0].mxu0
    %2586 = vmatprep.mubr.f32.mxu0 0.0
    %2587 = vmatmul.mubr.f32.gmra.mrb[0].mxu0 %v2495
    %v2588 = vpop.f32.mrb[0].mxu0
    %v2589 = vadd.f32 0.0, %v2588
    %v2590 = vpop.f32.mrb[0].mxu0
    %2591 = vmatprep.mubr.f32.mxu0 0.0
    %2592 = vmatmul.mubr.f32.gmra.mrb[0].mxu0 %v2498
    %v2593 = vpop.f32.mrb[0].mxu0
    %v2594 = vadd.f32 0.0, %v2593
    %v2595 = vpop.f32.mrb[0].mxu0
    %2596 = vmatprep.mubr.f32.mxu0 0.0
    %2597 = vmatmul.mubr.f32.gmra.mrb[0].mxu0 %v2501
    %v2598 = vpop.f32.mrb[0].mxu0
    %v2599 = vadd.f32 0.0, %v2598
    %v2600 = vpop.f32.mrb[0].mxu0
    %2601 = vmatprep.mubr.f32.mxu0 0.0
    %2602 = vmatmul.mubr.f32.gmra.mrb[0].mxu0 %v2504
    %v2603 = vpop.f32.mrb[0].mxu0
    %v2604 = vadd.f32 0.0, %v2603
    %v2605 = vpop.f32.mrb[0].mxu0
    %2606 = vmatprep.mubr.f32.mxu0 0.0
    %2607 = vmatmul.mubr.f32.gmra.mrb[0].mxu0 %v2507
    %v2608 = vpop.f32.mrb[0].mxu0
    %v2609 = vadd.f32 0.0, %v2608
    %v2610 = vpop.f32.mrb[0].mxu0
    %2611 = vmatprep.mubr.f32.mxu0 0.0
    %2612 = vmatmul.mubr.f32.gmra.mrb[0].mxu0 %v2510
    %v2613 = vpop.f32.mrb[0].mxu0
    %v2614 = vadd.f32 0.0, %v2613
    %v2615 = vpop.f32.mrb[0].mxu0
    %2616 = vdwg.mxu0
    %v2617 = vadd.f32 %v2464, %v2579
    %v2618 = vadd.f32 %v2465, %v2584
    %v2619 = vadd.f32 %v2466, %v2589
    %v2620 = vadd.f32 %v2467, %v2594
    %v2621 = vadd.f32 %v2468, %v2599
    %v2622 = vadd.f32 %v2469, %v2604
    %v2623 = vadd.f32 %v2470, %v2609
    %v2624 = vadd.f32 %v2471, %v2614
    %v2625 = vld [vmem:[%s0 + $0x61] sm:$0xff]
    %v2626 = vld [vmem:[%s0 + $0x69] sm:$0xff]
    %v2627 = vld [vmem:[%s0 + $0x71] sm:$0xff]
    %v2628 = vld [vmem:[%s0 + $0x79] sm:$0xff]
    %v2629 = vld [vmem:[%s0 + $0x81] sm:$0xff]
    %v2630 = vld [vmem:[%s0 + $0x89] sm:$0xff]
    %v2631 = vld [vmem:[%s0 + $0x91] sm:$0xff]
    %v2632 = vld [vmem:[%s0 + $0x99] sm:$0xff]
    %v2634 = vsel %vm201, %v2625, 0
    %v2637 = vsel %vm201, %v2626, 0
    %v2640 = vsel %vm201, %v2627, 0
    %v2643 = vsel %vm201, %v2628, 0
    %v2646 = vsel %vm201, %v2629, 0
    %v2649 = vsel %vm201, %v2630, 0
    %v2652 = vsel %vm201, %v2631, 0
    %v2655 = vsel %vm201, %v2632, 0
    %2657 = vmatprep.subr.mxu0 0.0
    %2658 = vmatpush1.msra.mxu0 %v1278
    %2659 = vmatprep.subr.mxu0 0.0
    %2660 = vmatpush1.msra.mxu0 0.0
    %2661 = vmatprep.subr.mxu0 0.0
    %2662 = vmatpush1.msra.mxu0 0.0
    %2663 = vmatprep.subr.mxu0 0.0
    %2664 = vmatpush1.msra.mxu0 0.0
    %2665 = vmatprep.subr.mxu0 0.0
    %2666 = vmatpush1.msra.mxu0 0.0
    %2667 = vmatprep.subr.mxu0 0.0
    %2668 = vmatpush1.msra.mxu0 0.0
    %2669 = vmatprep.subr.mxu0 0.0
    %2670 = vmatpush1.msra.mxu0 0.0
    %2671 = vmatprep.subr.mxu0 0.0
    %2672 = vmatpush1.msra.mxu0 0.0
    %2673 = vmatprep.subr.mxu0 0.0
    %2674 = vmatpush1.msra.mxu0 0.0
    %2675 = vmatprep.subr.mxu0 0.0
    %2676 = vmatpush1.msra.mxu0 0.0
    %2677 = vmatprep.subr.mxu0 0.0
    %2678 = vmatpush1.msra.mxu0 0.0
    %2679 = vmatprep.subr.mxu0 0.0
    %2680 = vmatpush1.msra.mxu0 0.0
    %2681 = vmatprep.subr.mxu0 0.0
    %2682 = vmatpush1.msra.mxu0 0.0
    %2683 = vmatprep.subr.mxu0 0.0
    %2684 = vmatpush1.msra.mxu0 0.0
    %2685 = vmatprep.subr.mxu0 0.0
    %2686 = vmatpush1.msra.mxu0 0.0
    %2687 = vmatprep.subr.mxu0 0.0
    %2688 = vmatpush1.msra.mxu0 0.0
    %2689 = vmatprep.subr.mxu0 0.0
    %2690 = vmatpush1.msra.mxu0 0.0
    %2691 = vmatprep.subr.mxu0 0.0
    %2692 = vmatpush1.msra.mxu0 0.0
    %2693 = vmatprep.subr.mxu0 0.0
    %2694 = vmatpush1.msra.mxu0 0.0
    %2695 = vmatprep.subr.mxu0 0.0
    %2696 = vmatpush1.msra.mxu0 0.0
    %2697 = vmatprep.subr.mxu0 0.0
    %2698 = vmatpush1.msra.mxu0 0.0
    %2699 = vmatprep.subr.mxu0 0.0
    %2700 = vmatpush1.msra.mxu0 0.0
    %2701 = vmatprep.subr.mxu0 0.0
    %2702 = vmatpush1.msra.mxu0 0.0
    %2703 = vmatprep.subr.mxu0 0.0
    %2704 = vmatpush1.msra.mxu0 0.0
    %2705 = vmatprep.subr.mxu0 0.0
    %2706 = vmatpush1.msra.mxu0 0.0
    %2707 = vmatprep.subr.mxu0 0.0
    %2708 = vmatpush1.msra.mxu0 0.0
    %2709 = vmatprep.subr.mxu0 0.0
    %2710 = vmatpush1.msra.mxu0 0.0
    %2711 = vmatprep.subr.mxu0 0.0
    %2712 = vmatpush1.msra.mxu0 0.0
    %2713 = vmatprep.subr.mxu0 0.0
    %2714 = vmatpush1.msra.mxu0 0.0
    %2715 = vmatprep.subr.mxu0 0.0
    %2716 = vmatpush1.msra.mxu0 0.0
    %2717 = vmatprep.subr.mxu0 0.0
    %2718 = vmatpush1.msra.mxu0 0.0
    %2719 = vmatprep.subr.mxu0 0.0
    %2720 = vmatpush1.msra.mxu0 0.0
    %2721 = vmatprep.mubr.f32.mxu0 0.0
    %2722 = vmatmul.mubr.f32.gmra.mrb[0].mxu0 %v2634
    %v2723 = vpop.f32.mrb[0].mxu0
    %v2724 = vadd.f32 0.0, %v2723
    %v2725 = vpop.f32.mrb[0].mxu0
    %2726 = vmatprep.mubr.f32.mxu0 0.0
    %2727 = vmatmul.mubr.f32.gmra.mrb[0].mxu0 %v2637
    %v2728 = vpop.f32.mrb[0].mxu0
    %v2729 = vadd.f32 0.0, %v2728
    %v2730 = vpop.f32.mrb[0].mxu0
    %2731 = vmatprep.mubr.f32.mxu0 0.0
    %2732 = vmatmul.mubr.f32.gmra.mrb[0].mxu0 %v2640
    %v2733 = vpop.f32.mrb[0].mxu0
    %v2734 = vadd.f32 0.0, %v2733
    %v2735 = vpop.f32.mrb[0].mxu0
    %2736 = vmatprep.mubr.f32.mxu0 0.0
    %2737 = vmatmul.mubr.f32.gmra.mrb[0].mxu0 %v2643
    %v2738 = vpop.f32.mrb[0].mxu0
    %v2739 = vadd.f32 0.0, %v2738
    %v2740 = vpop.f32.mrb[0].mxu0
    %2741 = vmatprep.mubr.f32.mxu0 0.0
    %2742 = vmatmul.mubr.f32.gmra.mrb[0].mxu0 %v2646
    %v2743 = vpop.f32.mrb[0].mxu0
    %v2744 = vadd.f32 0.0, %v2743
    %v2745 = vpop.f32.mrb[0].mxu0
    %2746 = vmatprep.mubr.f32.mxu0 0.0
    %2747 = vmatmul.mubr.f32.gmra.mrb[0].mxu0 %v2649
    %v2748 = vpop.f32.mrb[0].mxu0
    %v2749 = vadd.f32 0.0, %v2748
    %v2750 = vpop.f32.mrb[0].mxu0
    %2751 = vmatprep.mubr.f32.mxu0 0.0
    %2752 = vmatmul.mubr.f32.gmra.mrb[0].mxu0 %v2652
    %v2753 = vpop.f32.mrb[0].mxu0
    %v2754 = vadd.f32 0.0, %v2753
    %v2755 = vpop.f32.mrb[0].mxu0
    %2756 = vmatprep.mubr.f32.mxu0 0.0
    %2757 = vmatmul.mubr.f32.gmra.mrb[0].mxu0 %v2655
    %v2758 = vpop.f32.mrb[0].mxu0
    %v2759 = vadd.f32 0.0, %v2758
    %v2760 = vpop.f32.mrb[0].mxu0
    %2761 = vdwg.mxu0
    %v2762 = vadd.f32 %v2617, %v2724
    %v2763 = vadd.f32 %v2618, %v2729
    %v2764 = vadd.f32 %v2619, %v2734
    %v2765 = vadd.f32 %v2620, %v2739
    %v2766 = vadd.f32 %v2621, %v2744
    %v2767 = vadd.f32 %v2622, %v2749
    %v2768 = vadd.f32 %v2623, %v2754
    %v2769 = vadd.f32 %v2624, %v2759
    %v2770 = vld [vmem:[%s0 + $0x62] sm:$0xff]
    %v2771 = vld [vmem:[%s0 + $0x6a] sm:$0xff]
    %v2772 = vld [vmem:[%s0 + $0x72] sm:$0xff]
    %v2773 = vld [vmem:[%s0 + $0x7a] sm:$0xff]
    %v2774 = vld [vmem:[%s0 + $0x82] sm:$0xff]
    %v2775 = vld [vmem:[%s0 + $0x8a] sm:$0xff]
    %v2776 = vld [vmem:[%s0 + $0x92] sm:$0xff]
    %v2777 = vld [vmem:[%s0 + $0x9a] sm:$0xff]
    %v2778 = vmul.f32 %v2770, %v166
    %v2779 = vmul.f32 %v2771, %v167
    %v2780 = vmul.f32 %v2772, %v168
    %v2781 = vmul.f32 %v2773, %v169
    %v2782 = vmul.f32 %v2774, %v170
    %v2783 = vmul.f32 %v2775, %v171
    %v2784 = vmul.f32 %v2776, %v172
    %v2785 = vmul.f32 %v2777, %v173
    %v2787 = vsel %vm201, %v2778, 0
    %v2790 = vsel %vm201, %v2779, 0
    %v2793 = vsel %vm201, %v2780, 0
    %v2796 = vsel %vm201, %v2781, 0
    %v2799 = vsel %vm201, %v2782, 0
    %v2802 = vsel %vm201, %v2783, 0
    %v2805 = vsel %vm201, %v2784, 0
    %v2808 = vsel %vm201, %v2785, 0
    %2810 = vmatprep.subr.mxu0 0.0
    %2811 = vmatpush1.msra.mxu0 %v1435
    %2812 = vmatprep.subr.mxu0 0.0
    %2813 = vmatpush1.msra.mxu0 0.0
    %2814 = vmatprep.subr.mxu0 0.0
    %2815 = vmatpush1.msra.mxu0 0.0
    %2816 = vmatprep.subr.mxu0 0.0
    %2817 = vmatpush1.msra.mxu0 0.0
    %2818 = vmatprep.subr.mxu0 0.0
    %2819 = vmatpush1.msra.mxu0 0.0
    %2820 = vmatprep.subr.mxu0 0.0
    %2821 = vmatpush1.msra.mxu0 0.0
    %2822 = vmatprep.subr.mxu0 0.0
    %2823 = vmatpush1.msra.mxu0 0.0
    %2824 = vmatprep.subr.mxu0 0.0
    %2825 = vmatpush1.msra.mxu0 0.0
    %2826 = vmatprep.subr.mxu0 0.0
    %2827 = vmatpush1.msra.mxu0 0.0
    %2828 = vmatprep.subr.mxu0 0.0
    %2829 = vmatpush1.msra.mxu0 0.0
    %2830 = vmatprep.subr.mxu0 0.0
    %2831 = vmatpush1.msra.mxu0 0.0
    %2832 = vmatprep.subr.mxu0 0.0
    %2833 = vmatpush1.msra.mxu0 0.0
    %2834 = vmatprep.subr.mxu0 0.0
    %2835 = vmatpush1.msra.mxu0 0.0
    %2836 = vmatprep.subr.mxu0 0.0
    %2837 = vmatpush1.msra.mxu0 0.0
    %2838 = vmatprep.subr.mxu0 0.0
    %2839 = vmatpush1.msra.mxu0 0.0
    %2840 = vmatprep.subr.mxu0 0.0
    %2841 = vmatpush1.msra.mxu0 0.0
    %2842 = vmatprep.subr.mxu0 0.0
    %2843 = vmatpush1.msra.mxu0 0.0
    %2844 = vmatprep.subr.mxu0 0.0
    %2845 = vmatpush1.msra.mxu0 0.0
    %2846 = vmatprep.subr.mxu0 0.0
    %2847 = vmatpush1.msra.mxu0 0.0
    %2848 = vmatprep.subr.mxu0 0.0
    %2849 = vmatpush1.msra.mxu0 0.0
    %2850 = vmatprep.subr.mxu0 0.0
    %2851 = vmatpush1.msra.mxu0 0.0
    %2852 = vmatprep.subr.mxu0 0.0
    %2853 = vmatpush1.msra.mxu0 0.0
    %2854 = vmatprep.subr.mxu0 0.0
    %2855 = vmatpush1.msra.mxu0 0.0
    %2856 = vmatprep.subr.mxu0 0.0
    %2857 = vmatpush1.msra.mxu0 0.0
    %2858 = vmatprep.subr.mxu0 0.0
    %2859 = vmatpush1.msra.mxu0 0.0
    %2860 = vmatprep.subr.mxu0 0.0
    %2861 = vmatpush1.msra.mxu0 0.0
    %2862 = vmatprep.subr.mxu0 0.0
    %2863 = vmatpush1.msra.mxu0 0.0
    %2864 = vmatprep.subr.mxu0 0.0
    %2865 = vmatpush1.msra.mxu0 0.0
    %2866 = vmatprep.subr.mxu0 0.0
    %2867 = vmatpush1.msra.mxu0 0.0
    %2868 = vmatprep.subr.mxu0 0.0
    %2869 = vmatpush1.msra.mxu0 0.0
    %2870 = vmatprep.subr.mxu0 0.0
    %2871 = vmatpush1.msra.mxu0 0.0
    %2872 = vmatprep.subr.mxu0 0.0
    %2873 = vmatpush1.msra.mxu0 0.0
    %2874 = vmatprep.mubr.f32.mxu0 0.0
    %2875 = vmatmul.mubr.f32.gmra.mrb[0].mxu0 %v2787
    %v2876 = vpop.f32.mrb[0].mxu0
    %v2877 = vadd.f32 0.0, %v2876
    %v2878 = vpop.f32.mrb[0].mxu0
    %2879 = vmatprep.mubr.f32.mxu0 0.0
    %2880 = vmatmul.mubr.f32.gmra.mrb[0].mxu0 %v2790
    %v2881 = vpop.f32.mrb[0].mxu0
    %v2882 = vadd.f32 0.0, %v2881
    %v2883 = vpop.f32.mrb[0].mxu0
    %2884 = vmatprep.mubr.f32.mxu0 0.0
    %2885 = vmatmul.mubr.f32.gmra.mrb[0].mxu0 %v2793
    %v2886 = vpop.f32.mrb[0].mxu0
    %v2887 = vadd.f32 0.0, %v2886
    %v2888 = vpop.f32.mrb[0].mxu0
    %2889 = vmatprep.mubr.f32.mxu0 0.0
    %2890 = vmatmul.mubr.f32.gmra.mrb[0].mxu0 %v2796
    %v2891 = vpop.f32.mrb[0].mxu0
    %v2892 = vadd.f32 0.0, %v2891
    %v2893 = vpop.f32.mrb[0].mxu0
    %2894 = vmatprep.mubr.f32.mxu0 0.0
    %2895 = vmatmul.mubr.f32.gmra.mrb[0].mxu0 %v2799
    %v2896 = vpop.f32.mrb[0].mxu0
    %v2897 = vadd.f32 0.0, %v2896
    %v2898 = vpop.f32.mrb[0].mxu0
    %2899 = vmatprep.mubr.f32.mxu0 0.0
    %2900 = vmatmul.mubr.f32.gmra.mrb[0].mxu0 %v2802
    %v2901 = vpop.f32.mrb[0].mxu0
    %v2902 = vadd.f32 0.0, %v2901
    %v2903 = vpop.f32.mrb[0].mxu0
    %2904 = vmatprep.mubr.f32.mxu0 0.0
    %2905 = vmatmul.mubr.f32.gmra.mrb[0].mxu0 %v2805
    %v2906 = vpop.f32.mrb[0].mxu0
    %v2907 = vadd.f32 0.0, %v2906
    %v2908 = vpop.f32.mrb[0].mxu0
    %2909 = vmatprep.mubr.f32.mxu0 0.0
    %2910 = vmatmul.mubr.f32.gmra.mrb[0].mxu0 %v2808
    %v2911 = vpop.f32.mrb[0].mxu0
    %v2912 = vadd.f32 0.0, %v2911
    %v2913 = vpop.f32.mrb[0].mxu0
    %2914 = vdwg.mxu0
    %v2915 = vadd.f32 %v2762, %v2877
    %v2916 = vadd.f32 %v2763, %v2882
    %v2917 = vadd.f32 %v2764, %v2887
    %v2918 = vadd.f32 %v2765, %v2892
    %v2919 = vadd.f32 %v2766, %v2897
    %v2920 = vadd.f32 %v2767, %v2902
    %v2921 = vadd.f32 %v2768, %v2907
    %v2922 = vadd.f32 %v2769, %v2912
    %v2923 = vadd.f32 %v2915, %v1554
    %v2924 = vadd.f32 %v2916, %v1554
    %v2925 = vadd.f32 %v2917, %v1554
    %v2926 = vadd.f32 %v2918, %v1554
    %v2927 = vadd.f32 %v2919, %v1554
    %v2928 = vadd.f32 %v2920, %v1554
    %v2929 = vadd.f32 %v2921, %v1554
    %v2930 = vadd.f32 %v2922, %v1554
    %v2931 = vmax.f32 %v2923, 0.0
    %v2932 = vmax.f32 %v2924, 0.0
    %v2933 = vmax.f32 %v2925, 0.0
    %v2934 = vmax.f32 %v2926, 0.0
    %v2935 = vmax.f32 %v2927, 0.0
    %v2936 = vmax.f32 %v2928, 0.0
    %v2937 = vmax.f32 %v2929, 0.0
    %v2938 = vmax.f32 %v2930, 0.0
    %v2939 = vadd.f32 %v2931, %v2932
    %v2940 = vadd.f32 %v2939, %v2933
    %v2941 = vadd.f32 %v2940, %v2934
    %v2942 = vadd.f32 %v2941, %v2935
    %v2943 = vadd.f32 %v2942, %v2936
    %v2944 = vadd.f32 %v2943, %v2937
    %v2945 = vadd.f32 %v2944, %v2938
    %v2946 = vrot.slane %v2945, 4
    %v2947 = vadd.f32 %v2945, %v2946
    %v2948 = vrot.slane %v2947, 2
    %v2949 = vadd.f32 %v2947, %v2948
    %v2950 = vrot.slane %v2949, 1
    %v2951 = vadd.f32 %v2949, %v2950
    %v2952 = vadd.f32 %v1585, %v2951
    %v2953 = vld [vmem:[%s0 + $0x80] sm:$0xff]
    %v2954 = vld [vmem:[%s0 + $0x88] sm:$0xff]
    %v2955 = vld [vmem:[%s0 + $0x90] sm:$0xff]
    %v2956 = vld [vmem:[%s0 + $0x98] sm:$0xff]
    %v2957 = vld [vmem:[%s0 + $0xa0] sm:$0xff]
    %v2958 = vld [vmem:[%s0 + $0xa8] sm:$0xff]
    %v2959 = vld [vmem:[%s0 + $0xb0] sm:$0xff]
    %v2960 = vld [vmem:[%s0 + $0xb8] sm:$0xff]
    %v2961 = vmul.f32 %v2953, %v142
    %v2962 = vmul.f32 %v2954, %v143
    %v2963 = vmul.f32 %v2955, %v144
    %v2964 = vmul.f32 %v2956, %v145
    %v2965 = vmul.f32 %v2957, %v146
    %v2966 = vmul.f32 %v2958, %v147
    %v2967 = vmul.f32 %v2959, %v148
    %v2968 = vmul.f32 %v2960, %v149
    %v2969 = vld [vmem:[%s0 + $0x81] sm:$0xff]
    %v2970 = vld [vmem:[%s0 + $0x89] sm:$0xff]
    %v2971 = vld [vmem:[%s0 + $0x91] sm:$0xff]
    %v2972 = vld [vmem:[%s0 + $0x99] sm:$0xff]
    %v2973 = vld [vmem:[%s0 + $0xa1] sm:$0xff]
    %v2974 = vld [vmem:[%s0 + $0xa9] sm:$0xff]
    %v2975 = vld [vmem:[%s0 + $0xb1] sm:$0xff]
    %v2976 = vld [vmem:[%s0 + $0xb9] sm:$0xff]
    %v2978 = vsel %vm201, %v2969, 0
    %v2981 = vsel %vm201, %v2970, 0
    %v2984 = vsel %vm201, %v2971, 0
    %v2987 = vsel %vm201, %v2972, 0
    %v2990 = vsel %vm201, %v2973, 0
    %v2993 = vsel %vm201, %v2974, 0
    %v2996 = vsel %vm201, %v2975, 0
    %v2999 = vsel %vm201, %v2976, 0
    %3001 = vmatprep.subr.mxu0 0.0
    %3002 = vmatpush1.msra.mxu0 %v228
    %3003 = vmatprep.subr.mxu0 0.0
    %3004 = vmatpush1.msra.mxu0 0.0
    %3005 = vmatprep.subr.mxu0 0.0
    %3006 = vmatpush1.msra.mxu0 0.0
    %3007 = vmatprep.subr.mxu0 0.0
    %3008 = vmatpush1.msra.mxu0 0.0
    %3009 = vmatprep.subr.mxu0 0.0
    %3010 = vmatpush1.msra.mxu0 0.0
    %3011 = vmatprep.subr.mxu0 0.0
    %3012 = vmatpush1.msra.mxu0 0.0
    %3013 = vmatprep.subr.mxu0 0.0
    %3014 = vmatpush1.msra.mxu0 0.0
    %3015 = vmatprep.subr.mxu0 0.0
    %3016 = vmatpush1.msra.mxu0 0.0
    %3017 = vmatprep.subr.mxu0 0.0
    %3018 = vmatpush1.msra.mxu0 0.0
    %3019 = vmatprep.subr.mxu0 0.0
    %3020 = vmatpush1.msra.mxu0 0.0
    %3021 = vmatprep.subr.mxu0 0.0
    %3022 = vmatpush1.msra.mxu0 0.0
    %3023 = vmatprep.subr.mxu0 0.0
    %3024 = vmatpush1.msra.mxu0 0.0
    %3025 = vmatprep.subr.mxu0 0.0
    %3026 = vmatpush1.msra.mxu0 0.0
    %3027 = vmatprep.subr.mxu0 0.0
    %3028 = vmatpush1.msra.mxu0 0.0
    %3029 = vmatprep.subr.mxu0 0.0
    %3030 = vmatpush1.msra.mxu0 0.0
    %3031 = vmatprep.subr.mxu0 0.0
    %3032 = vmatpush1.msra.mxu0 0.0
    %3033 = vmatprep.subr.mxu0 0.0
    %3034 = vmatpush1.msra.mxu0 0.0
    %3035 = vmatprep.subr.mxu0 0.0
    %3036 = vmatpush1.msra.mxu0 0.0
    %3037 = vmatprep.subr.mxu0 0.0
    %3038 = vmatpush1.msra.mxu0 0.0
    %3039 = vmatprep.subr.mxu0 0.0
    %3040 = vmatpush1.msra.mxu0 0.0
    %3041 = vmatprep.subr.mxu0 0.0
    %3042 = vmatpush1.msra.mxu0 0.0
    %3043 = vmatprep.subr.mxu0 0.0
    %3044 = vmatpush1.msra.mxu0 0.0
    %3045 = vmatprep.subr.mxu0 0.0
    %3046 = vmatpush1.msra.mxu0 0.0
    %3047 = vmatprep.subr.mxu0 0.0
    %3048 = vmatpush1.msra.mxu0 0.0
    %3049 = vmatprep.subr.mxu0 0.0
    %3050 = vmatpush1.msra.mxu0 0.0
    %3051 = vmatprep.subr.mxu0 0.0
    %3052 = vmatpush1.msra.mxu0 0.0
    %3053 = vmatprep.subr.mxu0 0.0
    %3054 = vmatpush1.msra.mxu0 0.0
    %3055 = vmatprep.subr.mxu0 0.0
    %3056 = vmatpush1.msra.mxu0 0.0
    %3057 = vmatprep.subr.mxu0 0.0
    %3058 = vmatpush1.msra.mxu0 0.0
    %3059 = vmatprep.subr.mxu0 0.0
    %3060 = vmatpush1.msra.mxu0 0.0
    %3061 = vmatprep.subr.mxu0 0.0
    %3062 = vmatpush1.msra.mxu0 0.0
    %3063 = vmatprep.subr.mxu0 0.0
    %3064 = vmatpush1.msra.mxu0 0.0
    %3065 = vmatprep.mubr.f32.mxu0 0.0
    %3066 = vmatmul.mubr.f32.gmra.mrb[0].mxu0 %v2978
    %v3067 = vpop.f32.mrb[0].mxu0
    %v3068 = vadd.f32 0.0, %v3067
    %v3069 = vpop.f32.mrb[0].mxu0
    %3070 = vmatprep.mubr.f32.mxu0 0.0
    %3071 = vmatmul.mubr.f32.gmra.mrb[0].mxu0 %v2981
    %v3072 = vpop.f32.mrb[0].mxu0
    %v3073 = vadd.f32 0.0, %v3072
    %v3074 = vpop.f32.mrb[0].mxu0
    %3075 = vmatprep.mubr.f32.mxu0 0.0
    %3076 = vmatmul.mubr.f32.gmra.mrb[0].mxu0 %v2984
    %v3077 = vpop.f32.mrb[0].mxu0
    %v3078 = vadd.f32 0.0, %v3077
    %v3079 = vpop.f32.mrb[0].mxu0
    %3080 = vmatprep.mubr.f32.mxu0 0.0
    %3081 = vmatmul.mubr.f32.gmra.mrb[0].mxu0 %v2987
    %v3082 = vpop.f32.mrb[0].mxu0
    %v3083 = vadd.f32 0.0, %v3082
    %v3084 = vpop.f32.mrb[0].mxu0
    %3085 = vmatprep.mubr.f32.mxu0 0.0
    %3086 = vmatmul.mubr.f32.gmra.mrb[0].mxu0 %v2990
    %v3087 = vpop.f32.mrb[0].mxu0
    %v3088 = vadd.f32 0.0, %v3087
    %v3089 = vpop.f32.mrb[0].mxu0
    %3090 = vmatprep.mubr.f32.mxu0 0.0
    %3091 = vmatmul.mubr.f32.gmra.mrb[0].mxu0 %v2993
    %v3092 = vpop.f32.mrb[0].mxu0
    %v3093 = vadd.f32 0.0, %v3092
    %v3094 = vpop.f32.mrb[0].mxu0
    %3095 = vmatprep.mubr.f32.mxu0 0.0
    %3096 = vmatmul.mubr.f32.gmra.mrb[0].mxu0 %v2996
    %v3097 = vpop.f32.mrb[0].mxu0
    %v3098 = vadd.f32 0.0, %v3097
    %v3099 = vpop.f32.mrb[0].mxu0
    %3100 = vmatprep.mubr.f32.mxu0 0.0
    %3101 = vmatmul.mubr.f32.gmra.mrb[0].mxu0 %v2999
    %v3102 = vpop.f32.mrb[0].mxu0
    %v3103 = vadd.f32 0.0, %v3102
    %v3104 = vpop.f32.mrb[0].mxu0
    %3105 = vdwg.mxu0
    %v3107 = vsel %vm201, %v2961, 0
    %v3110 = vsel %vm201, %v2962, 0
    %v3113 = vsel %vm201, %v2963, 0
    %v3116 = vsel %vm201, %v2964, 0
    %v3119 = vsel %vm201, %v2965, 0
    %v3122 = vsel %vm201, %v2966, 0
    %v3125 = vsel %vm201, %v2967, 0
    %v3128 = vsel %vm201, %v2968, 0
    %3130 = vmatprep.subr.mxu0 0.0
    %3131 = vmatpush1.msra.mxu0 %v360
    %3132 = vmatprep.subr.mxu0 0.0
    %3133 = vmatpush1.msra.mxu0 0.0
    %3134 = vmatprep.subr.mxu0 0.0
    %3135 = vmatpush1.msra.mxu0 0.0
    %3136 = vmatprep.subr.mxu0 0.0
    %3137 = vmatpush1.msra.mxu0 0.0
    %3138 = vmatprep.subr.mxu0 0.0
    %3139 = vmatpush1.msra.mxu0 0.0
    %3140 = vmatprep.subr.mxu0 0.0
    %3141 = vmatpush1.msra.mxu0 0.0
    %3142 = vmatprep.subr.mxu0 0.0
    %3143 = vmatpush1.msra.mxu0 0.0
    %3144 = vmatprep.subr.mxu0 0.0
    %3145 = vmatpush1.msra.mxu0 0.0
    %3146 = vmatprep.subr.mxu0 0.0
    %3147 = vmatpush1.msra.mxu0 0.0
    %3148 = vmatprep.subr.mxu0 0.0
    %3149 = vmatpush1.msra.mxu0 0.0
    %3150 = vmatprep.subr.mxu0 0.0
    %3151 = vmatpush1.msra.mxu0 0.0
    %3152 = vmatprep.subr.mxu0 0.0
    %3153 = vmatpush1.msra.mxu0 0.0
    %3154 = vmatprep.subr.mxu0 0.0
    %3155 = vmatpush1.msra.mxu0 0.0
    %3156 = vmatprep.subr.mxu0 0.0
    %3157 = vmatpush1.msra.mxu0 0.0
    %3158 = vmatprep.subr.mxu0 0.0
    %3159 = vmatpush1.msra.mxu0 0.0
    %3160 = vmatprep.subr.mxu0 0.0
    %3161 = vmatpush1.msra.mxu0 0.0
    %3162 = vmatprep.subr.mxu0 0.0
    %3163 = vmatpush1.msra.mxu0 0.0
    %3164 = vmatprep.subr.mxu0 0.0
    %3165 = vmatpush1.msra.mxu0 0.0
    %3166 = vmatprep.subr.mxu0 0.0
    %3167 = vmatpush1.msra.mxu0 0.0
    %3168 = vmatprep.subr.mxu0 0.0
    %3169 = vmatpush1.msra.mxu0 0.0
    %3170 = vmatprep.subr.mxu0 0.0
    %3171 = vmatpush1.msra.mxu0 0.0
    %3172 = vmatprep.subr.mxu0 0.0
    %3173 = vmatpush1.msra.mxu0 0.0
    %3174 = vmatprep.subr.mxu0 0.0
    %3175 = vmatpush1.msra.mxu0 0.0
    %3176 = vmatprep.subr.mxu0 0.0
    %3177 = vmatpush1.msra.mxu0 0.0
    %3178 = vmatprep.subr.mxu0 0.0
    %3179 = vmatpush1.msra.mxu0 0.0
    %3180 = vmatprep.subr.mxu0 0.0
    %3181 = vmatpush1.msra.mxu0 0.0
    %3182 = vmatprep.subr.mxu0 0.0
    %3183 = vmatpush1.msra.mxu0 0.0
    %3184 = vmatprep.subr.mxu0 0.0
    %3185 = vmatpush1.msra.mxu0 0.0
    %3186 = vmatprep.subr.mxu0 0.0
    %3187 = vmatpush1.msra.mxu0 0.0
    %3188 = vmatprep.subr.mxu0 0.0
    %3189 = vmatpush1.msra.mxu0 0.0
    %3190 = vmatprep.subr.mxu0 0.0
    %3191 = vmatpush1.msra.mxu0 0.0
    %3192 = vmatprep.subr.mxu0 0.0
    %3193 = vmatpush1.msra.mxu0 0.0
    %3194 = vmatprep.mubr.f32.mxu0 0.0
    %3195 = vmatmul.mubr.f32.gmra.mrb[0].mxu0 %v3107
    %v3196 = vpop.f32.mrb[0].mxu0
    %v3197 = vadd.f32 %v3068, %v3196
    %v3198 = vpop.f32.mrb[0].mxu0
    %3199 = vmatprep.mubr.f32.mxu0 0.0
    %3200 = vmatmul.mubr.f32.gmra.mrb[0].mxu0 %v3110
    %v3201 = vpop.f32.mrb[0].mxu0
    %v3202 = vadd.f32 %v3073, %v3201
    %v3203 = vpop.f32.mrb[0].mxu0
    %3204 = vmatprep.mubr.f32.mxu0 0.0
    %3205 = vmatmul.mubr.f32.gmra.mrb[0].mxu0 %v3113
    %v3206 = vpop.f32.mrb[0].mxu0
    %v3207 = vadd.f32 %v3078, %v3206
    %v3208 = vpop.f32.mrb[0].mxu0
    %3209 = vmatprep.mubr.f32.mxu0 0.0
    %3210 = vmatmul.mubr.f32.gmra.mrb[0].mxu0 %v3116
    %v3211 = vpop.f32.mrb[0].mxu0
    %v3212 = vadd.f32 %v3083, %v3211
    %v3213 = vpop.f32.mrb[0].mxu0
    %3214 = vmatprep.mubr.f32.mxu0 0.0
    %3215 = vmatmul.mubr.f32.gmra.mrb[0].mxu0 %v3119
    %v3216 = vpop.f32.mrb[0].mxu0
    %v3217 = vadd.f32 %v3088, %v3216
    %v3218 = vpop.f32.mrb[0].mxu0
    %3219 = vmatprep.mubr.f32.mxu0 0.0
    %3220 = vmatmul.mubr.f32.gmra.mrb[0].mxu0 %v3122
    %v3221 = vpop.f32.mrb[0].mxu0
    %v3222 = vadd.f32 %v3093, %v3221
    %v3223 = vpop.f32.mrb[0].mxu0
    %3224 = vmatprep.mubr.f32.mxu0 0.0
    %3225 = vmatmul.mubr.f32.gmra.mrb[0].mxu0 %v3125
    %v3226 = vpop.f32.mrb[0].mxu0
    %v3227 = vadd.f32 %v3098, %v3226
    %v3228 = vpop.f32.mrb[0].mxu0
    %3229 = vmatprep.mubr.f32.mxu0 0.0
    %3230 = vmatmul.mubr.f32.gmra.mrb[0].mxu0 %v3128
    %v3231 = vpop.f32.mrb[0].mxu0
    %v3232 = vadd.f32 %v3103, %v3231
    %v3233 = vpop.f32.mrb[0].mxu0
    %3234 = vdwg.mxu0
    %v3235 = vld [vmem:[%s0 + $0x82] sm:$0xff]
    %v3236 = vld [vmem:[%s0 + $0x8a] sm:$0xff]
    %v3237 = vld [vmem:[%s0 + $0x92] sm:$0xff]
    %v3238 = vld [vmem:[%s0 + $0x9a] sm:$0xff]
    %v3239 = vld [vmem:[%s0 + $0xa2] sm:$0xff]
    %v3240 = vld [vmem:[%s0 + $0xaa] sm:$0xff]
    %v3241 = vld [vmem:[%s0 + $0xb2] sm:$0xff]
    %v3242 = vld [vmem:[%s0 + $0xba] sm:$0xff]
    %v3243 = vmul.f32 %v3235, %v166
    %v3244 = vmul.f32 %v3236, %v167
    %v3245 = vmul.f32 %v3237, %v168
    %v3246 = vmul.f32 %v3238, %v169
    %v3247 = vmul.f32 %v3239, %v170
    %v3248 = vmul.f32 %v3240, %v171
    %v3249 = vmul.f32 %v3241, %v172
    %v3250 = vmul.f32 %v3242, %v173
    %v3252 = vsel %vm201, %v3243, 0
    %v3255 = vsel %vm201, %v3244, 0
    %v3258 = vsel %vm201, %v3245, 0
    %v3261 = vsel %vm201, %v3246, 0
    %v3264 = vsel %vm201, %v3247, 0
    %v3267 = vsel %vm201, %v3248, 0
    %v3270 = vsel %vm201, %v3249, 0
    %v3273 = vsel %vm201, %v3250, 0
    %3275 = vmatprep.subr.mxu0 0.0
    %3276 = vmatpush1.msra.mxu0 %v509
    %3277 = vmatprep.subr.mxu0 0.0
    %3278 = vmatpush1.msra.mxu0 0.0
    %3279 = vmatprep.subr.mxu0 0.0
    %3280 = vmatpush1.msra.mxu0 0.0
    %3281 = vmatprep.subr.mxu0 0.0
    %3282 = vmatpush1.msra.mxu0 0.0
    %3283 = vmatprep.subr.mxu0 0.0
    %3284 = vmatpush1.msra.mxu0 0.0
    %3285 = vmatprep.subr.mxu0 0.0
    %3286 = vmatpush1.msra.mxu0 0.0
    %3287 = vmatprep.subr.mxu0 0.0
    %3288 = vmatpush1.msra.mxu0 0.0
    %3289 = vmatprep.subr.mxu0 0.0
    %3290 = vmatpush1.msra.mxu0 0.0
    %3291 = vmatprep.subr.mxu0 0.0
    %3292 = vmatpush1.msra.mxu0 0.0
    %3293 = vmatprep.subr.mxu0 0.0
    %3294 = vmatpush1.msra.mxu0 0.0
    %3295 = vmatprep.subr.mxu0 0.0
    %3296 = vmatpush1.msra.mxu0 0.0
    %3297 = vmatprep.subr.mxu0 0.0
    %3298 = vmatpush1.msra.mxu0 0.0
    %3299 = vmatprep.subr.mxu0 0.0
    %3300 = vmatpush1.msra.mxu0 0.0
    %3301 = vmatprep.subr.mxu0 0.0
    %3302 = vmatpush1.msra.mxu0 0.0
    %3303 = vmatprep.subr.mxu0 0.0
    %3304 = vmatpush1.msra.mxu0 0.0
    %3305 = vmatprep.subr.mxu0 0.0
    %3306 = vmatpush1.msra.mxu0 0.0
    %3307 = vmatprep.subr.mxu0 0.0
    %3308 = vmatpush1.msra.mxu0 0.0
    %3309 = vmatprep.subr.mxu0 0.0
    %3310 = vmatpush1.msra.mxu0 0.0
    %3311 = vmatprep.subr.mxu0 0.0
    %3312 = vmatpush1.msra.mxu0 0.0
    %3313 = vmatprep.subr.mxu0 0.0
    %3314 = vmatpush1.msra.mxu0 0.0
    %3315 = vmatprep.subr.mxu0 0.0
    %3316 = vmatpush1.msra.mxu0 0.0
    %3317 = vmatprep.subr.mxu0 0.0
    %3318 = vmatpush1.msra.mxu0 0.0
    %3319 = vmatprep.subr.mxu0 0.0
    %3320 = vmatpush1.msra.mxu0 0.0
    %3321 = vmatprep.subr.mxu0 0.0
    %3322 = vmatpush1.msra.mxu0 0.0
    %3323 = vmatprep.subr.mxu0 0.0
    %3324 = vmatpush1.msra.mxu0 0.0
    %3325 = vmatprep.subr.mxu0 0.0
    %3326 = vmatpush1.msra.mxu0 0.0
    %3327 = vmatprep.subr.mxu0 0.0
    %3328 = vmatpush1.msra.mxu0 0.0
    %3329 = vmatprep.subr.mxu0 0.0
    %3330 = vmatpush1.msra.mxu0 0.0
    %3331 = vmatprep.subr.mxu0 0.0
    %3332 = vmatpush1.msra.mxu0 0.0
    %3333 = vmatprep.subr.mxu0 0.0
    %3334 = vmatpush1.msra.mxu0 0.0
    %3335 = vmatprep.subr.mxu0 0.0
    %3336 = vmatpush1.msra.mxu0 0.0
    %3337 = vmatprep.subr.mxu0 0.0
    %3338 = vmatpush1.msra.mxu0 0.0
    %3339 = vmatprep.mubr.f32.mxu0 0.0
    %3340 = vmatmul.mubr.f32.gmra.mrb[0].mxu0 %v3252
    %v3341 = vpop.f32.mrb[0].mxu0
    %v3342 = vadd.f32 0.0, %v3341
    %v3343 = vpop.f32.mrb[0].mxu0
    %3344 = vmatprep.mubr.f32.mxu0 0.0
    %3345 = vmatmul.mubr.f32.gmra.mrb[0].mxu0 %v3255
    %v3346 = vpop.f32.mrb[0].mxu0
    %v3347 = vadd.f32 0.0, %v3346
    %v3348 = vpop.f32.mrb[0].mxu0
    %3349 = vmatprep.mubr.f32.mxu0 0.0
    %3350 = vmatmul.mubr.f32.gmra.mrb[0].mxu0 %v3258
    %v3351 = vpop.f32.mrb[0].mxu0
    %v3352 = vadd.f32 0.0, %v3351
    %v3353 = vpop.f32.mrb[0].mxu0
    %3354 = vmatprep.mubr.f32.mxu0 0.0
    %3355 = vmatmul.mubr.f32.gmra.mrb[0].mxu0 %v3261
    %v3356 = vpop.f32.mrb[0].mxu0
    %v3357 = vadd.f32 0.0, %v3356
    %v3358 = vpop.f32.mrb[0].mxu0
    %3359 = vmatprep.mubr.f32.mxu0 0.0
    %3360 = vmatmul.mubr.f32.gmra.mrb[0].mxu0 %v3264
    %v3361 = vpop.f32.mrb[0].mxu0
    %v3362 = vadd.f32 0.0, %v3361
    %v3363 = vpop.f32.mrb[0].mxu0
    %3364 = vmatprep.mubr.f32.mxu0 0.0
    %3365 = vmatmul.mubr.f32.gmra.mrb[0].mxu0 %v3267
    %v3366 = vpop.f32.mrb[0].mxu0
    %v3367 = vadd.f32 0.0, %v3366
    %v3368 = vpop.f32.mrb[0].mxu0
    %3369 = vmatprep.mubr.f32.mxu0 0.0
    %3370 = vmatmul.mubr.f32.gmra.mrb[0].mxu0 %v3270
    %v3371 = vpop.f32.mrb[0].mxu0
    %v3372 = vadd.f32 0.0, %v3371
    %v3373 = vpop.f32.mrb[0].mxu0
    %3374 = vmatprep.mubr.f32.mxu0 0.0
    %3375 = vmatmul.mubr.f32.gmra.mrb[0].mxu0 %v3273
    %v3376 = vpop.f32.mrb[0].mxu0
    %v3377 = vadd.f32 0.0, %v3376
    %v3378 = vpop.f32.mrb[0].mxu0
    %3379 = vdwg.mxu0
    %v3380 = vadd.f32 %v3197, %v3342
    %v3381 = vadd.f32 %v3202, %v3347
    %v3382 = vadd.f32 %v3207, %v3352
    %v3383 = vadd.f32 %v3212, %v3357
    %v3384 = vadd.f32 %v3217, %v3362
    %v3385 = vadd.f32 %v3222, %v3367
    %v3386 = vadd.f32 %v3227, %v3372
    %v3387 = vadd.f32 %v3232, %v3377
    %v3388 = vld [vmem:[%s0 + $0x90] sm:$0xff]
    %v3389 = vld [vmem:[%s0 + $0x98] sm:$0xff]
    %v3390 = vld [vmem:[%s0 + $0xa0] sm:$0xff]
    %v3391 = vld [vmem:[%s0 + $0xa8] sm:$0xff]
    %v3392 = vld [vmem:[%s0 + $0xb0] sm:$0xff]
    %v3393 = vld [vmem:[%s0 + $0xb8] sm:$0xff]
    %v3394 = vld [vmem:[%s0 + $0xc0] sm:$0xff]
    %v3395 = vld [vmem:[%s0 + $0xc8] sm:$0xff]
    %v3396 = vmul.f32 %v3388, %v142
    %v3397 = vmul.f32 %v3389, %v143
    %v3398 = vmul.f32 %v3390, %v144
    %v3399 = vmul.f32 %v3391, %v145
    %v3400 = vmul.f32 %v3392, %v146
    %v3401 = vmul.f32 %v3393, %v147
    %v3402 = vmul.f32 %v3394, %v148
    %v3403 = vmul.f32 %v3395, %v149
    %v3405 = vsel %vm201, %v3396, 0
    %v3408 = vsel %vm201, %v3397, 0
    %v3411 = vsel %vm201, %v3398, 0
    %v3414 = vsel %vm201, %v3399, 0
    %v3417 = vsel %vm201, %v3400, 0
    %v3420 = vsel %vm201, %v3401, 0
    %v3423 = vsel %vm201, %v3402, 0
    %v3426 = vsel %vm201, %v3403, 0
    %3428 = vmatprep.subr.mxu0 0.0
    %3429 = vmatpush1.msra.mxu0 %v666
    %3430 = vmatprep.subr.mxu0 0.0
    %3431 = vmatpush1.msra.mxu0 0.0
    %3432 = vmatprep.subr.mxu0 0.0
    %3433 = vmatpush1.msra.mxu0 0.0
    %3434 = vmatprep.subr.mxu0 0.0
    %3435 = vmatpush1.msra.mxu0 0.0
    %3436 = vmatprep.subr.mxu0 0.0
    %3437 = vmatpush1.msra.mxu0 0.0
    %3438 = vmatprep.subr.mxu0 0.0
    %3439 = vmatpush1.msra.mxu0 0.0
    %3440 = vmatprep.subr.mxu0 0.0
    %3441 = vmatpush1.msra.mxu0 0.0
    %3442 = vmatprep.subr.mxu0 0.0
    %3443 = vmatpush1.msra.mxu0 0.0
    %3444 = vmatprep.subr.mxu0 0.0
    %3445 = vmatpush1.msra.mxu0 0.0
    %3446 = vmatprep.subr.mxu0 0.0
    %3447 = vmatpush1.msra.mxu0 0.0
    %3448 = vmatprep.subr.mxu0 0.0
    %3449 = vmatpush1.msra.mxu0 0.0
    %3450 = vmatprep.subr.mxu0 0.0
    %3451 = vmatpush1.msra.mxu0 0.0
    %3452 = vmatprep.subr.mxu0 0.0
    %3453 = vmatpush1.msra.mxu0 0.0
    %3454 = vmatprep.subr.mxu0 0.0
    %3455 = vmatpush1.msra.mxu0 0.0
    %3456 = vmatprep.subr.mxu0 0.0
    %3457 = vmatpush1.msra.mxu0 0.0
    %3458 = vmatprep.subr.mxu0 0.0
    %3459 = vmatpush1.msra.mxu0 0.0
    %3460 = vmatprep.subr.mxu0 0.0
    %3461 = vmatpush1.msra.mxu0 0.0
    %3462 = vmatprep.subr.mxu0 0.0
    %3463 = vmatpush1.msra.mxu0 0.0
    %3464 = vmatprep.subr.mxu0 0.0
    %3465 = vmatpush1.msra.mxu0 0.0
    %3466 = vmatprep.subr.mxu0 0.0
    %3467 = vmatpush1.msra.mxu0 0.0
    %3468 = vmatprep.subr.mxu0 0.0
    %3469 = vmatpush1.msra.mxu0 0.0
    %3470 = vmatprep.subr.mxu0 0.0
    %3471 = vmatpush1.msra.mxu0 0.0
    %3472 = vmatprep.subr.mxu0 0.0
    %3473 = vmatpush1.msra.mxu0 0.0
    %3474 = vmatprep.subr.mxu0 0.0
    %3475 = vmatpush1.msra.mxu0 0.0
    %3476 = vmatprep.subr.mxu0 0.0
    %3477 = vmatpush1.msra.mxu0 0.0
    %3478 = vmatprep.subr.mxu0 0.0
    %3479 = vmatpush1.msra.mxu0 0.0
    %3480 = vmatprep.subr.mxu0 0.0
    %3481 = vmatpush1.msra.mxu0 0.0
    %3482 = vmatprep.subr.mxu0 0.0
    %3483 = vmatpush1.msra.mxu0 0.0
    %3484 = vmatprep.subr.mxu0 0.0
    %3485 = vmatpush1.msra.mxu0 0.0
    %3486 = vmatprep.subr.mxu0 0.0
    %3487 = vmatpush1.msra.mxu0 0.0
    %3488 = vmatprep.subr.mxu0 0.0
    %3489 = vmatpush1.msra.mxu0 0.0
    %3490 = vmatprep.subr.mxu0 0.0
    %3491 = vmatpush1.msra.mxu0 0.0
    %3492 = vmatprep.mubr.f32.mxu0 0.0
    %3493 = vmatmul.mubr.f32.gmra.mrb[0].mxu0 %v3405
    %v3494 = vpop.f32.mrb[0].mxu0
    %v3495 = vadd.f32 0.0, %v3494
    %v3496 = vpop.f32.mrb[0].mxu0
    %3497 = vmatprep.mubr.f32.mxu0 0.0
    %3498 = vmatmul.mubr.f32.gmra.mrb[0].mxu0 %v3408
    %v3499 = vpop.f32.mrb[0].mxu0
    %v3500 = vadd.f32 0.0, %v3499
    %v3501 = vpop.f32.mrb[0].mxu0
    %3502 = vmatprep.mubr.f32.mxu0 0.0
    %3503 = vmatmul.mubr.f32.gmra.mrb[0].mxu0 %v3411
    %v3504 = vpop.f32.mrb[0].mxu0
    %v3505 = vadd.f32 0.0, %v3504
    %v3506 = vpop.f32.mrb[0].mxu0
    %3507 = vmatprep.mubr.f32.mxu0 0.0
    %3508 = vmatmul.mubr.f32.gmra.mrb[0].mxu0 %v3414
    %v3509 = vpop.f32.mrb[0].mxu0
    %v3510 = vadd.f32 0.0, %v3509
    %v3511 = vpop.f32.mrb[0].mxu0
    %3512 = vmatprep.mubr.f32.mxu0 0.0
    %3513 = vmatmul.mubr.f32.gmra.mrb[0].mxu0 %v3417
    %v3514 = vpop.f32.mrb[0].mxu0
    %v3515 = vadd.f32 0.0, %v3514
    %v3516 = vpop.f32.mrb[0].mxu0
    %3517 = vmatprep.mubr.f32.mxu0 0.0
    %3518 = vmatmul.mubr.f32.gmra.mrb[0].mxu0 %v3420
    %v3519 = vpop.f32.mrb[0].mxu0
    %v3520 = vadd.f32 0.0, %v3519
    %v3521 = vpop.f32.mrb[0].mxu0
    %3522 = vmatprep.mubr.f32.mxu0 0.0
    %3523 = vmatmul.mubr.f32.gmra.mrb[0].mxu0 %v3423
    %v3524 = vpop.f32.mrb[0].mxu0
    %v3525 = vadd.f32 0.0, %v3524
    %v3526 = vpop.f32.mrb[0].mxu0
    %3527 = vmatprep.mubr.f32.mxu0 0.0
    %3528 = vmatmul.mubr.f32.gmra.mrb[0].mxu0 %v3426
    %v3529 = vpop.f32.mrb[0].mxu0
    %v3530 = vadd.f32 0.0, %v3529
    %v3531 = vpop.f32.mrb[0].mxu0
    %3532 = vdwg.mxu0
    %v3533 = vadd.f32 %v3380, %v3495
    %v3534 = vadd.f32 %v3381, %v3500
    %v3535 = vadd.f32 %v3382, %v3505
    %v3536 = vadd.f32 %v3383, %v3510
    %v3537 = vadd.f32 %v3384, %v3515
    %v3538 = vadd.f32 %v3385, %v3520
    %v3539 = vadd.f32 %v3386, %v3525
    %v3540 = vadd.f32 %v3387, %v3530
    %v3541 = vld [vmem:[%s0 + $0x91] sm:$0xff]
    %v3542 = vld [vmem:[%s0 + $0x99] sm:$0xff]
    %v3543 = vld [vmem:[%s0 + $0xa1] sm:$0xff]
    %v3544 = vld [vmem:[%s0 + $0xa9] sm:$0xff]
    %v3545 = vld [vmem:[%s0 + $0xb1] sm:$0xff]
    %v3546 = vld [vmem:[%s0 + $0xb9] sm:$0xff]
    %v3547 = vld [vmem:[%s0 + $0xc1] sm:$0xff]
    %v3548 = vld [vmem:[%s0 + $0xc9] sm:$0xff]
    %v3550 = vsel %vm201, %v3541, 0
    %v3553 = vsel %vm201, %v3542, 0
    %v3556 = vsel %vm201, %v3543, 0
    %v3559 = vsel %vm201, %v3544, 0
    %v3562 = vsel %vm201, %v3545, 0
    %v3565 = vsel %vm201, %v3546, 0
    %v3568 = vsel %vm201, %v3547, 0
    %v3571 = vsel %vm201, %v3548, 0
    %3573 = vmatprep.subr.mxu0 0.0
    %3574 = vmatpush1.msra.mxu0 %v815
    %3575 = vmatprep.subr.mxu0 0.0
    %3576 = vmatpush1.msra.mxu0 0.0
    %3577 = vmatprep.subr.mxu0 0.0
    %3578 = vmatpush1.msra.mxu0 0.0
    %3579 = vmatprep.subr.mxu0 0.0
    %3580 = vmatpush1.msra.mxu0 0.0
    %3581 = vmatprep.subr.mxu0 0.0
    %3582 = vmatpush1.msra.mxu0 0.0
    %3583 = vmatprep.subr.mxu0 0.0
    %3584 = vmatpush1.msra.mxu0 0.0
    %3585 = vmatprep.subr.mxu0 0.0
    %3586 = vmatpush1.msra.mxu0 0.0
    %3587 = vmatprep.subr.mxu0 0.0
    %3588 = vmatpush1.msra.mxu0 0.0
    %3589 = vmatprep.subr.mxu0 0.0
    %3590 = vmatpush1.msra.mxu0 0.0
    %3591 = vmatprep.subr.mxu0 0.0
    %3592 = vmatpush1.msra.mxu0 0.0
    %3593 = vmatprep.subr.mxu0 0.0
    %3594 = vmatpush1.msra.mxu0 0.0
    %3595 = vmatprep.subr.mxu0 0.0
    %3596 = vmatpush1.msra.mxu0 0.0
    %3597 = vmatprep.subr.mxu0 0.0
    %3598 = vmatpush1.msra.mxu0 0.0
    %3599 = vmatprep.subr.mxu0 0.0
    %3600 = vmatpush1.msra.mxu0 0.0
    %3601 = vmatprep.subr.mxu0 0.0
    %3602 = vmatpush1.msra.mxu0 0.0
    %3603 = vmatprep.subr.mxu0 0.0
    %3604 = vmatpush1.msra.mxu0 0.0
    %3605 = vmatprep.subr.mxu0 0.0
    %3606 = vmatpush1.msra.mxu0 0.0
    %3607 = vmatprep.subr.mxu0 0.0
    %3608 = vmatpush1.msra.mxu0 0.0
    %3609 = vmatprep.subr.mxu0 0.0
    %3610 = vmatpush1.msra.mxu0 0.0
    %3611 = vmatprep.subr.mxu0 0.0
    %3612 = vmatpush1.msra.mxu0 0.0
    %3613 = vmatprep.subr.mxu0 0.0
    %3614 = vmatpush1.msra.mxu0 0.0
    %3615 = vmatprep.subr.mxu0 0.0
    %3616 = vmatpush1.msra.mxu0 0.0
    %3617 = vmatprep.subr.mxu0 0.0
    %3618 = vmatpush1.msra.mxu0 0.0
    %3619 = vmatprep.subr.mxu0 0.0
    %3620 = vmatpush1.msra.mxu0 0.0
    %3621 = vmatprep.subr.mxu0 0.0
    %3622 = vmatpush1.msra.mxu0 0.0
    %3623 = vmatprep.subr.mxu0 0.0
    %3624 = vmatpush1.msra.mxu0 0.0
    %3625 = vmatprep.subr.mxu0 0.0
    %3626 = vmatpush1.msra.mxu0 0.0
    %3627 = vmatprep.subr.mxu0 0.0
    %3628 = vmatpush1.msra.mxu0 0.0
    %3629 = vmatprep.subr.mxu0 0.0
    %3630 = vmatpush1.msra.mxu0 0.0
    %3631 = vmatprep.subr.mxu0 0.0
    %3632 = vmatpush1.msra.mxu0 0.0
    %3633 = vmatprep.subr.mxu0 0.0
    %3634 = vmatpush1.msra.mxu0 0.0
    %3635 = vmatprep.subr.mxu0 0.0
    %3636 = vmatpush1.msra.mxu0 0.0
    %3637 = vmatprep.mubr.f32.mxu0 0.0
    %3638 = vmatmul.mubr.f32.gmra.mrb[0].mxu0 %v3550
    %v3639 = vpop.f32.mrb[0].mxu0
    %v3640 = vadd.f32 0.0, %v3639
    %v3641 = vpop.f32.mrb[0].mxu0
    %3642 = vmatprep.mubr.f32.mxu0 0.0
    %3643 = vmatmul.mubr.f32.gmra.mrb[0].mxu0 %v3553
    %v3644 = vpop.f32.mrb[0].mxu0
    %v3645 = vadd.f32 0.0, %v3644
    %v3646 = vpop.f32.mrb[0].mxu0
    %3647 = vmatprep.mubr.f32.mxu0 0.0
    %3648 = vmatmul.mubr.f32.gmra.mrb[0].mxu0 %v3556
    %v3649 = vpop.f32.mrb[0].mxu0
    %v3650 = vadd.f32 0.0, %v3649
    %v3651 = vpop.f32.mrb[0].mxu0
    %3652 = vmatprep.mubr.f32.mxu0 0.0
    %3653 = vmatmul.mubr.f32.gmra.mrb[0].mxu0 %v3559
    %v3654 = vpop.f32.mrb[0].mxu0
    %v3655 = vadd.f32 0.0, %v3654
    %v3656 = vpop.f32.mrb[0].mxu0
    %3657 = vmatprep.mubr.f32.mxu0 0.0
    %3658 = vmatmul.mubr.f32.gmra.mrb[0].mxu0 %v3562
    %v3659 = vpop.f32.mrb[0].mxu0
    %v3660 = vadd.f32 0.0, %v3659
    %v3661 = vpop.f32.mrb[0].mxu0
    %3662 = vmatprep.mubr.f32.mxu0 0.0
    %3663 = vmatmul.mubr.f32.gmra.mrb[0].mxu0 %v3565
    %v3664 = vpop.f32.mrb[0].mxu0
    %v3665 = vadd.f32 0.0, %v3664
    %v3666 = vpop.f32.mrb[0].mxu0
    %3667 = vmatprep.mubr.f32.mxu0 0.0
    %3668 = vmatmul.mubr.f32.gmra.mrb[0].mxu0 %v3568
    %v3669 = vpop.f32.mrb[0].mxu0
    %v3670 = vadd.f32 0.0, %v3669
    %v3671 = vpop.f32.mrb[0].mxu0
    %3672 = vmatprep.mubr.f32.mxu0 0.0
    %3673 = vmatmul.mubr.f32.gmra.mrb[0].mxu0 %v3571
    %v3674 = vpop.f32.mrb[0].mxu0
    %v3675 = vadd.f32 0.0, %v3674
    %v3676 = vpop.f32.mrb[0].mxu0
    %3677 = vdwg.mxu0
    %v3678 = vadd.f32 %v3533, %v3640
    %v3679 = vadd.f32 %v3534, %v3645
    %v3680 = vadd.f32 %v3535, %v3650
    %v3681 = vadd.f32 %v3536, %v3655
    %v3682 = vadd.f32 %v3537, %v3660
    %v3683 = vadd.f32 %v3538, %v3665
    %v3684 = vadd.f32 %v3539, %v3670
    %v3685 = vadd.f32 %v3540, %v3675
    %v3686 = vld [vmem:[%s0 + $0x92] sm:$0xff]
    %v3687 = vld [vmem:[%s0 + $0x9a] sm:$0xff]
    %v3688 = vld [vmem:[%s0 + $0xa2] sm:$0xff]
    %v3689 = vld [vmem:[%s0 + $0xaa] sm:$0xff]
    %v3690 = vld [vmem:[%s0 + $0xb2] sm:$0xff]
    %v3691 = vld [vmem:[%s0 + $0xba] sm:$0xff]
    %v3692 = vld [vmem:[%s0 + $0xc2] sm:$0xff]
    %v3693 = vld [vmem:[%s0 + $0xca] sm:$0xff]
    %v3694 = vmul.f32 %v3686, %v166
    %v3695 = vmul.f32 %v3687, %v167
    %v3696 = vmul.f32 %v3688, %v168
    %v3697 = vmul.f32 %v3689, %v169
    %v3698 = vmul.f32 %v3690, %v170
    %v3699 = vmul.f32 %v3691, %v171
    %v3700 = vmul.f32 %v3692, %v172
    %v3701 = vmul.f32 %v3693, %v173
    %v3703 = vsel %vm201, %v3694, 0
    %v3706 = vsel %vm201, %v3695, 0
    %v3709 = vsel %vm201, %v3696, 0
    %v3712 = vsel %vm201, %v3697, 0
    %v3715 = vsel %vm201, %v3698, 0
    %v3718 = vsel %vm201, %v3699, 0
    %v3721 = vsel %vm201, %v3700, 0
    %v3724 = vsel %vm201, %v3701, 0
    %3726 = vmatprep.subr.mxu0 0.0
    %3727 = vmatpush1.msra.mxu0 %v972
    %3728 = vmatprep.subr.mxu0 0.0
    %3729 = vmatpush1.msra.mxu0 0.0
    %3730 = vmatprep.subr.mxu0 0.0
    %3731 = vmatpush1.msra.mxu0 0.0
    %3732 = vmatprep.subr.mxu0 0.0
    %3733 = vmatpush1.msra.mxu0 0.0
    %3734 = vmatprep.subr.mxu0 0.0
    %3735 = vmatpush1.msra.mxu0 0.0
    %3736 = vmatprep.subr.mxu0 0.0
    %3737 = vmatpush1.msra.mxu0 0.0
    %3738 = vmatprep.subr.mxu0 0.0
    %3739 = vmatpush1.msra.mxu0 0.0
    %3740 = vmatprep.subr.mxu0 0.0
    %3741 = vmatpush1.msra.mxu0 0.0
    %3742 = vmatprep.subr.mxu0 0.0
    %3743 = vmatpush1.msra.mxu0 0.0
    %3744 = vmatprep.subr.mxu0 0.0
    %3745 = vmatpush1.msra.mxu0 0.0
    %3746 = vmatprep.subr.mxu0 0.0
    %3747 = vmatpush1.msra.mxu0 0.0
    %3748 = vmatprep.subr.mxu0 0.0
    %3749 = vmatpush1.msra.mxu0 0.0
    %3750 = vmatprep.subr.mxu0 0.0
    %3751 = vmatpush1.msra.mxu0 0.0
    %3752 = vmatprep.subr.mxu0 0.0
    %3753 = vmatpush1.msra.mxu0 0.0
    %3754 = vmatprep.subr.mxu0 0.0
    %3755 = vmatpush1.msra.mxu0 0.0
    %3756 = vmatprep.subr.mxu0 0.0
    %3757 = vmatpush1.msra.mxu0 0.0
    %3758 = vmatprep.subr.mxu0 0.0
    %3759 = vmatpush1.msra.mxu0 0.0
    %3760 = vmatprep.subr.mxu0 0.0
    %3761 = vmatpush1.msra.mxu0 0.0
    %3762 = vmatprep.subr.mxu0 0.0
    %3763 = vmatpush1.msra.mxu0 0.0
    %3764 = vmatprep.subr.mxu0 0.0
    %3765 = vmatpush1.msra.mxu0 0.0
    %3766 = vmatprep.subr.mxu0 0.0
    %3767 = vmatpush1.msra.mxu0 0.0
    %3768 = vmatprep.subr.mxu0 0.0
    %3769 = vmatpush1.msra.mxu0 0.0
    %3770 = vmatprep.subr.mxu0 0.0
    %3771 = vmatpush1.msra.mxu0 0.0
    %3772 = vmatprep.subr.mxu0 0.0
    %3773 = vmatpush1.msra.mxu0 0.0
    %3774 = vmatprep.subr.mxu0 0.0
    %3775 = vmatpush1.msra.mxu0 0.0
    %3776 = vmatprep.subr.mxu0 0.0
    %3777 = vmatpush1.msra.mxu0 0.0
    %3778 = vmatprep.subr.mxu0 0.0
    %3779 = vmatpush1.msra.mxu0 0.0
    %3780 = vmatprep.subr.mxu0 0.0
    %3781 = vmatpush1.msra.mxu0 0.0
    %3782 = vmatprep.subr.mxu0 0.0
    %3783 = vmatpush1.msra.mxu0 0.0
    %3784 = vmatprep.subr.mxu0 0.0
    %3785 = vmatpush1.msra.mxu0 0.0
    %3786 = vmatprep.subr.mxu0 0.0
    %3787 = vmatpush1.msra.mxu0 0.0
    %3788 = vmatprep.subr.mxu0 0.0
    %3789 = vmatpush1.msra.mxu0 0.0
    %3790 = vmatprep.mubr.f32.mxu0 0.0
    %3791 = vmatmul.mubr.f32.gmra.mrb[0].mxu0 %v3703
    %v3792 = vpop.f32.mrb[0].mxu0
    %v3793 = vadd.f32 0.0, %v3792
    %v3794 = vpop.f32.mrb[0].mxu0
    %3795 = vmatprep.mubr.f32.mxu0 0.0
    %3796 = vmatmul.mubr.f32.gmra.mrb[0].mxu0 %v3706
    %v3797 = vpop.f32.mrb[0].mxu0
    %v3798 = vadd.f32 0.0, %v3797
    %v3799 = vpop.f32.mrb[0].mxu0
    %3800 = vmatprep.mubr.f32.mxu0 0.0
    %3801 = vmatmul.mubr.f32.gmra.mrb[0].mxu0 %v3709
    %v3802 = vpop.f32.mrb[0].mxu0
    %v3803 = vadd.f32 0.0, %v3802
    %v3804 = vpop.f32.mrb[0].mxu0
    %3805 = vmatprep.mubr.f32.mxu0 0.0
    %3806 = vmatmul.mubr.f32.gmra.mrb[0].mxu0 %v3712
    %v3807 = vpop.f32.mrb[0].mxu0
    %v3808 = vadd.f32 0.0, %v3807
    %v3809 = vpop.f32.mrb[0].mxu0
    %3810 = vmatprep.mubr.f32.mxu0 0.0
    %3811 = vmatmul.mubr.f32.gmra.mrb[0].mxu0 %v3715
    %v3812 = vpop.f32.mrb[0].mxu0
    %v3813 = vadd.f32 0.0, %v3812
    %v3814 = vpop.f32.mrb[0].mxu0
    %3815 = vmatprep.mubr.f32.mxu0 0.0
    %3816 = vmatmul.mubr.f32.gmra.mrb[0].mxu0 %v3718
    %v3817 = vpop.f32.mrb[0].mxu0
    %v3818 = vadd.f32 0.0, %v3817
    %v3819 = vpop.f32.mrb[0].mxu0
    %3820 = vmatprep.mubr.f32.mxu0 0.0
    %3821 = vmatmul.mubr.f32.gmra.mrb[0].mxu0 %v3721
    %v3822 = vpop.f32.mrb[0].mxu0
    %v3823 = vadd.f32 0.0, %v3822
    %v3824 = vpop.f32.mrb[0].mxu0
    %3825 = vmatprep.mubr.f32.mxu0 0.0
    %3826 = vmatmul.mubr.f32.gmra.mrb[0].mxu0 %v3724
    %v3827 = vpop.f32.mrb[0].mxu0
    %v3828 = vadd.f32 0.0, %v3827
    %v3829 = vpop.f32.mrb[0].mxu0
    %3830 = vdwg.mxu0
    %v3831 = vadd.f32 %v3678, %v3793
    %v3832 = vadd.f32 %v3679, %v3798
    %v3833 = vadd.f32 %v3680, %v3803
    %v3834 = vadd.f32 %v3681, %v3808
    %v3835 = vadd.f32 %v3682, %v3813
    %v3836 = vadd.f32 %v3683, %v3818
    %v3837 = vadd.f32 %v3684, %v3823
    %v3838 = vadd.f32 %v3685, %v3828
    %v3839 = vld [vmem:[%s0 + $0xa0] sm:$0xff]
    %v3840 = vld [vmem:[%s0 + $0xa8] sm:$0xff]
    %v3841 = vld [vmem:[%s0 + $0xb0] sm:$0xff]
    %v3842 = vld [vmem:[%s0 + $0xb8] sm:$0xff]
    %v3843 = vld [vmem:[%s0 + $0xc0] sm:$0xff]
    %v3844 = vld [vmem:[%s0 + $0xc8] sm:$0xff]
    %v3845 = vld [vmem:[%s0 + $0xd0] sm:$0xff]
    %v3846 = vld [vmem:[%s0 + $0xd8] sm:$0xff]
    %v3847 = vmul.f32 %v3839, %v142
    %v3848 = vmul.f32 %v3840, %v143
    %v3849 = vmul.f32 %v3841, %v144
    %v3850 = vmul.f32 %v3842, %v145
    %v3851 = vmul.f32 %v3843, %v146
    %v3852 = vmul.f32 %v3844, %v147
    %v3853 = vmul.f32 %v3845, %v148
    %v3854 = vmul.f32 %v3846, %v149
    %v3856 = vsel %vm201, %v3847, 0
    %v3859 = vsel %vm201, %v3848, 0
    %v3862 = vsel %vm201, %v3849, 0
    %v3865 = vsel %vm201, %v3850, 0
    %v3868 = vsel %vm201, %v3851, 0
    %v3871 = vsel %vm201, %v3852, 0
    %v3874 = vsel %vm201, %v3853, 0
    %v3877 = vsel %vm201, %v3854, 0
    %3879 = vmatprep.subr.mxu0 0.0
    %3880 = vmatpush1.msra.mxu0 %v1129
    %3881 = vmatprep.subr.mxu0 0.0
    %3882 = vmatpush1.msra.mxu0 0.0
    %3883 = vmatprep.subr.mxu0 0.0
    %3884 = vmatpush1.msra.mxu0 0.0
    %3885 = vmatprep.subr.mxu0 0.0
    %3886 = vmatpush1.msra.mxu0 0.0
    %3887 = vmatprep.subr.mxu0 0.0
    %3888 = vmatpush1.msra.mxu0 0.0
    %3889 = vmatprep.subr.mxu0 0.0
    %3890 = vmatpush1.msra.mxu0 0.0
    %3891 = vmatprep.subr.mxu0 0.0
    %3892 = vmatpush1.msra.mxu0 0.0
    %3893 = vmatprep.subr.mxu0 0.0
    %3894 = vmatpush1.msra.mxu0 0.0
    %3895 = vmatprep.subr.mxu0 0.0
    %3896 = vmatpush1.msra.mxu0 0.0
    %3897 = vmatprep.subr.mxu0 0.0
    %3898 = vmatpush1.msra.mxu0 0.0
    %3899 = vmatprep.subr.mxu0 0.0
    %3900 = vmatpush1.msra.mxu0 0.0
    %3901 = vmatprep.subr.mxu0 0.0
    %3902 = vmatpush1.msra.mxu0 0.0
    %3903 = vmatprep.subr.mxu0 0.0
    %3904 = vmatpush1.msra.mxu0 0.0
    %3905 = vmatprep.subr.mxu0 0.0
    %3906 = vmatpush1.msra.mxu0 0.0
    %3907 = vmatprep.subr.mxu0 0.0
    %3908 = vmatpush1.msra.mxu0 0.0
    %3909 = vmatprep.subr.mxu0 0.0
    %3910 = vmatpush1.msra.mxu0 0.0
    %3911 = vmatprep.subr.mxu0 0.0
    %3912 = vmatpush1.msra.mxu0 0.0
    %3913 = vmatprep.subr.mxu0 0.0
    %3914 = vmatpush1.msra.mxu0 0.0
    %3915 = vmatprep.subr.mxu0 0.0
    %3916 = vmatpush1.msra.mxu0 0.0
    %3917 = vmatprep.subr.mxu0 0.0
    %3918 = vmatpush1.msra.mxu0 0.0
    %3919 = vmatprep.subr.mxu0 0.0
    %3920 = vmatpush1.msra.mxu0 0.0
    %3921 = vmatprep.subr.mxu0 0.0
    %3922 = vmatpush1.msra.mxu0 0.0
    %3923 = vmatprep.subr.mxu0 0.0
    %3924 = vmatpush1.msra.mxu0 0.0
    %3925 = vmatprep.subr.mxu0 0.0
    %3926 = vmatpush1.msra.mxu0 0.0
    %3927 = vmatprep.subr.mxu0 0.0
    %3928 = vmatpush1.msra.mxu0 0.0
    %3929 = vmatprep.subr.mxu0 0.0
    %3930 = vmatpush1.msra.mxu0 0.0
    %3931 = vmatprep.subr.mxu0 0.0
    %3932 = vmatpush1.msra.mxu0 0.0
    %3933 = vmatprep.subr.mxu0 0.0
    %3934 = vmatpush1.msra.mxu0 0.0
    %3935 = vmatprep.subr.mxu0 0.0
    %3936 = vmatpush1.msra.mxu0 0.0
    %3937 = vmatprep.subr.mxu0 0.0
    %3938 = vmatpush1.msra.mxu0 0.0
    %3939 = vmatprep.subr.mxu0 0.0
    %3940 = vmatpush1.msra.mxu0 0.0
    %3941 = vmatprep.subr.mxu0 0.0
    %3942 = vmatpush1.msra.mxu0 0.0
    %3943 = vmatprep.mubr.f32.mxu0 0.0
    %3944 = vmatmul.mubr.f32.gmra.mrb[0].mxu0 %v3856
    %v3945 = vpop.f32.mrb[0].mxu0
    %v3946 = vadd.f32 0.0, %v3945
    %v3947 = vpop.f32.mrb[0].mxu0
    %3948 = vmatprep.mubr.f32.mxu0 0.0
    %3949 = vmatmul.mubr.f32.gmra.mrb[0].mxu0 %v3859
    %v3950 = vpop.f32.mrb[0].mxu0
    %v3951 = vadd.f32 0.0, %v3950
    %v3952 = vpop.f32.mrb[0].mxu0
    %3953 = vmatprep.mubr.f32.mxu0 0.0
    %3954 = vmatmul.mubr.f32.gmra.mrb[0].mxu0 %v3862
    %v3955 = vpop.f32.mrb[0].mxu0
    %v3956 = vadd.f32 0.0, %v3955
    %v3957 = vpop.f32.mrb[0].mxu0
    %3958 = vmatprep.mubr.f32.mxu0 0.0
    %3959 = vmatmul.mubr.f32.gmra.mrb[0].mxu0 %v3865
    %v3960 = vpop.f32.mrb[0].mxu0
    %v3961 = vadd.f32 0.0, %v3960
    %v3962 = vpop.f32.mrb[0].mxu0
    %3963 = vmatprep.mubr.f32.mxu0 0.0
    %3964 = vmatmul.mubr.f32.gmra.mrb[0].mxu0 %v3868
    %v3965 = vpop.f32.mrb[0].mxu0
    %v3966 = vadd.f32 0.0, %v3965
    %v3967 = vpop.f32.mrb[0].mxu0
    %3968 = vmatprep.mubr.f32.mxu0 0.0
    %3969 = vmatmul.mubr.f32.gmra.mrb[0].mxu0 %v3871
    %v3970 = vpop.f32.mrb[0].mxu0
    %v3971 = vadd.f32 0.0, %v3970
    %v3972 = vpop.f32.mrb[0].mxu0
    %3973 = vmatprep.mubr.f32.mxu0 0.0
    %3974 = vmatmul.mubr.f32.gmra.mrb[0].mxu0 %v3874
    %v3975 = vpop.f32.mrb[0].mxu0
    %v3976 = vadd.f32 0.0, %v3975
    %v3977 = vpop.f32.mrb[0].mxu0
    %3978 = vmatprep.mubr.f32.mxu0 0.0
    %3979 = vmatmul.mubr.f32.gmra.mrb[0].mxu0 %v3877
    %v3980 = vpop.f32.mrb[0].mxu0
    %v3981 = vadd.f32 0.0, %v3980
    %v3982 = vpop.f32.mrb[0].mxu0
    %3983 = vdwg.mxu0
    %v3984 = vadd.f32 %v3831, %v3946
    %v3985 = vadd.f32 %v3832, %v3951
    %v3986 = vadd.f32 %v3833, %v3956
    %v3987 = vadd.f32 %v3834, %v3961
    %v3988 = vadd.f32 %v3835, %v3966
    %v3989 = vadd.f32 %v3836, %v3971
    %v3990 = vadd.f32 %v3837, %v3976
    %v3991 = vadd.f32 %v3838, %v3981
    %v3992 = vld [vmem:[%s0 + $0xa1] sm:$0xff]
    %v3993 = vld [vmem:[%s0 + $0xa9] sm:$0xff]
    %v3994 = vld [vmem:[%s0 + $0xb1] sm:$0xff]
    %v3995 = vld [vmem:[%s0 + $0xb9] sm:$0xff]
    %v3996 = vld [vmem:[%s0 + $0xc1] sm:$0xff]
    %v3997 = vld [vmem:[%s0 + $0xc9] sm:$0xff]
    %v3998 = vld [vmem:[%s0 + $0xd1] sm:$0xff]
    %v3999 = vld [vmem:[%s0 + $0xd9] sm:$0xff]
    %v4001 = vsel %vm201, %v3992, 0
    %v4004 = vsel %vm201, %v3993, 0
    %v4007 = vsel %vm201, %v3994, 0
    %v4010 = vsel %vm201, %v3995, 0
    %v4013 = vsel %vm201, %v3996, 0
    %v4016 = vsel %vm201, %v3997, 0
    %v4019 = vsel %vm201, %v3998, 0
    %v4022 = vsel %vm201, %v3999, 0
    %4024 = vmatprep.subr.mxu0 0.0
    %4025 = vmatpush1.msra.mxu0 %v1278
    %4026 = vmatprep.subr.mxu0 0.0
    %4027 = vmatpush1.msra.mxu0 0.0
    %4028 = vmatprep.subr.mxu0 0.0
    %4029 = vmatpush1.msra.mxu0 0.0
    %4030 = vmatprep.subr.mxu0 0.0
    %4031 = vmatpush1.msra.mxu0 0.0
    %4032 = vmatprep.subr.mxu0 0.0
    %4033 = vmatpush1.msra.mxu0 0.0
    %4034 = vmatprep.subr.mxu0 0.0
    %4035 = vmatpush1.msra.mxu0 0.0
    %4036 = vmatprep.subr.mxu0 0.0
    %4037 = vmatpush1.msra.mxu0 0.0
    %4038 = vmatprep.subr.mxu0 0.0
    %4039 = vmatpush1.msra.mxu0 0.0
    %4040 = vmatprep.subr.mxu0 0.0
    %4041 = vmatpush1.msra.mxu0 0.0
    %4042 = vmatprep.subr.mxu0 0.0
    %4043 = vmatpush1.msra.mxu0 0.0
    %4044 = vmatprep.subr.mxu0 0.0
    %4045 = vmatpush1.msra.mxu0 0.0
    %4046 = vmatprep.subr.mxu0 0.0
    %4047 = vmatpush1.msra.mxu0 0.0
    %4048 = vmatprep.subr.mxu0 0.0
    %4049 = vmatpush1.msra.mxu0 0.0
    %4050 = vmatprep.subr.mxu0 0.0
    %4051 = vmatpush1.msra.mxu0 0.0
    %4052 = vmatprep.subr.mxu0 0.0
    %4053 = vmatpush1.msra.mxu0 0.0
    %4054 = vmatprep.subr.mxu0 0.0
    %4055 = vmatpush1.msra.mxu0 0.0
    %4056 = vmatprep.subr.mxu0 0.0
    %4057 = vmatpush1.msra.mxu0 0.0
    %4058 = vmatprep.subr.mxu0 0.0
    %4059 = vmatpush1.msra.mxu0 0.0
    %4060 = vmatprep.subr.mxu0 0.0
    %4061 = vmatpush1.msra.mxu0 0.0
    %4062 = vmatprep.subr.mxu0 0.0
    %4063 = vmatpush1.msra.mxu0 0.0
    %4064 = vmatprep.subr.mxu0 0.0
    %4065 = vmatpush1.msra.mxu0 0.0
    %4066 = vmatprep.subr.mxu0 0.0
    %4067 = vmatpush1.msra.mxu0 0.0
    %4068 = vmatprep.subr.mxu0 0.0
    %4069 = vmatpush1.msra.mxu0 0.0
    %4070 = vmatprep.subr.mxu0 0.0
    %4071 = vmatpush1.msra.mxu0 0.0
    %4072 = vmatprep.subr.mxu0 0.0
    %4073 = vmatpush1.msra.mxu0 0.0
    %4074 = vmatprep.subr.mxu0 0.0
    %4075 = vmatpush1.msra.mxu0 0.0
    %4076 = vmatprep.subr.mxu0 0.0
    %4077 = vmatpush1.msra.mxu0 0.0
    %4078 = vmatprep.subr.mxu0 0.0
    %4079 = vmatpush1.msra.mxu0 0.0
    %4080 = vmatprep.subr.mxu0 0.0
    %4081 = vmatpush1.msra.mxu0 0.0
    %4082 = vmatprep.subr.mxu0 0.0
    %4083 = vmatpush1.msra.mxu0 0.0
    %4084 = vmatprep.subr.mxu0 0.0
    %4085 = vmatpush1.msra.mxu0 0.0
    %4086 = vmatprep.subr.mxu0 0.0
    %4087 = vmatpush1.msra.mxu0 0.0
    %4088 = vmatprep.mubr.f32.mxu0 0.0
    %4089 = vmatmul.mubr.f32.gmra.mrb[0].mxu0 %v4001
    %v4090 = vpop.f32.mrb[0].mxu0
    %v4091 = vadd.f32 0.0, %v4090
    %v4092 = vpop.f32.mrb[0].mxu0
    %4093 = vmatprep.mubr.f32.mxu0 0.0
    %4094 = vmatmul.mubr.f32.gmra.mrb[0].mxu0 %v4004
    %v4095 = vpop.f32.mrb[0].mxu0
    %v4096 = vadd.f32 0.0, %v4095
    %v4097 = vpop.f32.mrb[0].mxu0
    %4098 = vmatprep.mubr.f32.mxu0 0.0
    %4099 = vmatmul.mubr.f32.gmra.mrb[0].mxu0 %v4007
    %v4100 = vpop.f32.mrb[0].mxu0
    %v4101 = vadd.f32 0.0, %v4100
    %v4102 = vpop.f32.mrb[0].mxu0
    %4103 = vmatprep.mubr.f32.mxu0 0.0
    %4104 = vmatmul.mubr.f32.gmra.mrb[0].mxu0 %v4010
    %v4105 = vpop.f32.mrb[0].mxu0
    %v4106 = vadd.f32 0.0, %v4105
    %v4107 = vpop.f32.mrb[0].mxu0
    %4108 = vmatprep.mubr.f32.mxu0 0.0
    %4109 = vmatmul.mubr.f32.gmra.mrb[0].mxu0 %v4013
    %v4110 = vpop.f32.mrb[0].mxu0
    %v4111 = vadd.f32 0.0, %v4110
    %v4112 = vpop.f32.mrb[0].mxu0
    %4113 = vmatprep.mubr.f32.mxu0 0.0
    %4114 = vmatmul.mubr.f32.gmra.mrb[0].mxu0 %v4016
    %v4115 = vpop.f32.mrb[0].mxu0
    %v4116 = vadd.f32 0.0, %v4115
    %v4117 = vpop.f32.mrb[0].mxu0
    %4118 = vmatprep.mubr.f32.mxu0 0.0
    %4119 = vmatmul.mubr.f32.gmra.mrb[0].mxu0 %v4019
    %v4120 = vpop.f32.mrb[0].mxu0
    %v4121 = vadd.f32 0.0, %v4120
    %v4122 = vpop.f32.mrb[0].mxu0
    %4123 = vmatprep.mubr.f32.mxu0 0.0
    %4124 = vmatmul.mubr.f32.gmra.mrb[0].mxu0 %v4022
    %v4125 = vpop.f32.mrb[0].mxu0
    %v4126 = vadd.f32 0.0, %v4125
    %v4127 = vpop.f32.mrb[0].mxu0
    %4128 = vdwg.mxu0
    %v4129 = vadd.f32 %v3984, %v4091
    %v4130 = vadd.f32 %v3985, %v4096
    %v4131 = vadd.f32 %v3986, %v4101
    %v4132 = vadd.f32 %v3987, %v4106
    %v4133 = vadd.f32 %v3988, %v4111
    %v4134 = vadd.f32 %v3989, %v4116
    %v4135 = vadd.f32 %v3990, %v4121
    %v4136 = vadd.f32 %v3991, %v4126
    %v4137 = vld [vmem:[%s0 + $0xa2] sm:$0xff]
    %v4138 = vld [vmem:[%s0 + $0xaa] sm:$0xff]
    %v4139 = vld [vmem:[%s0 + $0xb2] sm:$0xff]
    %v4140 = vld [vmem:[%s0 + $0xba] sm:$0xff]
    %v4141 = vld [vmem:[%s0 + $0xc2] sm:$0xff]
    %v4142 = vld [vmem:[%s0 + $0xca] sm:$0xff]
    %v4143 = vld [vmem:[%s0 + $0xd2] sm:$0xff]
    %v4144 = vld [vmem:[%s0 + $0xda] sm:$0xff]
    %v4145 = vmul.f32 %v4137, %v166
    %v4146 = vmul.f32 %v4138, %v167
    %v4147 = vmul.f32 %v4139, %v168
    %v4148 = vmul.f32 %v4140, %v169
    %v4149 = vmul.f32 %v4141, %v170
    %v4150 = vmul.f32 %v4142, %v171
    %v4151 = vmul.f32 %v4143, %v172
    %v4152 = vmul.f32 %v4144, %v173
    %v4154 = vsel %vm201, %v4145, 0
    %v4157 = vsel %vm201, %v4146, 0
    %v4160 = vsel %vm201, %v4147, 0
    %v4163 = vsel %vm201, %v4148, 0
    %v4166 = vsel %vm201, %v4149, 0
    %v4169 = vsel %vm201, %v4150, 0
    %v4172 = vsel %vm201, %v4151, 0
    %v4175 = vsel %vm201, %v4152, 0
    %4177 = vmatprep.subr.mxu0 0.0
    %4178 = vmatpush1.msra.mxu0 %v1435
    %4179 = vmatprep.subr.mxu0 0.0
    %4180 = vmatpush1.msra.mxu0 0.0
    %4181 = vmatprep.subr.mxu0 0.0
    %4182 = vmatpush1.msra.mxu0 0.0
    %4183 = vmatprep.subr.mxu0 0.0
    %4184 = vmatpush1.msra.mxu0 0.0
    %4185 = vmatprep.subr.mxu0 0.0
    %4186 = vmatpush1.msra.mxu0 0.0
    %4187 = vmatprep.subr.mxu0 0.0
    %4188 = vmatpush1.msra.mxu0 0.0
    %4189 = vmatprep.subr.mxu0 0.0
    %4190 = vmatpush1.msra.mxu0 0.0
    %4191 = vmatprep.subr.mxu0 0.0
    %4192 = vmatpush1.msra.mxu0 0.0
    %4193 = vmatprep.subr.mxu0 0.0
    %4194 = vmatpush1.msra.mxu0 0.0
    %4195 = vmatprep.subr.mxu0 0.0
    %4196 = vmatpush1.msra.mxu0 0.0
    %4197 = vmatprep.subr.mxu0 0.0
    %4198 = vmatpush1.msra.mxu0 0.0
    %4199 = vmatprep.subr.mxu0 0.0
    %4200 = vmatpush1.msra.mxu0 0.0
    %4201 = vmatprep.subr.mxu0 0.0
    %4202 = vmatpush1.msra.mxu0 0.0
    %4203 = vmatprep.subr.mxu0 0.0
    %4204 = vmatpush1.msra.mxu0 0.0
    %4205 = vmatprep.subr.mxu0 0.0
    %4206 = vmatpush1.msra.mxu0 0.0
    %4207 = vmatprep.subr.mxu0 0.0
    %4208 = vmatpush1.msra.mxu0 0.0
    %4209 = vmatprep.subr.mxu0 0.0
    %4210 = vmatpush1.msra.mxu0 0.0
    %4211 = vmatprep.subr.mxu0 0.0
    %4212 = vmatpush1.msra.mxu0 0.0
    %4213 = vmatprep.subr.mxu0 0.0
    %4214 = vmatpush1.msra.mxu0 0.0
    %4215 = vmatprep.subr.mxu0 0.0
    %4216 = vmatpush1.msra.mxu0 0.0
    %4217 = vmatprep.subr.mxu0 0.0
    %4218 = vmatpush1.msra.mxu0 0.0
    %4219 = vmatprep.subr.mxu0 0.0
    %4220 = vmatpush1.msra.mxu0 0.0
    %4221 = vmatprep.subr.mxu0 0.0
    %4222 = vmatpush1.msra.mxu0 0.0
    %4223 = vmatprep.subr.mxu0 0.0
    %4224 = vmatpush1.msra.mxu0 0.0
    %4225 = vmatprep.subr.mxu0 0.0
    %4226 = vmatpush1.msra.mxu0 0.0
    %4227 = vmatprep.subr.mxu0 0.0
    %4228 = vmatpush1.msra.mxu0 0.0
    %4229 = vmatprep.subr.mxu0 0.0
    %4230 = vmatpush1.msra.mxu0 0.0
    %4231 = vmatprep.subr.mxu0 0.0
    %4232 = vmatpush1.msra.mxu0 0.0
    %4233 = vmatprep.subr.mxu0 0.0
    %4234 = vmatpush1.msra.mxu0 0.0
    %4235 = vmatprep.subr.mxu0 0.0
    %4236 = vmatpush1.msra.mxu0 0.0
    %4237 = vmatprep.subr.mxu0 0.0
    %4238 = vmatpush1.msra.mxu0 0.0
    %4239 = vmatprep.subr.mxu0 0.0
    %4240 = vmatpush1.msra.mxu0 0.0
    %4241 = vmatprep.mubr.f32.mxu0 0.0
    %4242 = vmatmul.mubr.f32.gmra.mrb[0].mxu0 %v4154
    %v4243 = vpop.f32.mrb[0].mxu0
    %v4244 = vadd.f32 0.0, %v4243
    %v4245 = vpop.f32.mrb[0].mxu0
    %4246 = vmatprep.mubr.f32.mxu0 0.0
    %4247 = vmatmul.mubr.f32.gmra.mrb[0].mxu0 %v4157
    %v4248 = vpop.f32.mrb[0].mxu0
    %v4249 = vadd.f32 0.0, %v4248
    %v4250 = vpop.f32.mrb[0].mxu0
    %4251 = vmatprep.mubr.f32.mxu0 0.0
    %4252 = vmatmul.mubr.f32.gmra.mrb[0].mxu0 %v4160
    %v4253 = vpop.f32.mrb[0].mxu0
    %v4254 = vadd.f32 0.0, %v4253
    %v4255 = vpop.f32.mrb[0].mxu0
    %4256 = vmatprep.mubr.f32.mxu0 0.0
    %4257 = vmatmul.mubr.f32.gmra.mrb[0].mxu0 %v4163
    %v4258 = vpop.f32.mrb[0].mxu0
    %v4259 = vadd.f32 0.0, %v4258
    %v4260 = vpop.f32.mrb[0].mxu0
    %4261 = vmatprep.mubr.f32.mxu0 0.0
    %4262 = vmatmul.mubr.f32.gmra.mrb[0].mxu0 %v4166
    %v4263 = vpop.f32.mrb[0].mxu0
    %v4264 = vadd.f32 0.0, %v4263
    %v4265 = vpop.f32.mrb[0].mxu0
    %4266 = vmatprep.mubr.f32.mxu0 0.0
    %4267 = vmatmul.mubr.f32.gmra.mrb[0].mxu0 %v4169
    %v4268 = vpop.f32.mrb[0].mxu0
    %v4269 = vadd.f32 0.0, %v4268
    %v4270 = vpop.f32.mrb[0].mxu0
    %4271 = vmatprep.mubr.f32.mxu0 0.0
    %4272 = vmatmul.mubr.f32.gmra.mrb[0].mxu0 %v4172
    %v4273 = vpop.f32.mrb[0].mxu0
    %v4274 = vadd.f32 0.0, %v4273
    %v4275 = vpop.f32.mrb[0].mxu0
    %4276 = vmatprep.mubr.f32.mxu0 0.0
    %4277 = vmatmul.mubr.f32.gmra.mrb[0].mxu0 %v4175
    %v4278 = vpop.f32.mrb[0].mxu0
    %v4279 = vadd.f32 0.0, %v4278
    %v4280 = vpop.f32.mrb[0].mxu0
    %4281 = vdwg.mxu0
    %v4282 = vadd.f32 %v4129, %v4244
    %v4283 = vadd.f32 %v4130, %v4249
    %v4284 = vadd.f32 %v4131, %v4254
    %v4285 = vadd.f32 %v4132, %v4259
    %v4286 = vadd.f32 %v4133, %v4264
    %v4287 = vadd.f32 %v4134, %v4269
    %v4288 = vadd.f32 %v4135, %v4274
    %v4289 = vadd.f32 %v4136, %v4279
    %v4290 = vadd.f32 %v4282, %v1554
    %v4291 = vadd.f32 %v4283, %v1554
    %v4292 = vadd.f32 %v4284, %v1554
    %v4293 = vadd.f32 %v4285, %v1554
    %v4294 = vadd.f32 %v4286, %v1554
    %v4295 = vadd.f32 %v4287, %v1554
    %v4296 = vadd.f32 %v4288, %v1554
    %v4297 = vadd.f32 %v4289, %v1554
    %v4298 = vmax.f32 %v4290, 0.0
    %v4299 = vmax.f32 %v4291, 0.0
    %v4300 = vmax.f32 %v4292, 0.0
    %v4301 = vmax.f32 %v4293, 0.0
    %v4302 = vmax.f32 %v4294, 0.0
    %v4303 = vmax.f32 %v4295, 0.0
    %v4304 = vmax.f32 %v4296, 0.0
    %v4305 = vmax.f32 %v4297, 0.0
    %v4306 = vadd.f32 %v4298, %v4299
    %v4307 = vadd.f32 %v4306, %v4300
    %v4308 = vadd.f32 %v4307, %v4301
    %v4309 = vadd.f32 %v4308, %v4302
    %v4310 = vadd.f32 %v4309, %v4303
    %v4311 = vadd.f32 %v4310, %v4304
    %v4312 = vadd.f32 %v4311, %v4305
    %v4313 = vrot.slane %v4312, 4
    %v4314 = vadd.f32 %v4312, %v4313
    %v4315 = vrot.slane %v4314, 2
    %v4316 = vadd.f32 %v4314, %v4315
    %v4317 = vrot.slane %v4316, 1
    %v4318 = vadd.f32 %v4316, %v4317
    %v4319 = vadd.f32 %v2952, %v4318
    %v4320 = vld [vmem:[%s0 + $0xc0] sm:$0xff]
    %v4321 = vld [vmem:[%s0 + $0xc8] sm:$0xff]
    %v4322 = vld [vmem:[%s0 + $0xd0] sm:$0xff]
    %v4323 = vld [vmem:[%s0 + $0xd8] sm:$0xff]
    %v4324 = vld [vmem:[%s0 + $0xe0] sm:$0xff]
    %v4325 = vld [vmem:[%s0 + $0xe8] sm:$0xff]
    %v4326 = vld [vmem:[%s0 + $0xf0] sm:$0xff]
    %v4327 = vld [vmem:[%s0 + $0xf8] sm:$0xff]
    %v4328 = vmul.f32 %v4320, %v142
    %v4329 = vmul.f32 %v4321, %v143
    %v4330 = vmul.f32 %v4322, %v144
    %v4331 = vmul.f32 %v4323, %v145
    %v4332 = vmul.f32 %v4324, %v146
    %v4333 = vmul.f32 %v4325, %v147
    %v4334 = vmul.f32 %v4326, %v148
    %v4335 = vmul.f32 %v4327, %v149
    %v4336 = vld [vmem:[%s0 + $0xc1] sm:$0xff]
    %v4337 = vld [vmem:[%s0 + $0xc9] sm:$0xff]
    %v4338 = vld [vmem:[%s0 + $0xd1] sm:$0xff]
    %v4339 = vld [vmem:[%s0 + $0xd9] sm:$0xff]
    %v4340 = vld [vmem:[%s0 + $0xe1] sm:$0xff]
    %v4341 = vld [vmem:[%s0 + $0xe9] sm:$0xff]
    %v4342 = vld [vmem:[%s0 + $0xf1] sm:$0xff]
    %v4343 = vld [vmem:[%s0 + $0xf9] sm:$0xff]
    %v4345 = vsel %vm201, %v4336, 0
    %v4348 = vsel %vm201, %v4337, 0
    %v4351 = vsel %vm201, %v4338, 0
    %v4354 = vsel %vm201, %v4339, 0
    %v4357 = vsel %vm201, %v4340, 0
    %v4360 = vsel %vm201, %v4341, 0
    %v4363 = vsel %vm201, %v4342, 0
    %v4366 = vsel %vm201, %v4343, 0
    %4368 = vmatprep.subr.mxu0 0.0
    %4369 = vmatpush1.msra.mxu0 %v228
    %4370 = vmatprep.subr.mxu0 0.0
    %4371 = vmatpush1.msra.mxu0 0.0
    %4372 = vmatprep.subr.mxu0 0.0
    %4373 = vmatpush1.msra.mxu0 0.0
    %4374 = vmatprep.subr.mxu0 0.0
    %4375 = vmatpush1.msra.mxu0 0.0
    %4376 = vmatprep.subr.mxu0 0.0
    %4377 = vmatpush1.msra.mxu0 0.0
    %4378 = vmatprep.subr.mxu0 0.0
    %4379 = vmatpush1.msra.mxu0 0.0
    %4380 = vmatprep.subr.mxu0 0.0
    %4381 = vmatpush1.msra.mxu0 0.0
    %4382 = vmatprep.subr.mxu0 0.0
    %4383 = vmatpush1.msra.mxu0 0.0
    %4384 = vmatprep.subr.mxu0 0.0
    %4385 = vmatpush1.msra.mxu0 0.0
    %4386 = vmatprep.subr.mxu0 0.0
    %4387 = vmatpush1.msra.mxu0 0.0
    %4388 = vmatprep.subr.mxu0 0.0
    %4389 = vmatpush1.msra.mxu0 0.0
    %4390 = vmatprep.subr.mxu0 0.0
    %4391 = vmatpush1.msra.mxu0 0.0
    %4392 = vmatprep.subr.mxu0 0.0
    %4393 = vmatpush1.msra.mxu0 0.0
    %4394 = vmatprep.subr.mxu0 0.0
    %4395 = vmatpush1.msra.mxu0 0.0
    %4396 = vmatprep.subr.mxu0 0.0
    %4397 = vmatpush1.msra.mxu0 0.0
    %4398 = vmatprep.subr.mxu0 0.0
    %4399 = vmatpush1.msra.mxu0 0.0
    %4400 = vmatprep.subr.mxu0 0.0
    %4401 = vmatpush1.msra.mxu0 0.0
    %4402 = vmatprep.subr.mxu0 0.0
    %4403 = vmatpush1.msra.mxu0 0.0
    %4404 = vmatprep.subr.mxu0 0.0
    %4405 = vmatpush1.msra.mxu0 0.0
    %4406 = vmatprep.subr.mxu0 0.0
    %4407 = vmatpush1.msra.mxu0 0.0
    %4408 = vmatprep.subr.mxu0 0.0
    %4409 = vmatpush1.msra.mxu0 0.0
    %4410 = vmatprep.subr.mxu0 0.0
    %4411 = vmatpush1.msra.mxu0 0.0
    %4412 = vmatprep.subr.mxu0 0.0
    %4413 = vmatpush1.msra.mxu0 0.0
    %4414 = vmatprep.subr.mxu0 0.0
    %4415 = vmatpush1.msra.mxu0 0.0
    %4416 = vmatprep.subr.mxu0 0.0
    %4417 = vmatpush1.msra.mxu0 0.0
    %4418 = vmatprep.subr.mxu0 0.0
    %4419 = vmatpush1.msra.mxu0 0.0
    %4420 = vmatprep.subr.mxu0 0.0
    %4421 = vmatpush1.msra.mxu0 0.0
    %4422 = vmatprep.subr.mxu0 0.0
    %4423 = vmatpush1.msra.mxu0 0.0
    %4424 = vmatprep.subr.mxu0 0.0
    %4425 = vmatpush1.msra.mxu0 0.0
    %4426 = vmatprep.subr.mxu0 0.0
    %4427 = vmatpush1.msra.mxu0 0.0
    %4428 = vmatprep.subr.mxu0 0.0
    %4429 = vmatpush1.msra.mxu0 0.0
    %4430 = vmatprep.subr.mxu0 0.0
    %4431 = vmatpush1.msra.mxu0 0.0
    %4432 = vmatprep.mubr.f32.mxu0 0.0
    %4433 = vmatmul.mubr.f32.gmra.mrb[0].mxu0 %v4345
    %v4434 = vpop.f32.mrb[0].mxu0
    %v4435 = vadd.f32 0.0, %v4434
    %v4436 = vpop.f32.mrb[0].mxu0
    %4437 = vmatprep.mubr.f32.mxu0 0.0
    %4438 = vmatmul.mubr.f32.gmra.mrb[0].mxu0 %v4348
    %v4439 = vpop.f32.mrb[0].mxu0
    %v4440 = vadd.f32 0.0, %v4439
    %v4441 = vpop.f32.mrb[0].mxu0
    %4442 = vmatprep.mubr.f32.mxu0 0.0
    %4443 = vmatmul.mubr.f32.gmra.mrb[0].mxu0 %v4351
    %v4444 = vpop.f32.mrb[0].mxu0
    %v4445 = vadd.f32 0.0, %v4444
    %v4446 = vpop.f32.mrb[0].mxu0
    %4447 = vmatprep.mubr.f32.mxu0 0.0
    %4448 = vmatmul.mubr.f32.gmra.mrb[0].mxu0 %v4354
    %v4449 = vpop.f32.mrb[0].mxu0
    %v4450 = vadd.f32 0.0, %v4449
    %v4451 = vpop.f32.mrb[0].mxu0
    %4452 = vmatprep.mubr.f32.mxu0 0.0
    %4453 = vmatmul.mubr.f32.gmra.mrb[0].mxu0 %v4357
    %v4454 = vpop.f32.mrb[0].mxu0
    %v4455 = vadd.f32 0.0, %v4454
    %v4456 = vpop.f32.mrb[0].mxu0
    %4457 = vmatprep.mubr.f32.mxu0 0.0
    %4458 = vmatmul.mubr.f32.gmra.mrb[0].mxu0 %v4360
    %v4459 = vpop.f32.mrb[0].mxu0
    %v4460 = vadd.f32 0.0, %v4459
    %v4461 = vpop.f32.mrb[0].mxu0
    %4462 = vmatprep.mubr.f32.mxu0 0.0
    %4463 = vmatmul.mubr.f32.gmra.mrb[0].mxu0 %v4363
    %v4464 = vpop.f32.mrb[0].mxu0
    %v4465 = vadd.f32 0.0, %v4464
    %v4466 = vpop.f32.mrb[0].mxu0
    %4467 = vmatprep.mubr.f32.mxu0 0.0
    %4468 = vmatmul.mubr.f32.gmra.mrb[0].mxu0 %v4366
    %v4469 = vpop.f32.mrb[0].mxu0
    %v4470 = vadd.f32 0.0, %v4469
    %v4471 = vpop.f32.mrb[0].mxu0
    %4472 = vdwg.mxu0
    %v4474 = vsel %vm201, %v4328, 0
    %v4477 = vsel %vm201, %v4329, 0
    %v4480 = vsel %vm201, %v4330, 0
    %v4483 = vsel %vm201, %v4331, 0
    %v4486 = vsel %vm201, %v4332, 0
    %v4489 = vsel %vm201, %v4333, 0
    %v4492 = vsel %vm201, %v4334, 0
    %v4495 = vsel %vm201, %v4335, 0
    %4497 = vmatprep.subr.mxu0 0.0
    %4498 = vmatpush1.msra.mxu0 %v360
    %4499 = vmatprep.subr.mxu0 0.0
    %4500 = vmatpush1.msra.mxu0 0.0
    %4501 = vmatprep.subr.mxu0 0.0
    %4502 = vmatpush1.msra.mxu0 0.0
    %4503 = vmatprep.subr.mxu0 0.0
    %4504 = vmatpush1.msra.mxu0 0.0
    %4505 = vmatprep.subr.mxu0 0.0
    %4506 = vmatpush1.msra.mxu0 0.0
    %4507 = vmatprep.subr.mxu0 0.0
    %4508 = vmatpush1.msra.mxu0 0.0
    %4509 = vmatprep.subr.mxu0 0.0
    %4510 = vmatpush1.msra.mxu0 0.0
    %4511 = vmatprep.subr.mxu0 0.0
    %4512 = vmatpush1.msra.mxu0 0.0
    %4513 = vmatprep.subr.mxu0 0.0
    %4514 = vmatpush1.msra.mxu0 0.0
    %4515 = vmatprep.subr.mxu0 0.0
    %4516 = vmatpush1.msra.mxu0 0.0
    %4517 = vmatprep.subr.mxu0 0.0
    %4518 = vmatpush1.msra.mxu0 0.0
    %4519 = vmatprep.subr.mxu0 0.0
    %4520 = vmatpush1.msra.mxu0 0.0
    %4521 = vmatprep.subr.mxu0 0.0
    %4522 = vmatpush1.msra.mxu0 0.0
    %4523 = vmatprep.subr.mxu0 0.0
    %4524 = vmatpush1.msra.mxu0 0.0
    %4525 = vmatprep.subr.mxu0 0.0
    %4526 = vmatpush1.msra.mxu0 0.0
    %4527 = vmatprep.subr.mxu0 0.0
    %4528 = vmatpush1.msra.mxu0 0.0
    %4529 = vmatprep.subr.mxu0 0.0
    %4530 = vmatpush1.msra.mxu0 0.0
    %4531 = vmatprep.subr.mxu0 0.0
    %4532 = vmatpush1.msra.mxu0 0.0
    %4533 = vmatprep.subr.mxu0 0.0
    %4534 = vmatpush1.msra.mxu0 0.0
    %4535 = vmatprep.subr.mxu0 0.0
    %4536 = vmatpush1.msra.mxu0 0.0
    %4537 = vmatprep.subr.mxu0 0.0
    %4538 = vmatpush1.msra.mxu0 0.0
    %4539 = vmatprep.subr.mxu0 0.0
    %4540 = vmatpush1.msra.mxu0 0.0
    %4541 = vmatprep.subr.mxu0 0.0
    %4542 = vmatpush1.msra.mxu0 0.0
    %4543 = vmatprep.subr.mxu0 0.0
    %4544 = vmatpush1.msra.mxu0 0.0
    %4545 = vmatprep.subr.mxu0 0.0
    %4546 = vmatpush1.msra.mxu0 0.0
    %4547 = vmatprep.subr.mxu0 0.0
    %4548 = vmatpush1.msra.mxu0 0.0
    %4549 = vmatprep.subr.mxu0 0.0
    %4550 = vmatpush1.msra.mxu0 0.0
    %4551 = vmatprep.subr.mxu0 0.0
    %4552 = vmatpush1.msra.mxu0 0.0
    %4553 = vmatprep.subr.mxu0 0.0
    %4554 = vmatpush1.msra.mxu0 0.0
    %4555 = vmatprep.subr.mxu0 0.0
    %4556 = vmatpush1.msra.mxu0 0.0
    %4557 = vmatprep.subr.mxu0 0.0
    %4558 = vmatpush1.msra.mxu0 0.0
    %4559 = vmatprep.subr.mxu0 0.0
    %4560 = vmatpush1.msra.mxu0 0.0
    %4561 = vmatprep.mubr.f32.mxu0 0.0
    %4562 = vmatmul.mubr.f32.gmra.mrb[0].mxu0 %v4474
    %v4563 = vpop.f32.mrb[0].mxu0
    %v4564 = vadd.f32 %v4435, %v4563
    %v4565 = vpop.f32.mrb[0].mxu0
    %4566 = vmatprep.mubr.f32.mxu0 0.0
    %4567 = vmatmul.mubr.f32.gmra.mrb[0].mxu0 %v4477
    %v4568 = vpop.f32.mrb[0].mxu0
    %v4569 = vadd.f32 %v4440, %v4568
    %v4570 = vpop.f32.mrb[0].mxu0
    %4571 = vmatprep.mubr.f32.mxu0 0.0
    %4572 = vmatmul.mubr.f32.gmra.mrb[0].mxu0 %v4480
    %v4573 = vpop.f32.mrb[0].mxu0
    %v4574 = vadd.f32 %v4445, %v4573
    %v4575 = vpop.f32.mrb[0].mxu0
    %4576 = vmatprep.mubr.f32.mxu0 0.0
    %4577 = vmatmul.mubr.f32.gmra.mrb[0].mxu0 %v4483
    %v4578 = vpop.f32.mrb[0].mxu0
    %v4579 = vadd.f32 %v4450, %v4578
    %v4580 = vpop.f32.mrb[0].mxu0
    %4581 = vmatprep.mubr.f32.mxu0 0.0
    %4582 = vmatmul.mubr.f32.gmra.mrb[0].mxu0 %v4486
    %v4583 = vpop.f32.mrb[0].mxu0
    %v4584 = vadd.f32 %v4455, %v4583
    %v4585 = vpop.f32.mrb[0].mxu0
    %4586 = vmatprep.mubr.f32.mxu0 0.0
    %4587 = vmatmul.mubr.f32.gmra.mrb[0].mxu0 %v4489
    %v4588 = vpop.f32.mrb[0].mxu0
    %v4589 = vadd.f32 %v4460, %v4588
    %v4590 = vpop.f32.mrb[0].mxu0
    %4591 = vmatprep.mubr.f32.mxu0 0.0
    %4592 = vmatmul.mubr.f32.gmra.mrb[0].mxu0 %v4492
    %v4593 = vpop.f32.mrb[0].mxu0
    %v4594 = vadd.f32 %v4465, %v4593
    %v4595 = vpop.f32.mrb[0].mxu0
    %4596 = vmatprep.mubr.f32.mxu0 0.0
    %4597 = vmatmul.mubr.f32.gmra.mrb[0].mxu0 %v4495
    %v4598 = vpop.f32.mrb[0].mxu0
    %v4599 = vadd.f32 %v4470, %v4598
    %v4600 = vpop.f32.mrb[0].mxu0
    %4601 = vdwg.mxu0
    %v4602 = vld [vmem:[%s0 + $0xc2] sm:$0xff]
    %v4603 = vld [vmem:[%s0 + $0xca] sm:$0xff]
    %v4604 = vld [vmem:[%s0 + $0xd2] sm:$0xff]
    %v4605 = vld [vmem:[%s0 + $0xda] sm:$0xff]
    %v4606 = vld [vmem:[%s0 + $0xe2] sm:$0xff]
    %v4607 = vld [vmem:[%s0 + $0xea] sm:$0xff]
    %v4608 = vld [vmem:[%s0 + $0xf2] sm:$0xff]
    %v4609 = vld [vmem:[%s0 + $0xfa] sm:$0xff]
    %v4610 = vmul.f32 %v4602, %v166
    %v4611 = vmul.f32 %v4603, %v167
    %v4612 = vmul.f32 %v4604, %v168
    %v4613 = vmul.f32 %v4605, %v169
    %v4614 = vmul.f32 %v4606, %v170
    %v4615 = vmul.f32 %v4607, %v171
    %v4616 = vmul.f32 %v4608, %v172
    %v4617 = vmul.f32 %v4609, %v173
    %v4619 = vsel %vm201, %v4610, 0
    %v4622 = vsel %vm201, %v4611, 0
    %v4625 = vsel %vm201, %v4612, 0
    %v4628 = vsel %vm201, %v4613, 0
    %v4631 = vsel %vm201, %v4614, 0
    %v4634 = vsel %vm201, %v4615, 0
    %v4637 = vsel %vm201, %v4616, 0
    %v4640 = vsel %vm201, %v4617, 0
    %4642 = vmatprep.subr.mxu0 0.0
    %4643 = vmatpush1.msra.mxu0 %v509
    %4644 = vmatprep.subr.mxu0 0.0
    %4645 = vmatpush1.msra.mxu0 0.0
    %4646 = vmatprep.subr.mxu0 0.0
    %4647 = vmatpush1.msra.mxu0 0.0
    %4648 = vmatprep.subr.mxu0 0.0
    %4649 = vmatpush1.msra.mxu0 0.0
    %4650 = vmatprep.subr.mxu0 0.0
    %4651 = vmatpush1.msra.mxu0 0.0
    %4652 = vmatprep.subr.mxu0 0.0
    %4653 = vmatpush1.msra.mxu0 0.0
    %4654 = vmatprep.subr.mxu0 0.0
    %4655 = vmatpush1.msra.mxu0 0.0
    %4656 = vmatprep.subr.mxu0 0.0
    %4657 = vmatpush1.msra.mxu0 0.0
    %4658 = vmatprep.subr.mxu0 0.0
    %4659 = vmatpush1.msra.mxu0 0.0
    %4660 = vmatprep.subr.mxu0 0.0
    %4661 = vmatpush1.msra.mxu0 0.0
    %4662 = vmatprep.subr.mxu0 0.0
    %4663 = vmatpush1.msra.mxu0 0.0
    %4664 = vmatprep.subr.mxu0 0.0
    %4665 = vmatpush1.msra.mxu0 0.0
    %4666 = vmatprep.subr.mxu0 0.0
    %4667 = vmatpush1.msra.mxu0 0.0
    %4668 = vmatprep.subr.mxu0 0.0
    %4669 = vmatpush1.msra.mxu0 0.0
    %4670 = vmatprep.subr.mxu0 0.0
    %4671 = vmatpush1.msra.mxu0 0.0
    %4672 = vmatprep.subr.mxu0 0.0
    %4673 = vmatpush1.msra.mxu0 0.0
    %4674 = vmatprep.subr.mxu0 0.0
    %4675 = vmatpush1.msra.mxu0 0.0
    %4676 = vmatprep.subr.mxu0 0.0
    %4677 = vmatpush1.msra.mxu0 0.0
    %4678 = vmatprep.subr.mxu0 0.0
    %4679 = vmatpush1.msra.mxu0 0.0
    %4680 = vmatprep.subr.mxu0 0.0
    %4681 = vmatpush1.msra.mxu0 0.0
    %4682 = vmatprep.subr.mxu0 0.0
    %4683 = vmatpush1.msra.mxu0 0.0
    %4684 = vmatprep.subr.mxu0 0.0
    %4685 = vmatpush1.msra.mxu0 0.0
    %4686 = vmatprep.subr.mxu0 0.0
    %4687 = vmatpush1.msra.mxu0 0.0
    %4688 = vmatprep.subr.mxu0 0.0
    %4689 = vmatpush1.msra.mxu0 0.0
    %4690 = vmatprep.subr.mxu0 0.0
    %4691 = vmatpush1.msra.mxu0 0.0
    %4692 = vmatprep.subr.mxu0 0.0
    %4693 = vmatpush1.msra.mxu0 0.0
    %4694 = vmatprep.subr.mxu0 0.0
    %4695 = vmatpush1.msra.mxu0 0.0
    %4696 = vmatprep.subr.mxu0 0.0
    %4697 = vmatpush1.msra.mxu0 0.0
    %4698 = vmatprep.subr.mxu0 0.0
    %4699 = vmatpush1.msra.mxu0 0.0
    %4700 = vmatprep.subr.mxu0 0.0
    %4701 = vmatpush1.msra.mxu0 0.0
    %4702 = vmatprep.subr.mxu0 0.0
    %4703 = vmatpush1.msra.mxu0 0.0
    %4704 = vmatprep.subr.mxu0 0.0
    %4705 = vmatpush1.msra.mxu0 0.0
    %4706 = vmatprep.mubr.f32.mxu0 0.0
    %4707 = vmatmul.mubr.f32.gmra.mrb[0].mxu0 %v4619
    %v4708 = vpop.f32.mrb[0].mxu0
    %v4709 = vadd.f32 0.0, %v4708
    %v4710 = vpop.f32.mrb[0].mxu0
    %4711 = vmatprep.mubr.f32.mxu0 0.0
    %4712 = vmatmul.mubr.f32.gmra.mrb[0].mxu0 %v4622
    %v4713 = vpop.f32.mrb[0].mxu0
    %v4714 = vadd.f32 0.0, %v4713
    %v4715 = vpop.f32.mrb[0].mxu0
    %4716 = vmatprep.mubr.f32.mxu0 0.0
    %4717 = vmatmul.mubr.f32.gmra.mrb[0].mxu0 %v4625
    %v4718 = vpop.f32.mrb[0].mxu0
    %v4719 = vadd.f32 0.0, %v4718
    %v4720 = vpop.f32.mrb[0].mxu0
    %4721 = vmatprep.mubr.f32.mxu0 0.0
    %4722 = vmatmul.mubr.f32.gmra.mrb[0].mxu0 %v4628
    %v4723 = vpop.f32.mrb[0].mxu0
    %v4724 = vadd.f32 0.0, %v4723
    %v4725 = vpop.f32.mrb[0].mxu0
    %4726 = vmatprep.mubr.f32.mxu0 0.0
    %4727 = vmatmul.mubr.f32.gmra.mrb[0].mxu0 %v4631
    %v4728 = vpop.f32.mrb[0].mxu0
    %v4729 = vadd.f32 0.0, %v4728
    %v4730 = vpop.f32.mrb[0].mxu0
    %4731 = vmatprep.mubr.f32.mxu0 0.0
    %4732 = vmatmul.mubr.f32.gmra.mrb[0].mxu0 %v4634
    %v4733 = vpop.f32.mrb[0].mxu0
    %v4734 = vadd.f32 0.0, %v4733
    %v4735 = vpop.f32.mrb[0].mxu0
    %4736 = vmatprep.mubr.f32.mxu0 0.0
    %4737 = vmatmul.mubr.f32.gmra.mrb[0].mxu0 %v4637
    %v4738 = vpop.f32.mrb[0].mxu0
    %v4739 = vadd.f32 0.0, %v4738
    %v4740 = vpop.f32.mrb[0].mxu0
    %4741 = vmatprep.mubr.f32.mxu0 0.0
    %4742 = vmatmul.mubr.f32.gmra.mrb[0].mxu0 %v4640
    %v4743 = vpop.f32.mrb[0].mxu0
    %v4744 = vadd.f32 0.0, %v4743
    %v4745 = vpop.f32.mrb[0].mxu0
    %4746 = vdwg.mxu0
    %v4747 = vadd.f32 %v4564, %v4709
    %v4748 = vadd.f32 %v4569, %v4714
    %v4749 = vadd.f32 %v4574, %v4719
    %v4750 = vadd.f32 %v4579, %v4724
    %v4751 = vadd.f32 %v4584, %v4729
    %v4752 = vadd.f32 %v4589, %v4734
    %v4753 = vadd.f32 %v4594, %v4739
    %v4754 = vadd.f32 %v4599, %v4744
    %v4755 = vld [vmem:[%s0 + $0xd0] sm:$0xff]
    %v4756 = vld [vmem:[%s0 + $0xd8] sm:$0xff]
    %v4757 = vld [vmem:[%s0 + $0xe0] sm:$0xff]
    %v4758 = vld [vmem:[%s0 + $0xe8] sm:$0xff]
    %v4759 = vld [vmem:[%s0 + $0xf0] sm:$0xff]
    %v4760 = vld [vmem:[%s0 + $0xf8] sm:$0xff]
    %v4761 = vld [vmem:[%s0 + $0x100] sm:$0xff]
    %v4762 = vld [vmem:[%s0 + $0x108] sm:$0xff]
    %v4763 = vmul.f32 %v4755, %v142
    %v4764 = vmul.f32 %v4756, %v143
    %v4765 = vmul.f32 %v4757, %v144
    %v4766 = vmul.f32 %v4758, %v145
    %v4767 = vmul.f32 %v4759, %v146
    %v4768 = vmul.f32 %v4760, %v147
    %v4769 = vmul.f32 %v4761, %v148
    %v4770 = vmul.f32 %v4762, %v149
    %v4772 = vsel %vm201, %v4763, 0
    %v4775 = vsel %vm201, %v4764, 0
    %v4778 = vsel %vm201, %v4765, 0
    %v4781 = vsel %vm201, %v4766, 0
    %v4784 = vsel %vm201, %v4767, 0
    %v4787 = vsel %vm201, %v4768, 0
    %v4790 = vsel %vm201, %v4769, 0
    %v4793 = vsel %vm201, %v4770, 0
    %4795 = vmatprep.subr.mxu0 0.0
    %4796 = vmatpush1.msra.mxu0 %v666
    %4797 = vmatprep.subr.mxu0 0.0
    %4798 = vmatpush1.msra.mxu0 0.0
    %4799 = vmatprep.subr.mxu0 0.0
    %4800 = vmatpush1.msra.mxu0 0.0
    %4801 = vmatprep.subr.mxu0 0.0
    %4802 = vmatpush1.msra.mxu0 0.0
    %4803 = vmatprep.subr.mxu0 0.0
    %4804 = vmatpush1.msra.mxu0 0.0
    %4805 = vmatprep.subr.mxu0 0.0
    %4806 = vmatpush1.msra.mxu0 0.0
    %4807 = vmatprep.subr.mxu0 0.0
    %4808 = vmatpush1.msra.mxu0 0.0
    %4809 = vmatprep.subr.mxu0 0.0
    %4810 = vmatpush1.msra.mxu0 0.0
    %4811 = vmatprep.subr.mxu0 0.0
    %4812 = vmatpush1.msra.mxu0 0.0
    %4813 = vmatprep.subr.mxu0 0.0
    %4814 = vmatpush1.msra.mxu0 0.0
    %4815 = vmatprep.subr.mxu0 0.0
    %4816 = vmatpush1.msra.mxu0 0.0
    %4817 = vmatprep.subr.mxu0 0.0
    %4818 = vmatpush1.msra.mxu0 0.0
    %4819 = vmatprep.subr.mxu0 0.0
    %4820 = vmatpush1.msra.mxu0 0.0
    %4821 = vmatprep.subr.mxu0 0.0
    %4822 = vmatpush1.msra.mxu0 0.0
    %4823 = vmatprep.subr.mxu0 0.0
    %4824 = vmatpush1.msra.mxu0 0.0
    %4825 = vmatprep.subr.mxu0 0.0
    %4826 = vmatpush1.msra.mxu0 0.0
    %4827 = vmatprep.subr.mxu0 0.0
    %4828 = vmatpush1.msra.mxu0 0.0
    %4829 = vmatprep.subr.mxu0 0.0
    %4830 = vmatpush1.msra.mxu0 0.0
    %4831 = vmatprep.subr.mxu0 0.0
    %4832 = vmatpush1.msra.mxu0 0.0
    %4833 = vmatprep.subr.mxu0 0.0
    %4834 = vmatpush1.msra.mxu0 0.0
    %4835 = vmatprep.subr.mxu0 0.0
    %4836 = vmatpush1.msra.mxu0 0.0
    %4837 = vmatprep.subr.mxu0 0.0
    %4838 = vmatpush1.msra.mxu0 0.0
    %4839 = vmatprep.subr.mxu0 0.0
    %4840 = vmatpush1.msra.mxu0 0.0
    %4841 = vmatprep.subr.mxu0 0.0
    %4842 = vmatpush1.msra.mxu0 0.0
    %4843 = vmatprep.subr.mxu0 0.0
    %4844 = vmatpush1.msra.mxu0 0.0
    %4845 = vmatprep.subr.mxu0 0.0
    %4846 = vmatpush1.msra.mxu0 0.0
    %4847 = vmatprep.subr.mxu0 0.0
    %4848 = vmatpush1.msra.mxu0 0.0
    %4849 = vmatprep.subr.mxu0 0.0
    %4850 = vmatpush1.msra.mxu0 0.0
    %4851 = vmatprep.subr.mxu0 0.0
    %4852 = vmatpush1.msra.mxu0 0.0
    %4853 = vmatprep.subr.mxu0 0.0
    %4854 = vmatpush1.msra.mxu0 0.0
    %4855 = vmatprep.subr.mxu0 0.0
    %4856 = vmatpush1.msra.mxu0 0.0
    %4857 = vmatprep.subr.mxu0 0.0
    %4858 = vmatpush1.msra.mxu0 0.0
    %4859 = vmatprep.mubr.f32.mxu0 0.0
    %4860 = vmatmul.mubr.f32.gmra.mrb[0].mxu0 %v4772
    %v4861 = vpop.f32.mrb[0].mxu0
    %v4862 = vadd.f32 0.0, %v4861
    %v4863 = vpop.f32.mrb[0].mxu0
    %4864 = vmatprep.mubr.f32.mxu0 0.0
    %4865 = vmatmul.mubr.f32.gmra.mrb[0].mxu0 %v4775
    %v4866 = vpop.f32.mrb[0].mxu0
    %v4867 = vadd.f32 0.0, %v4866
    %v4868 = vpop.f32.mrb[0].mxu0
    %4869 = vmatprep.mubr.f32.mxu0 0.0
    %4870 = vmatmul.mubr.f32.gmra.mrb[0].mxu0 %v4778
    %v4871 = vpop.f32.mrb[0].mxu0
    %v4872 = vadd.f32 0.0, %v4871
    %v4873 = vpop.f32.mrb[0].mxu0
    %4874 = vmatprep.mubr.f32.mxu0 0.0
    %4875 = vmatmul.mubr.f32.gmra.mrb[0].mxu0 %v4781
    %v4876 = vpop.f32.mrb[0].mxu0
    %v4877 = vadd.f32 0.0, %v4876
    %v4878 = vpop.f32.mrb[0].mxu0
    %4879 = vmatprep.mubr.f32.mxu0 0.0
    %4880 = vmatmul.mubr.f32.gmra.mrb[0].mxu0 %v4784
    %v4881 = vpop.f32.mrb[0].mxu0
    %v4882 = vadd.f32 0.0, %v4881
    %v4883 = vpop.f32.mrb[0].mxu0
    %4884 = vmatprep.mubr.f32.mxu0 0.0
    %4885 = vmatmul.mubr.f32.gmra.mrb[0].mxu0 %v4787
    %v4886 = vpop.f32.mrb[0].mxu0
    %v4887 = vadd.f32 0.0, %v4886
    %v4888 = vpop.f32.mrb[0].mxu0
    %4889 = vmatprep.mubr.f32.mxu0 0.0
    %4890 = vmatmul.mubr.f32.gmra.mrb[0].mxu0 %v4790
    %v4891 = vpop.f32.mrb[0].mxu0
    %v4892 = vadd.f32 0.0, %v4891
    %v4893 = vpop.f32.mrb[0].mxu0
    %4894 = vmatprep.mubr.f32.mxu0 0.0
    %4895 = vmatmul.mubr.f32.gmra.mrb[0].mxu0 %v4793
    %v4896 = vpop.f32.mrb[0].mxu0
    %v4897 = vadd.f32 0.0, %v4896
    %v4898 = vpop.f32.mrb[0].mxu0
    %4899 = vdwg.mxu0
    %v4900 = vadd.f32 %v4747, %v4862
    %v4901 = vadd.f32 %v4748, %v4867
    %v4902 = vadd.f32 %v4749, %v4872
    %v4903 = vadd.f32 %v4750, %v4877
    %v4904 = vadd.f32 %v4751, %v4882
    %v4905 = vadd.f32 %v4752, %v4887
    %v4906 = vadd.f32 %v4753, %v4892
    %v4907 = vadd.f32 %v4754, %v4897
    %v4908 = vld [vmem:[%s0 + $0xd1] sm:$0xff]
    %v4909 = vld [vmem:[%s0 + $0xd9] sm:$0xff]
    %v4910 = vld [vmem:[%s0 + $0xe1] sm:$0xff]
    %v4911 = vld [vmem:[%s0 + $0xe9] sm:$0xff]
    %v4912 = vld [vmem:[%s0 + $0xf1] sm:$0xff]
    %v4913 = vld [vmem:[%s0 + $0xf9] sm:$0xff]
    %v4914 = vld [vmem:[%s0 + $0x101] sm:$0xff]
    %v4915 = vld [vmem:[%s0 + $0x109] sm:$0xff]
    %v4917 = vsel %vm201, %v4908, 0
    %v4920 = vsel %vm201, %v4909, 0
    %v4923 = vsel %vm201, %v4910, 0
    %v4926 = vsel %vm201, %v4911, 0
    %v4929 = vsel %vm201, %v4912, 0
    %v4932 = vsel %vm201, %v4913, 0
    %v4935 = vsel %vm201, %v4914, 0
    %v4938 = vsel %vm201, %v4915, 0
    %4940 = vmatprep.subr.mxu0 0.0
    %4941 = vmatpush1.msra.mxu0 %v815
    %4942 = vmatprep.subr.mxu0 0.0
    %4943 = vmatpush1.msra.mxu0 0.0
    %4944 = vmatprep.subr.mxu0 0.0
    %4945 = vmatpush1.msra.mxu0 0.0
    %4946 = vmatprep.subr.mxu0 0.0
    %4947 = vmatpush1.msra.mxu0 0.0
    %4948 = vmatprep.subr.mxu0 0.0
    %4949 = vmatpush1.msra.mxu0 0.0
    %4950 = vmatprep.subr.mxu0 0.0
    %4951 = vmatpush1.msra.mxu0 0.0
    %4952 = vmatprep.subr.mxu0 0.0
    %4953 = vmatpush1.msra.mxu0 0.0
    %4954 = vmatprep.subr.mxu0 0.0
    %4955 = vmatpush1.msra.mxu0 0.0
    %4956 = vmatprep.subr.mxu0 0.0
    %4957 = vmatpush1.msra.mxu0 0.0
    %4958 = vmatprep.subr.mxu0 0.0
    %4959 = vmatpush1.msra.mxu0 0.0
    %4960 = vmatprep.subr.mxu0 0.0
    %4961 = vmatpush1.msra.mxu0 0.0
    %4962 = vmatprep.subr.mxu0 0.0
    %4963 = vmatpush1.msra.mxu0 0.0
    %4964 = vmatprep.subr.mxu0 0.0
    %4965 = vmatpush1.msra.mxu0 0.0
    %4966 = vmatprep.subr.mxu0 0.0
    %4967 = vmatpush1.msra.mxu0 0.0
    %4968 = vmatprep.subr.mxu0 0.0
    %4969 = vmatpush1.msra.mxu0 0.0
    %4970 = vmatprep.subr.mxu0 0.0
    %4971 = vmatpush1.msra.mxu0 0.0
    %4972 = vmatprep.subr.mxu0 0.0
    %4973 = vmatpush1.msra.mxu0 0.0
    %4974 = vmatprep.subr.mxu0 0.0
    %4975 = vmatpush1.msra.mxu0 0.0
    %4976 = vmatprep.subr.mxu0 0.0
    %4977 = vmatpush1.msra.mxu0 0.0
    %4978 = vmatprep.subr.mxu0 0.0
    %4979 = vmatpush1.msra.mxu0 0.0
    %4980 = vmatprep.subr.mxu0 0.0
    %4981 = vmatpush1.msra.mxu0 0.0
    %4982 = vmatprep.subr.mxu0 0.0
    %4983 = vmatpush1.msra.mxu0 0.0
    %4984 = vmatprep.subr.mxu0 0.0
    %4985 = vmatpush1.msra.mxu0 0.0
    %4986 = vmatprep.subr.mxu0 0.0
    %4987 = vmatpush1.msra.mxu0 0.0
    %4988 = vmatprep.subr.mxu0 0.0
    %4989 = vmatpush1.msra.mxu0 0.0
    %4990 = vmatprep.subr.mxu0 0.0
    %4991 = vmatpush1.msra.mxu0 0.0
    %4992 = vmatprep.subr.mxu0 0.0
    %4993 = vmatpush1.msra.mxu0 0.0
    %4994 = vmatprep.subr.mxu0 0.0
    %4995 = vmatpush1.msra.mxu0 0.0
    %4996 = vmatprep.subr.mxu0 0.0
    %4997 = vmatpush1.msra.mxu0 0.0
    %4998 = vmatprep.subr.mxu0 0.0
    %4999 = vmatpush1.msra.mxu0 0.0
    %5000 = vmatprep.subr.mxu0 0.0
    %5001 = vmatpush1.msra.mxu0 0.0
    %5002 = vmatprep.subr.mxu0 0.0
    %5003 = vmatpush1.msra.mxu0 0.0
    %5004 = vmatprep.mubr.f32.mxu0 0.0
    %5005 = vmatmul.mubr.f32.gmra.mrb[0].mxu0 %v4917
    %v5006 = vpop.f32.mrb[0].mxu0
    %v5007 = vadd.f32 0.0, %v5006
    %v5008 = vpop.f32.mrb[0].mxu0
    %5009 = vmatprep.mubr.f32.mxu0 0.0
    %5010 = vmatmul.mubr.f32.gmra.mrb[0].mxu0 %v4920
    %v5011 = vpop.f32.mrb[0].mxu0
    %v5012 = vadd.f32 0.0, %v5011
    %v5013 = vpop.f32.mrb[0].mxu0
    %5014 = vmatprep.mubr.f32.mxu0 0.0
    %5015 = vmatmul.mubr.f32.gmra.mrb[0].mxu0 %v4923
    %v5016 = vpop.f32.mrb[0].mxu0
    %v5017 = vadd.f32 0.0, %v5016
    %v5018 = vpop.f32.mrb[0].mxu0
    %5019 = vmatprep.mubr.f32.mxu0 0.0
    %5020 = vmatmul.mubr.f32.gmra.mrb[0].mxu0 %v4926
    %v5021 = vpop.f32.mrb[0].mxu0
    %v5022 = vadd.f32 0.0, %v5021
    %v5023 = vpop.f32.mrb[0].mxu0
    %5024 = vmatprep.mubr.f32.mxu0 0.0
    %5025 = vmatmul.mubr.f32.gmra.mrb[0].mxu0 %v4929
    %v5026 = vpop.f32.mrb[0].mxu0
    %v5027 = vadd.f32 0.0, %v5026
    %v5028 = vpop.f32.mrb[0].mxu0
    %5029 = vmatprep.mubr.f32.mxu0 0.0
    %5030 = vmatmul.mubr.f32.gmra.mrb[0].mxu0 %v4932
    %v5031 = vpop.f32.mrb[0].mxu0
    %v5032 = vadd.f32 0.0, %v5031
    %v5033 = vpop.f32.mrb[0].mxu0
    %5034 = vmatprep.mubr.f32.mxu0 0.0
    %5035 = vmatmul.mubr.f32.gmra.mrb[0].mxu0 %v4935
    %v5036 = vpop.f32.mrb[0].mxu0
    %v5037 = vadd.f32 0.0, %v5036
    %v5038 = vpop.f32.mrb[0].mxu0
    %5039 = vmatprep.mubr.f32.mxu0 0.0
    %5040 = vmatmul.mubr.f32.gmra.mrb[0].mxu0 %v4938
    %v5041 = vpop.f32.mrb[0].mxu0
    %v5042 = vadd.f32 0.0, %v5041
    %v5043 = vpop.f32.mrb[0].mxu0
    %5044 = vdwg.mxu0
    %v5045 = vadd.f32 %v4900, %v5007
    %v5046 = vadd.f32 %v4901, %v5012
    %v5047 = vadd.f32 %v4902, %v5017
    %v5048 = vadd.f32 %v4903, %v5022
    %v5049 = vadd.f32 %v4904, %v5027
    %v5050 = vadd.f32 %v4905, %v5032
    %v5051 = vadd.f32 %v4906, %v5037
    %v5052 = vadd.f32 %v4907, %v5042
    %v5053 = vld [vmem:[%s0 + $0xd2] sm:$0xff]
    %v5054 = vld [vmem:[%s0 + $0xda] sm:$0xff]
    %v5055 = vld [vmem:[%s0 + $0xe2] sm:$0xff]
    %v5056 = vld [vmem:[%s0 + $0xea] sm:$0xff]
    %v5057 = vld [vmem:[%s0 + $0xf2] sm:$0xff]
    %v5058 = vld [vmem:[%s0 + $0xfa] sm:$0xff]
    %v5059 = vld [vmem:[%s0 + $0x102] sm:$0xff]
    %v5060 = vld [vmem:[%s0 + $0x10a] sm:$0xff]
    %v5061 = vmul.f32 %v5053, %v166
    %v5062 = vmul.f32 %v5054, %v167
    %v5063 = vmul.f32 %v5055, %v168
    %v5064 = vmul.f32 %v5056, %v169
    %v5065 = vmul.f32 %v5057, %v170
    %v5066 = vmul.f32 %v5058, %v171
    %v5067 = vmul.f32 %v5059, %v172
    %v5068 = vmul.f32 %v5060, %v173
    %v5070 = vsel %vm201, %v5061, 0
    %v5073 = vsel %vm201, %v5062, 0
    %v5076 = vsel %vm201, %v5063, 0
    %v5079 = vsel %vm201, %v5064, 0
    %v5082 = vsel %vm201, %v5065, 0
    %v5085 = vsel %vm201, %v5066, 0
    %v5088 = vsel %vm201, %v5067, 0
    %v5091 = vsel %vm201, %v5068, 0
    %5093 = vmatprep.subr.mxu0 0.0
    %5094 = vmatpush1.msra.mxu0 %v972
    %5095 = vmatprep.subr.mxu0 0.0
    %5096 = vmatpush1.msra.mxu0 0.0
    %5097 = vmatprep.subr.mxu0 0.0
    %5098 = vmatpush1.msra.mxu0 0.0
    %5099 = vmatprep.subr.mxu0 0.0
    %5100 = vmatpush1.msra.mxu0 0.0
    %5101 = vmatprep.subr.mxu0 0.0
    %5102 = vmatpush1.msra.mxu0 0.0
    %5103 = vmatprep.subr.mxu0 0.0
    %5104 = vmatpush1.msra.mxu0 0.0
    %5105 = vmatprep.subr.mxu0 0.0
    %5106 = vmatpush1.msra.mxu0 0.0
    %5107 = vmatprep.subr.mxu0 0.0
    %5108 = vmatpush1.msra.mxu0 0.0
    %5109 = vmatprep.subr.mxu0 0.0
    %5110 = vmatpush1.msra.mxu0 0.0
    %5111 = vmatprep.subr.mxu0 0.0
    %5112 = vmatpush1.msra.mxu0 0.0
    %5113 = vmatprep.subr.mxu0 0.0
    %5114 = vmatpush1.msra.mxu0 0.0
    %5115 = vmatprep.subr.mxu0 0.0
    %5116 = vmatpush1.msra.mxu0 0.0
    %5117 = vmatprep.subr.mxu0 0.0
    %5118 = vmatpush1.msra.mxu0 0.0
    %5119 = vmatprep.subr.mxu0 0.0
    %5120 = vmatpush1.msra.mxu0 0.0
    %5121 = vmatprep.subr.mxu0 0.0
    %5122 = vmatpush1.msra.mxu0 0.0
    %5123 = vmatprep.subr.mxu0 0.0
    %5124 = vmatpush1.msra.mxu0 0.0
    %5125 = vmatprep.subr.mxu0 0.0
    %5126 = vmatpush1.msra.mxu0 0.0
    %5127 = vmatprep.subr.mxu0 0.0
    %5128 = vmatpush1.msra.mxu0 0.0
    %5129 = vmatprep.subr.mxu0 0.0
    %5130 = vmatpush1.msra.mxu0 0.0
    %5131 = vmatprep.subr.mxu0 0.0
    %5132 = vmatpush1.msra.mxu0 0.0
    %5133 = vmatprep.subr.mxu0 0.0
    %5134 = vmatpush1.msra.mxu0 0.0
    %5135 = vmatprep.subr.mxu0 0.0
    %5136 = vmatpush1.msra.mxu0 0.0
    %5137 = vmatprep.subr.mxu0 0.0
    %5138 = vmatpush1.msra.mxu0 0.0
    %5139 = vmatprep.subr.mxu0 0.0
    %5140 = vmatpush1.msra.mxu0 0.0
    %5141 = vmatprep.subr.mxu0 0.0
    %5142 = vmatpush1.msra.mxu0 0.0
    %5143 = vmatprep.subr.mxu0 0.0
    %5144 = vmatpush1.msra.mxu0 0.0
    %5145 = vmatprep.subr.mxu0 0.0
    %5146 = vmatpush1.msra.mxu0 0.0
    %5147 = vmatprep.subr.mxu0 0.0
    %5148 = vmatpush1.msra.mxu0 0.0
    %5149 = vmatprep.subr.mxu0 0.0
    %5150 = vmatpush1.msra.mxu0 0.0
    %5151 = vmatprep.subr.mxu0 0.0
    %5152 = vmatpush1.msra.mxu0 0.0
    %5153 = vmatprep.subr.mxu0 0.0
    %5154 = vmatpush1.msra.mxu0 0.0
    %5155 = vmatprep.subr.mxu0 0.0
    %5156 = vmatpush1.msra.mxu0 0.0
    %5157 = vmatprep.mubr.f32.mxu0 0.0
    %5158 = vmatmul.mubr.f32.gmra.mrb[0].mxu0 %v5070
    %v5159 = vpop.f32.mrb[0].mxu0
    %v5160 = vadd.f32 0.0, %v5159
    %v5161 = vpop.f32.mrb[0].mxu0
    %5162 = vmatprep.mubr.f32.mxu0 0.0
    %5163 = vmatmul.mubr.f32.gmra.mrb[0].mxu0 %v5073
    %v5164 = vpop.f32.mrb[0].mxu0
    %v5165 = vadd.f32 0.0, %v5164
    %v5166 = vpop.f32.mrb[0].mxu0
    %5167 = vmatprep.mubr.f32.mxu0 0.0
    %5168 = vmatmul.mubr.f32.gmra.mrb[0].mxu0 %v5076
    %v5169 = vpop.f32.mrb[0].mxu0
    %v5170 = vadd.f32 0.0, %v5169
    %v5171 = vpop.f32.mrb[0].mxu0
    %5172 = vmatprep.mubr.f32.mxu0 0.0
    %5173 = vmatmul.mubr.f32.gmra.mrb[0].mxu0 %v5079
    %v5174 = vpop.f32.mrb[0].mxu0
    %v5175 = vadd.f32 0.0, %v5174
    %v5176 = vpop.f32.mrb[0].mxu0
    %5177 = vmatprep.mubr.f32.mxu0 0.0
    %5178 = vmatmul.mubr.f32.gmra.mrb[0].mxu0 %v5082
    %v5179 = vpop.f32.mrb[0].mxu0
    %v5180 = vadd.f32 0.0, %v5179
    %v5181 = vpop.f32.mrb[0].mxu0
    %5182 = vmatprep.mubr.f32.mxu0 0.0
    %5183 = vmatmul.mubr.f32.gmra.mrb[0].mxu0 %v5085
    %v5184 = vpop.f32.mrb[0].mxu0
    %v5185 = vadd.f32 0.0, %v5184
    %v5186 = vpop.f32.mrb[0].mxu0
    %5187 = vmatprep.mubr.f32.mxu0 0.0
    %5188 = vmatmul.mubr.f32.gmra.mrb[0].mxu0 %v5088
    %v5189 = vpop.f32.mrb[0].mxu0
    %v5190 = vadd.f32 0.0, %v5189
    %v5191 = vpop.f32.mrb[0].mxu0
    %5192 = vmatprep.mubr.f32.mxu0 0.0
    %5193 = vmatmul.mubr.f32.gmra.mrb[0].mxu0 %v5091
    %v5194 = vpop.f32.mrb[0].mxu0
    %v5195 = vadd.f32 0.0, %v5194
    %v5196 = vpop.f32.mrb[0].mxu0
    %5197 = vdwg.mxu0
    %v5198 = vadd.f32 %v5045, %v5160
    %v5199 = vadd.f32 %v5046, %v5165
    %v5200 = vadd.f32 %v5047, %v5170
    %v5201 = vadd.f32 %v5048, %v5175
    %v5202 = vadd.f32 %v5049, %v5180
    %v5203 = vadd.f32 %v5050, %v5185
    %v5204 = vadd.f32 %v5051, %v5190
    %v5205 = vadd.f32 %v5052, %v5195
    %v5206 = vld [vmem:[%s0 + $0xe0] sm:$0xff]
    %v5207 = vld [vmem:[%s0 + $0xe8] sm:$0xff]
    %v5208 = vld [vmem:[%s0 + $0xf0] sm:$0xff]
    %v5209 = vld [vmem:[%s0 + $0xf8] sm:$0xff]
    %v5210 = vld [vmem:[%s0 + $0x100] sm:$0xff]
    %v5211 = vld [vmem:[%s0 + $0x108] sm:$0xff]
    %v5212 = vld [vmem:[%s0 + $0x110] sm:$0xff]
    %v5213 = vld [vmem:[%s0 + $0x118] sm:$0xff]
    %v5214 = vmul.f32 %v5206, %v142
    %v5215 = vmul.f32 %v5207, %v143
    %v5216 = vmul.f32 %v5208, %v144
    %v5217 = vmul.f32 %v5209, %v145
    %v5218 = vmul.f32 %v5210, %v146
    %v5219 = vmul.f32 %v5211, %v147
    %v5220 = vmul.f32 %v5212, %v148
    %v5221 = vmul.f32 %v5213, %v149
    %v5223 = vsel %vm201, %v5214, 0
    %v5226 = vsel %vm201, %v5215, 0
    %v5229 = vsel %vm201, %v5216, 0
    %v5232 = vsel %vm201, %v5217, 0
    %v5235 = vsel %vm201, %v5218, 0
    %v5238 = vsel %vm201, %v5219, 0
    %v5241 = vsel %vm201, %v5220, 0
    %v5244 = vsel %vm201, %v5221, 0
    %5246 = vmatprep.subr.mxu0 0.0
    %5247 = vmatpush1.msra.mxu0 %v1129
    %5248 = vmatprep.subr.mxu0 0.0
    %5249 = vmatpush1.msra.mxu0 0.0
    %5250 = vmatprep.subr.mxu0 0.0
    %5251 = vmatpush1.msra.mxu0 0.0
    %5252 = vmatprep.subr.mxu0 0.0
    %5253 = vmatpush1.msra.mxu0 0.0
    %5254 = vmatprep.subr.mxu0 0.0
    %5255 = vmatpush1.msra.mxu0 0.0
    %5256 = vmatprep.subr.mxu0 0.0
    %5257 = vmatpush1.msra.mxu0 0.0
    %5258 = vmatprep.subr.mxu0 0.0
    %5259 = vmatpush1.msra.mxu0 0.0
    %5260 = vmatprep.subr.mxu0 0.0
    %5261 = vmatpush1.msra.mxu0 0.0
    %5262 = vmatprep.subr.mxu0 0.0
    %5263 = vmatpush1.msra.mxu0 0.0
    %5264 = vmatprep.subr.mxu0 0.0
    %5265 = vmatpush1.msra.mxu0 0.0
    %5266 = vmatprep.subr.mxu0 0.0
    %5267 = vmatpush1.msra.mxu0 0.0
    %5268 = vmatprep.subr.mxu0 0.0
    %5269 = vmatpush1.msra.mxu0 0.0
    %5270 = vmatprep.subr.mxu0 0.0
    %5271 = vmatpush1.msra.mxu0 0.0
    %5272 = vmatprep.subr.mxu0 0.0
    %5273 = vmatpush1.msra.mxu0 0.0
    %5274 = vmatprep.subr.mxu0 0.0
    %5275 = vmatpush1.msra.mxu0 0.0
    %5276 = vmatprep.subr.mxu0 0.0
    %5277 = vmatpush1.msra.mxu0 0.0
    %5278 = vmatprep.subr.mxu0 0.0
    %5279 = vmatpush1.msra.mxu0 0.0
    %5280 = vmatprep.subr.mxu0 0.0
    %5281 = vmatpush1.msra.mxu0 0.0
    %5282 = vmatprep.subr.mxu0 0.0
    %5283 = vmatpush1.msra.mxu0 0.0
    %5284 = vmatprep.subr.mxu0 0.0
    %5285 = vmatpush1.msra.mxu0 0.0
    %5286 = vmatprep.subr.mxu0 0.0
    %5287 = vmatpush1.msra.mxu0 0.0
    %5288 = vmatprep.subr.mxu0 0.0
    %5289 = vmatpush1.msra.mxu0 0.0
    %5290 = vmatprep.subr.mxu0 0.0
    %5291 = vmatpush1.msra.mxu0 0.0
    %5292 = vmatprep.subr.mxu0 0.0
    %5293 = vmatpush1.msra.mxu0 0.0
    %5294 = vmatprep.subr.mxu0 0.0
    %5295 = vmatpush1.msra.mxu0 0.0
    %5296 = vmatprep.subr.mxu0 0.0
    %5297 = vmatpush1.msra.mxu0 0.0
    %5298 = vmatprep.subr.mxu0 0.0
    %5299 = vmatpush1.msra.mxu0 0.0
    %5300 = vmatprep.subr.mxu0 0.0
    %5301 = vmatpush1.msra.mxu0 0.0
    %5302 = vmatprep.subr.mxu0 0.0
    %5303 = vmatpush1.msra.mxu0 0.0
    %5304 = vmatprep.subr.mxu0 0.0
    %5305 = vmatpush1.msra.mxu0 0.0
    %5306 = vmatprep.subr.mxu0 0.0
    %5307 = vmatpush1.msra.mxu0 0.0
    %5308 = vmatprep.subr.mxu0 0.0
    %5309 = vmatpush1.msra.mxu0 0.0
    %5310 = vmatprep.mubr.f32.mxu0 0.0
    %5311 = vmatmul.mubr.f32.gmra.mrb[0].mxu0 %v5223
    %v5312 = vpop.f32.mrb[0].mxu0
    %v5313 = vadd.f32 0.0, %v5312
    %v5314 = vpop.f32.mrb[0].mxu0
    %5315 = vmatprep.mubr.f32.mxu0 0.0
    %5316 = vmatmul.mubr.f32.gmra.mrb[0].mxu0 %v5226
    %v5317 = vpop.f32.mrb[0].mxu0
    %v5318 = vadd.f32 0.0, %v5317
    %v5319 = vpop.f32.mrb[0].mxu0
    %5320 = vmatprep.mubr.f32.mxu0 0.0
    %5321 = vmatmul.mubr.f32.gmra.mrb[0].mxu0 %v5229
    %v5322 = vpop.f32.mrb[0].mxu0
    %v5323 = vadd.f32 0.0, %v5322
    %v5324 = vpop.f32.mrb[0].mxu0
    %5325 = vmatprep.mubr.f32.mxu0 0.0
    %5326 = vmatmul.mubr.f32.gmra.mrb[0].mxu0 %v5232
    %v5327 = vpop.f32.mrb[0].mxu0
    %v5328 = vadd.f32 0.0, %v5327
    %v5329 = vpop.f32.mrb[0].mxu0
    %5330 = vmatprep.mubr.f32.mxu0 0.0
    %5331 = vmatmul.mubr.f32.gmra.mrb[0].mxu0 %v5235
    %v5332 = vpop.f32.mrb[0].mxu0
    %v5333 = vadd.f32 0.0, %v5332
    %v5334 = vpop.f32.mrb[0].mxu0
    %5335 = vmatprep.mubr.f32.mxu0 0.0
    %5336 = vmatmul.mubr.f32.gmra.mrb[0].mxu0 %v5238
    %v5337 = vpop.f32.mrb[0].mxu0
    %v5338 = vadd.f32 0.0, %v5337
    %v5339 = vpop.f32.mrb[0].mxu0
    %5340 = vmatprep.mubr.f32.mxu0 0.0
    %5341 = vmatmul.mubr.f32.gmra.mrb[0].mxu0 %v5241
    %v5342 = vpop.f32.mrb[0].mxu0
    %v5343 = vadd.f32 0.0, %v5342
    %v5344 = vpop.f32.mrb[0].mxu0
    %5345 = vmatprep.mubr.f32.mxu0 0.0
    %5346 = vmatmul.mubr.f32.gmra.mrb[0].mxu0 %v5244
    %v5347 = vpop.f32.mrb[0].mxu0
    %v5348 = vadd.f32 0.0, %v5347
    %v5349 = vpop.f32.mrb[0].mxu0
    %5350 = vdwg.mxu0
    %v5351 = vadd.f32 %v5198, %v5313
    %v5352 = vadd.f32 %v5199, %v5318
    %v5353 = vadd.f32 %v5200, %v5323
    %v5354 = vadd.f32 %v5201, %v5328
    %v5355 = vadd.f32 %v5202, %v5333
    %v5356 = vadd.f32 %v5203, %v5338
    %v5357 = vadd.f32 %v5204, %v5343
    %v5358 = vadd.f32 %v5205, %v5348
    %v5359 = vld [vmem:[%s0 + $0xe1] sm:$0xff]
    %v5360 = vld [vmem:[%s0 + $0xe9] sm:$0xff]
    %v5361 = vld [vmem:[%s0 + $0xf1] sm:$0xff]
    %v5362 = vld [vmem:[%s0 + $0xf9] sm:$0xff]
    %v5363 = vld [vmem:[%s0 + $0x101] sm:$0xff]
    %v5364 = vld [vmem:[%s0 + $0x109] sm:$0xff]
    %v5365 = vld [vmem:[%s0 + $0x111] sm:$0xff]
    %v5366 = vld [vmem:[%s0 + $0x119] sm:$0xff]
    %v5368 = vsel %vm201, %v5359, 0
    %v5371 = vsel %vm201, %v5360, 0
    %v5374 = vsel %vm201, %v5361, 0
    %v5377 = vsel %vm201, %v5362, 0
    %v5380 = vsel %vm201, %v5363, 0
    %v5383 = vsel %vm201, %v5364, 0
    %v5386 = vsel %vm201, %v5365, 0
    %v5389 = vsel %vm201, %v5366, 0
    %5391 = vmatprep.subr.mxu0 0.0
    %5392 = vmatpush1.msra.mxu0 %v1278
    %5393 = vmatprep.subr.mxu0 0.0
    %5394 = vmatpush1.msra.mxu0 0.0
    %5395 = vmatprep.subr.mxu0 0.0
    %5396 = vmatpush1.msra.mxu0 0.0
    %5397 = vmatprep.subr.mxu0 0.0
    %5398 = vmatpush1.msra.mxu0 0.0
    %5399 = vmatprep.subr.mxu0 0.0
    %5400 = vmatpush1.msra.mxu0 0.0
    %5401 = vmatprep.subr.mxu0 0.0
    %5402 = vmatpush1.msra.mxu0 0.0
    %5403 = vmatprep.subr.mxu0 0.0
    %5404 = vmatpush1.msra.mxu0 0.0
    %5405 = vmatprep.subr.mxu0 0.0
    %5406 = vmatpush1.msra.mxu0 0.0
    %5407 = vmatprep.subr.mxu0 0.0
    %5408 = vmatpush1.msra.mxu0 0.0
    %5409 = vmatprep.subr.mxu0 0.0
    %5410 = vmatpush1.msra.mxu0 0.0
    %5411 = vmatprep.subr.mxu0 0.0
    %5412 = vmatpush1.msra.mxu0 0.0
    %5413 = vmatprep.subr.mxu0 0.0
    %5414 = vmatpush1.msra.mxu0 0.0
    %5415 = vmatprep.subr.mxu0 0.0
    %5416 = vmatpush1.msra.mxu0 0.0
    %5417 = vmatprep.subr.mxu0 0.0
    %5418 = vmatpush1.msra.mxu0 0.0
    %5419 = vmatprep.subr.mxu0 0.0
    %5420 = vmatpush1.msra.mxu0 0.0
    %5421 = vmatprep.subr.mxu0 0.0
    %5422 = vmatpush1.msra.mxu0 0.0
    %5423 = vmatprep.subr.mxu0 0.0
    %5424 = vmatpush1.msra.mxu0 0.0
    %5425 = vmatprep.subr.mxu0 0.0
    %5426 = vmatpush1.msra.mxu0 0.0
    %5427 = vmatprep.subr.mxu0 0.0
    %5428 = vmatpush1.msra.mxu0 0.0
    %5429 = vmatprep.subr.mxu0 0.0
    %5430 = vmatpush1.msra.mxu0 0.0
    %5431 = vmatprep.subr.mxu0 0.0
    %5432 = vmatpush1.msra.mxu0 0.0
    %5433 = vmatprep.subr.mxu0 0.0
    %5434 = vmatpush1.msra.mxu0 0.0
    %5435 = vmatprep.subr.mxu0 0.0
    %5436 = vmatpush1.msra.mxu0 0.0
    %5437 = vmatprep.subr.mxu0 0.0
    %5438 = vmatpush1.msra.mxu0 0.0
    %5439 = vmatprep.subr.mxu0 0.0
    %5440 = vmatpush1.msra.mxu0 0.0
    %5441 = vmatprep.subr.mxu0 0.0
    %5442 = vmatpush1.msra.mxu0 0.0
    %5443 = vmatprep.subr.mxu0 0.0
    %5444 = vmatpush1.msra.mxu0 0.0
    %5445 = vmatprep.subr.mxu0 0.0
    %5446 = vmatpush1.msra.mxu0 0.0
    %5447 = vmatprep.subr.mxu0 0.0
    %5448 = vmatpush1.msra.mxu0 0.0
    %5449 = vmatprep.subr.mxu0 0.0
    %5450 = vmatpush1.msra.mxu0 0.0
    %5451 = vmatprep.subr.mxu0 0.0
    %5452 = vmatpush1.msra.mxu0 0.0
    %5453 = vmatprep.subr.mxu0 0.0
    %5454 = vmatpush1.msra.mxu0 0.0
    %5455 = vmatprep.mubr.f32.mxu0 0.0
    %5456 = vmatmul.mubr.f32.gmra.mrb[0].mxu0 %v5368
    %v5457 = vpop.f32.mrb[0].mxu0
    %v5458 = vadd.f32 0.0, %v5457
    %v5459 = vpop.f32.mrb[0].mxu0
    %5460 = vmatprep.mubr.f32.mxu0 0.0
    %5461 = vmatmul.mubr.f32.gmra.mrb[0].mxu0 %v5371
    %v5462 = vpop.f32.mrb[0].mxu0
    %v5463 = vadd.f32 0.0, %v5462
    %v5464 = vpop.f32.mrb[0].mxu0
    %5465 = vmatprep.mubr.f32.mxu0 0.0
    %5466 = vmatmul.mubr.f32.gmra.mrb[0].mxu0 %v5374
    %v5467 = vpop.f32.mrb[0].mxu0
    %v5468 = vadd.f32 0.0, %v5467
    %v5469 = vpop.f32.mrb[0].mxu0
    %5470 = vmatprep.mubr.f32.mxu0 0.0
    %5471 = vmatmul.mubr.f32.gmra.mrb[0].mxu0 %v5377
    %v5472 = vpop.f32.mrb[0].mxu0
    %v5473 = vadd.f32 0.0, %v5472
    %v5474 = vpop.f32.mrb[0].mxu0
    %5475 = vmatprep.mubr.f32.mxu0 0.0
    %5476 = vmatmul.mubr.f32.gmra.mrb[0].mxu0 %v5380
    %v5477 = vpop.f32.mrb[0].mxu0
    %v5478 = vadd.f32 0.0, %v5477
    %v5479 = vpop.f32.mrb[0].mxu0
    %5480 = vmatprep.mubr.f32.mxu0 0.0
    %5481 = vmatmul.mubr.f32.gmra.mrb[0].mxu0 %v5383
    %v5482 = vpop.f32.mrb[0].mxu0
    %v5483 = vadd.f32 0.0, %v5482
    %v5484 = vpop.f32.mrb[0].mxu0
    %5485 = vmatprep.mubr.f32.mxu0 0.0
    %5486 = vmatmul.mubr.f32.gmra.mrb[0].mxu0 %v5386
    %v5487 = vpop.f32.mrb[0].mxu0
    %v5488 = vadd.f32 0.0, %v5487
    %v5489 = vpop.f32.mrb[0].mxu0
    %5490 = vmatprep.mubr.f32.mxu0 0.0
    %5491 = vmatmul.mubr.f32.gmra.mrb[0].mxu0 %v5389
    %v5492 = vpop.f32.mrb[0].mxu0
    %v5493 = vadd.f32 0.0, %v5492
    %v5494 = vpop.f32.mrb[0].mxu0
    %5495 = vdwg.mxu0
    %v5496 = vadd.f32 %v5351, %v5458
    %v5497 = vadd.f32 %v5352, %v5463
    %v5498 = vadd.f32 %v5353, %v5468
    %v5499 = vadd.f32 %v5354, %v5473
    %v5500 = vadd.f32 %v5355, %v5478
    %v5501 = vadd.f32 %v5356, %v5483
    %v5502 = vadd.f32 %v5357, %v5488
    %v5503 = vadd.f32 %v5358, %v5493
    %v5504 = vld [vmem:[%s0 + $0xe2] sm:$0xff]
    %v5505 = vld [vmem:[%s0 + $0xea] sm:$0xff]
    %v5506 = vld [vmem:[%s0 + $0xf2] sm:$0xff]
    %v5507 = vld [vmem:[%s0 + $0xfa] sm:$0xff]
    %v5508 = vld [vmem:[%s0 + $0x102] sm:$0xff]
    %v5509 = vld [vmem:[%s0 + $0x10a] sm:$0xff]
    %v5510 = vld [vmem:[%s0 + $0x112] sm:$0xff]
    %v5511 = vld [vmem:[%s0 + $0x11a] sm:$0xff]
    %v5512 = vmul.f32 %v5504, %v166
    %v5513 = vmul.f32 %v5505, %v167
    %v5514 = vmul.f32 %v5506, %v168
    %v5515 = vmul.f32 %v5507, %v169
    %v5516 = vmul.f32 %v5508, %v170
    %v5517 = vmul.f32 %v5509, %v171
    %v5518 = vmul.f32 %v5510, %v172
    %v5519 = vmul.f32 %v5511, %v173
    %v5521 = vsel %vm201, %v5512, 0
    %v5524 = vsel %vm201, %v5513, 0
    %v5527 = vsel %vm201, %v5514, 0
    %v5530 = vsel %vm201, %v5515, 0
    %v5533 = vsel %vm201, %v5516, 0
    %v5536 = vsel %vm201, %v5517, 0
    %v5539 = vsel %vm201, %v5518, 0
    %v5542 = vsel %vm201, %v5519, 0
    %5544 = vmatprep.subr.mxu0 0.0
    %5545 = vmatpush1.msra.mxu0 %v1435
    %5546 = vmatprep.subr.mxu0 0.0
    %5547 = vmatpush1.msra.mxu0 0.0
    %5548 = vmatprep.subr.mxu0 0.0
    %5549 = vmatpush1.msra.mxu0 0.0
    %5550 = vmatprep.subr.mxu0 0.0
    %5551 = vmatpush1.msra.mxu0 0.0
    %5552 = vmatprep.subr.mxu0 0.0
    %5553 = vmatpush1.msra.mxu0 0.0
    %5554 = vmatprep.subr.mxu0 0.0
    %5555 = vmatpush1.msra.mxu0 0.0
    %5556 = vmatprep.subr.mxu0 0.0
    %5557 = vmatpush1.msra.mxu0 0.0
    %5558 = vmatprep.subr.mxu0 0.0
    %5559 = vmatpush1.msra.mxu0 0.0
    %5560 = vmatprep.subr.mxu0 0.0
    %5561 = vmatpush1.msra.mxu0 0.0
    %5562 = vmatprep.subr.mxu0 0.0
    %5563 = vmatpush1.msra.mxu0 0.0
    %5564 = vmatprep.subr.mxu0 0.0
    %5565 = vmatpush1.msra.mxu0 0.0
    %5566 = vmatprep.subr.mxu0 0.0
    %5567 = vmatpush1.msra.mxu0 0.0
    %5568 = vmatprep.subr.mxu0 0.0
    %5569 = vmatpush1.msra.mxu0 0.0
    %5570 = vmatprep.subr.mxu0 0.0
    %5571 = vmatpush1.msra.mxu0 0.0
    %5572 = vmatprep.subr.mxu0 0.0
    %5573 = vmatpush1.msra.mxu0 0.0
    %5574 = vmatprep.subr.mxu0 0.0
    %5575 = vmatpush1.msra.mxu0 0.0
    %5576 = vmatprep.subr.mxu0 0.0
    %5577 = vmatpush1.msra.mxu0 0.0
    %5578 = vmatprep.subr.mxu0 0.0
    %5579 = vmatpush1.msra.mxu0 0.0
    %5580 = vmatprep.subr.mxu0 0.0
    %5581 = vmatpush1.msra.mxu0 0.0
    %5582 = vmatprep.subr.mxu0 0.0
    %5583 = vmatpush1.msra.mxu0 0.0
    %5584 = vmatprep.subr.mxu0 0.0
    %5585 = vmatpush1.msra.mxu0 0.0
    %5586 = vmatprep.subr.mxu0 0.0
    %5587 = vmatpush1.msra.mxu0 0.0
    %5588 = vmatprep.subr.mxu0 0.0
    %5589 = vmatpush1.msra.mxu0 0.0
    %5590 = vmatprep.subr.mxu0 0.0
    %5591 = vmatpush1.msra.mxu0 0.0
    %5592 = vmatprep.subr.mxu0 0.0
    %5593 = vmatpush1.msra.mxu0 0.0
    %5594 = vmatprep.subr.mxu0 0.0
    %5595 = vmatpush1.msra.mxu0 0.0
    %5596 = vmatprep.subr.mxu0 0.0
    %5597 = vmatpush1.msra.mxu0 0.0
    %5598 = vmatprep.subr.mxu0 0.0
    %5599 = vmatpush1.msra.mxu0 0.0
    %5600 = vmatprep.subr.mxu0 0.0
    %5601 = vmatpush1.msra.mxu0 0.0
    %5602 = vmatprep.subr.mxu0 0.0
    %5603 = vmatpush1.msra.mxu0 0.0
    %5604 = vmatprep.subr.mxu0 0.0
    %5605 = vmatpush1.msra.mxu0 0.0
    %5606 = vmatprep.subr.mxu0 0.0
    %5607 = vmatpush1.msra.mxu0 0.0
    %5608 = vmatprep.mubr.f32.mxu0 0.0
    %5609 = vmatmul.mubr.f32.gmra.mrb[0].mxu0 %v5521
    %v5610 = vpop.f32.mrb[0].mxu0
    %v5611 = vadd.f32 0.0, %v5610
    %v5612 = vpop.f32.mrb[0].mxu0
    %5613 = vmatprep.mubr.f32.mxu0 0.0
    %5614 = vmatmul.mubr.f32.gmra.mrb[0].mxu0 %v5524
    %v5615 = vpop.f32.mrb[0].mxu0
    %v5616 = vadd.f32 0.0, %v5615
    %v5617 = vpop.f32.mrb[0].mxu0
    %5618 = vmatprep.mubr.f32.mxu0 0.0
    %5619 = vmatmul.mubr.f32.gmra.mrb[0].mxu0 %v5527
    %v5620 = vpop.f32.mrb[0].mxu0
    %v5621 = vadd.f32 0.0, %v5620
    %v5622 = vpop.f32.mrb[0].mxu0
    %5623 = vmatprep.mubr.f32.mxu0 0.0
    %5624 = vmatmul.mubr.f32.gmra.mrb[0].mxu0 %v5530
    %v5625 = vpop.f32.mrb[0].mxu0
    %v5626 = vadd.f32 0.0, %v5625
    %v5627 = vpop.f32.mrb[0].mxu0
    %5628 = vmatprep.mubr.f32.mxu0 0.0
    %5629 = vmatmul.mubr.f32.gmra.mrb[0].mxu0 %v5533
    %v5630 = vpop.f32.mrb[0].mxu0
    %v5631 = vadd.f32 0.0, %v5630
    %v5632 = vpop.f32.mrb[0].mxu0
    %5633 = vmatprep.mubr.f32.mxu0 0.0
    %5634 = vmatmul.mubr.f32.gmra.mrb[0].mxu0 %v5536
    %v5635 = vpop.f32.mrb[0].mxu0
    %v5636 = vadd.f32 0.0, %v5635
    %v5637 = vpop.f32.mrb[0].mxu0
    %5638 = vmatprep.mubr.f32.mxu0 0.0
    %5639 = vmatmul.mubr.f32.gmra.mrb[0].mxu0 %v5539
    %v5640 = vpop.f32.mrb[0].mxu0
    %v5641 = vadd.f32 0.0, %v5640
    %v5642 = vpop.f32.mrb[0].mxu0
    %5643 = vmatprep.mubr.f32.mxu0 0.0
    %5644 = vmatmul.mubr.f32.gmra.mrb[0].mxu0 %v5542
    %v5645 = vpop.f32.mrb[0].mxu0
    %v5646 = vadd.f32 0.0, %v5645
    %v5647 = vpop.f32.mrb[0].mxu0
    %5648 = vdwg.mxu0
    %v5649 = vadd.f32 %v5496, %v5611
    %v5650 = vadd.f32 %v5497, %v5616
    %v5651 = vadd.f32 %v5498, %v5621
    %v5652 = vadd.f32 %v5499, %v5626
    %v5653 = vadd.f32 %v5500, %v5631
    %v5654 = vadd.f32 %v5501, %v5636
    %v5655 = vadd.f32 %v5502, %v5641
    %v5656 = vadd.f32 %v5503, %v5646
    %v5657 = vadd.f32 %v5649, %v1554
    %v5658 = vadd.f32 %v5650, %v1554
    %v5659 = vadd.f32 %v5651, %v1554
    %v5660 = vadd.f32 %v5652, %v1554
    %v5661 = vadd.f32 %v5653, %v1554
    %v5662 = vadd.f32 %v5654, %v1554
    %v5663 = vadd.f32 %v5655, %v1554
    %v5664 = vadd.f32 %v5656, %v1554
    %v5665 = vmax.f32 %v5657, 0.0
    %v5666 = vmax.f32 %v5658, 0.0
    %v5667 = vmax.f32 %v5659, 0.0
    %v5668 = vmax.f32 %v5660, 0.0
    %v5669 = vmax.f32 %v5661, 0.0
    %v5670 = vmax.f32 %v5662, 0.0
    %v5671 = vmax.f32 %v5663, 0.0
    %v5672 = vmax.f32 %v5664, 0.0
    %v5673 = vadd.f32 %v5665, %v5666
    %v5674 = vadd.f32 %v5673, %v5667
    %v5675 = vadd.f32 %v5674, %v5668
    %v5676 = vadd.f32 %v5675, %v5669
    %v5677 = vadd.f32 %v5676, %v5670
    %v5678 = vadd.f32 %v5677, %v5671
    %v5679 = vadd.f32 %v5678, %v5672
    %v5680 = vrot.slane %v5679, 4
    %v5681 = vadd.f32 %v5679, %v5680
    %v5682 = vrot.slane %v5681, 2
    %v5683 = vadd.f32 %v5681, %v5682
    %v5684 = vrot.slane %v5683, 1
    %v5685 = vadd.f32 %v5683, %v5684
    %v5686 = vadd.f32 %v4319, %v5685
    %v5687 = vmul.f32 %v5686, 0.00390625
    %v5688 = vld [vmem:[%s3] sm:$0xff]
    %v5689 = vld [vmem:[%s3 + $0x8] sm:$0xff]
    %v5690 = vld [vmem:[%s3 + $0x10] sm:$0xff]
    %v5691 = vld [vmem:[%s3 + $0x18] sm:$0xff]
    %v5692 = vld [vmem:[%s3 + $0x20] sm:$0xff]
    %v5693 = vld [vmem:[%s3 + $0x28] sm:$0xff]
    %v5694 = vld [vmem:[%s3 + $0x30] sm:$0xff]
    %v5695 = vld [vmem:[%s3 + $0x38] sm:$0xff]
    %v5696 = vld [vmem:[%s3 + $0x40] sm:$0xff]
    %v5697 = vld [vmem:[%s3 + $0x48] sm:$0xff]
    %v5698 = vld [vmem:[%s3 + $0x50] sm:$0xff]
    %v5699 = vld [vmem:[%s3 + $0x58] sm:$0xff]
    %v5700 = vld [vmem:[%s3 + $0x60] sm:$0xff]
    %v5701 = vld [vmem:[%s3 + $0x68] sm:$0xff]
    %v5702 = vld [vmem:[%s3 + $0x70] sm:$0xff]
    %v5703 = vld [vmem:[%s3 + $0x78] sm:$0xff]
    %v5704 = vld [vmem:[%s4] sm:$0x1]
    %5705 = vmatprep.subr.mxu0 0.0
    %5706 = vmatpush1.msra.mxu0 %v5688
    %5707 = vmatprep.subr.mxu0 0.0
    %5708 = vmatpush1.msra.mxu0 %v5689
    %5709 = vmatprep.subr.mxu0 0.0
    %5710 = vmatpush1.msra.mxu0 %v5690
    %5711 = vmatprep.subr.mxu0 0.0
    %5712 = vmatpush1.msra.mxu0 %v5691
    %5713 = vmatprep.subr.mxu0 0.0
    %5714 = vmatpush1.msra.mxu0 %v5692
    %5715 = vmatprep.subr.mxu0 0.0
    %5716 = vmatpush1.msra.mxu0 %v5693
    %5717 = vmatprep.subr.mxu0 0.0
    %5718 = vmatpush1.msra.mxu0 %v5694
    %5719 = vmatprep.subr.mxu0 0.0
    %5720 = vmatpush1.msra.mxu0 %v5695
    %5721 = vmatprep.subr.mxu0 0.0
    %5722 = vmatpush1.msra.mxu0 %v5696
    %5723 = vmatprep.subr.mxu0 0.0
    %5724 = vmatpush1.msra.mxu0 %v5697
    %5725 = vmatprep.subr.mxu0 0.0
    %5726 = vmatpush1.msra.mxu0 %v5698
    %5727 = vmatprep.subr.mxu0 0.0
    %5728 = vmatpush1.msra.mxu0 %v5699
    %5729 = vmatprep.subr.mxu0 0.0
    %5730 = vmatpush1.msra.mxu0 %v5700
    %5731 = vmatprep.subr.mxu0 0.0
    %5732 = vmatpush1.msra.mxu0 %v5701
    %5733 = vmatprep.subr.mxu0 0.0
    %5734 = vmatpush1.msra.mxu0 %v5702
    %5735 = vmatprep.subr.mxu0 0.0
    %5736 = vmatpush1.msra.mxu0 %v5703
    %5737 = vmatprep.subr.mxu0 0.0
    %5738 = vmatpush1.msra.mxu0 0.0
    %5739 = vmatprep.subr.mxu0 0.0
    %5740 = vmatpush1.msra.mxu0 0.0
    %5741 = vmatprep.subr.mxu0 0.0
    %5742 = vmatpush1.msra.mxu0 0.0
    %5743 = vmatprep.subr.mxu0 0.0
    %5744 = vmatpush1.msra.mxu0 0.0
    %5745 = vmatprep.subr.mxu0 0.0
    %5746 = vmatpush1.msra.mxu0 0.0
    %5747 = vmatprep.subr.mxu0 0.0
    %5748 = vmatpush1.msra.mxu0 0.0
    %5749 = vmatprep.subr.mxu0 0.0
    %5750 = vmatpush1.msra.mxu0 0.0
    %5751 = vmatprep.subr.mxu0 0.0
    %5752 = vmatpush1.msra.mxu0 0.0
    %5753 = vmatprep.subr.mxu0 0.0
    %5754 = vmatpush1.msra.mxu0 0.0
    %5755 = vmatprep.subr.mxu0 0.0
    %5756 = vmatpush1.msra.mxu0 0.0
    %5757 = vmatprep.subr.mxu0 0.0
    %5758 = vmatpush1.msra.mxu0 0.0
    %5759 = vmatprep.subr.mxu0 0.0
    %5760 = vmatpush1.msra.mxu0 0.0
    %5761 = vmatprep.subr.mxu0 0.0
    %5762 = vmatpush1.msra.mxu0 0.0
    %5763 = vmatprep.subr.mxu0 0.0
    %5764 = vmatpush1.msra.mxu0 0.0
    %5765 = vmatprep.subr.mxu0 0.0
    %5766 = vmatpush1.msra.mxu0 0.0
    %5767 = vmatprep.subr.mxu0 0.0
    %5768 = vmatpush1.msra.mxu0 0.0
    %5769 = vmatprep.mubr.f32.mxu0 0.0
    %5770 = vmatmul.mubr.f32.gmra.mrb[0].mxu0 %v5687
    %v5771 = vpop.f32.mrb[0].mxu0
    %v5772 = vadd.f32 %v5704, %v5771
    %v5773 = vpop.f32.mrb[0].mxu0
    %5774 = vdwg.mxu0
    %vm5775 = vcmask 253952
    %5776 = vst.msk [vmem:[#allocation2] sm:$0x1] %vm5775, %v5772
    %s5777 = scalar_lea.vmem %s0, 296
    %v5778 = vld [vmem:[%s5777] sm:$0xff]
    %v5779 = vld [vmem:[%s5777 + $0x8] sm:$0xff]
    %v5780 = vld [vmem:[%s5777 + $0x10] sm:$0xff]
    %v5781 = vld [vmem:[%s5777 + $0x18] sm:$0xff]
    %v5782 = vld [vmem:[%s5777 + $0x20] sm:$0xff]
    %v5783 = vld [vmem:[%s5777 + $0x28] sm:$0xff]
    %v5784 = vld [vmem:[%s5777 + $0x30] sm:$0xff]
    %v5785 = vld [vmem:[%s5777 + $0x38] sm:$0xff]
    %v5786 = vmul.f32 %v5778, %v142
    %v5787 = vmul.f32 %v5779, %v143
    %v5788 = vmul.f32 %v5780, %v144
    %v5789 = vmul.f32 %v5781, %v145
    %v5790 = vmul.f32 %v5782, %v146
    %v5791 = vmul.f32 %v5783, %v147
    %v5792 = vmul.f32 %v5784, %v148
    %v5793 = vmul.f32 %v5785, %v149
    %v5794 = vld [vmem:[%s1] sm:$0xf]
    %v5795 = vld [vmem:[%s5777 + $0x1] sm:$0xff]
    %v5796 = vld [vmem:[%s5777 + $0x9] sm:$0xff]
    %v5797 = vld [vmem:[%s5777 + $0x11] sm:$0xff]
    %v5798 = vld [vmem:[%s5777 + $0x19] sm:$0xff]
    %v5799 = vld [vmem:[%s5777 + $0x21] sm:$0xff]
    %v5800 = vld [vmem:[%s5777 + $0x29] sm:$0xff]
    %v5801 = vld [vmem:[%s5777 + $0x31] sm:$0xff]
    %v5802 = vld [vmem:[%s5777 + $0x39] sm:$0xff]
    %v5803 = vld [vmem:[%s1 + $0x4] sm:$0xf]
    %v5805 = vsel %vm201, %v5795, 0
    %v5808 = vsel %vm201, %v5796, 0
    %v5811 = vsel %vm201, %v5797, 0
    %v5814 = vsel %vm201, %v5798, 0
    %v5817 = vsel %vm201, %v5799, 0
    %v5820 = vsel %vm201, %v5800, 0
    %v5823 = vsel %vm201, %v5801, 0
    %v5826 = vsel %vm201, %v5802, 0
    %v5829 = vsel %vm226, %v5803, 0
    %5831 = vmatprep.subr.mxu0 0.0
    %5832 = vmatpush1.msra.mxu0 %v5829
    %5833 = vmatprep.subr.mxu0 0.0
    %5834 = vmatpush1.msra.mxu0 0.0
    %5835 = vmatprep.subr.mxu0 0.0
    %5836 = vmatpush1.msra.mxu0 0.0
    %5837 = vmatprep.subr.mxu0 0.0
    %5838 = vmatpush1.msra.mxu0 0.0
    %5839 = vmatprep.subr.mxu0 0.0
    %5840 = vmatpush1.msra.mxu0 0.0
    %5841 = vmatprep.subr.mxu0 0.0
    %5842 = vmatpush1.msra.mxu0 0.0
    %5843 = vmatprep.subr.mxu0 0.0
    %5844 = vmatpush1.msra.mxu0 0.0
    %5845 = vmatprep.subr.mxu0 0.0
    %5846 = vmatpush1.msra.mxu0 0.0
    %5847 = vmatprep.subr.mxu0 0.0
    %5848 = vmatpush1.msra.mxu0 0.0
    %5849 = vmatprep.subr.mxu0 0.0
    %5850 = vmatpush1.msra.mxu0 0.0
    %5851 = vmatprep.subr.mxu0 0.0
    %5852 = vmatpush1.msra.mxu0 0.0
    %5853 = vmatprep.subr.mxu0 0.0
    %5854 = vmatpush1.msra.mxu0 0.0
    %5855 = vmatprep.subr.mxu0 0.0
    %5856 = vmatpush1.msra.mxu0 0.0
    %5857 = vmatprep.subr.mxu0 0.0
    %5858 = vmatpush1.msra.mxu0 0.0
    %5859 = vmatprep.subr.mxu0 0.0
    %5860 = vmatpush1.msra.mxu0 0.0
    %5861 = vmatprep.subr.mxu0 0.0
    %5862 = vmatpush1.msra.mxu0 0.0
    %5863 = vmatprep.subr.mxu0 0.0
    %5864 = vmatpush1.msra.mxu0 0.0
    %5865 = vmatprep.subr.mxu0 0.0
    %5866 = vmatpush1.msra.mxu0 0.0
    %5867 = vmatprep.subr.mxu0 0.0
    %5868 = vmatpush1.msra.mxu0 0.0
    %5869 = vmatprep.subr.mxu0 0.0
    %5870 = vmatpush1.msra.mxu0 0.0
    %5871 = vmatprep.subr.mxu0 0.0
    %5872 = vmatpush1.msra.mxu0 0.0
    %5873 = vmatprep.subr.mxu0 0.0
    %5874 = vmatpush1.msra.mxu0 0.0
    %5875 = vmatprep.subr.mxu0 0.0
    %5876 = vmatpush1.msra.mxu0 0.0
    %5877 = vmatprep.subr.mxu0 0.0
    %5878 = vmatpush1.msra.mxu0 0.0
    %5879 = vmatprep.subr.mxu0 0.0
    %5880 = vmatpush1.msra.mxu0 0.0
    %5881 = vmatprep.subr.mxu0 0.0
    %5882 = vmatpush1.msra.mxu0 0.0
    %5883 = vmatprep.subr.mxu0 0.0
    %5884 = vmatpush1.msra.mxu0 0.0
    %5885 = vmatprep.subr.mxu0 0.0
    %5886 = vmatpush1.msra.mxu0 0.0
    %5887 = vmatprep.subr.mxu0 0.0
    %5888 = vmatpush1.msra.mxu0 0.0
    %5889 = vmatprep.subr.mxu0 0.0
    %5890 = vmatpush1.msra.mxu0 0.0
    %5891 = vmatprep.subr.mxu0 0.0
    %5892 = vmatpush1.msra.mxu0 0.0
    %5893 = vmatprep.subr.mxu0 0.0
    %5894 = vmatpush1.msra.mxu0 0.0
    %5895 = vmatprep.mubr.f32.mxu0 0.0
    %5896 = vmatmul.mubr.f32.gmra.mrb[0].mxu0 %v5805
    %v5897 = vpop.f32.mrb[0].mxu0
    %v5898 = vadd.f32 0.0, %v5897
    %v5899 = vpop.f32.mrb[0].mxu0
    %5900 = vmatprep.mubr.f32.mxu0 0.0
    %5901 = vmatmul.mubr.f32.gmra.mrb[0].mxu0 %v5808
    %v5902 = vpop.f32.mrb[0].mxu0
    %v5903 = vadd.f32 0.0, %v5902
    %v5904 = vpop.f32.mrb[0].mxu0
    %5905 = vmatprep.mubr.f32.mxu0 0.0
    %5906 = vmatmul.mubr.f32.gmra.mrb[0].mxu0 %v5811
    %v5907 = vpop.f32.mrb[0].mxu0
    %v5908 = vadd.f32 0.0, %v5907
    %v5909 = vpop.f32.mrb[0].mxu0
    %5910 = vmatprep.mubr.f32.mxu0 0.0
    %5911 = vmatmul.mubr.f32.gmra.mrb[0].mxu0 %v5814
    %v5912 = vpop.f32.mrb[0].mxu0
    %v5913 = vadd.f32 0.0, %v5912
    %v5914 = vpop.f32.mrb[0].mxu0
    %5915 = vmatprep.mubr.f32.mxu0 0.0
    %5916 = vmatmul.mubr.f32.gmra.mrb[0].mxu0 %v5817
    %v5917 = vpop.f32.mrb[0].mxu0
    %v5918 = vadd.f32 0.0, %v5917
    %v5919 = vpop.f32.mrb[0].mxu0
    %5920 = vmatprep.mubr.f32.mxu0 0.0
    %5921 = vmatmul.mubr.f32.gmra.mrb[0].mxu0 %v5820
    %v5922 = vpop.f32.mrb[0].mxu0
    %v5923 = vadd.f32 0.0, %v5922
    %v5924 = vpop.f32.mrb[0].mxu0
    %5925 = vmatprep.mubr.f32.mxu0 0.0
    %5926 = vmatmul.mubr.f32.gmra.mrb[0].mxu0 %v5823
    %v5927 = vpop.f32.mrb[0].mxu0
    %v5928 = vadd.f32 0.0, %v5927
    %v5929 = vpop.f32.mrb[0].mxu0
    %5930 = vmatprep.mubr.f32.mxu0 0.0
    %5931 = vmatmul.mubr.f32.gmra.mrb[0].mxu0 %v5826
    %v5932 = vpop.f32.mrb[0].mxu0
    %v5933 = vadd.f32 0.0, %v5932
    %v5934 = vpop.f32.mrb[0].mxu0
    %5935 = vdwg.mxu0
    %v5937 = vsel %vm201, %v5786, 0
    %v5940 = vsel %vm201, %v5787, 0
    %v5943 = vsel %vm201, %v5788, 0
    %v5946 = vsel %vm201, %v5789, 0
    %v5949 = vsel %vm201, %v5790, 0
    %v5952 = vsel %vm201, %v5791, 0
    %v5955 = vsel %vm201, %v5792, 0
    %v5958 = vsel %vm201, %v5793, 0
    %v5961 = vsel %vm226, %v5794, 0
    %5963 = vmatprep.subr.mxu0 0.0
    %5964 = vmatpush1.msra.mxu0 %v5961
    %5965 = vmatprep.subr.mxu0 0.0
    %5966 = vmatpush1.msra.mxu0 0.0
    %5967 = vmatprep.subr.mxu0 0.0
    %5968 = vmatpush1.msra.mxu0 0.0
    %5969 = vmatprep.subr.mxu0 0.0
    %5970 = vmatpush1.msra.mxu0 0.0
    %5971 = vmatprep.subr.mxu0 0.0
    %5972 = vmatpush1.msra.mxu0 0.0
    %5973 = vmatprep.subr.mxu0 0.0
    %5974 = vmatpush1.msra.mxu0 0.0
    %5975 = vmatprep.subr.mxu0 0.0
    %5976 = vmatpush1.msra.mxu0 0.0
    %5977 = vmatprep.subr.mxu0 0.0
    %5978 = vmatpush1.msra.mxu0 0.0
    %5979 = vmatprep.subr.mxu0 0.0
    %5980 = vmatpush1.msra.mxu0 0.0
    %5981 = vmatprep.subr.mxu0 0.0
    %5982 = vmatpush1.msra.mxu0 0.0
    %5983 = vmatprep.subr.mxu0 0.0
    %5984 = vmatpush1.msra.mxu0 0.0
    %5985 = vmatprep.subr.mxu0 0.0
    %5986 = vmatpush1.msra.mxu0 0.0
    %5987 = vmatprep.subr.mxu0 0.0
    %5988 = vmatpush1.msra.mxu0 0.0
    %5989 = vmatprep.subr.mxu0 0.0
    %5990 = vmatpush1.msra.mxu0 0.0
    %5991 = vmatprep.subr.mxu0 0.0
    %5992 = vmatpush1.msra.mxu0 0.0
    %5993 = vmatprep.subr.mxu0 0.0
    %5994 = vmatpush1.msra.mxu0 0.0
    %5995 = vmatprep.subr.mxu0 0.0
    %5996 = vmatpush1.msra.mxu0 0.0
    %5997 = vmatprep.subr.mxu0 0.0
    %5998 = vmatpush1.msra.mxu0 0.0
    %5999 = vmatprep.subr.mxu0 0.0
    %6000 = vmatpush1.msra.mxu0 0.0
    %6001 = vmatprep.subr.mxu0 0.0
    %6002 = vmatpush1.msra.mxu0 0.0
    %6003 = vmatprep.subr.mxu0 0.0
    %6004 = vmatpush1.msra.mxu0 0.0
    %6005 = vmatprep.subr.mxu0 0.0
    %6006 = vmatpush1.msra.mxu0 0.0
    %6007 = vmatprep.subr.mxu0 0.0
    %6008 = vmatpush1.msra.mxu0 0.0
    %6009 = vmatprep.subr.mxu0 0.0
    %6010 = vmatpush1.msra.mxu0 0.0
    %6011 = vmatprep.subr.mxu0 0.0
    %6012 = vmatpush1.msra.mxu0 0.0
    %6013 = vmatprep.subr.mxu0 0.0
    %6014 = vmatpush1.msra.mxu0 0.0
    %6015 = vmatprep.subr.mxu0 0.0
    %6016 = vmatpush1.msra.mxu0 0.0
    %6017 = vmatprep.subr.mxu0 0.0
    %6018 = vmatpush1.msra.mxu0 0.0
    %6019 = vmatprep.subr.mxu0 0.0
    %6020 = vmatpush1.msra.mxu0 0.0
    %6021 = vmatprep.subr.mxu0 0.0
    %6022 = vmatpush1.msra.mxu0 0.0
    %6023 = vmatprep.subr.mxu0 0.0
    %6024 = vmatpush1.msra.mxu0 0.0
    %6025 = vmatprep.subr.mxu0 0.0
    %6026 = vmatpush1.msra.mxu0 0.0
    %6027 = vmatprep.mubr.f32.mxu0 0.0
    %6028 = vmatmul.mubr.f32.gmra.mrb[0].mxu0 %v5937
    %v6029 = vpop.f32.mrb[0].mxu0
    %v6030 = vadd.f32 %v5898, %v6029
    %v6031 = vpop.f32.mrb[0].mxu0
    %6032 = vmatprep.mubr.f32.mxu0 0.0
    %6033 = vmatmul.mubr.f32.gmra.mrb[0].mxu0 %v5940
    %v6034 = vpop.f32.mrb[0].mxu0
    %v6035 = vadd.f32 %v5903, %v6034
    %v6036 = vpop.f32.mrb[0].mxu0
    %6037 = vmatprep.mubr.f32.mxu0 0.0
    %6038 = vmatmul.mubr.f32.gmra.mrb[0].mxu0 %v5943
    %v6039 = vpop.f32.mrb[0].mxu0
    %v6040 = vadd.f32 %v5908, %v6039
    %v6041 = vpop.f32.mrb[0].mxu0
    %6042 = vmatprep.mubr.f32.mxu0 0.0
    %6043 = vmatmul.mubr.f32.gmra.mrb[0].mxu0 %v5946
    %v6044 = vpop.f32.mrb[0].mxu0
    %v6045 = vadd.f32 %v5913, %v6044
    %v6046 = vpop.f32.mrb[0].mxu0
    %6047 = vmatprep.mubr.f32.mxu0 0.0
    %6048 = vmatmul.mubr.f32.gmra.mrb[0].mxu0 %v5949
    %v6049 = vpop.f32.mrb[0].mxu0
    %v6050 = vadd.f32 %v5918, %v6049
    %v6051 = vpop.f32.mrb[0].mxu0
    %6052 = vmatprep.mubr.f32.mxu0 0.0
    %6053 = vmatmul.mubr.f32.gmra.mrb[0].mxu0 %v5952
    %v6054 = vpop.f32.mrb[0].mxu0
    %v6055 = vadd.f32 %v5923, %v6054
    %v6056 = vpop.f32.mrb[0].mxu0
    %6057 = vmatprep.mubr.f32.mxu0 0.0
    %6058 = vmatmul.mubr.f32.gmra.mrb[0].mxu0 %v5955
    %v6059 = vpop.f32.mrb[0].mxu0
    %v6060 = vadd.f32 %v5928, %v6059
    %v6061 = vpop.f32.mrb[0].mxu0
    %6062 = vmatprep.mubr.f32.mxu0 0.0
    %6063 = vmatmul.mubr.f32.gmra.mrb[0].mxu0 %v5958
    %v6064 = vpop.f32.mrb[0].mxu0
    %v6065 = vadd.f32 %v5933, %v6064
    %v6066 = vpop.f32.mrb[0].mxu0
    %6067 = vdwg.mxu0
    %v6068 = vld [vmem:[%s5777 + $0x2] sm:$0xff]
    %v6069 = vld [vmem:[%s5777 + $0xa] sm:$0xff]
    %v6070 = vld [vmem:[%s5777 + $0x12] sm:$0xff]
    %v6071 = vld [vmem:[%s5777 + $0x1a] sm:$0xff]
    %v6072 = vld [vmem:[%s5777 + $0x22] sm:$0xff]
    %v6073 = vld [vmem:[%s5777 + $0x2a] sm:$0xff]
    %v6074 = vld [vmem:[%s5777 + $0x32] sm:$0xff]
    %v6075 = vld [vmem:[%s5777 + $0x3a] sm:$0xff]
    %v6076 = vmul.f32 %v6068, %v166
    %v6077 = vmul.f32 %v6069, %v167
    %v6078 = vmul.f32 %v6070, %v168
    %v6079 = vmul.f32 %v6071, %v169
    %v6080 = vmul.f32 %v6072, %v170
    %v6081 = vmul.f32 %v6073, %v171
    %v6082 = vmul.f32 %v6074, %v172
    %v6083 = vmul.f32 %v6075, %v173
    %v6084 = vld [vmem:[%s1 + $0x8] sm:$0xf]
    %v6086 = vsel %vm201, %v6076, 0
    %v6089 = vsel %vm201, %v6077, 0
    %v6092 = vsel %vm201, %v6078, 0
    %v6095 = vsel %vm201, %v6079, 0
    %v6098 = vsel %vm201, %v6080, 0
    %v6101 = vsel %vm201, %v6081, 0
    %v6104 = vsel %vm201, %v6082, 0
    %v6107 = vsel %vm201, %v6083, 0
    %v6110 = vsel %vm226, %v6084, 0
    %6112 = vmatprep.subr.mxu0 0.0
    %6113 = vmatpush1.msra.mxu0 %v6110
    %6114 = vmatprep.subr.mxu0 0.0
    %6115 = vmatpush1.msra.mxu0 0.0
    %6116 = vmatprep.subr.mxu0 0.0
    %6117 = vmatpush1.msra.mxu0 0.0
    %6118 = vmatprep.subr.mxu0 0.0
    %6119 = vmatpush1.msra.mxu0 0.0
    %6120 = vmatprep.subr.mxu0 0.0
    %6121 = vmatpush1.msra.mxu0 0.0
    %6122 = vmatprep.subr.mxu0 0.0
    %6123 = vmatpush1.msra.mxu0 0.0
    %6124 = vmatprep.subr.mxu0 0.0
    %6125 = vmatpush1.msra.mxu0 0.0
    %6126 = vmatprep.subr.mxu0 0.0
    %6127 = vmatpush1.msra.mxu0 0.0
    %6128 = vmatprep.subr.mxu0 0.0
    %6129 = vmatpush1.msra.mxu0 0.0
    %6130 = vmatprep.subr.mxu0 0.0
    %6131 = vmatpush1.msra.mxu0 0.0
    %6132 = vmatprep.subr.mxu0 0.0
    %6133 = vmatpush1.msra.mxu0 0.0
    %6134 = vmatprep.subr.mxu0 0.0
    %6135 = vmatpush1.msra.mxu0 0.0
    %6136 = vmatprep.subr.mxu0 0.0
    %6137 = vmatpush1.msra.mxu0 0.0
    %6138 = vmatprep.subr.mxu0 0.0
    %6139 = vmatpush1.msra.mxu0 0.0
    %6140 = vmatprep.subr.mxu0 0.0
    %6141 = vmatpush1.msra.mxu0 0.0
    %6142 = vmatprep.subr.mxu0 0.0
    %6143 = vmatpush1.msra.mxu0 0.0
    %6144 = vmatprep.subr.mxu0 0.0
    %6145 = vmatpush1.msra.mxu0 0.0
    %6146 = vmatprep.subr.mxu0 0.0
    %6147 = vmatpush1.msra.mxu0 0.0
    %6148 = vmatprep.subr.mxu0 0.0
    %6149 = vmatpush1.msra.mxu0 0.0
    %6150 = vmatprep.subr.mxu0 0.0
    %6151 = vmatpush1.msra.mxu0 0.0
    %6152 = vmatprep.subr.mxu0 0.0
    %6153 = vmatpush1.msra.mxu0 0.0
    %6154 = vmatprep.subr.mxu0 0.0
    %6155 = vmatpush1.msra.mxu0 0.0
    %6156 = vmatprep.subr.mxu0 0.0
    %6157 = vmatpush1.msra.mxu0 0.0
    %6158 = vmatprep.subr.mxu0 0.0
    %6159 = vmatpush1.msra.mxu0 0.0
    %6160 = vmatprep.subr.mxu0 0.0
    %6161 = vmatpush1.msra.mxu0 0.0
    %6162 = vmatprep.subr.mxu0 0.0
    %6163 = vmatpush1.msra.mxu0 0.0
    %6164 = vmatprep.subr.mxu0 0.0
    %6165 = vmatpush1.msra.mxu0 0.0
    %6166 = vmatprep.subr.mxu0 0.0
    %6167 = vmatpush1.msra.mxu0 0.0
    %6168 = vmatprep.subr.mxu0 0.0
    %6169 = vmatpush1.msra.mxu0 0.0
    %6170 = vmatprep.subr.mxu0 0.0
    %6171 = vmatpush1.msra.mxu0 0.0
    %6172 = vmatprep.subr.mxu0 0.0
    %6173 = vmatpush1.msra.mxu0 0.0
    %6174 = vmatprep.subr.mxu0 0.0
    %6175 = vmatpush1.msra.mxu0 0.0
    %6176 = vmatprep.mubr.f32.mxu0 0.0
    %6177 = vmatmul.mubr.f32.gmra.mrb[0].mxu0 %v6086
    %v6178 = vpop.f32.mrb[0].mxu0
    %v6179 = vadd.f32 0.0, %v6178
    %v6180 = vpop.f32.mrb[0].mxu0
    %6181 = vmatprep.mubr.f32.mxu0 0.0
    %6182 = vmatmul.mubr.f32.gmra.mrb[0].mxu0 %v6089
    %v6183 = vpop.f32.mrb[0].mxu0
    %v6184 = vadd.f32 0.0, %v6183
    %v6185 = vpop.f32.mrb[0].mxu0
    %6186 = vmatprep.mubr.f32.mxu0 0.0
    %6187 = vmatmul.mubr.f32.gmra.mrb[0].mxu0 %v6092
    %v6188 = vpop.f32.mrb[0].mxu0
    %v6189 = vadd.f32 0.0, %v6188
    %v6190 = vpop.f32.mrb[0].mxu0
    %6191 = vmatprep.mubr.f32.mxu0 0.0
    %6192 = vmatmul.mubr.f32.gmra.mrb[0].mxu0 %v6095
    %v6193 = vpop.f32.mrb[0].mxu0
    %v6194 = vadd.f32 0.0, %v6193
    %v6195 = vpop.f32.mrb[0].mxu0
    %6196 = vmatprep.mubr.f32.mxu0 0.0
    %6197 = vmatmul.mubr.f32.gmra.mrb[0].mxu0 %v6098
    %v6198 = vpop.f32.mrb[0].mxu0
    %v6199 = vadd.f32 0.0, %v6198
    %v6200 = vpop.f32.mrb[0].mxu0
    %6201 = vmatprep.mubr.f32.mxu0 0.0
    %6202 = vmatmul.mubr.f32.gmra.mrb[0].mxu0 %v6101
    %v6203 = vpop.f32.mrb[0].mxu0
    %v6204 = vadd.f32 0.0, %v6203
    %v6205 = vpop.f32.mrb[0].mxu0
    %6206 = vmatprep.mubr.f32.mxu0 0.0
    %6207 = vmatmul.mubr.f32.gmra.mrb[0].mxu0 %v6104
    %v6208 = vpop.f32.mrb[0].mxu0
    %v6209 = vadd.f32 0.0, %v6208
    %v6210 = vpop.f32.mrb[0].mxu0
    %6211 = vmatprep.mubr.f32.mxu0 0.0
    %6212 = vmatmul.mubr.f32.gmra.mrb[0].mxu0 %v6107
    %v6213 = vpop.f32.mrb[0].mxu0
    %v6214 = vadd.f32 0.0, %v6213
    %v6215 = vpop.f32.mrb[0].mxu0
    %6216 = vdwg.mxu0
    %v6217 = vadd.f32 %v6030, %v6179
    %v6218 = vadd.f32 %v6035, %v6184
    %v6219 = vadd.f32 %v6040, %v6189
    %v6220 = vadd.f32 %v6045, %v6194
    %v6221 = vadd.f32 %v6050, %v6199
    %v6222 = vadd.f32 %v6055, %v6204
    %v6223 = vadd.f32 %v6060, %v6209
    %v6224 = vadd.f32 %v6065, %v6214
    %v6225 = vld [vmem:[%s5777 + $0x10] sm:$0xff]
    %v6226 = vld [vmem:[%s5777 + $0x18] sm:$0xff]
    %v6227 = vld [vmem:[%s5777 + $0x20] sm:$0xff]
    %v6228 = vld [vmem:[%s5777 + $0x28] sm:$0xff]
    %v6229 = vld [vmem:[%s5777 + $0x30] sm:$0xff]
    %v6230 = vld [vmem:[%s5777 + $0x38] sm:$0xff]
    %v6231 = vld [vmem:[%s5777 + $0x40] sm:$0xff]
    %v6232 = vld [vmem:[%s5777 + $0x48] sm:$0xff]
    %v6233 = vmul.f32 %v6225, %v142
    %v6234 = vmul.f32 %v6226, %v143
    %v6235 = vmul.f32 %v6227, %v144
    %v6236 = vmul.f32 %v6228, %v145
    %v6237 = vmul.f32 %v6229, %v146
    %v6238 = vmul.f32 %v6230, %v147
    %v6239 = vmul.f32 %v6231, %v148
    %v6240 = vmul.f32 %v6232, %v149
    %v6241 = vld [vmem:[%s1 + $0xc] sm:$0xf]
    %v6243 = vsel %vm201, %v6233, 0
    %v6246 = vsel %vm201, %v6234, 0
    %v6249 = vsel %vm201, %v6235, 0
    %v6252 = vsel %vm201, %v6236, 0
    %v6255 = vsel %vm201, %v6237, 0
    %v6258 = vsel %vm201, %v6238, 0
    %v6261 = vsel %vm201, %v6239, 0
    %v6264 = vsel %vm201, %v6240, 0
    %v6267 = vsel %vm226, %v6241, 0
    %6269 = vmatprep.subr.mxu0 0.0
    %6270 = vmatpush1.msra.mxu0 %v6267
    %6271 = vmatprep.subr.mxu0 0.0
    %6272 = vmatpush1.msra.mxu0 0.0
    %6273 = vmatprep.subr.mxu0 0.0
    %6274 = vmatpush1.msra.mxu0 0.0
    %6275 = vmatprep.subr.mxu0 0.0
    %6276 = vmatpush1.msra.mxu0 0.0
    %6277 = vmatprep.subr.mxu0 0.0
    %6278 = vmatpush1.msra.mxu0 0.0
    %6279 = vmatprep.subr.mxu0 0.0
    %6280 = vmatpush1.msra.mxu0 0.0
    %6281 = vmatprep.subr.mxu0 0.0
    %6282 = vmatpush1.msra.mxu0 0.0
    %6283 = vmatprep.subr.mxu0 0.0
    %6284 = vmatpush1.msra.mxu0 0.0
    %6285 = vmatprep.subr.mxu0 0.0
    %6286 = vmatpush1.msra.mxu0 0.0
    %6287 = vmatprep.subr.mxu0 0.0
    %6288 = vmatpush1.msra.mxu0 0.0
    %6289 = vmatprep.subr.mxu0 0.0
    %6290 = vmatpush1.msra.mxu0 0.0
    %6291 = vmatprep.subr.mxu0 0.0
    %6292 = vmatpush1.msra.mxu0 0.0
    %6293 = vmatprep.subr.mxu0 0.0
    %6294 = vmatpush1.msra.mxu0 0.0
    %6295 = vmatprep.subr.mxu0 0.0
    %6296 = vmatpush1.msra.mxu0 0.0
    %6297 = vmatprep.subr.mxu0 0.0
    %6298 = vmatpush1.msra.mxu0 0.0
    %6299 = vmatprep.subr.mxu0 0.0
    %6300 = vmatpush1.msra.mxu0 0.0
    %6301 = vmatprep.subr.mxu0 0.0
    %6302 = vmatpush1.msra.mxu0 0.0
    %6303 = vmatprep.subr.mxu0 0.0
    %6304 = vmatpush1.msra.mxu0 0.0
    %6305 = vmatprep.subr.mxu0 0.0
    %6306 = vmatpush1.msra.mxu0 0.0
    %6307 = vmatprep.subr.mxu0 0.0
    %6308 = vmatpush1.msra.mxu0 0.0
    %6309 = vmatprep.subr.mxu0 0.0
    %6310 = vmatpush1.msra.mxu0 0.0
    %6311 = vmatprep.subr.mxu0 0.0
    %6312 = vmatpush1.msra.mxu0 0.0
    %6313 = vmatprep.subr.mxu0 0.0
    %6314 = vmatpush1.msra.mxu0 0.0
    %6315 = vmatprep.subr.mxu0 0.0
    %6316 = vmatpush1.msra.mxu0 0.0
    %6317 = vmatprep.subr.mxu0 0.0
    %6318 = vmatpush1.msra.mxu0 0.0
    %6319 = vmatprep.subr.mxu0 0.0
    %6320 = vmatpush1.msra.mxu0 0.0
    %6321 = vmatprep.subr.mxu0 0.0
    %6322 = vmatpush1.msra.mxu0 0.0
    %6323 = vmatprep.subr.mxu0 0.0
    %6324 = vmatpush1.msra.mxu0 0.0
    %6325 = vmatprep.subr.mxu0 0.0
    %6326 = vmatpush1.msra.mxu0 0.0
    %6327 = vmatprep.subr.mxu0 0.0
    %6328 = vmatpush1.msra.mxu0 0.0
    %6329 = vmatprep.subr.mxu0 0.0
    %6330 = vmatpush1.msra.mxu0 0.0
    %6331 = vmatprep.subr.mxu0 0.0
    %6332 = vmatpush1.msra.mxu0 0.0
    %6333 = vmatprep.mubr.f32.mxu0 0.0
    %6334 = vmatmul.mubr.f32.gmra.mrb[0].mxu0 %v6243
    %v6335 = vpop.f32.mrb[0].mxu0
    %v6336 = vadd.f32 0.0, %v6335
    %v6337 = vpop.f32.mrb[0].mxu0
    %6338 = vmatprep.mubr.f32.mxu0 0.0
    %6339 = vmatmul.mubr.f32.gmra.mrb[0].mxu0 %v6246
    %v6340 = vpop.f32.mrb[0].mxu0
    %v6341 = vadd.f32 0.0, %v6340
    %v6342 = vpop.f32.mrb[0].mxu0
    %6343 = vmatprep.mubr.f32.mxu0 0.0
    %6344 = vmatmul.mubr.f32.gmra.mrb[0].mxu0 %v6249
    %v6345 = vpop.f32.mrb[0].mxu0
    %v6346 = vadd.f32 0.0, %v6345
    %v6347 = vpop.f32.mrb[0].mxu0
    %6348 = vmatprep.mubr.f32.mxu0 0.0
    %6349 = vmatmul.mubr.f32.gmra.mrb[0].mxu0 %v6252
    %v6350 = vpop.f32.mrb[0].mxu0
    %v6351 = vadd.f32 0.0, %v6350
    %v6352 = vpop.f32.mrb[0].mxu0
    %6353 = vmatprep.mubr.f32.mxu0 0.0
    %6354 = vmatmul.mubr.f32.gmra.mrb[0].mxu0 %v6255
    %v6355 = vpop.f32.mrb[0].mxu0
    %v6356 = vadd.f32 0.0, %v6355
    %v6357 = vpop.f32.mrb[0].mxu0
    %6358 = vmatprep.mubr.f32.mxu0 0.0
    %6359 = vmatmul.mubr.f32.gmra.mrb[0].mxu0 %v6258
    %v6360 = vpop.f32.mrb[0].mxu0
    %v6361 = vadd.f32 0.0, %v6360
    %v6362 = vpop.f32.mrb[0].mxu0
    %6363 = vmatprep.mubr.f32.mxu0 0.0
    %6364 = vmatmul.mubr.f32.gmra.mrb[0].mxu0 %v6261
    %v6365 = vpop.f32.mrb[0].mxu0
    %v6366 = vadd.f32 0.0, %v6365
    %v6367 = vpop.f32.mrb[0].mxu0
    %6368 = vmatprep.mubr.f32.mxu0 0.0
    %6369 = vmatmul.mubr.f32.gmra.mrb[0].mxu0 %v6264
    %v6370 = vpop.f32.mrb[0].mxu0
    %v6371 = vadd.f32 0.0, %v6370
    %v6372 = vpop.f32.mrb[0].mxu0
    %6373 = vdwg.mxu0
    %v6374 = vadd.f32 %v6217, %v6336
    %v6375 = vadd.f32 %v6218, %v6341
    %v6376 = vadd.f32 %v6219, %v6346
    %v6377 = vadd.f32 %v6220, %v6351
    %v6378 = vadd.f32 %v6221, %v6356
    %v6379 = vadd.f32 %v6222, %v6361
    %v6380 = vadd.f32 %v6223, %v6366
    %v6381 = vadd.f32 %v6224, %v6371
    %v6382 = vld [vmem:[%s5777 + $0x11] sm:$0xff]
    %v6383 = vld [vmem:[%s5777 + $0x19] sm:$0xff]
    %v6384 = vld [vmem:[%s5777 + $0x21] sm:$0xff]
    %v6385 = vld [vmem:[%s5777 + $0x29] sm:$0xff]
    %v6386 = vld [vmem:[%s5777 + $0x31] sm:$0xff]
    %v6387 = vld [vmem:[%s5777 + $0x39] sm:$0xff]
    %v6388 = vld [vmem:[%s5777 + $0x41] sm:$0xff]
    %v6389 = vld [vmem:[%s5777 + $0x49] sm:$0xff]
    %v6390 = vld [vmem:[%s1 + $0x10] sm:$0xf]
    %v6392 = vsel %vm201, %v6382, 0
    %v6395 = vsel %vm201, %v6383, 0
    %v6398 = vsel %vm201, %v6384, 0
    %v6401 = vsel %vm201, %v6385, 0
    %v6404 = vsel %vm201, %v6386, 0
    %v6407 = vsel %vm201, %v6387, 0
    %v6410 = vsel %vm201, %v6388, 0
    %v6413 = vsel %vm201, %v6389, 0
    %v6416 = vsel %vm226, %v6390, 0
    %6418 = vmatprep.subr.mxu0 0.0
    %6419 = vmatpush1.msra.mxu0 %v6416
    %6420 = vmatprep.subr.mxu0 0.0
    %6421 = vmatpush1.msra.mxu0 0.0
    %6422 = vmatprep.subr.mxu0 0.0
    %6423 = vmatpush1.msra.mxu0 0.0
    %6424 = vmatprep.subr.mxu0 0.0
    %6425 = vmatpush1.msra.mxu0 0.0
    %6426 = vmatprep.subr.mxu0 0.0
    %6427 = vmatpush1.msra.mxu0 0.0
    %6428 = vmatprep.subr.mxu0 0.0
    %6429 = vmatpush1.msra.mxu0 0.0
    %6430 = vmatprep.subr.mxu0 0.0
    %6431 = vmatpush1.msra.mxu0 0.0
    %6432 = vmatprep.subr.mxu0 0.0
    %6433 = vmatpush1.msra.mxu0 0.0
    %6434 = vmatprep.subr.mxu0 0.0
    %6435 = vmatpush1.msra.mxu0 0.0
    %6436 = vmatprep.subr.mxu0 0.0
    %6437 = vmatpush1.msra.mxu0 0.0
    %6438 = vmatprep.subr.mxu0 0.0
    %6439 = vmatpush1.msra.mxu0 0.0
    %6440 = vmatprep.subr.mxu0 0.0
    %6441 = vmatpush1.msra.mxu0 0.0
    %6442 = vmatprep.subr.mxu0 0.0
    %6443 = vmatpush1.msra.mxu0 0.0
    %6444 = vmatprep.subr.mxu0 0.0
    %6445 = vmatpush1.msra.mxu0 0.0
    %6446 = vmatprep.subr.mxu0 0.0
    %6447 = vmatpush1.msra.mxu0 0.0
    %6448 = vmatprep.subr.mxu0 0.0
    %6449 = vmatpush1.msra.mxu0 0.0
    %6450 = vmatprep.subr.mxu0 0.0
    %6451 = vmatpush1.msra.mxu0 0.0
    %6452 = vmatprep.subr.mxu0 0.0
    %6453 = vmatpush1.msra.mxu0 0.0
    %6454 = vmatprep.subr.mxu0 0.0
    %6455 = vmatpush1.msra.mxu0 0.0
    %6456 = vmatprep.subr.mxu0 0.0
    %6457 = vmatpush1.msra.mxu0 0.0
    %6458 = vmatprep.subr.mxu0 0.0
    %6459 = vmatpush1.msra.mxu0 0.0
    %6460 = vmatprep.subr.mxu0 0.0
    %6461 = vmatpush1.msra.mxu0 0.0
    %6462 = vmatprep.subr.mxu0 0.0
    %6463 = vmatpush1.msra.mxu0 0.0
    %6464 = vmatprep.subr.mxu0 0.0
    %6465 = vmatpush1.msra.mxu0 0.0
    %6466 = vmatprep.subr.mxu0 0.0
    %6467 = vmatpush1.msra.mxu0 0.0
    %6468 = vmatprep.subr.mxu0 0.0
    %6469 = vmatpush1.msra.mxu0 0.0
    %6470 = vmatprep.subr.mxu0 0.0
    %6471 = vmatpush1.msra.mxu0 0.0
    %6472 = vmatprep.subr.mxu0 0.0
    %6473 = vmatpush1.msra.mxu0 0.0
    %6474 = vmatprep.subr.mxu0 0.0
    %6475 = vmatpush1.msra.mxu0 0.0
    %6476 = vmatprep.subr.mxu0 0.0
    %6477 = vmatpush1.msra.mxu0 0.0
    %6478 = vmatprep.subr.mxu0 0.0
    %6479 = vmatpush1.msra.mxu0 0.0
    %6480 = vmatprep.subr.mxu0 0.0
    %6481 = vmatpush1.msra.mxu0 0.0
    %6482 = vmatprep.mubr.f32.mxu0 0.0
    %6483 = vmatmul.mubr.f32.gmra.mrb[0].mxu0 %v6392
    %v6484 = vpop.f32.mrb[0].mxu0
    %v6485 = vadd.f32 0.0, %v6484
    %v6486 = vpop.f32.mrb[0].mxu0
    %6487 = vmatprep.mubr.f32.mxu0 0.0
    %6488 = vmatmul.mubr.f32.gmra.mrb[0].mxu0 %v6395
    %v6489 = vpop.f32.mrb[0].mxu0
    %v6490 = vadd.f32 0.0, %v6489
    %v6491 = vpop.f32.mrb[0].mxu0
    %6492 = vmatprep.mubr.f32.mxu0 0.0
    %6493 = vmatmul.mubr.f32.gmra.mrb[0].mxu0 %v6398
    %v6494 = vpop.f32.mrb[0].mxu0
    %v6495 = vadd.f32 0.0, %v6494
    %v6496 = vpop.f32.mrb[0].mxu0
    %6497 = vmatprep.mubr.f32.mxu0 0.0
    %6498 = vmatmul.mubr.f32.gmra.mrb[0].mxu0 %v6401
    %v6499 = vpop.f32.mrb[0].mxu0
    %v6500 = vadd.f32 0.0, %v6499
    %v6501 = vpop.f32.mrb[0].mxu0
    %6502 = vmatprep.mubr.f32.mxu0 0.0
    %6503 = vmatmul.mubr.f32.gmra.mrb[0].mxu0 %v6404
    %v6504 = vpop.f32.mrb[0].mxu0
    %v6505 = vadd.f32 0.0, %v6504
    %v6506 = vpop.f32.mrb[0].mxu0
    %6507 = vmatprep.mubr.f32.mxu0 0.0
    %6508 = vmatmul.mubr.f32.gmra.mrb[0].mxu0 %v6407
    %v6509 = vpop.f32.mrb[0].mxu0
    %v6510 = vadd.f32 0.0, %v6509
    %v6511 = vpop.f32.mrb[0].mxu0
    %6512 = vmatprep.mubr.f32.mxu0 0.0
    %6513 = vmatmul.mubr.f32.gmra.mrb[0].mxu0 %v6410
    %v6514 = vpop.f32.mrb[0].mxu0
    %v6515 = vadd.f32 0.0, %v6514
    %v6516 = vpop.f32.mrb[0].mxu0
    %6517 = vmatprep.mubr.f32.mxu0 0.0
    %6518 = vmatmul.mubr.f32.gmra.mrb[0].mxu0 %v6413
    %v6519 = vpop.f32.mrb[0].mxu0
    %v6520 = vadd.f32 0.0, %v6519
    %v6521 = vpop.f32.mrb[0].mxu0
    %6522 = vdwg.mxu0
    %v6523 = vadd.f32 %v6374, %v6485
    %v6524 = vadd.f32 %v6375, %v6490
    %v6525 = vadd.f32 %v6376, %v6495
    %v6526 = vadd.f32 %v6377, %v6500
    %v6527 = vadd.f32 %v6378, %v6505
    %v6528 = vadd.f32 %v6379, %v6510
    %v6529 = vadd.f32 %v6380, %v6515
    %v6530 = vadd.f32 %v6381, %v6520
    %v6531 = vld [vmem:[%s5777 + $0x12] sm:$0xff]
    %v6532 = vld [vmem:[%s5777 + $0x1a] sm:$0xff]
    %v6533 = vld [vmem:[%s5777 + $0x22] sm:$0xff]
    %v6534 = vld [vmem:[%s5777 + $0x2a] sm:$0xff]
    %v6535 = vld [vmem:[%s5777 + $0x32] sm:$0xff]
    %v6536 = vld [vmem:[%s5777 + $0x3a] sm:$0xff]
    %v6537 = vld [vmem:[%s5777 + $0x42] sm:$0xff]
    %v6538 = vld [vmem:[%s5777 + $0x4a] sm:$0xff]
    %v6539 = vmul.f32 %v6531, %v166
    %v6540 = vmul.f32 %v6532, %v167
    %v6541 = vmul.f32 %v6533, %v168
    %v6542 = vmul.f32 %v6534, %v169
    %v6543 = vmul.f32 %v6535, %v170
    %v6544 = vmul.f32 %v6536, %v171
    %v6545 = vmul.f32 %v6537, %v172
    %v6546 = vmul.f32 %v6538, %v173
    %v6547 = vld [vmem:[%s1 + $0x14] sm:$0xf]
    %v6549 = vsel %vm201, %v6539, 0
    %v6552 = vsel %vm201, %v6540, 0
    %v6555 = vsel %vm201, %v6541, 0
    %v6558 = vsel %vm201, %v6542, 0
    %v6561 = vsel %vm201, %v6543, 0
    %v6564 = vsel %vm201, %v6544, 0
    %v6567 = vsel %vm201, %v6545, 0
    %v6570 = vsel %vm201, %v6546, 0
    %v6573 = vsel %vm226, %v6547, 0
    %6575 = vmatprep.subr.mxu0 0.0
    %6576 = vmatpush1.msra.mxu0 %v6573
    %6577 = vmatprep.subr.mxu0 0.0
    %6578 = vmatpush1.msra.mxu0 0.0
    %6579 = vmatprep.subr.mxu0 0.0
    %6580 = vmatpush1.msra.mxu0 0.0
    %6581 = vmatprep.subr.mxu0 0.0
    %6582 = vmatpush1.msra.mxu0 0.0
    %6583 = vmatprep.subr.mxu0 0.0
    %6584 = vmatpush1.msra.mxu0 0.0
    %6585 = vmatprep.subr.mxu0 0.0
    %6586 = vmatpush1.msra.mxu0 0.0
    %6587 = vmatprep.subr.mxu0 0.0
    %6588 = vmatpush1.msra.mxu0 0.0
    %6589 = vmatprep.subr.mxu0 0.0
    %6590 = vmatpush1.msra.mxu0 0.0
    %6591 = vmatprep.subr.mxu0 0.0
    %6592 = vmatpush1.msra.mxu0 0.0
    %6593 = vmatprep.subr.mxu0 0.0
    %6594 = vmatpush1.msra.mxu0 0.0
    %6595 = vmatprep.subr.mxu0 0.0
    %6596 = vmatpush1.msra.mxu0 0.0
    %6597 = vmatprep.subr.mxu0 0.0
    %6598 = vmatpush1.msra.mxu0 0.0
    %6599 = vmatprep.subr.mxu0 0.0
    %6600 = vmatpush1.msra.mxu0 0.0
    %6601 = vmatprep.subr.mxu0 0.0
    %6602 = vmatpush1.msra.mxu0 0.0
    %6603 = vmatprep.subr.mxu0 0.0
    %6604 = vmatpush1.msra.mxu0 0.0
    %6605 = vmatprep.subr.mxu0 0.0
    %6606 = vmatpush1.msra.mxu0 0.0
    %6607 = vmatprep.subr.mxu0 0.0
    %6608 = vmatpush1.msra.mxu0 0.0
    %6609 = vmatprep.subr.mxu0 0.0
    %6610 = vmatpush1.msra.mxu0 0.0
    %6611 = vmatprep.subr.mxu0 0.0
    %6612 = vmatpush1.msra.mxu0 0.0
    %6613 = vmatprep.subr.mxu0 0.0
    %6614 = vmatpush1.msra.mxu0 0.0
    %6615 = vmatprep.subr.mxu0 0.0
    %6616 = vmatpush1.msra.mxu0 0.0
    %6617 = vmatprep.subr.mxu0 0.0
    %6618 = vmatpush1.msra.mxu0 0.0
    %6619 = vmatprep.subr.mxu0 0.0
    %6620 = vmatpush1.msra.mxu0 0.0
    %6621 = vmatprep.subr.mxu0 0.0
    %6622 = vmatpush1.msra.mxu0 0.0
    %6623 = vmatprep.subr.mxu0 0.0
    %6624 = vmatpush1.msra.mxu0 0.0
    %6625 = vmatprep.subr.mxu0 0.0
    %6626 = vmatpush1.msra.mxu0 0.0
    %6627 = vmatprep.subr.mxu0 0.0
    %6628 = vmatpush1.msra.mxu0 0.0
    %6629 = vmatprep.subr.mxu0 0.0
    %6630 = vmatpush1.msra.mxu0 0.0
    %6631 = vmatprep.subr.mxu0 0.0
    %6632 = vmatpush1.msra.mxu0 0.0
    %6633 = vmatprep.subr.mxu0 0.0
    %6634 = vmatpush1.msra.mxu0 0.0
    %6635 = vmatprep.subr.mxu0 0.0
    %6636 = vmatpush1.msra.mxu0 0.0
    %6637 = vmatprep.subr.mxu0 0.0
    %6638 = vmatpush1.msra.mxu0 0.0
    %6639 = vmatprep.mubr.f32.mxu0 0.0
    %6640 = vmatmul.mubr.f32.gmra.mrb[0].mxu0 %v6549
    %v6641 = vpop.f32.mrb[0].mxu0
    %v6642 = vadd.f32 0.0, %v6641
    %v6643 = vpop.f32.mrb[0].mxu0
    %6644 = vmatprep.mubr.f32.mxu0 0.0
    %6645 = vmatmul.mubr.f32.gmra.mrb[0].mxu0 %v6552
    %v6646 = vpop.f32.mrb[0].mxu0
    %v6647 = vadd.f32 0.0, %v6646
    %v6648 = vpop.f32.mrb[0].mxu0
    %6649 = vmatprep.mubr.f32.mxu0 0.0
    %6650 = vmatmul.mubr.f32.gmra.mrb[0].mxu0 %v6555
    %v6651 = vpop.f32.mrb[0].mxu0
    %v6652 = vadd.f32 0.0, %v6651
    %v6653 = vpop.f32.mrb[0].mxu0
    %6654 = vmatprep.mubr.f32.mxu0 0.0
    %6655 = vmatmul.mubr.f32.gmra.mrb[0].mxu0 %v6558
    %v6656 = vpop.f32.mrb[0].mxu0
    %v6657 = vadd.f32 0.0, %v6656
    %v6658 = vpop.f32.mrb[0].mxu0
    %6659 = vmatprep.mubr.f32.mxu0 0.0
    %6660 = vmatmul.mubr.f32.gmra.mrb[0].mxu0 %v6561
    %v6661 = vpop.f32.mrb[0].mxu0
    %v6662 = vadd.f32 0.0, %v6661
    %v6663 = vpop.f32.mrb[0].mxu0
    %6664 = vmatprep.mubr.f32.mxu0 0.0
    %6665 = vmatmul.mubr.f32.gmra.mrb[0].mxu0 %v6564
    %v6666 = vpop.f32.mrb[0].mxu0
    %v6667 = vadd.f32 0.0, %v6666
    %v6668 = vpop.f32.mrb[0].mxu0
    %6669 = vmatprep.mubr.f32.mxu0 0.0
    %6670 = vmatmul.mubr.f32.gmra.mrb[0].mxu0 %v6567
    %v6671 = vpop.f32.mrb[0].mxu0
    %v6672 = vadd.f32 0.0, %v6671
    %v6673 = vpop.f32.mrb[0].mxu0
    %6674 = vmatprep.mubr.f32.mxu0 0.0
    %6675 = vmatmul.mubr.f32.gmra.mrb[0].mxu0 %v6570
    %v6676 = vpop.f32.mrb[0].mxu0
    %v6677 = vadd.f32 0.0, %v6676
    %v6678 = vpop.f32.mrb[0].mxu0
    %6679 = vdwg.mxu0
    %v6680 = vadd.f32 %v6523, %v6642
    %v6681 = vadd.f32 %v6524, %v6647
    %v6682 = vadd.f32 %v6525, %v6652
    %v6683 = vadd.f32 %v6526, %v6657
    %v6684 = vadd.f32 %v6527, %v6662
    %v6685 = vadd.f32 %v6528, %v6667
    %v6686 = vadd.f32 %v6529, %v6672
    %v6687 = vadd.f32 %v6530, %v6677
    %v6688 = vld [vmem:[%s5777 + $0x20] sm:$0xff]
    %v6689 = vld [vmem:[%s5777 + $0x28] sm:$0xff]
    %v6690 = vld [vmem:[%s5777 + $0x30] sm:$0xff]
    %v6691 = vld [vmem:[%s5777 + $0x38] sm:$0xff]
    %v6692 = vld [vmem:[%s5777 + $0x40] sm:$0xff]
    %v6693 = vld [vmem:[%s5777 + $0x48] sm:$0xff]
    %v6694 = vld [vmem:[%s5777 + $0x50] sm:$0xff]
    %v6695 = vld [vmem:[%s5777 + $0x58] sm:$0xff]
    %v6696 = vmul.f32 %v6688, %v142
    %v6697 = vmul.f32 %v6689, %v143
    %v6698 = vmul.f32 %v6690, %v144
    %v6699 = vmul.f32 %v6691, %v145
    %v6700 = vmul.f32 %v6692, %v146
    %v6701 = vmul.f32 %v6693, %v147
    %v6702 = vmul.f32 %v6694, %v148
    %v6703 = vmul.f32 %v6695, %v149
    %v6704 = vld [vmem:[%s1 + $0x18] sm:$0xf]
    %v6706 = vsel %vm201, %v6696, 0
    %v6709 = vsel %vm201, %v6697, 0
    %v6712 = vsel %vm201, %v6698, 0
    %v6715 = vsel %vm201, %v6699, 0
    %v6718 = vsel %vm201, %v6700, 0
    %v6721 = vsel %vm201, %v6701, 0
    %v6724 = vsel %vm201, %v6702, 0
    %v6727 = vsel %vm201, %v6703, 0
    %v6730 = vsel %vm226, %v6704, 0
    %6732 = vmatprep.subr.mxu0 0.0
    %6733 = vmatpush1.msra.mxu0 %v6730
    %6734 = vmatprep.subr.mxu0 0.0
    %6735 = vmatpush1.msra.mxu0 0.0
    %6736 = vmatprep.subr.mxu0 0.0
    %6737 = vmatpush1.msra.mxu0 0.0
    %6738 = vmatprep.subr.mxu0 0.0
    %6739 = vmatpush1.msra.mxu0 0.0
    %6740 = vmatprep.subr.mxu0 0.0
    %6741 = vmatpush1.msra.mxu0 0.0
    %6742 = vmatprep.subr.mxu0 0.0
    %6743 = vmatpush1.msra.mxu0 0.0
    %6744 = vmatprep.subr.mxu0 0.0
    %6745 = vmatpush1.msra.mxu0 0.0
    %6746 = vmatprep.subr.mxu0 0.0
    %6747 = vmatpush1.msra.mxu0 0.0
    %6748 = vmatprep.subr.mxu0 0.0
    %6749 = vmatpush1.msra.mxu0 0.0
    %6750 = vmatprep.subr.mxu0 0.0
    %6751 = vmatpush1.msra.mxu0 0.0
    %6752 = vmatprep.subr.mxu0 0.0
    %6753 = vmatpush1.msra.mxu0 0.0
    %6754 = vmatprep.subr.mxu0 0.0
    %6755 = vmatpush1.msra.mxu0 0.0
    %6756 = vmatprep.subr.mxu0 0.0
    %6757 = vmatpush1.msra.mxu0 0.0
    %6758 = vmatprep.subr.mxu0 0.0
    %6759 = vmatpush1.msra.mxu0 0.0
    %6760 = vmatprep.subr.mxu0 0.0
    %6761 = vmatpush1.msra.mxu0 0.0
    %6762 = vmatprep.subr.mxu0 0.0
    %6763 = vmatpush1.msra.mxu0 0.0
    %6764 = vmatprep.subr.mxu0 0.0
    %6765 = vmatpush1.msra.mxu0 0.0
    %6766 = vmatprep.subr.mxu0 0.0
    %6767 = vmatpush1.msra.mxu0 0.0
    %6768 = vmatprep.subr.mxu0 0.0
    %6769 = vmatpush1.msra.mxu0 0.0
    %6770 = vmatprep.subr.mxu0 0.0
    %6771 = vmatpush1.msra.mxu0 0.0
    %6772 = vmatprep.subr.mxu0 0.0
    %6773 = vmatpush1.msra.mxu0 0.0
    %6774 = vmatprep.subr.mxu0 0.0
    %6775 = vmatpush1.msra.mxu0 0.0
    %6776 = vmatprep.subr.mxu0 0.0
    %6777 = vmatpush1.msra.mxu0 0.0
    %6778 = vmatprep.subr.mxu0 0.0
    %6779 = vmatpush1.msra.mxu0 0.0
    %6780 = vmatprep.subr.mxu0 0.0
    %6781 = vmatpush1.msra.mxu0 0.0
    %6782 = vmatprep.subr.mxu0 0.0
    %6783 = vmatpush1.msra.mxu0 0.0
    %6784 = vmatprep.subr.mxu0 0.0
    %6785 = vmatpush1.msra.mxu0 0.0
    %6786 = vmatprep.subr.mxu0 0.0
    %6787 = vmatpush1.msra.mxu0 0.0
    %6788 = vmatprep.subr.mxu0 0.0
    %6789 = vmatpush1.msra.mxu0 0.0
    %6790 = vmatprep.subr.mxu0 0.0
    %6791 = vmatpush1.msra.mxu0 0.0
    %6792 = vmatprep.subr.mxu0 0.0
    %6793 = vmatpush1.msra.mxu0 0.0
    %6794 = vmatprep.subr.mxu0 0.0
    %6795 = vmatpush1.msra.mxu0 0.0
    %6796 = vmatprep.mubr.f32.mxu0 0.0
    %6797 = vmatmul.mubr.f32.gmra.mrb[0].mxu0 %v6706
    %v6798 = vpop.f32.mrb[0].mxu0
    %v6799 = vadd.f32 0.0, %v6798
    %v6800 = vpop.f32.mrb[0].mxu0
    %6801 = vmatprep.mubr.f32.mxu0 0.0
    %6802 = vmatmul.mubr.f32.gmra.mrb[0].mxu0 %v6709
    %v6803 = vpop.f32.mrb[0].mxu0
    %v6804 = vadd.f32 0.0, %v6803
    %v6805 = vpop.f32.mrb[0].mxu0
    %6806 = vmatprep.mubr.f32.mxu0 0.0
    %6807 = vmatmul.mubr.f32.gmra.mrb[0].mxu0 %v6712
    %v6808 = vpop.f32.mrb[0].mxu0
    %v6809 = vadd.f32 0.0, %v6808
    %v6810 = vpop.f32.mrb[0].mxu0
    %6811 = vmatprep.mubr.f32.mxu0 0.0
    %6812 = vmatmul.mubr.f32.gmra.mrb[0].mxu0 %v6715
    %v6813 = vpop.f32.mrb[0].mxu0
    %v6814 = vadd.f32 0.0, %v6813
    %v6815 = vpop.f32.mrb[0].mxu0
    %6816 = vmatprep.mubr.f32.mxu0 0.0
    %6817 = vmatmul.mubr.f32.gmra.mrb[0].mxu0 %v6718
    %v6818 = vpop.f32.mrb[0].mxu0
    %v6819 = vadd.f32 0.0, %v6818
    %v6820 = vpop.f32.mrb[0].mxu0
    %6821 = vmatprep.mubr.f32.mxu0 0.0
    %6822 = vmatmul.mubr.f32.gmra.mrb[0].mxu0 %v6721
    %v6823 = vpop.f32.mrb[0].mxu0
    %v6824 = vadd.f32 0.0, %v6823
    %v6825 = vpop.f32.mrb[0].mxu0
    %6826 = vmatprep.mubr.f32.mxu0 0.0
    %6827 = vmatmul.mubr.f32.gmra.mrb[0].mxu0 %v6724
    %v6828 = vpop.f32.mrb[0].mxu0
    %v6829 = vadd.f32 0.0, %v6828
    %v6830 = vpop.f32.mrb[0].mxu0
    %6831 = vmatprep.mubr.f32.mxu0 0.0
    %6832 = vmatmul.mubr.f32.gmra.mrb[0].mxu0 %v6727
    %v6833 = vpop.f32.mrb[0].mxu0
    %v6834 = vadd.f32 0.0, %v6833
    %v6835 = vpop.f32.mrb[0].mxu0
    %6836 = vdwg.mxu0
    %v6837 = vadd.f32 %v6680, %v6799
    %v6838 = vadd.f32 %v6681, %v6804
    %v6839 = vadd.f32 %v6682, %v6809
    %v6840 = vadd.f32 %v6683, %v6814
    %v6841 = vadd.f32 %v6684, %v6819
    %v6842 = vadd.f32 %v6685, %v6824
    %v6843 = vadd.f32 %v6686, %v6829
    %v6844 = vadd.f32 %v6687, %v6834
    %v6845 = vld [vmem:[%s5777 + $0x21] sm:$0xff]
    %v6846 = vld [vmem:[%s5777 + $0x29] sm:$0xff]
    %v6847 = vld [vmem:[%s5777 + $0x31] sm:$0xff]
    %v6848 = vld [vmem:[%s5777 + $0x39] sm:$0xff]
    %v6849 = vld [vmem:[%s5777 + $0x41] sm:$0xff]
    %v6850 = vld [vmem:[%s5777 + $0x49] sm:$0xff]
    %v6851 = vld [vmem:[%s5777 + $0x51] sm:$0xff]
    %v6852 = vld [vmem:[%s5777 + $0x59] sm:$0xff]
    %v6853 = vld [vmem:[%s1 + $0x1c] sm:$0xf]
    %v6855 = vsel %vm201, %v6845, 0
    %v6858 = vsel %vm201, %v6846, 0
    %v6861 = vsel %vm201, %v6847, 0
    %v6864 = vsel %vm201, %v6848, 0
    %v6867 = vsel %vm201, %v6849, 0
    %v6870 = vsel %vm201, %v6850, 0
    %v6873 = vsel %vm201, %v6851, 0
    %v6876 = vsel %vm201, %v6852, 0
    %v6879 = vsel %vm226, %v6853, 0
    %6881 = vmatprep.subr.mxu0 0.0
    %6882 = vmatpush1.msra.mxu0 %v6879
    %6883 = vmatprep.subr.mxu0 0.0
    %6884 = vmatpush1.msra.mxu0 0.0
    %6885 = vmatprep.subr.mxu0 0.0
    %6886 = vmatpush1.msra.mxu0 0.0
    %6887 = vmatprep.subr.mxu0 0.0
    %6888 = vmatpush1.msra.mxu0 0.0
    %6889 = vmatprep.subr.mxu0 0.0
    %6890 = vmatpush1.msra.mxu0 0.0
    %6891 = vmatprep.subr.mxu0 0.0
    %6892 = vmatpush1.msra.mxu0 0.0
    %6893 = vmatprep.subr.mxu0 0.0
    %6894 = vmatpush1.msra.mxu0 0.0
    %6895 = vmatprep.subr.mxu0 0.0
    %6896 = vmatpush1.msra.mxu0 0.0
    %6897 = vmatprep.subr.mxu0 0.0
    %6898 = vmatpush1.msra.mxu0 0.0
    %6899 = vmatprep.subr.mxu0 0.0
    %6900 = vmatpush1.msra.mxu0 0.0
    %6901 = vmatprep.subr.mxu0 0.0
    %6902 = vmatpush1.msra.mxu0 0.0
    %6903 = vmatprep.subr.mxu0 0.0
    %6904 = vmatpush1.msra.mxu0 0.0
    %6905 = vmatprep.subr.mxu0 0.0
    %6906 = vmatpush1.msra.mxu0 0.0
    %6907 = vmatprep.subr.mxu0 0.0
    %6908 = vmatpush1.msra.mxu0 0.0
    %6909 = vmatprep.subr.mxu0 0.0
    %6910 = vmatpush1.msra.mxu0 0.0
    %6911 = vmatprep.subr.mxu0 0.0
    %6912 = vmatpush1.msra.mxu0 0.0
    %6913 = vmatprep.subr.mxu0 0.0
    %6914 = vmatpush1.msra.mxu0 0.0
    %6915 = vmatprep.subr.mxu0 0.0
    %6916 = vmatpush1.msra.mxu0 0.0
    %6917 = vmatprep.subr.mxu0 0.0
    %6918 = vmatpush1.msra.mxu0 0.0
    %6919 = vmatprep.subr.mxu0 0.0
    %6920 = vmatpush1.msra.mxu0 0.0
    %6921 = vmatprep.subr.mxu0 0.0
    %6922 = vmatpush1.msra.mxu0 0.0
    %6923 = vmatprep.subr.mxu0 0.0
    %6924 = vmatpush1.msra.mxu0 0.0
    %6925 = vmatprep.subr.mxu0 0.0
    %6926 = vmatpush1.msra.mxu0 0.0
    %6927 = vmatprep.subr.mxu0 0.0
    %6928 = vmatpush1.msra.mxu0 0.0
    %6929 = vmatprep.subr.mxu0 0.0
    %6930 = vmatpush1.msra.mxu0 0.0
    %6931 = vmatprep.subr.mxu0 0.0
    %6932 = vmatpush1.msra.mxu0 0.0
    %6933 = vmatprep.subr.mxu0 0.0
    %6934 = vmatpush1.msra.mxu0 0.0
    %6935 = vmatprep.subr.mxu0 0.0
    %6936 = vmatpush1.msra.mxu0 0.0
    %6937 = vmatprep.subr.mxu0 0.0
    %6938 = vmatpush1.msra.mxu0 0.0
    %6939 = vmatprep.subr.mxu0 0.0
    %6940 = vmatpush1.msra.mxu0 0.0
    %6941 = vmatprep.subr.mxu0 0.0
    %6942 = vmatpush1.msra.mxu0 0.0
    %6943 = vmatprep.subr.mxu0 0.0
    %6944 = vmatpush1.msra.mxu0 0.0
    %6945 = vmatprep.mubr.f32.mxu0 0.0
    %6946 = vmatmul.mubr.f32.gmra.mrb[0].mxu0 %v6855
    %v6947 = vpop.f32.mrb[0].mxu0
    %v6948 = vadd.f32 0.0, %v6947
    %v6949 = vpop.f32.mrb[0].mxu0
    %6950 = vmatprep.mubr.f32.mxu0 0.0
    %6951 = vmatmul.mubr.f32.gmra.mrb[0].mxu0 %v6858
    %v6952 = vpop.f32.mrb[0].mxu0
    %v6953 = vadd.f32 0.0, %v6952
    %v6954 = vpop.f32.mrb[0].mxu0
    %6955 = vmatprep.mubr.f32.mxu0 0.0
    %6956 = vmatmul.mubr.f32.gmra.mrb[0].mxu0 %v6861
    %v6957 = vpop.f32.mrb[0].mxu0
    %v6958 = vadd.f32 0.0, %v6957
    %v6959 = vpop.f32.mrb[0].mxu0
    %6960 = vmatprep.mubr.f32.mxu0 0.0
    %6961 = vmatmul.mubr.f32.gmra.mrb[0].mxu0 %v6864
    %v6962 = vpop.f32.mrb[0].mxu0
    %v6963 = vadd.f32 0.0, %v6962
    %v6964 = vpop.f32.mrb[0].mxu0
    %6965 = vmatprep.mubr.f32.mxu0 0.0
    %6966 = vmatmul.mubr.f32.gmra.mrb[0].mxu0 %v6867
    %v6967 = vpop.f32.mrb[0].mxu0
    %v6968 = vadd.f32 0.0, %v6967
    %v6969 = vpop.f32.mrb[0].mxu0
    %6970 = vmatprep.mubr.f32.mxu0 0.0
    %6971 = vmatmul.mubr.f32.gmra.mrb[0].mxu0 %v6870
    %v6972 = vpop.f32.mrb[0].mxu0
    %v6973 = vadd.f32 0.0, %v6972
    %v6974 = vpop.f32.mrb[0].mxu0
    %6975 = vmatprep.mubr.f32.mxu0 0.0
    %6976 = vmatmul.mubr.f32.gmra.mrb[0].mxu0 %v6873
    %v6977 = vpop.f32.mrb[0].mxu0
    %v6978 = vadd.f32 0.0, %v6977
    %v6979 = vpop.f32.mrb[0].mxu0
    %6980 = vmatprep.mubr.f32.mxu0 0.0
    %6981 = vmatmul.mubr.f32.gmra.mrb[0].mxu0 %v6876
    %v6982 = vpop.f32.mrb[0].mxu0
    %v6983 = vadd.f32 0.0, %v6982
    %v6984 = vpop.f32.mrb[0].mxu0
    %6985 = vdwg.mxu0
    %v6986 = vadd.f32 %v6837, %v6948
    %v6987 = vadd.f32 %v6838, %v6953
    %v6988 = vadd.f32 %v6839, %v6958
    %v6989 = vadd.f32 %v6840, %v6963
    %v6990 = vadd.f32 %v6841, %v6968
    %v6991 = vadd.f32 %v6842, %v6973
    %v6992 = vadd.f32 %v6843, %v6978
    %v6993 = vadd.f32 %v6844, %v6983
    %v6994 = vld [vmem:[%s5777 + $0x22] sm:$0xff]
    %v6995 = vld [vmem:[%s5777 + $0x2a] sm:$0xff]
    %v6996 = vld [vmem:[%s5777 + $0x32] sm:$0xff]
    %v6997 = vld [vmem:[%s5777 + $0x3a] sm:$0xff]
    %v6998 = vld [vmem:[%s5777 + $0x42] sm:$0xff]
    %v6999 = vld [vmem:[%s5777 + $0x4a] sm:$0xff]
    %v7000 = vld [vmem:[%s5777 + $0x52] sm:$0xff]
    %v7001 = vld [vmem:[%s5777 + $0x5a] sm:$0xff]
    %v7002 = vmul.f32 %v6994, %v166
    %v7003 = vmul.f32 %v6995, %v167
    %v7004 = vmul.f32 %v6996, %v168
    %v7005 = vmul.f32 %v6997, %v169
    %v7006 = vmul.f32 %v6998, %v170
    %v7007 = vmul.f32 %v6999, %v171
    %v7008 = vmul.f32 %v7000, %v172
    %v7009 = vmul.f32 %v7001, %v173
    %v7010 = vld [vmem:[%s1 + $0x20] sm:$0xf]
    %v7012 = vsel %vm201, %v7002, 0
    %v7015 = vsel %vm201, %v7003, 0
    %v7018 = vsel %vm201, %v7004, 0
    %v7021 = vsel %vm201, %v7005, 0
    %v7024 = vsel %vm201, %v7006, 0
    %v7027 = vsel %vm201, %v7007, 0
    %v7030 = vsel %vm201, %v7008, 0
    %v7033 = vsel %vm201, %v7009, 0
    %v7036 = vsel %vm226, %v7010, 0
    %7038 = vmatprep.subr.mxu0 0.0
    %7039 = vmatpush1.msra.mxu0 %v7036
    %7040 = vmatprep.subr.mxu0 0.0
    %7041 = vmatpush1.msra.mxu0 0.0
    %7042 = vmatprep.subr.mxu0 0.0
    %7043 = vmatpush1.msra.mxu0 0.0
    %7044 = vmatprep.subr.mxu0 0.0
    %7045 = vmatpush1.msra.mxu0 0.0
    %7046 = vmatprep.subr.mxu0 0.0
    %7047 = vmatpush1.msra.mxu0 0.0
    %7048 = vmatprep.subr.mxu0 0.0
    %7049 = vmatpush1.msra.mxu0 0.0
    %7050 = vmatprep.subr.mxu0 0.0
    %7051 = vmatpush1.msra.mxu0 0.0
    %7052 = vmatprep.subr.mxu0 0.0
    %7053 = vmatpush1.msra.mxu0 0.0
    %7054 = vmatprep.subr.mxu0 0.0
    %7055 = vmatpush1.msra.mxu0 0.0
    %7056 = vmatprep.subr.mxu0 0.0
    %7057 = vmatpush1.msra.mxu0 0.0
    %7058 = vmatprep.subr.mxu0 0.0
    %7059 = vmatpush1.msra.mxu0 0.0
    %7060 = vmatprep.subr.mxu0 0.0
    %7061 = vmatpush1.msra.mxu0 0.0
    %7062 = vmatprep.subr.mxu0 0.0
    %7063 = vmatpush1.msra.mxu0 0.0
    %7064 = vmatprep.subr.mxu0 0.0
    %7065 = vmatpush1.msra.mxu0 0.0
    %7066 = vmatprep.subr.mxu0 0.0
    %7067 = vmatpush1.msra.mxu0 0.0
    %7068 = vmatprep.subr.mxu0 0.0
    %7069 = vmatpush1.msra.mxu0 0.0
    %7070 = vmatprep.subr.mxu0 0.0
    %7071 = vmatpush1.msra.mxu0 0.0
    %7072 = vmatprep.subr.mxu0 0.0
    %7073 = vmatpush1.msra.mxu0 0.0
    %7074 = vmatprep.subr.mxu0 0.0
    %7075 = vmatpush1.msra.mxu0 0.0
    %7076 = vmatprep.subr.mxu0 0.0
    %7077 = vmatpush1.msra.mxu0 0.0
    %7078 = vmatprep.subr.mxu0 0.0
    %7079 = vmatpush1.msra.mxu0 0.0
    %7080 = vmatprep.subr.mxu0 0.0
    %7081 = vmatpush1.msra.mxu0 0.0
    %7082 = vmatprep.subr.mxu0 0.0
    %7083 = vmatpush1.msra.mxu0 0.0
    %7084 = vmatprep.subr.mxu0 0.0
    %7085 = vmatpush1.msra.mxu0 0.0
    %7086 = vmatprep.subr.mxu0 0.0
    %7087 = vmatpush1.msra.mxu0 0.0
    %7088 = vmatprep.subr.mxu0 0.0
    %7089 = vmatpush1.msra.mxu0 0.0
    %7090 = vmatprep.subr.mxu0 0.0
    %7091 = vmatpush1.msra.mxu0 0.0
    %7092 = vmatprep.subr.mxu0 0.0
    %7093 = vmatpush1.msra.mxu0 0.0
    %7094 = vmatprep.subr.mxu0 0.0
    %7095 = vmatpush1.msra.mxu0 0.0
    %7096 = vmatprep.subr.mxu0 0.0
    %7097 = vmatpush1.msra.mxu0 0.0
    %7098 = vmatprep.subr.mxu0 0.0
    %7099 = vmatpush1.msra.mxu0 0.0
    %7100 = vmatprep.subr.mxu0 0.0
    %7101 = vmatpush1.msra.mxu0 0.0
    %7102 = vmatprep.mubr.f32.mxu0 0.0
    %7103 = vmatmul.mubr.f32.gmra.mrb[0].mxu0 %v7012
    %v7104 = vpop.f32.mrb[0].mxu0
    %v7105 = vadd.f32 0.0, %v7104
    %v7106 = vpop.f32.mrb[0].mxu0
    %7107 = vmatprep.mubr.f32.mxu0 0.0
    %7108 = vmatmul.mubr.f32.gmra.mrb[0].mxu0 %v7015
    %v7109 = vpop.f32.mrb[0].mxu0
    %v7110 = vadd.f32 0.0, %v7109
    %v7111 = vpop.f32.mrb[0].mxu0
    %7112 = vmatprep.mubr.f32.mxu0 0.0
    %7113 = vmatmul.mubr.f32.gmra.mrb[0].mxu0 %v7018
    %v7114 = vpop.f32.mrb[0].mxu0
    %v7115 = vadd.f32 0.0, %v7114
    %v7116 = vpop.f32.mrb[0].mxu0
    %7117 = vmatprep.mubr.f32.mxu0 0.0
    %7118 = vmatmul.mubr.f32.gmra.mrb[0].mxu0 %v7021
    %v7119 = vpop.f32.mrb[0].mxu0
    %v7120 = vadd.f32 0.0, %v7119
    %v7121 = vpop.f32.mrb[0].mxu0
    %7122 = vmatprep.mubr.f32.mxu0 0.0
    %7123 = vmatmul.mubr.f32.gmra.mrb[0].mxu0 %v7024
    %v7124 = vpop.f32.mrb[0].mxu0
    %v7125 = vadd.f32 0.0, %v7124
    %v7126 = vpop.f32.mrb[0].mxu0
    %7127 = vmatprep.mubr.f32.mxu0 0.0
    %7128 = vmatmul.mubr.f32.gmra.mrb[0].mxu0 %v7027
    %v7129 = vpop.f32.mrb[0].mxu0
    %v7130 = vadd.f32 0.0, %v7129
    %v7131 = vpop.f32.mrb[0].mxu0
    %7132 = vmatprep.mubr.f32.mxu0 0.0
    %7133 = vmatmul.mubr.f32.gmra.mrb[0].mxu0 %v7030
    %v7134 = vpop.f32.mrb[0].mxu0
    %v7135 = vadd.f32 0.0, %v7134
    %v7136 = vpop.f32.mrb[0].mxu0
    %7137 = vmatprep.mubr.f32.mxu0 0.0
    %7138 = vmatmul.mubr.f32.gmra.mrb[0].mxu0 %v7033
    %v7139 = vpop.f32.mrb[0].mxu0
    %v7140 = vadd.f32 0.0, %v7139
    %v7141 = vpop.f32.mrb[0].mxu0
    %7142 = vdwg.mxu0
    %v7143 = vadd.f32 %v6986, %v7105
    %v7144 = vadd.f32 %v6987, %v7110
    %v7145 = vadd.f32 %v6988, %v7115
    %v7146 = vadd.f32 %v6989, %v7120
    %v7147 = vadd.f32 %v6990, %v7125
    %v7148 = vadd.f32 %v6991, %v7130
    %v7149 = vadd.f32 %v6992, %v7135
    %v7150 = vadd.f32 %v6993, %v7140
    %v7151 = vadd.f32 %v7143, %v1554
    %v7152 = vadd.f32 %v7144, %v1554
    %v7153 = vadd.f32 %v7145, %v1554
    %v7154 = vadd.f32 %v7146, %v1554
    %v7155 = vadd.f32 %v7147, %v1554
    %v7156 = vadd.f32 %v7148, %v1554
    %v7157 = vadd.f32 %v7149, %v1554
    %v7158 = vadd.f32 %v7150, %v1554
    %v7159 = vmax.f32 %v7151, 0.0
    %v7160 = vmax.f32 %v7152, 0.0
    %v7161 = vmax.f32 %v7153, 0.0
    %v7162 = vmax.f32 %v7154, 0.0
    %v7163 = vmax.f32 %v7155, 0.0
    %v7164 = vmax.f32 %v7156, 0.0
    %v7165 = vmax.f32 %v7157, 0.0
    %v7166 = vmax.f32 %v7158, 0.0
    %v7167 = vadd.f32 %v7159, %v7160
    %v7168 = vadd.f32 %v7167, %v7161
    %v7169 = vadd.f32 %v7168, %v7162
    %v7170 = vadd.f32 %v7169, %v7163
    %v7171 = vadd.f32 %v7170, %v7164
    %v7172 = vadd.f32 %v7171, %v7165
    %v7173 = vadd.f32 %v7172, %v7166
    %v7174 = vrot.slane %v7173, 4
    %v7175 = vadd.f32 %v7173, %v7174
    %v7176 = vrot.slane %v7175, 2
    %v7177 = vadd.f32 %v7175, %v7176
    %v7178 = vrot.slane %v7177, 1
    %v7179 = vadd.f32 %v7177, %v7178
    %v7180 = vadd.f32 %v7179, 0.0
    %v7181 = vld [vmem:[%s5777 + $0x40] sm:$0xff]
    %v7182 = vld [vmem:[%s5777 + $0x48] sm:$0xff]
    %v7183 = vld [vmem:[%s5777 + $0x50] sm:$0xff]
    %v7184 = vld [vmem:[%s5777 + $0x58] sm:$0xff]
    %v7185 = vld [vmem:[%s5777 + $0x60] sm:$0xff]
    %v7186 = vld [vmem:[%s5777 + $0x68] sm:$0xff]
    %v7187 = vld [vmem:[%s5777 + $0x70] sm:$0xff]
    %v7188 = vld [vmem:[%s5777 + $0x78] sm:$0xff]
    %v7189 = vmul.f32 %v7181, %v142
    %v7190 = vmul.f32 %v7182, %v143
    %v7191 = vmul.f32 %v7183, %v144
    %v7192 = vmul.f32 %v7184, %v145
    %v7193 = vmul.f32 %v7185, %v146
    %v7194 = vmul.f32 %v7186, %v147
    %v7195 = vmul.f32 %v7187, %v148
    %v7196 = vmul.f32 %v7188, %v149
    %v7197 = vld [vmem:[%s5777 + $0x41] sm:$0xff]
    %v7198 = vld [vmem:[%s5777 + $0x49] sm:$0xff]
    %v7199 = vld [vmem:[%s5777 + $0x51] sm:$0xff]
    %v7200 = vld [vmem:[%s5777 + $0x59] sm:$0xff]
    %v7201 = vld [vmem:[%s5777 + $0x61] sm:$0xff]
    %v7202 = vld [vmem:[%s5777 + $0x69] sm:$0xff]
    %v7203 = vld [vmem:[%s5777 + $0x71] sm:$0xff]
    %v7204 = vld [vmem:[%s5777 + $0x79] sm:$0xff]
    %v7206 = vsel %vm201, %v7197, 0
    %v7209 = vsel %vm201, %v7198, 0
    %v7212 = vsel %vm201, %v7199, 0
    %v7215 = vsel %vm201, %v7200, 0
    %v7218 = vsel %vm201, %v7201, 0
    %v7221 = vsel %vm201, %v7202, 0
    %v7224 = vsel %vm201, %v7203, 0
    %v7227 = vsel %vm201, %v7204, 0
    %7229 = vmatprep.subr.mxu0 0.0
    %7230 = vmatpush1.msra.mxu0 %v5829
    %7231 = vmatprep.subr.mxu0 0.0
    %7232 = vmatpush1.msra.mxu0 0.0
    %7233 = vmatprep.subr.mxu0 0.0
    %7234 = vmatpush1.msra.mxu0 0.0
    %7235 = vmatprep.subr.mxu0 0.0
    %7236 = vmatpush1.msra.mxu0 0.0
    %7237 = vmatprep.subr.mxu0 0.0
    %7238 = vmatpush1.msra.mxu0 0.0
    %7239 = vmatprep.subr.mxu0 0.0
    %7240 = vmatpush1.msra.mxu0 0.0
    %7241 = vmatprep.subr.mxu0 0.0
    %7242 = vmatpush1.msra.mxu0 0.0
    %7243 = vmatprep.subr.mxu0 0.0
    %7244 = vmatpush1.msra.mxu0 0.0
    %7245 = vmatprep.subr.mxu0 0.0
    %7246 = vmatpush1.msra.mxu0 0.0
    %7247 = vmatprep.subr.mxu0 0.0
    %7248 = vmatpush1.msra.mxu0 0.0
    %7249 = vmatprep.subr.mxu0 0.0
    %7250 = vmatpush1.msra.mxu0 0.0
    %7251 = vmatprep.subr.mxu0 0.0
    %7252 = vmatpush1.msra.mxu0 0.0
    %7253 = vmatprep.subr.mxu0 0.0
    %7254 = vmatpush1.msra.mxu0 0.0
    %7255 = vmatprep.subr.mxu0 0.0
    %7256 = vmatpush1.msra.mxu0 0.0
    %7257 = vmatprep.subr.mxu0 0.0
    %7258 = vmatpush1.msra.mxu0 0.0
    %7259 = vmatprep.subr.mxu0 0.0
    %7260 = vmatpush1.msra.mxu0 0.0
    %7261 = vmatprep.subr.mxu0 0.0
    %7262 = vmatpush1.msra.mxu0 0.0
    %7263 = vmatprep.subr.mxu0 0.0
    %7264 = vmatpush1.msra.mxu0 0.0
    %7265 = vmatprep.subr.mxu0 0.0
    %7266 = vmatpush1.msra.mxu0 0.0
    %7267 = vmatprep.subr.mxu0 0.0
    %7268 = vmatpush1.msra.mxu0 0.0
    %7269 = vmatprep.subr.mxu0 0.0
    %7270 = vmatpush1.msra.mxu0 0.0
    %7271 = vmatprep.subr.mxu0 0.0
    %7272 = vmatpush1.msra.mxu0 0.0
    %7273 = vmatprep.subr.mxu0 0.0
    %7274 = vmatpush1.msra.mxu0 0.0
    %7275 = vmatprep.subr.mxu0 0.0
    %7276 = vmatpush1.msra.mxu0 0.0
    %7277 = vmatprep.subr.mxu0 0.0
    %7278 = vmatpush1.msra.mxu0 0.0
    %7279 = vmatprep.subr.mxu0 0.0
    %7280 = vmatpush1.msra.mxu0 0.0
    %7281 = vmatprep.subr.mxu0 0.0
    %7282 = vmatpush1.msra.mxu0 0.0
    %7283 = vmatprep.subr.mxu0 0.0
    %7284 = vmatpush1.msra.mxu0 0.0
    %7285 = vmatprep.subr.mxu0 0.0
    %7286 = vmatpush1.msra.mxu0 0.0
    %7287 = vmatprep.subr.mxu0 0.0
    %7288 = vmatpush1.msra.mxu0 0.0
    %7289 = vmatprep.subr.mxu0 0.0
    %7290 = vmatpush1.msra.mxu0 0.0
    %7291 = vmatprep.subr.mxu0 0.0
    %7292 = vmatpush1.msra.mxu0 0.0
    %7293 = vmatprep.mubr.f32.mxu0 0.0
    %7294 = vmatmul.mubr.f32.gmra.mrb[0].mxu0 %v7206
    %v7295 = vpop.f32.mrb[0].mxu0
    %v7296 = vadd.f32 0.0, %v7295
    %v7297 = vpop.f32.mrb[0].mxu0
    %7298 = vmatprep.mubr.f32.mxu0 0.0
    %7299 = vmatmul.mubr.f32.gmra.mrb[0].mxu0 %v7209
    %v7300 = vpop.f32.mrb[0].mxu0
    %v7301 = vadd.f32 0.0, %v7300
    %v7302 = vpop.f32.mrb[0].mxu0
    %7303 = vmatprep.mubr.f32.mxu0 0.0
    %7304 = vmatmul.mubr.f32.gmra.mrb[0].mxu0 %v7212
    %v7305 = vpop.f32.mrb[0].mxu0
    %v7306 = vadd.f32 0.0, %v7305
    %v7307 = vpop.f32.mrb[0].mxu0
    %7308 = vmatprep.mubr.f32.mxu0 0.0
    %7309 = vmatmul.mubr.f32.gmra.mrb[0].mxu0 %v7215
    %v7310 = vpop.f32.mrb[0].mxu0
    %v7311 = vadd.f32 0.0, %v7310
    %v7312 = vpop.f32.mrb[0].mxu0
    %7313 = vmatprep.mubr.f32.mxu0 0.0
    %7314 = vmatmul.mubr.f32.gmra.mrb[0].mxu0 %v7218
    %v7315 = vpop.f32.mrb[0].mxu0
    %v7316 = vadd.f32 0.0, %v7315
    %v7317 = vpop.f32.mrb[0].mxu0
    %7318 = vmatprep.mubr.f32.mxu0 0.0
    %7319 = vmatmul.mubr.f32.gmra.mrb[0].mxu0 %v7221
    %v7320 = vpop.f32.mrb[0].mxu0
    %v7321 = vadd.f32 0.0, %v7320
    %v7322 = vpop.f32.mrb[0].mxu0
    %7323 = vmatprep.mubr.f32.mxu0 0.0
    %7324 = vmatmul.mubr.f32.gmra.mrb[0].mxu0 %v7224
    %v7325 = vpop.f32.mrb[0].mxu0
    %v7326 = vadd.f32 0.0, %v7325
    %v7327 = vpop.f32.mrb[0].mxu0
    %7328 = vmatprep.mubr.f32.mxu0 0.0
    %7329 = vmatmul.mubr.f32.gmra.mrb[0].mxu0 %v7227
    %v7330 = vpop.f32.mrb[0].mxu0
    %v7331 = vadd.f32 0.0, %v7330
    %v7332 = vpop.f32.mrb[0].mxu0
    %7333 = vdwg.mxu0
    %v7335 = vsel %vm201, %v7189, 0
    %v7338 = vsel %vm201, %v7190, 0
    %v7341 = vsel %vm201, %v7191, 0
    %v7344 = vsel %vm201, %v7192, 0
    %v7347 = vsel %vm201, %v7193, 0
    %v7350 = vsel %vm201, %v7194, 0
    %v7353 = vsel %vm201, %v7195, 0
    %v7356 = vsel %vm201, %v7196, 0
    %7358 = vmatprep.subr.mxu0 0.0
    %7359 = vmatpush1.msra.mxu0 %v5961
    %7360 = vmatprep.subr.mxu0 0.0
    %7361 = vmatpush1.msra.mxu0 0.0
    %7362 = vmatprep.subr.mxu0 0.0
    %7363 = vmatpush1.msra.mxu0 0.0
    %7364 = vmatprep.subr.mxu0 0.0
    %7365 = vmatpush1.msra.mxu0 0.0
    %7366 = vmatprep.subr.mxu0 0.0
    %7367 = vmatpush1.msra.mxu0 0.0
    %7368 = vmatprep.subr.mxu0 0.0
    %7369 = vmatpush1.msra.mxu0 0.0
    %7370 = vmatprep.subr.mxu0 0.0
    %7371 = vmatpush1.msra.mxu0 0.0
    %7372 = vmatprep.subr.mxu0 0.0
    %7373 = vmatpush1.msra.mxu0 0.0
    %7374 = vmatprep.subr.mxu0 0.0
    %7375 = vmatpush1.msra.mxu0 0.0
    %7376 = vmatprep.subr.mxu0 0.0
    %7377 = vmatpush1.msra.mxu0 0.0
    %7378 = vmatprep.subr.mxu0 0.0
    %7379 = vmatpush1.msra.mxu0 0.0
    %7380 = vmatprep.subr.mxu0 0.0
    %7381 = vmatpush1.msra.mxu0 0.0
    %7382 = vmatprep.subr.mxu0 0.0
    %7383 = vmatpush1.msra.mxu0 0.0
    %7384 = vmatprep.subr.mxu0 0.0
    %7385 = vmatpush1.msra.mxu0 0.0
    %7386 = vmatprep.subr.mxu0 0.0
    %7387 = vmatpush1.msra.mxu0 0.0
    %7388 = vmatprep.subr.mxu0 0.0
    %7389 = vmatpush1.msra.mxu0 0.0
    %7390 = vmatprep.subr.mxu0 0.0
    %7391 = vmatpush1.msra.mxu0 0.0
    %7392 = vmatprep.subr.mxu0 0.0
    %7393 = vmatpush1.msra.mxu0 0.0
    %7394 = vmatprep.subr.mxu0 0.0
    %7395 = vmatpush1.msra.mxu0 0.0
    %7396 = vmatprep.subr.mxu0 0.0
    %7397 = vmatpush1.msra.mxu0 0.0
    %7398 = vmatprep.subr.mxu0 0.0
    %7399 = vmatpush1.msra.mxu0 0.0
    %7400 = vmatprep.subr.mxu0 0.0
    %7401 = vmatpush1.msra.mxu0 0.0
    %7402 = vmatprep.subr.mxu0 0.0
    %7403 = vmatpush1.msra.mxu0 0.0
    %7404 = vmatprep.subr.mxu0 0.0
    %7405 = vmatpush1.msra.mxu0 0.0
    %7406 = vmatprep.subr.mxu0 0.0
    %7407 = vmatpush1.msra.mxu0 0.0
    %7408 = vmatprep.subr.mxu0 0.0
    %7409 = vmatpush1.msra.mxu0 0.0
    %7410 = vmatprep.subr.mxu0 0.0
    %7411 = vmatpush1.msra.mxu0 0.0
    %7412 = vmatprep.subr.mxu0 0.0
    %7413 = vmatpush1.msra.mxu0 0.0
    %7414 = vmatprep.subr.mxu0 0.0
    %7415 = vmatpush1.msra.mxu0 0.0
    %7416 = vmatprep.subr.mxu0 0.0
    %7417 = vmatpush1.msra.mxu0 0.0
    %7418 = vmatprep.subr.mxu0 0.0
    %7419 = vmatpush1.msra.mxu0 0.0
    %7420 = vmatprep.subr.mxu0 0.0
    %7421 = vmatpush1.msra.mxu0 0.0
    %7422 = vmatprep.mubr.f32.mxu0 0.0
    %7423 = vmatmul.mubr.f32.gmra.mrb[0].mxu0 %v7335
    %v7424 = vpop.f32.mrb[0].mxu0
    %v7425 = vadd.f32 %v7296, %v7424
    %v7426 = vpop.f32.mrb[0].mxu0
    %7427 = vmatprep.mubr.f32.mxu0 0.0
    %7428 = vmatmul.mubr.f32.gmra.mrb[0].mxu0 %v7338
    %v7429 = vpop.f32.mrb[0].mxu0
    %v7430 = vadd.f32 %v7301, %v7429
    %v7431 = vpop.f32.mrb[0].mxu0
    %7432 = vmatprep.mubr.f32.mxu0 0.0
    %7433 = vmatmul.mubr.f32.gmra.mrb[0].mxu0 %v7341
    %v7434 = vpop.f32.mrb[0].mxu0
    %v7435 = vadd.f32 %v7306, %v7434
    %v7436 = vpop.f32.mrb[0].mxu0
    %7437 = vmatprep.mubr.f32.mxu0 0.0
    %7438 = vmatmul.mubr.f32.gmra.mrb[0].mxu0 %v7344
    %v7439 = vpop.f32.mrb[0].mxu0
    %v7440 = vadd.f32 %v7311, %v7439
    %v7441 = vpop.f32.mrb[0].mxu0
    %7442 = vmatprep.mubr.f32.mxu0 0.0
    %7443 = vmatmul.mubr.f32.gmra.mrb[0].mxu0 %v7347
    %v7444 = vpop.f32.mrb[0].mxu0
    %v7445 = vadd.f32 %v7316, %v7444
    %v7446 = vpop.f32.mrb[0].mxu0
    %7447 = vmatprep.mubr.f32.mxu0 0.0
    %7448 = vmatmul.mubr.f32.gmra.mrb[0].mxu0 %v7350
    %v7449 = vpop.f32.mrb[0].mxu0
    %v7450 = vadd.f32 %v7321, %v7449
    %v7451 = vpop.f32.mrb[0].mxu0
    %7452 = vmatprep.mubr.f32.mxu0 0.0
    %7453 = vmatmul.mubr.f32.gmra.mrb[0].mxu0 %v7353
    %v7454 = vpop.f32.mrb[0].mxu0
    %v7455 = vadd.f32 %v7326, %v7454
    %v7456 = vpop.f32.mrb[0].mxu0
    %7457 = vmatprep.mubr.f32.mxu0 0.0
    %7458 = vmatmul.mubr.f32.gmra.mrb[0].mxu0 %v7356
    %v7459 = vpop.f32.mrb[0].mxu0
    %v7460 = vadd.f32 %v7331, %v7459
    %v7461 = vpop.f32.mrb[0].mxu0
    %7462 = vdwg.mxu0
    %v7463 = vld [vmem:[%s5777 + $0x42] sm:$0xff]
    %v7464 = vld [vmem:[%s5777 + $0x4a] sm:$0xff]
    %v7465 = vld [vmem:[%s5777 + $0x52] sm:$0xff]
    %v7466 = vld [vmem:[%s5777 + $0x5a] sm:$0xff]
    %v7467 = vld [vmem:[%s5777 + $0x62] sm:$0xff]
    %v7468 = vld [vmem:[%s5777 + $0x6a] sm:$0xff]
    %v7469 = vld [vmem:[%s5777 + $0x72] sm:$0xff]
    %v7470 = vld [vmem:[%s5777 + $0x7a] sm:$0xff]
    %v7471 = vmul.f32 %v7463, %v166
    %v7472 = vmul.f32 %v7464, %v167
    %v7473 = vmul.f32 %v7465, %v168
    %v7474 = vmul.f32 %v7466, %v169
    %v7475 = vmul.f32 %v7467, %v170
    %v7476 = vmul.f32 %v7468, %v171
    %v7477 = vmul.f32 %v7469, %v172
    %v7478 = vmul.f32 %v7470, %v173
    %v7480 = vsel %vm201, %v7471, 0
    %v7483 = vsel %vm201, %v7472, 0
    %v7486 = vsel %vm201, %v7473, 0
    %v7489 = vsel %vm201, %v7474, 0
    %v7492 = vsel %vm201, %v7475, 0
    %v7495 = vsel %vm201, %v7476, 0
    %v7498 = vsel %vm201, %v7477, 0
    %v7501 = vsel %vm201, %v7478, 0
    %7503 = vmatprep.subr.mxu0 0.0
    %7504 = vmatpush1.msra.mxu0 %v6110
    %7505 = vmatprep.subr.mxu0 0.0
    %7506 = vmatpush1.msra.mxu0 0.0
    %7507 = vmatprep.subr.mxu0 0.0
    %7508 = vmatpush1.msra.mxu0 0.0
    %7509 = vmatprep.subr.mxu0 0.0
    %7510 = vmatpush1.msra.mxu0 0.0
    %7511 = vmatprep.subr.mxu0 0.0
    %7512 = vmatpush1.msra.mxu0 0.0
    %7513 = vmatprep.subr.mxu0 0.0
    %7514 = vmatpush1.msra.mxu0 0.0
    %7515 = vmatprep.subr.mxu0 0.0
    %7516 = vmatpush1.msra.mxu0 0.0
    %7517 = vmatprep.subr.mxu0 0.0
    %7518 = vmatpush1.msra.mxu0 0.0
    %7519 = vmatprep.subr.mxu0 0.0
    %7520 = vmatpush1.msra.mxu0 0.0
    %7521 = vmatprep.subr.mxu0 0.0
    %7522 = vmatpush1.msra.mxu0 0.0
    %7523 = vmatprep.subr.mxu0 0.0
    %7524 = vmatpush1.msra.mxu0 0.0
    %7525 = vmatprep.subr.mxu0 0.0
    %7526 = vmatpush1.msra.mxu0 0.0
    %7527 = vmatprep.subr.mxu0 0.0
    %7528 = vmatpush1.msra.mxu0 0.0
    %7529 = vmatprep.subr.mxu0 0.0
    %7530 = vmatpush1.msra.mxu0 0.0
    %7531 = vmatprep.subr.mxu0 0.0
    %7532 = vmatpush1.msra.mxu0 0.0
    %7533 = vmatprep.subr.mxu0 0.0
    %7534 = vmatpush1.msra.mxu0 0.0
    %7535 = vmatprep.subr.mxu0 0.0
    %7536 = vmatpush1.msra.mxu0 0.0
    %7537 = vmatprep.subr.mxu0 0.0
    %7538 = vmatpush1.msra.mxu0 0.0
    %7539 = vmatprep.subr.mxu0 0.0
    %7540 = vmatpush1.msra.mxu0 0.0
    %7541 = vmatprep.subr.mxu0 0.0
    %7542 = vmatpush1.msra.mxu0 0.0
    %7543 = vmatprep.subr.mxu0 0.0
    %7544 = vmatpush1.msra.mxu0 0.0
    %7545 = vmatprep.subr.mxu0 0.0
    %7546 = vmatpush1.msra.mxu0 0.0
    %7547 = vmatprep.subr.mxu0 0.0
    %7548 = vmatpush1.msra.mxu0 0.0
    %7549 = vmatprep.subr.mxu0 0.0
    %7550 = vmatpush1.msra.mxu0 0.0
    %7551 = vmatprep.subr.mxu0 0.0
    %7552 = vmatpush1.msra.mxu0 0.0
    %7553 = vmatprep.subr.mxu0 0.0
    %7554 = vmatpush1.msra.mxu0 0.0
    %7555 = vmatprep.subr.mxu0 0.0
    %7556 = vmatpush1.msra.mxu0 0.0
    %7557 = vmatprep.subr.mxu0 0.0
    %7558 = vmatpush1.msra.mxu0 0.0
    %7559 = vmatprep.subr.mxu0 0.0
    %7560 = vmatpush1.msra.mxu0 0.0
    %7561 = vmatprep.subr.mxu0 0.0
    %7562 = vmatpush1.msra.mxu0 0.0
    %7563 = vmatprep.subr.mxu0 0.0
    %7564 = vmatpush1.msra.mxu0 0.0
    %7565 = vmatprep.subr.mxu0 0.0
    %7566 = vmatpush1.msra.mxu0 0.0
    %7567 = vmatprep.mubr.f32.mxu0 0.0
    %7568 = vmatmul.mubr.f32.gmra.mrb[0].mxu0 %v7480
    %v7569 = vpop.f32.mrb[0].mxu0
    %v7570 = vadd.f32 0.0, %v7569
    %v7571 = vpop.f32.mrb[0].mxu0
    %7572 = vmatprep.mubr.f32.mxu0 0.0
    %7573 = vmatmul.mubr.f32.gmra.mrb[0].mxu0 %v7483
    %v7574 = vpop.f32.mrb[0].mxu0
    %v7575 = vadd.f32 0.0, %v7574
    %v7576 = vpop.f32.mrb[0].mxu0
    %7577 = vmatprep.mubr.f32.mxu0 0.0
    %7578 = vmatmul.mubr.f32.gmra.mrb[0].mxu0 %v7486
    %v7579 = vpop.f32.mrb[0].mxu0
    %v7580 = vadd.f32 0.0, %v7579
    %v7581 = vpop.f32.mrb[0].mxu0
    %7582 = vmatprep.mubr.f32.mxu0 0.0
    %7583 = vmatmul.mubr.f32.gmra.mrb[0].mxu0 %v7489
    %v7584 = vpop.f32.mrb[0].mxu0
    %v7585 = vadd.f32 0.0, %v7584
    %v7586 = vpop.f32.mrb[0].mxu0
    %7587 = vmatprep.mubr.f32.mxu0 0.0
    %7588 = vmatmul.mubr.f32.gmra.mrb[0].mxu0 %v7492
    %v7589 = vpop.f32.mrb[0].mxu0
    %v7590 = vadd.f32 0.0, %v7589
    %v7591 = vpop.f32.mrb[0].mxu0
    %7592 = vmatprep.mubr.f32.mxu0 0.0
    %7593 = vmatmul.mubr.f32.gmra.mrb[0].mxu0 %v7495
    %v7594 = vpop.f32.mrb[0].mxu0
    %v7595 = vadd.f32 0.0, %v7594
    %v7596 = vpop.f32.mrb[0].mxu0
    %7597 = vmatprep.mubr.f32.mxu0 0.0
    %7598 = vmatmul.mubr.f32.gmra.mrb[0].mxu0 %v7498
    %v7599 = vpop.f32.mrb[0].mxu0
    %v7600 = vadd.f32 0.0, %v7599
    %v7601 = vpop.f32.mrb[0].mxu0
    %7602 = vmatprep.mubr.f32.mxu0 0.0
    %7603 = vmatmul.mubr.f32.gmra.mrb[0].mxu0 %v7501
    %v7604 = vpop.f32.mrb[0].mxu0
    %v7605 = vadd.f32 0.0, %v7604
    %v7606 = vpop.f32.mrb[0].mxu0
    %7607 = vdwg.mxu0
    %v7608 = vadd.f32 %v7425, %v7570
    %v7609 = vadd.f32 %v7430, %v7575
    %v7610 = vadd.f32 %v7435, %v7580
    %v7611 = vadd.f32 %v7440, %v7585
    %v7612 = vadd.f32 %v7445, %v7590
    %v7613 = vadd.f32 %v7450, %v7595
    %v7614 = vadd.f32 %v7455, %v7600
    %v7615 = vadd.f32 %v7460, %v7605
    %v7616 = vld [vmem:[%s5777 + $0x50] sm:$0xff]
    %v7617 = vld [vmem:[%s5777 + $0x58] sm:$0xff]
    %v7618 = vld [vmem:[%s5777 + $0x60] sm:$0xff]
    %v7619 = vld [vmem:[%s5777 + $0x68] sm:$0xff]
    %v7620 = vld [vmem:[%s5777 + $0x70] sm:$0xff]
    %v7621 = vld [vmem:[%s5777 + $0x78] sm:$0xff]
    %v7622 = vld [vmem:[%s5777 + $0x80] sm:$0xff]
    %v7623 = vld [vmem:[%s5777 + $0x88] sm:$0xff]
    %v7624 = vmul.f32 %v7616, %v142
    %v7625 = vmul.f32 %v7617, %v143
    %v7626 = vmul.f32 %v7618, %v144
    %v7627 = vmul.f32 %v7619, %v145
    %v7628 = vmul.f32 %v7620, %v146
    %v7629 = vmul.f32 %v7621, %v147
    %v7630 = vmul.f32 %v7622, %v148
    %v7631 = vmul.f32 %v7623, %v149
    %v7633 = vsel %vm201, %v7624, 0
    %v7636 = vsel %vm201, %v7625, 0
    %v7639 = vsel %vm201, %v7626, 0
    %v7642 = vsel %vm201, %v7627, 0
    %v7645 = vsel %vm201, %v7628, 0
    %v7648 = vsel %vm201, %v7629, 0
    %v7651 = vsel %vm201, %v7630, 0
    %v7654 = vsel %vm201, %v7631, 0
    %7656 = vmatprep.subr.mxu0 0.0
    %7657 = vmatpush1.msra.mxu0 %v6267
    %7658 = vmatprep.subr.mxu0 0.0
    %7659 = vmatpush1.msra.mxu0 0.0
    %7660 = vmatprep.subr.mxu0 0.0
    %7661 = vmatpush1.msra.mxu0 0.0
    %7662 = vmatprep.subr.mxu0 0.0
    %7663 = vmatpush1.msra.mxu0 0.0
    %7664 = vmatprep.subr.mxu0 0.0
    %7665 = vmatpush1.msra.mxu0 0.0
    %7666 = vmatprep.subr.mxu0 0.0
    %7667 = vmatpush1.msra.mxu0 0.0
    %7668 = vmatprep.subr.mxu0 0.0
    %7669 = vmatpush1.msra.mxu0 0.0
    %7670 = vmatprep.subr.mxu0 0.0
    %7671 = vmatpush1.msra.mxu0 0.0
    %7672 = vmatprep.subr.mxu0 0.0
    %7673 = vmatpush1.msra.mxu0 0.0
    %7674 = vmatprep.subr.mxu0 0.0
    %7675 = vmatpush1.msra.mxu0 0.0
    %7676 = vmatprep.subr.mxu0 0.0
    %7677 = vmatpush1.msra.mxu0 0.0
    %7678 = vmatprep.subr.mxu0 0.0
    %7679 = vmatpush1.msra.mxu0 0.0
    %7680 = vmatprep.subr.mxu0 0.0
    %7681 = vmatpush1.msra.mxu0 0.0
    %7682 = vmatprep.subr.mxu0 0.0
    %7683 = vmatpush1.msra.mxu0 0.0
    %7684 = vmatprep.subr.mxu0 0.0
    %7685 = vmatpush1.msra.mxu0 0.0
    %7686 = vmatprep.subr.mxu0 0.0
    %7687 = vmatpush1.msra.mxu0 0.0
    %7688 = vmatprep.subr.mxu0 0.0
    %7689 = vmatpush1.msra.mxu0 0.0
    %7690 = vmatprep.subr.mxu0 0.0
    %7691 = vmatpush1.msra.mxu0 0.0
    %7692 = vmatprep.subr.mxu0 0.0
    %7693 = vmatpush1.msra.mxu0 0.0
    %7694 = vmatprep.subr.mxu0 0.0
    %7695 = vmatpush1.msra.mxu0 0.0
    %7696 = vmatprep.subr.mxu0 0.0
    %7697 = vmatpush1.msra.mxu0 0.0
    %7698 = vmatprep.subr.mxu0 0.0
    %7699 = vmatpush1.msra.mxu0 0.0
    %7700 = vmatprep.subr.mxu0 0.0
    %7701 = vmatpush1.msra.mxu0 0.0
    %7702 = vmatprep.subr.mxu0 0.0
    %7703 = vmatpush1.msra.mxu0 0.0
    %7704 = vmatprep.subr.mxu0 0.0
    %7705 = vmatpush1.msra.mxu0 0.0
    %7706 = vmatprep.subr.mxu0 0.0
    %7707 = vmatpush1.msra.mxu0 0.0
    %7708 = vmatprep.subr.mxu0 0.0
    %7709 = vmatpush1.msra.mxu0 0.0
    %7710 = vmatprep.subr.mxu0 0.0
    %7711 = vmatpush1.msra.mxu0 0.0
    %7712 = vmatprep.subr.mxu0 0.0
    %7713 = vmatpush1.msra.mxu0 0.0
    %7714 = vmatprep.subr.mxu0 0.0
    %7715 = vmatpush1.msra.mxu0 0.0
    %7716 = vmatprep.subr.mxu0 0.0
    %7717 = vmatpush1.msra.mxu0 0.0
    %7718 = vmatprep.subr.mxu0 0.0
    %7719 = vmatpush1.msra.mxu0 0.0
    %7720 = vmatprep.mubr.f32.mxu0 0.0
    %7721 = vmatmul.mubr.f32.gmra.mrb[0].mxu0 %v7633
    %v7722 = vpop.f32.mrb[0].mxu0
    %v7723 = vadd.f32 0.0, %v7722
    %v7724 = vpop.f32.mrb[0].mxu0
    %7725 = vmatprep.mubr.f32.mxu0 0.0
    %7726 = vmatmul.mubr.f32.gmra.mrb[0].mxu0 %v7636
    %v7727 = vpop.f32.mrb[0].mxu0
    %v7728 = vadd.f32 0.0, %v7727
    %v7729 = vpop.f32.mrb[0].mxu0
    %7730 = vmatprep.mubr.f32.mxu0 0.0
    %7731 = vmatmul.mubr.f32.gmra.mrb[0].mxu0 %v7639
    %v7732 = vpop.f32.mrb[0].mxu0
    %v7733 = vadd.f32 0.0, %v7732
    %v7734 = vpop.f32.mrb[0].mxu0
    %7735 = vmatprep.mubr.f32.mxu0 0.0
    %7736 = vmatmul.mubr.f32.gmra.mrb[0].mxu0 %v7642
    %v7737 = vpop.f32.mrb[0].mxu0
    %v7738 = vadd.f32 0.0, %v7737
    %v7739 = vpop.f32.mrb[0].mxu0
    %7740 = vmatprep.mubr.f32.mxu0 0.0
    %7741 = vmatmul.mubr.f32.gmra.mrb[0].mxu0 %v7645
    %v7742 = vpop.f32.mrb[0].mxu0
    %v7743 = vadd.f32 0.0, %v7742
    %v7744 = vpop.f32.mrb[0].mxu0
    %7745 = vmatprep.mubr.f32.mxu0 0.0
    %7746 = vmatmul.mubr.f32.gmra.mrb[0].mxu0 %v7648
    %v7747 = vpop.f32.mrb[0].mxu0
    %v7748 = vadd.f32 0.0, %v7747
    %v7749 = vpop.f32.mrb[0].mxu0
    %7750 = vmatprep.mubr.f32.mxu0 0.0
    %7751 = vmatmul.mubr.f32.gmra.mrb[0].mxu0 %v7651
    %v7752 = vpop.f32.mrb[0].mxu0
    %v7753 = vadd.f32 0.0, %v7752
    %v7754 = vpop.f32.mrb[0].mxu0
    %7755 = vmatprep.mubr.f32.mxu0 0.0
    %7756 = vmatmul.mubr.f32.gmra.mrb[0].mxu0 %v7654
    %v7757 = vpop.f32.mrb[0].mxu0
    %v7758 = vadd.f32 0.0, %v7757
    %v7759 = vpop.f32.mrb[0].mxu0
    %7760 = vdwg.mxu0
    %v7761 = vadd.f32 %v7608, %v7723
    %v7762 = vadd.f32 %v7609, %v7728
    %v7763 = vadd.f32 %v7610, %v7733
    %v7764 = vadd.f32 %v7611, %v7738
    %v7765 = vadd.f32 %v7612, %v7743
    %v7766 = vadd.f32 %v7613, %v7748
    %v7767 = vadd.f32 %v7614, %v7753
    %v7768 = vadd.f32 %v7615, %v7758
    %v7769 = vld [vmem:[%s5777 + $0x51] sm:$0xff]
    %v7770 = vld [vmem:[%s5777 + $0x59] sm:$0xff]
    %v7771 = vld [vmem:[%s5777 + $0x61] sm:$0xff]
    %v7772 = vld [vmem:[%s5777 + $0x69] sm:$0xff]
    %v7773 = vld [vmem:[%s5777 + $0x71] sm:$0xff]
    %v7774 = vld [vmem:[%s5777 + $0x79] sm:$0xff]
    %v7775 = vld [vmem:[%s5777 + $0x81] sm:$0xff]
    %v7776 = vld [vmem:[%s5777 + $0x89] sm:$0xff]
    %v7778 = vsel %vm201, %v7769, 0
    %v7781 = vsel %vm201, %v7770, 0
    %v7784 = vsel %vm201, %v7771, 0
    %v7787 = vsel %vm201, %v7772, 0
    %v7790 = vsel %vm201, %v7773, 0
    %v7793 = vsel %vm201, %v7774, 0
    %v7796 = vsel %vm201, %v7775, 0
    %v7799 = vsel %vm201, %v7776, 0
    %7801 = vmatprep.subr.mxu0 0.0
    %7802 = vmatpush1.msra.mxu0 %v6416
    %7803 = vmatprep.subr.mxu0 0.0
    %7804 = vmatpush1.msra.mxu0 0.0
    %7805 = vmatprep.subr.mxu0 0.0
    %7806 = vmatpush1.msra.mxu0 0.0
    %7807 = vmatprep.subr.mxu0 0.0
    %7808 = vmatpush1.msra.mxu0 0.0
    %7809 = vmatprep.subr.mxu0 0.0
    %7810 = vmatpush1.msra.mxu0 0.0
    %7811 = vmatprep.subr.mxu0 0.0
    %7812 = vmatpush1.msra.mxu0 0.0
    %7813 = vmatprep.subr.mxu0 0.0
    %7814 = vmatpush1.msra.mxu0 0.0
    %7815 = vmatprep.subr.mxu0 0.0
    %7816 = vmatpush1.msra.mxu0 0.0
    %7817 = vmatprep.subr.mxu0 0.0
    %7818 = vmatpush1.msra.mxu0 0.0
    %7819 = vmatprep.subr.mxu0 0.0
    %7820 = vmatpush1.msra.mxu0 0.0
    %7821 = vmatprep.subr.mxu0 0.0
    %7822 = vmatpush1.msra.mxu0 0.0
    %7823 = vmatprep.subr.mxu0 0.0
    %7824 = vmatpush1.msra.mxu0 0.0
    %7825 = vmatprep.subr.mxu0 0.0
    %7826 = vmatpush1.msra.mxu0 0.0
    %7827 = vmatprep.subr.mxu0 0.0
    %7828 = vmatpush1.msra.mxu0 0.0
    %7829 = vmatprep.subr.mxu0 0.0
    %7830 = vmatpush1.msra.mxu0 0.0
    %7831 = vmatprep.subr.mxu0 0.0
    %7832 = vmatpush1.msra.mxu0 0.0
    %7833 = vmatprep.subr.mxu0 0.0
    %7834 = vmatpush1.msra.mxu0 0.0
    %7835 = vmatprep.subr.mxu0 0.0
    %7836 = vmatpush1.msra.mxu0 0.0
    %7837 = vmatprep.subr.mxu0 0.0
    %7838 = vmatpush1.msra.mxu0 0.0
    %7839 = vmatprep.subr.mxu0 0.0
    %7840 = vmatpush1.msra.mxu0 0.0
    %7841 = vmatprep.subr.mxu0 0.0
    %7842 = vmatpush1.msra.mxu0 0.0
    %7843 = vmatprep.subr.mxu0 0.0
    %7844 = vmatpush1.msra.mxu0 0.0
    %7845 = vmatprep.subr.mxu0 0.0
    %7846 = vmatpush1.msra.mxu0 0.0
    %7847 = vmatprep.subr.mxu0 0.0
    %7848 = vmatpush1.msra.mxu0 0.0
    %7849 = vmatprep.subr.mxu0 0.0
    %7850 = vmatpush1.msra.mxu0 0.0
    %7851 = vmatprep.subr.mxu0 0.0
    %7852 = vmatpush1.msra.mxu0 0.0
    %7853 = vmatprep.subr.mxu0 0.0
    %7854 = vmatpush1.msra.mxu0 0.0
    %7855 = vmatprep.subr.mxu0 0.0
    %7856 = vmatpush1.msra.mxu0 0.0
    %7857 = vmatprep.subr.mxu0 0.0
    %7858 = vmatpush1.msra.mxu0 0.0
    %7859 = vmatprep.subr.mxu0 0.0
    %7860 = vmatpush1.msra.mxu0 0.0
    %7861 = vmatprep.subr.mxu0 0.0
    %7862 = vmatpush1.msra.mxu0 0.0
    %7863 = vmatprep.subr.mxu0 0.0
    %7864 = vmatpush1.msra.mxu0 0.0
    %7865 = vmatprep.mubr.f32.mxu0 0.0
    %7866 = vmatmul.mubr.f32.gmra.mrb[0].mxu0 %v7778
    %v7867 = vpop.f32.mrb[0].mxu0
    %v7868 = vadd.f32 0.0, %v7867
    %v7869 = vpop.f32.mrb[0].mxu0
    %7870 = vmatprep.mubr.f32.mxu0 0.0
    %7871 = vmatmul.mubr.f32.gmra.mrb[0].mxu0 %v7781
    %v7872 = vpop.f32.mrb[0].mxu0
    %v7873 = vadd.f32 0.0, %v7872
    %v7874 = vpop.f32.mrb[0].mxu0
    %7875 = vmatprep.mubr.f32.mxu0 0.0
    %7876 = vmatmul.mubr.f32.gmra.mrb[0].mxu0 %v7784
    %v7877 = vpop.f32.mrb[0].mxu0
    %v7878 = vadd.f32 0.0, %v7877
    %v7879 = vpop.f32.mrb[0].mxu0
    %7880 = vmatprep.mubr.f32.mxu0 0.0
    %7881 = vmatmul.mubr.f32.gmra.mrb[0].mxu0 %v7787
    %v7882 = vpop.f32.mrb[0].mxu0
    %v7883 = vadd.f32 0.0, %v7882
    %v7884 = vpop.f32.mrb[0].mxu0
    %7885 = vmatprep.mubr.f32.mxu0 0.0
    %7886 = vmatmul.mubr.f32.gmra.mrb[0].mxu0 %v7790
    %v7887 = vpop.f32.mrb[0].mxu0
    %v7888 = vadd.f32 0.0, %v7887
    %v7889 = vpop.f32.mrb[0].mxu0
    %7890 = vmatprep.mubr.f32.mxu0 0.0
    %7891 = vmatmul.mubr.f32.gmra.mrb[0].mxu0 %v7793
    %v7892 = vpop.f32.mrb[0].mxu0
    %v7893 = vadd.f32 0.0, %v7892
    %v7894 = vpop.f32.mrb[0].mxu0
    %7895 = vmatprep.mubr.f32.mxu0 0.0
    %7896 = vmatmul.mubr.f32.gmra.mrb[0].mxu0 %v7796
    %v7897 = vpop.f32.mrb[0].mxu0
    %v7898 = vadd.f32 0.0, %v7897
    %v7899 = vpop.f32.mrb[0].mxu0
    %7900 = vmatprep.mubr.f32.mxu0 0.0
    %7901 = vmatmul.mubr.f32.gmra.mrb[0].mxu0 %v7799
    %v7902 = vpop.f32.mrb[0].mxu0
    %v7903 = vadd.f32 0.0, %v7902
    %v7904 = vpop.f32.mrb[0].mxu0
    %7905 = vdwg.mxu0
    %v7906 = vadd.f32 %v7761, %v7868
    %v7907 = vadd.f32 %v7762, %v7873
    %v7908 = vadd.f32 %v7763, %v7878
    %v7909 = vadd.f32 %v7764, %v7883
    %v7910 = vadd.f32 %v7765, %v7888
    %v7911 = vadd.f32 %v7766, %v7893
    %v7912 = vadd.f32 %v7767, %v7898
    %v7913 = vadd.f32 %v7768, %v7903
    %v7914 = vld [vmem:[%s5777 + $0x52] sm:$0xff]
    %v7915 = vld [vmem:[%s5777 + $0x5a] sm:$0xff]
    %v7916 = vld [vmem:[%s5777 + $0x62] sm:$0xff]
    %v7917 = vld [vmem:[%s5777 + $0x6a] sm:$0xff]
    %v7918 = vld [vmem:[%s5777 + $0x72] sm:$0xff]
    %v7919 = vld [vmem:[%s5777 + $0x7a] sm:$0xff]
    %v7920 = vld [vmem:[%s5777 + $0x82] sm:$0xff]
    %v7921 = vld [vmem:[%s5777 + $0x8a] sm:$0xff]
    %v7922 = vmul.f32 %v7914, %v166
    %v7923 = vmul.f32 %v7915, %v167
    %v7924 = vmul.f32 %v7916, %v168
    %v7925 = vmul.f32 %v7917, %v169
    %v7926 = vmul.f32 %v7918, %v170
    %v7927 = vmul.f32 %v7919, %v171
    %v7928 = vmul.f32 %v7920, %v172
    %v7929 = vmul.f32 %v7921, %v173
    %v7931 = vsel %vm201, %v7922, 0
    %v7934 = vsel %vm201, %v7923, 0
    %v7937 = vsel %vm201, %v7924, 0
    %v7940 = vsel %vm201, %v7925, 0
    %v7943 = vsel %vm201, %v7926, 0
    %v7946 = vsel %vm201, %v7927, 0
    %v7949 = vsel %vm201, %v7928, 0
    %v7952 = vsel %vm201, %v7929, 0
    %7954 = vmatprep.subr.mxu0 0.0
    %7955 = vmatpush1.msra.mxu0 %v6573
    %7956 = vmatprep.subr.mxu0 0.0
    %7957 = vmatpush1.msra.mxu0 0.0
    %7958 = vmatprep.subr.mxu0 0.0
    %7959 = vmatpush1.msra.mxu0 0.0
    %7960 = vmatprep.subr.mxu0 0.0
    %7961 = vmatpush1.msra.mxu0 0.0
    %7962 = vmatprep.subr.mxu0 0.0
    %7963 = vmatpush1.msra.mxu0 0.0
    %7964 = vmatprep.subr.mxu0 0.0
    %7965 = vmatpush1.msra.mxu0 0.0
    %7966 = vmatprep.subr.mxu0 0.0
    %7967 = vmatpush1.msra.mxu0 0.0
    %7968 = vmatprep.subr.mxu0 0.0
    %7969 = vmatpush1.msra.mxu0 0.0
    %7970 = vmatprep.subr.mxu0 0.0
    %7971 = vmatpush1.msra.mxu0 0.0
    %7972 = vmatprep.subr.mxu0 0.0
    %7973 = vmatpush1.msra.mxu0 0.0
    %7974 = vmatprep.subr.mxu0 0.0
    %7975 = vmatpush1.msra.mxu0 0.0
    %7976 = vmatprep.subr.mxu0 0.0
    %7977 = vmatpush1.msra.mxu0 0.0
    %7978 = vmatprep.subr.mxu0 0.0
    %7979 = vmatpush1.msra.mxu0 0.0
    %7980 = vmatprep.subr.mxu0 0.0
    %7981 = vmatpush1.msra.mxu0 0.0
    %7982 = vmatprep.subr.mxu0 0.0
    %7983 = vmatpush1.msra.mxu0 0.0
    %7984 = vmatprep.subr.mxu0 0.0
    %7985 = vmatpush1.msra.mxu0 0.0
    %7986 = vmatprep.subr.mxu0 0.0
    %7987 = vmatpush1.msra.mxu0 0.0
    %7988 = vmatprep.subr.mxu0 0.0
    %7989 = vmatpush1.msra.mxu0 0.0
    %7990 = vmatprep.subr.mxu0 0.0
    %7991 = vmatpush1.msra.mxu0 0.0
    %7992 = vmatprep.subr.mxu0 0.0
    %7993 = vmatpush1.msra.mxu0 0.0
    %7994 = vmatprep.subr.mxu0 0.0
    %7995 = vmatpush1.msra.mxu0 0.0
    %7996 = vmatprep.subr.mxu0 0.0
    %7997 = vmatpush1.msra.mxu0 0.0
    %7998 = vmatprep.subr.mxu0 0.0
    %7999 = vmatpush1.msra.mxu0 0.0
    %8000 = vmatprep.subr.mxu0 0.0
    %8001 = vmatpush1.msra.mxu0 0.0
    %8002 = vmatprep.subr.mxu0 0.0
    %8003 = vmatpush1.msra.mxu0 0.0
    %8004 = vmatprep.subr.mxu0 0.0
    %8005 = vmatpush1.msra.mxu0 0.0
    %8006 = vmatprep.subr.mxu0 0.0
    %8007 = vmatpush1.msra.mxu0 0.0
    %8008 = vmatprep.subr.mxu0 0.0
    %8009 = vmatpush1.msra.mxu0 0.0
    %8010 = vmatprep.subr.mxu0 0.0
    %8011 = vmatpush1.msra.mxu0 0.0
    %8012 = vmatprep.subr.mxu0 0.0
    %8013 = vmatpush1.msra.mxu0 0.0
    %8014 = vmatprep.subr.mxu0 0.0
    %8015 = vmatpush1.msra.mxu0 0.0
    %8016 = vmatprep.subr.mxu0 0.0
    %8017 = vmatpush1.msra.mxu0 0.0
    %8018 = vmatprep.mubr.f32.mxu0 0.0
    %8019 = vmatmul.mubr.f32.gmra.mrb[0].mxu0 %v7931
    %v8020 = vpop.f32.mrb[0].mxu0
    %v8021 = vadd.f32 0.0, %v8020
    %v8022 = vpop.f32.mrb[0].mxu0
    %8023 = vmatprep.mubr.f32.mxu0 0.0
    %8024 = vmatmul.mubr.f32.gmra.mrb[0].mxu0 %v7934
    %v8025 = vpop.f32.mrb[0].mxu0
    %v8026 = vadd.f32 0.0, %v8025
    %v8027 = vpop.f32.mrb[0].mxu0
    %8028 = vmatprep.mubr.f32.mxu0 0.0
    %8029 = vmatmul.mubr.f32.gmra.mrb[0].mxu0 %v7937
    %v8030 = vpop.f32.mrb[0].mxu0
    %v8031 = vadd.f32 0.0, %v8030
    %v8032 = vpop.f32.mrb[0].mxu0
    %8033 = vmatprep.mubr.f32.mxu0 0.0
    %8034 = vmatmul.mubr.f32.gmra.mrb[0].mxu0 %v7940
    %v8035 = vpop.f32.mrb[0].mxu0
    %v8036 = vadd.f32 0.0, %v8035
    %v8037 = vpop.f32.mrb[0].mxu0
    %8038 = vmatprep.mubr.f32.mxu0 0.0
    %8039 = vmatmul.mubr.f32.gmra.mrb[0].mxu0 %v7943
    %v8040 = vpop.f32.mrb[0].mxu0
    %v8041 = vadd.f32 0.0, %v8040
    %v8042 = vpop.f32.mrb[0].mxu0
    %8043 = vmatprep.mubr.f32.mxu0 0.0
    %8044 = vmatmul.mubr.f32.gmra.mrb[0].mxu0 %v7946
    %v8045 = vpop.f32.mrb[0].mxu0
    %v8046 = vadd.f32 0.0, %v8045
    %v8047 = vpop.f32.mrb[0].mxu0
    %8048 = vmatprep.mubr.f32.mxu0 0.0
    %8049 = vmatmul.mubr.f32.gmra.mrb[0].mxu0 %v7949
    %v8050 = vpop.f32.mrb[0].mxu0
    %v8051 = vadd.f32 0.0, %v8050
    %v8052 = vpop.f32.mrb[0].mxu0
    %8053 = vmatprep.mubr.f32.mxu0 0.0
    %8054 = vmatmul.mubr.f32.gmra.mrb[0].mxu0 %v7952
    %v8055 = vpop.f32.mrb[0].mxu0
    %v8056 = vadd.f32 0.0, %v8055
    %v8057 = vpop.f32.mrb[0].mxu0
    %8058 = vdwg.mxu0
    %v8059 = vadd.f32 %v7906, %v8021
    %v8060 = vadd.f32 %v7907, %v8026
    %v8061 = vadd.f32 %v7908, %v8031
    %v8062 = vadd.f32 %v7909, %v8036
    %v8063 = vadd.f32 %v7910, %v8041
    %v8064 = vadd.f32 %v7911, %v8046
    %v8065 = vadd.f32 %v7912, %v8051
    %v8066 = vadd.f32 %v7913, %v8056
    %v8067 = vld [vmem:[%s5777 + $0x60] sm:$0xff]
    %v8068 = vld [vmem:[%s5777 + $0x68] sm:$0xff]
    %v8069 = vld [vmem:[%s5777 + $0x70] sm:$0xff]
    %v8070 = vld [vmem:[%s5777 + $0x78] sm:$0xff]
    %v8071 = vld [vmem:[%s5777 + $0x80] sm:$0xff]
    %v8072 = vld [vmem:[%s5777 + $0x88] sm:$0xff]
    %v8073 = vld [vmem:[%s5777 + $0x90] sm:$0xff]
    %v8074 = vld [vmem:[%s5777 + $0x98] sm:$0xff]
    %v8075 = vmul.f32 %v8067, %v142
    %v8076 = vmul.f32 %v8068, %v143
    %v8077 = vmul.f32 %v8069, %v144
    %v8078 = vmul.f32 %v8070, %v145
    %v8079 = vmul.f32 %v8071, %v146
    %v8080 = vmul.f32 %v8072, %v147
    %v8081 = vmul.f32 %v8073, %v148
    %v8082 = vmul.f32 %v8074, %v149
    %v8084 = vsel %vm201, %v8075, 0
    %v8087 = vsel %vm201, %v8076, 0
    %v8090 = vsel %vm201, %v8077, 0
    %v8093 = vsel %vm201, %v8078, 0
    %v8096 = vsel %vm201, %v8079, 0
    %v8099 = vsel %vm201, %v8080, 0
    %v8102 = vsel %vm201, %v8081, 0
    %v8105 = vsel %vm201, %v8082, 0
    %8107 = vmatprep.subr.mxu0 0.0
    %8108 = vmatpush1.msra.mxu0 %v6730
    %8109 = vmatprep.subr.mxu0 0.0
    %8110 = vmatpush1.msra.mxu0 0.0
    %8111 = vmatprep.subr.mxu0 0.0
    %8112 = vmatpush1.msra.mxu0 0.0
    %8113 = vmatprep.subr.mxu0 0.0
    %8114 = vmatpush1.msra.mxu0 0.0
    %8115 = vmatprep.subr.mxu0 0.0
    %8116 = vmatpush1.msra.mxu0 0.0
    %8117 = vmatprep.subr.mxu0 0.0
    %8118 = vmatpush1.msra.mxu0 0.0
    %8119 = vmatprep.subr.mxu0 0.0
    %8120 = vmatpush1.msra.mxu0 0.0
    %8121 = vmatprep.subr.mxu0 0.0
    %8122 = vmatpush1.msra.mxu0 0.0
    %8123 = vmatprep.subr.mxu0 0.0
    %8124 = vmatpush1.msra.mxu0 0.0
    %8125 = vmatprep.subr.mxu0 0.0
    %8126 = vmatpush1.msra.mxu0 0.0
    %8127 = vmatprep.subr.mxu0 0.0
    %8128 = vmatpush1.msra.mxu0 0.0
    %8129 = vmatprep.subr.mxu0 0.0
    %8130 = vmatpush1.msra.mxu0 0.0
    %8131 = vmatprep.subr.mxu0 0.0
    %8132 = vmatpush1.msra.mxu0 0.0
    %8133 = vmatprep.subr.mxu0 0.0
    %8134 = vmatpush1.msra.mxu0 0.0
    %8135 = vmatprep.subr.mxu0 0.0
    %8136 = vmatpush1.msra.mxu0 0.0
    %8137 = vmatprep.subr.mxu0 0.0
    %8138 = vmatpush1.msra.mxu0 0.0
    %8139 = vmatprep.subr.mxu0 0.0
    %8140 = vmatpush1.msra.mxu0 0.0
    %8141 = vmatprep.subr.mxu0 0.0
    %8142 = vmatpush1.msra.mxu0 0.0
    %8143 = vmatprep.subr.mxu0 0.0
    %8144 = vmatpush1.msra.mxu0 0.0
    %8145 = vmatprep.subr.mxu0 0.0
    %8146 = vmatpush1.msra.mxu0 0.0
    %8147 = vmatprep.subr.mxu0 0.0
    %8148 = vmatpush1.msra.mxu0 0.0
    %8149 = vmatprep.subr.mxu0 0.0
    %8150 = vmatpush1.msra.mxu0 0.0
    %8151 = vmatprep.subr.mxu0 0.0
    %8152 = vmatpush1.msra.mxu0 0.0
    %8153 = vmatprep.subr.mxu0 0.0
    %8154 = vmatpush1.msra.mxu0 0.0
    %8155 = vmatprep.subr.mxu0 0.0
    %8156 = vmatpush1.msra.mxu0 0.0
    %8157 = vmatprep.subr.mxu0 0.0
    %8158 = vmatpush1.msra.mxu0 0.0
    %8159 = vmatprep.subr.mxu0 0.0
    %8160 = vmatpush1.msra.mxu0 0.0
    %8161 = vmatprep.subr.mxu0 0.0
    %8162 = vmatpush1.msra.mxu0 0.0
    %8163 = vmatprep.subr.mxu0 0.0
    %8164 = vmatpush1.msra.mxu0 0.0
    %8165 = vmatprep.subr.mxu0 0.0
    %8166 = vmatpush1.msra.mxu0 0.0
    %8167 = vmatprep.subr.mxu0 0.0
    %8168 = vmatpush1.msra.mxu0 0.0
    %8169 = vmatprep.subr.mxu0 0.0
    %8170 = vmatpush1.msra.mxu0 0.0
    %8171 = vmatprep.mubr.f32.mxu0 0.0
    %8172 = vmatmul.mubr.f32.gmra.mrb[0].mxu0 %v8084
    %v8173 = vpop.f32.mrb[0].mxu0
    %v8174 = vadd.f32 0.0, %v8173
    %v8175 = vpop.f32.mrb[0].mxu0
    %8176 = vmatprep.mubr.f32.mxu0 0.0
    %8177 = vmatmul.mubr.f32.gmra.mrb[0].mxu0 %v8087
    %v8178 = vpop.f32.mrb[0].mxu0
    %v8179 = vadd.f32 0.0, %v8178
    %v8180 = vpop.f32.mrb[0].mxu0
    %8181 = vmatprep.mubr.f32.mxu0 0.0
    %8182 = vmatmul.mubr.f32.gmra.mrb[0].mxu0 %v8090
    %v8183 = vpop.f32.mrb[0].mxu0
    %v8184 = vadd.f32 0.0, %v8183
    %v8185 = vpop.f32.mrb[0].mxu0
    %8186 = vmatprep.mubr.f32.mxu0 0.0
    %8187 = vmatmul.mubr.f32.gmra.mrb[0].mxu0 %v8093
    %v8188 = vpop.f32.mrb[0].mxu0
    %v8189 = vadd.f32 0.0, %v8188
    %v8190 = vpop.f32.mrb[0].mxu0
    %8191 = vmatprep.mubr.f32.mxu0 0.0
    %8192 = vmatmul.mubr.f32.gmra.mrb[0].mxu0 %v8096
    %v8193 = vpop.f32.mrb[0].mxu0
    %v8194 = vadd.f32 0.0, %v8193
    %v8195 = vpop.f32.mrb[0].mxu0
    %8196 = vmatprep.mubr.f32.mxu0 0.0
    %8197 = vmatmul.mubr.f32.gmra.mrb[0].mxu0 %v8099
    %v8198 = vpop.f32.mrb[0].mxu0
    %v8199 = vadd.f32 0.0, %v8198
    %v8200 = vpop.f32.mrb[0].mxu0
    %8201 = vmatprep.mubr.f32.mxu0 0.0
    %8202 = vmatmul.mubr.f32.gmra.mrb[0].mxu0 %v8102
    %v8203 = vpop.f32.mrb[0].mxu0
    %v8204 = vadd.f32 0.0, %v8203
    %v8205 = vpop.f32.mrb[0].mxu0
    %8206 = vmatprep.mubr.f32.mxu0 0.0
    %8207 = vmatmul.mubr.f32.gmra.mrb[0].mxu0 %v8105
    %v8208 = vpop.f32.mrb[0].mxu0
    %v8209 = vadd.f32 0.0, %v8208
    %v8210 = vpop.f32.mrb[0].mxu0
    %8211 = vdwg.mxu0
    %v8212 = vadd.f32 %v8059, %v8174
    %v8213 = vadd.f32 %v8060, %v8179
    %v8214 = vadd.f32 %v8061, %v8184
    %v8215 = vadd.f32 %v8062, %v8189
    %v8216 = vadd.f32 %v8063, %v8194
    %v8217 = vadd.f32 %v8064, %v8199
    %v8218 = vadd.f32 %v8065, %v8204
    %v8219 = vadd.f32 %v8066, %v8209
    %v8220 = vld [vmem:[%s5777 + $0x61] sm:$0xff]
    %v8221 = vld [vmem:[%s5777 + $0x69] sm:$0xff]
    %v8222 = vld [vmem:[%s5777 + $0x71] sm:$0xff]
    %v8223 = vld [vmem:[%s5777 + $0x79] sm:$0xff]
    %v8224 = vld [vmem:[%s5777 + $0x81] sm:$0xff]
    %v8225 = vld [vmem:[%s5777 + $0x89] sm:$0xff]
    %v8226 = vld [vmem:[%s5777 + $0x91] sm:$0xff]
    %v8227 = vld [vmem:[%s5777 + $0x99] sm:$0xff]
    %v8229 = vsel %vm201, %v8220, 0
    %v8232 = vsel %vm201, %v8221, 0
    %v8235 = vsel %vm201, %v8222, 0
    %v8238 = vsel %vm201, %v8223, 0
    %v8241 = vsel %vm201, %v8224, 0
    %v8244 = vsel %vm201, %v8225, 0
    %v8247 = vsel %vm201, %v8226, 0
    %v8250 = vsel %vm201, %v8227, 0
    %8252 = vmatprep.subr.mxu0 0.0
    %8253 = vmatpush1.msra.mxu0 %v6879
    %8254 = vmatprep.subr.mxu0 0.0
    %8255 = vmatpush1.msra.mxu0 0.0
    %8256 = vmatprep.subr.mxu0 0.0
    %8257 = vmatpush1.msra.mxu0 0.0
    %8258 = vmatprep.subr.mxu0 0.0
    %8259 = vmatpush1.msra.mxu0 0.0
    %8260 = vmatprep.subr.mxu0 0.0
    %8261 = vmatpush1.msra.mxu0 0.0
    %8262 = vmatprep.subr.mxu0 0.0
    %8263 = vmatpush1.msra.mxu0 0.0
    %8264 = vmatprep.subr.mxu0 0.0
    %8265 = vmatpush1.msra.mxu0 0.0
    %8266 = vmatprep.subr.mxu0 0.0
    %8267 = vmatpush1.msra.mxu0 0.0
    %8268 = vmatprep.subr.mxu0 0.0
    %8269 = vmatpush1.msra.mxu0 0.0
    %8270 = vmatprep.subr.mxu0 0.0
    %8271 = vmatpush1.msra.mxu0 0.0
    %8272 = vmatprep.subr.mxu0 0.0
    %8273 = vmatpush1.msra.mxu0 0.0
    %8274 = vmatprep.subr.mxu0 0.0
    %8275 = vmatpush1.msra.mxu0 0.0
    %8276 = vmatprep.subr.mxu0 0.0
    %8277 = vmatpush1.msra.mxu0 0.0
    %8278 = vmatprep.subr.mxu0 0.0
    %8279 = vmatpush1.msra.mxu0 0.0
    %8280 = vmatprep.subr.mxu0 0.0
    %8281 = vmatpush1.msra.mxu0 0.0
    %8282 = vmatprep.subr.mxu0 0.0
    %8283 = vmatpush1.msra.mxu0 0.0
    %8284 = vmatprep.subr.mxu0 0.0
    %8285 = vmatpush1.msra.mxu0 0.0
    %8286 = vmatprep.subr.mxu0 0.0
    %8287 = vmatpush1.msra.mxu0 0.0
    %8288 = vmatprep.subr.mxu0 0.0
    %8289 = vmatpush1.msra.mxu0 0.0
    %8290 = vmatprep.subr.mxu0 0.0
    %8291 = vmatpush1.msra.mxu0 0.0
    %8292 = vmatprep.subr.mxu0 0.0
    %8293 = vmatpush1.msra.mxu0 0.0
    %8294 = vmatprep.subr.mxu0 0.0
    %8295 = vmatpush1.msra.mxu0 0.0
    %8296 = vmatprep.subr.mxu0 0.0
    %8297 = vmatpush1.msra.mxu0 0.0
    %8298 = vmatprep.subr.mxu0 0.0
    %8299 = vmatpush1.msra.mxu0 0.0
    %8300 = vmatprep.subr.mxu0 0.0
    %8301 = vmatpush1.msra.mxu0 0.0
    %8302 = vmatprep.subr.mxu0 0.0
    %8303 = vmatpush1.msra.mxu0 0.0
    %8304 = vmatprep.subr.mxu0 0.0
    %8305 = vmatpush1.msra.mxu0 0.0
    %8306 = vmatprep.subr.mxu0 0.0
    %8307 = vmatpush1.msra.mxu0 0.0
    %8308 = vmatprep.subr.mxu0 0.0
    %8309 = vmatpush1.msra.mxu0 0.0
    %8310 = vmatprep.subr.mxu0 0.0
    %8311 = vmatpush1.msra.mxu0 0.0
    %8312 = vmatprep.subr.mxu0 0.0
    %8313 = vmatpush1.msra.mxu0 0.0
    %8314 = vmatprep.subr.mxu0 0.0
    %8315 = vmatpush1.msra.mxu0 0.0
    %8316 = vmatprep.mubr.f32.mxu0 0.0
    %8317 = vmatmul.mubr.f32.gmra.mrb[0].mxu0 %v8229
    %v8318 = vpop.f32.mrb[0].mxu0
    %v8319 = vadd.f32 0.0, %v8318
    %v8320 = vpop.f32.mrb[0].mxu0
    %8321 = vmatprep.mubr.f32.mxu0 0.0
    %8322 = vmatmul.mubr.f32.gmra.mrb[0].mxu0 %v8232
    %v8323 = vpop.f32.mrb[0].mxu0
    %v8324 = vadd.f32 0.0, %v8323
    %v8325 = vpop.f32.mrb[0].mxu0
    %8326 = vmatprep.mubr.f32.mxu0 0.0
    %8327 = vmatmul.mubr.f32.gmra.mrb[0].mxu0 %v8235
    %v8328 = vpop.f32.mrb[0].mxu0
    %v8329 = vadd.f32 0.0, %v8328
    %v8330 = vpop.f32.mrb[0].mxu0
    %8331 = vmatprep.mubr.f32.mxu0 0.0
    %8332 = vmatmul.mubr.f32.gmra.mrb[0].mxu0 %v8238
    %v8333 = vpop.f32.mrb[0].mxu0
    %v8334 = vadd.f32 0.0, %v8333
    %v8335 = vpop.f32.mrb[0].mxu0
    %8336 = vmatprep.mubr.f32.mxu0 0.0
    %8337 = vmatmul.mubr.f32.gmra.mrb[0].mxu0 %v8241
    %v8338 = vpop.f32.mrb[0].mxu0
    %v8339 = vadd.f32 0.0, %v8338
    %v8340 = vpop.f32.mrb[0].mxu0
    %8341 = vmatprep.mubr.f32.mxu0 0.0
    %8342 = vmatmul.mubr.f32.gmra.mrb[0].mxu0 %v8244
    %v8343 = vpop.f32.mrb[0].mxu0
    %v8344 = vadd.f32 0.0, %v8343
    %v8345 = vpop.f32.mrb[0].mxu0
    %8346 = vmatprep.mubr.f32.mxu0 0.0
    %8347 = vmatmul.mubr.f32.gmra.mrb[0].mxu0 %v8247
    %v8348 = vpop.f32.mrb[0].mxu0
    %v8349 = vadd.f32 0.0, %v8348
    %v8350 = vpop.f32.mrb[0].mxu0
    %8351 = vmatprep.mubr.f32.mxu0 0.0
    %8352 = vmatmul.mubr.f32.gmra.mrb[0].mxu0 %v8250
    %v8353 = vpop.f32.mrb[0].mxu0
    %v8354 = vadd.f32 0.0, %v8353
    %v8355 = vpop.f32.mrb[0].mxu0
    %8356 = vdwg.mxu0
    %v8357 = vadd.f32 %v8212, %v8319
    %v8358 = vadd.f32 %v8213, %v8324
    %v8359 = vadd.f32 %v8214, %v8329
    %v8360 = vadd.f32 %v8215, %v8334
    %v8361 = vadd.f32 %v8216, %v8339
    %v8362 = vadd.f32 %v8217, %v8344
    %v8363 = vadd.f32 %v8218, %v8349
    %v8364 = vadd.f32 %v8219, %v8354
    %v8365 = vld [vmem:[%s5777 + $0x62] sm:$0xff]
    %v8366 = vld [vmem:[%s5777 + $0x6a] sm:$0xff]
    %v8367 = vld [vmem:[%s5777 + $0x72] sm:$0xff]
    %v8368 = vld [vmem:[%s5777 + $0x7a] sm:$0xff]
    %v8369 = vld [vmem:[%s5777 + $0x82] sm:$0xff]
    %v8370 = vld [vmem:[%s5777 + $0x8a] sm:$0xff]
    %v8371 = vld [vmem:[%s5777 + $0x92] sm:$0xff]
    %v8372 = vld [vmem:[%s5777 + $0x9a] sm:$0xff]
    %v8373 = vmul.f32 %v8365, %v166
    %v8374 = vmul.f32 %v8366, %v167
    %v8375 = vmul.f32 %v8367, %v168
    %v8376 = vmul.f32 %v8368, %v169
    %v8377 = vmul.f32 %v8369, %v170
    %v8378 = vmul.f32 %v8370, %v171
    %v8379 = vmul.f32 %v8371, %v172
    %v8380 = vmul.f32 %v8372, %v173
    %v8382 = vsel %vm201, %v8373, 0
    %v8385 = vsel %vm201, %v8374, 0
    %v8388 = vsel %vm201, %v8375, 0
    %v8391 = vsel %vm201, %v8376, 0
    %v8394 = vsel %vm201, %v8377, 0
    %v8397 = vsel %vm201, %v8378, 0
    %v8400 = vsel %vm201, %v8379, 0
    %v8403 = vsel %vm201, %v8380, 0
    %8405 = vmatprep.subr.mxu0 0.0
    %8406 = vmatpush1.msra.mxu0 %v7036
    %8407 = vmatprep.subr.mxu0 0.0
    %8408 = vmatpush1.msra.mxu0 0.0
    %8409 = vmatprep.subr.mxu0 0.0
    %8410 = vmatpush1.msra.mxu0 0.0
    %8411 = vmatprep.subr.mxu0 0.0
    %8412 = vmatpush1.msra.mxu0 0.0
    %8413 = vmatprep.subr.mxu0 0.0
    %8414 = vmatpush1.msra.mxu0 0.0
    %8415 = vmatprep.subr.mxu0 0.0
    %8416 = vmatpush1.msra.mxu0 0.0
    %8417 = vmatprep.subr.mxu0 0.0
    %8418 = vmatpush1.msra.mxu0 0.0
    %8419 = vmatprep.subr.mxu0 0.0
    %8420 = vmatpush1.msra.mxu0 0.0
    %8421 = vmatprep.subr.mxu0 0.0
    %8422 = vmatpush1.msra.mxu0 0.0
    %8423 = vmatprep.subr.mxu0 0.0
    %8424 = vmatpush1.msra.mxu0 0.0
    %8425 = vmatprep.subr.mxu0 0.0
    %8426 = vmatpush1.msra.mxu0 0.0
    %8427 = vmatprep.subr.mxu0 0.0
    %8428 = vmatpush1.msra.mxu0 0.0
    %8429 = vmatprep.subr.mxu0 0.0
    %8430 = vmatpush1.msra.mxu0 0.0
    %8431 = vmatprep.subr.mxu0 0.0
    %8432 = vmatpush1.msra.mxu0 0.0
    %8433 = vmatprep.subr.mxu0 0.0
    %8434 = vmatpush1.msra.mxu0 0.0
    %8435 = vmatprep.subr.mxu0 0.0
    %8436 = vmatpush1.msra.mxu0 0.0
    %8437 = vmatprep.subr.mxu0 0.0
    %8438 = vmatpush1.msra.mxu0 0.0
    %8439 = vmatprep.subr.mxu0 0.0
    %8440 = vmatpush1.msra.mxu0 0.0
    %8441 = vmatprep.subr.mxu0 0.0
    %8442 = vmatpush1.msra.mxu0 0.0
    %8443 = vmatprep.subr.mxu0 0.0
    %8444 = vmatpush1.msra.mxu0 0.0
    %8445 = vmatprep.subr.mxu0 0.0
    %8446 = vmatpush1.msra.mxu0 0.0
    %8447 = vmatprep.subr.mxu0 0.0
    %8448 = vmatpush1.msra.mxu0 0.0
    %8449 = vmatprep.subr.mxu0 0.0
    %8450 = vmatpush1.msra.mxu0 0.0
    %8451 = vmatprep.subr.mxu0 0.0
    %8452 = vmatpush1.msra.mxu0 0.0
    %8453 = vmatprep.subr.mxu0 0.0
    %8454 = vmatpush1.msra.mxu0 0.0
    %8455 = vmatprep.subr.mxu0 0.0
    %8456 = vmatpush1.msra.mxu0 0.0
    %8457 = vmatprep.subr.mxu0 0.0
    %8458 = vmatpush1.msra.mxu0 0.0
    %8459 = vmatprep.subr.mxu0 0.0
    %8460 = vmatpush1.msra.mxu0 0.0
    %8461 = vmatprep.subr.mxu0 0.0
    %8462 = vmatpush1.msra.mxu0 0.0
    %8463 = vmatprep.subr.mxu0 0.0
    %8464 = vmatpush1.msra.mxu0 0.0
    %8465 = vmatprep.subr.mxu0 0.0
    %8466 = vmatpush1.msra.mxu0 0.0
    %8467 = vmatprep.subr.mxu0 0.0
    %8468 = vmatpush1.msra.mxu0 0.0
    %8469 = vmatprep.mubr.f32.mxu0 0.0
    %8470 = vmatmul.mubr.f32.gmra.mrb[0].mxu0 %v8382
    %v8471 = vpop.f32.mrb[0].mxu0
    %v8472 = vadd.f32 0.0, %v8471
    %v8473 = vpop.f32.mrb[0].mxu0
    %8474 = vmatprep.mubr.f32.mxu0 0.0
    %8475 = vmatmul.mubr.f32.gmra.mrb[0].mxu0 %v8385
    %v8476 = vpop.f32.mrb[0].mxu0
    %v8477 = vadd.f32 0.0, %v8476
    %v8478 = vpop.f32.mrb[0].mxu0
    %8479 = vmatprep.mubr.f32.mxu0 0.0
    %8480 = vmatmul.mubr.f32.gmra.mrb[0].mxu0 %v8388
    %v8481 = vpop.f32.mrb[0].mxu0
    %v8482 = vadd.f32 0.0, %v8481
    %v8483 = vpop.f32.mrb[0].mxu0
    %8484 = vmatprep.mubr.f32.mxu0 0.0
    %8485 = vmatmul.mubr.f32.gmra.mrb[0].mxu0 %v8391
    %v8486 = vpop.f32.mrb[0].mxu0
    %v8487 = vadd.f32 0.0, %v8486
    %v8488 = vpop.f32.mrb[0].mxu0
    %8489 = vmatprep.mubr.f32.mxu0 0.0
    %8490 = vmatmul.mubr.f32.gmra.mrb[0].mxu0 %v8394
    %v8491 = vpop.f32.mrb[0].mxu0
    %v8492 = vadd.f32 0.0, %v8491
    %v8493 = vpop.f32.mrb[0].mxu0
    %8494 = vmatprep.mubr.f32.mxu0 0.0
    %8495 = vmatmul.mubr.f32.gmra.mrb[0].mxu0 %v8397
    %v8496 = vpop.f32.mrb[0].mxu0
    %v8497 = vadd.f32 0.0, %v8496
    %v8498 = vpop.f32.mrb[0].mxu0
    %8499 = vmatprep.mubr.f32.mxu0 0.0
    %8500 = vmatmul.mubr.f32.gmra.mrb[0].mxu0 %v8400
    %v8501 = vpop.f32.mrb[0].mxu0
    %v8502 = vadd.f32 0.0, %v8501
    %v8503 = vpop.f32.mrb[0].mxu0
    %8504 = vmatprep.mubr.f32.mxu0 0.0
    %8505 = vmatmul.mubr.f32.gmra.mrb[0].mxu0 %v8403
    %v8506 = vpop.f32.mrb[0].mxu0
    %v8507 = vadd.f32 0.0, %v8506
    %v8508 = vpop.f32.mrb[0].mxu0
    %8509 = vdwg.mxu0
    %v8510 = vadd.f32 %v8357, %v8472
    %v8511 = vadd.f32 %v8358, %v8477
    %v8512 = vadd.f32 %v8359, %v8482
    %v8513 = vadd.f32 %v8360, %v8487
    %v8514 = vadd.f32 %v8361, %v8492
    %v8515 = vadd.f32 %v8362, %v8497
    %v8516 = vadd.f32 %v8363, %v8502
    %v8517 = vadd.f32 %v8364, %v8507
    %v8518 = vadd.f32 %v8510, %v1554
    %v8519 = vadd.f32 %v8511, %v1554
    %v8520 = vadd.f32 %v8512, %v1554
    %v8521 = vadd.f32 %v8513, %v1554
    %v8522 = vadd.f32 %v8514, %v1554
    %v8523 = vadd.f32 %v8515, %v1554
    %v8524 = vadd.f32 %v8516, %v1554
    %v8525 = vadd.f32 %v8517, %v1554
    %v8526 = vmax.f32 %v8518, 0.0
    %v8527 = vmax.f32 %v8519, 0.0
    %v8528 = vmax.f32 %v8520, 0.0
    %v8529 = vmax.f32 %v8521, 0.0
    %v8530 = vmax.f32 %v8522, 0.0
    %v8531 = vmax.f32 %v8523, 0.0
    %v8532 = vmax.f32 %v8524, 0.0
    %v8533 = vmax.f32 %v8525, 0.0
    %v8534 = vadd.f32 %v8526, %v8527
    %v8535 = vadd.f32 %v8534, %v8528
    %v8536 = vadd.f32 %v8535, %v8529
    %v8537 = vadd.f32 %v8536, %v8530
    %v8538 = vadd.f32 %v8537, %v8531
    %v8539 = vadd.f32 %v8538, %v8532
    %v8540 = vadd.f32 %v8539, %v8533
    %v8541 = vrot.slane %v8540, 4
    %v8542 = vadd.f32 %v8540, %v8541
    %v8543 = vrot.slane %v8542, 2
    %v8544 = vadd.f32 %v8542, %v8543
    %v8545 = vrot.slane %v8544, 1
    %v8546 = vadd.f32 %v8544, %v8545
    %v8547 = vadd.f32 %v7180, %v8546
    %v8548 = vld [vmem:[%s5777 + $0x80] sm:$0xff]
    %v8549 = vld [vmem:[%s5777 + $0x88] sm:$0xff]
    %v8550 = vld [vmem:[%s5777 + $0x90] sm:$0xff]
    %v8551 = vld [vmem:[%s5777 + $0x98] sm:$0xff]
    %v8552 = vld [vmem:[%s5777 + $0xa0] sm:$0xff]
    %v8553 = vld [vmem:[%s5777 + $0xa8] sm:$0xff]
    %v8554 = vld [vmem:[%s5777 + $0xb0] sm:$0xff]
    %v8555 = vld [vmem:[%s5777 + $0xb8] sm:$0xff]
    %v8556 = vmul.f32 %v8548, %v142
    %v8557 = vmul.f32 %v8549, %v143
    %v8558 = vmul.f32 %v8550, %v144
    %v8559 = vmul.f32 %v8551, %v145
    %v8560 = vmul.f32 %v8552, %v146
    %v8561 = vmul.f32 %v8553, %v147
    %v8562 = vmul.f32 %v8554, %v148
    %v8563 = vmul.f32 %v8555, %v149
    %v8564 = vld [vmem:[%s5777 + $0x81] sm:$0xff]
    %v8565 = vld [vmem:[%s5777 + $0x89] sm:$0xff]
    %v8566 = vld [vmem:[%s5777 + $0x91] sm:$0xff]
    %v8567 = vld [vmem:[%s5777 + $0x99] sm:$0xff]
    %v8568 = vld [vmem:[%s5777 + $0xa1] sm:$0xff]
    %v8569 = vld [vmem:[%s5777 + $0xa9] sm:$0xff]
    %v8570 = vld [vmem:[%s5777 + $0xb1] sm:$0xff]
    %v8571 = vld [vmem:[%s5777 + $0xb9] sm:$0xff]
    %v8573 = vsel %vm201, %v8564, 0
    %v8576 = vsel %vm201, %v8565, 0
    %v8579 = vsel %vm201, %v8566, 0
    %v8582 = vsel %vm201, %v8567, 0
    %v8585 = vsel %vm201, %v8568, 0
    %v8588 = vsel %vm201, %v8569, 0
    %v8591 = vsel %vm201, %v8570, 0
    %v8594 = vsel %vm201, %v8571, 0
    %8596 = vmatprep.subr.mxu0 0.0
    %8597 = vmatpush1.msra.mxu0 %v5829
    %8598 = vmatprep.subr.mxu0 0.0
    %8599 = vmatpush1.msra.mxu0 0.0
    %8600 = vmatprep.subr.mxu0 0.0
    %8601 = vmatpush1.msra.mxu0 0.0
    %8602 = vmatprep.subr.mxu0 0.0
    %8603 = vmatpush1.msra.mxu0 0.0
    %8604 = vmatprep.subr.mxu0 0.0
    %8605 = vmatpush1.msra.mxu0 0.0
    %8606 = vmatprep.subr.mxu0 0.0
    %8607 = vmatpush1.msra.mxu0 0.0
    %8608 = vmatprep.subr.mxu0 0.0
    %8609 = vmatpush1.msra.mxu0 0.0
    %8610 = vmatprep.subr.mxu0 0.0
    %8611 = vmatpush1.msra.mxu0 0.0
    %8612 = vmatprep.subr.mxu0 0.0
    %8613 = vmatpush1.msra.mxu0 0.0
    %8614 = vmatprep.subr.mxu0 0.0
    %8615 = vmatpush1.msra.mxu0 0.0
    %8616 = vmatprep.subr.mxu0 0.0
    %8617 = vmatpush1.msra.mxu0 0.0
    %8618 = vmatprep.subr.mxu0 0.0
    %8619 = vmatpush1.msra.mxu0 0.0
    %8620 = vmatprep.subr.mxu0 0.0
    %8621 = vmatpush1.msra.mxu0 0.0
    %8622 = vmatprep.subr.mxu0 0.0
    %8623 = vmatpush1.msra.mxu0 0.0
    %8624 = vmatprep.subr.mxu0 0.0
    %8625 = vmatpush1.msra.mxu0 0.0
    %8626 = vmatprep.subr.mxu0 0.0
    %8627 = vmatpush1.msra.mxu0 0.0
    %8628 = vmatprep.subr.mxu0 0.0
    %8629 = vmatpush1.msra.mxu0 0.0
    %8630 = vmatprep.subr.mxu0 0.0
    %8631 = vmatpush1.msra.mxu0 0.0
    %8632 = vmatprep.subr.mxu0 0.0
    %8633 = vmatpush1.msra.mxu0 0.0
    %8634 = vmatprep.subr.mxu0 0.0
    %8635 = vmatpush1.msra.mxu0 0.0
    %8636 = vmatprep.subr.mxu0 0.0
    %8637 = vmatpush1.msra.mxu0 0.0
    %8638 = vmatprep.subr.mxu0 0.0
    %8639 = vmatpush1.msra.mxu0 0.0
    %8640 = vmatprep.subr.mxu0 0.0
    %8641 = vmatpush1.msra.mxu0 0.0
    %8642 = vmatprep.subr.mxu0 0.0
    %8643 = vmatpush1.msra.mxu0 0.0
    %8644 = vmatprep.subr.mxu0 0.0
    %8645 = vmatpush1.msra.mxu0 0.0
    %8646 = vmatprep.subr.mxu0 0.0
    %8647 = vmatpush1.msra.mxu0 0.0
    %8648 = vmatprep.subr.mxu0 0.0
    %8649 = vmatpush1.msra.mxu0 0.0
    %8650 = vmatprep.subr.mxu0 0.0
    %8651 = vmatpush1.msra.mxu0 0.0
    %8652 = vmatprep.subr.mxu0 0.0
    %8653 = vmatpush1.msra.mxu0 0.0
    %8654 = vmatprep.subr.mxu0 0.0
    %8655 = vmatpush1.msra.mxu0 0.0
    %8656 = vmatprep.subr.mxu0 0.0
    %8657 = vmatpush1.msra.mxu0 0.0
    %8658 = vmatprep.subr.mxu0 0.0
    %8659 = vmatpush1.msra.mxu0 0.0
    %8660 = vmatprep.mubr.f32.mxu0 0.0
    %8661 = vmatmul.mubr.f32.gmra.mrb[0].mxu0 %v8573
    %v8662 = vpop.f32.mrb[0].mxu0
    %v8663 = vadd.f32 0.0, %v8662
    %v8664 = vpop.f32.mrb[0].mxu0
    %8665 = vmatprep.mubr.f32.mxu0 0.0
    %8666 = vmatmul.mubr.f32.gmra.mrb[0].mxu0 %v8576
    %v8667 = vpop.f32.mrb[0].mxu0
    %v8668 = vadd.f32 0.0, %v8667
    %v8669 = vpop.f32.mrb[0].mxu0
    %8670 = vmatprep.mubr.f32.mxu0 0.0
    %8671 = vmatmul.mubr.f32.gmra.mrb[0].mxu0 %v8579
    %v8672 = vpop.f32.mrb[0].mxu0
    %v8673 = vadd.f32 0.0, %v8672
    %v8674 = vpop.f32.mrb[0].mxu0
    %8675 = vmatprep.mubr.f32.mxu0 0.0
    %8676 = vmatmul.mubr.f32.gmra.mrb[0].mxu0 %v8582
    %v8677 = vpop.f32.mrb[0].mxu0
    %v8678 = vadd.f32 0.0, %v8677
    %v8679 = vpop.f32.mrb[0].mxu0
    %8680 = vmatprep.mubr.f32.mxu0 0.0
    %8681 = vmatmul.mubr.f32.gmra.mrb[0].mxu0 %v8585
    %v8682 = vpop.f32.mrb[0].mxu0
    %v8683 = vadd.f32 0.0, %v8682
    %v8684 = vpop.f32.mrb[0].mxu0
    %8685 = vmatprep.mubr.f32.mxu0 0.0
    %8686 = vmatmul.mubr.f32.gmra.mrb[0].mxu0 %v8588
    %v8687 = vpop.f32.mrb[0].mxu0
    %v8688 = vadd.f32 0.0, %v8687
    %v8689 = vpop.f32.mrb[0].mxu0
    %8690 = vmatprep.mubr.f32.mxu0 0.0
    %8691 = vmatmul.mubr.f32.gmra.mrb[0].mxu0 %v8591
    %v8692 = vpop.f32.mrb[0].mxu0
    %v8693 = vadd.f32 0.0, %v8692
    %v8694 = vpop.f32.mrb[0].mxu0
    %8695 = vmatprep.mubr.f32.mxu0 0.0
    %8696 = vmatmul.mubr.f32.gmra.mrb[0].mxu0 %v8594
    %v8697 = vpop.f32.mrb[0].mxu0
    %v8698 = vadd.f32 0.0, %v8697
    %v8699 = vpop.f32.mrb[0].mxu0
    %8700 = vdwg.mxu0
    %v8702 = vsel %vm201, %v8556, 0
    %v8705 = vsel %vm201, %v8557, 0
    %v8708 = vsel %vm201, %v8558, 0
    %v8711 = vsel %vm201, %v8559, 0
    %v8714 = vsel %vm201, %v8560, 0
    %v8717 = vsel %vm201, %v8561, 0
    %v8720 = vsel %vm201, %v8562, 0
    %v8723 = vsel %vm201, %v8563, 0
    %8725 = vmatprep.subr.mxu0 0.0
    %8726 = vmatpush1.msra.mxu0 %v5961
    %8727 = vmatprep.subr.mxu0 0.0
    %8728 = vmatpush1.msra.mxu0 0.0
    %8729 = vmatprep.subr.mxu0 0.0
    %8730 = vmatpush1.msra.mxu0 0.0
    %8731 = vmatprep.subr.mxu0 0.0
    %8732 = vmatpush1.msra.mxu0 0.0
    %8733 = vmatprep.subr.mxu0 0.0
    %8734 = vmatpush1.msra.mxu0 0.0
    %8735 = vmatprep.subr.mxu0 0.0
    %8736 = vmatpush1.msra.mxu0 0.0
    %8737 = vmatprep.subr.mxu0 0.0
    %8738 = vmatpush1.msra.mxu0 0.0
    %8739 = vmatprep.subr.mxu0 0.0
    %8740 = vmatpush1.msra.mxu0 0.0
    %8741 = vmatprep.subr.mxu0 0.0
    %8742 = vmatpush1.msra.mxu0 0.0
    %8743 = vmatprep.subr.mxu0 0.0
    %8744 = vmatpush1.msra.mxu0 0.0
    %8745 = vmatprep.subr.mxu0 0.0
    %8746 = vmatpush1.msra.mxu0 0.0
    %8747 = vmatprep.subr.mxu0 0.0
    %8748 = vmatpush1.msra.mxu0 0.0
    %8749 = vmatprep.subr.mxu0 0.0
    %8750 = vmatpush1.msra.mxu0 0.0
    %8751 = vmatprep.subr.mxu0 0.0
    %8752 = vmatpush1.msra.mxu0 0.0
    %8753 = vmatprep.subr.mxu0 0.0
    %8754 = vmatpush1.msra.mxu0 0.0
    %8755 = vmatprep.subr.mxu0 0.0
    %8756 = vmatpush1.msra.mxu0 0.0
    %8757 = vmatprep.subr.mxu0 0.0
    %8758 = vmatpush1.msra.mxu0 0.0
    %8759 = vmatprep.subr.mxu0 0.0
    %8760 = vmatpush1.msra.mxu0 0.0
    %8761 = vmatprep.subr.mxu0 0.0
    %8762 = vmatpush1.msra.mxu0 0.0
    %8763 = vmatprep.subr.mxu0 0.0
    %8764 = vmatpush1.msra.mxu0 0.0
    %8765 = vmatprep.subr.mxu0 0.0
    %8766 = vmatpush1.msra.mxu0 0.0
    %8767 = vmatprep.subr.mxu0 0.0
    %8768 = vmatpush1.msra.mxu0 0.0
    %8769 = vmatprep.subr.mxu0 0.0
    %8770 = vmatpush1.msra.mxu0 0.0
    %8771 = vmatprep.subr.mxu0 0.0
    %8772 = vmatpush1.msra.mxu0 0.0
    %8773 = vmatprep.subr.mxu0 0.0
    %8774 = vmatpush1.msra.mxu0 0.0
    %8775 = vmatprep.subr.mxu0 0.0
    %8776 = vmatpush1.msra.mxu0 0.0
    %8777 = vmatprep.subr.mxu0 0.0
    %8778 = vmatpush1.msra.mxu0 0.0
    %8779 = vmatprep.subr.mxu0 0.0
    %8780 = vmatpush1.msra.mxu0 0.0
    %8781 = vmatprep.subr.mxu0 0.0
    %8782 = vmatpush1.msra.mxu0 0.0
    %8783 = vmatprep.subr.mxu0 0.0
    %8784 = vmatpush1.msra.mxu0 0.0
    %8785 = vmatprep.subr.mxu0 0.0
    %8786 = vmatpush1.msra.mxu0 0.0
    %8787 = vmatprep.subr.mxu0 0.0
    %8788 = vmatpush1.msra.mxu0 0.0
    %8789 = vmatprep.mubr.f32.mxu0 0.0
    %8790 = vmatmul.mubr.f32.gmra.mrb[0].mxu0 %v8702
    %v8791 = vpop.f32.mrb[0].mxu0
    %v8792 = vadd.f32 %v8663, %v8791
    %v8793 = vpop.f32.mrb[0].mxu0
    %8794 = vmatprep.mubr.f32.mxu0 0.0
    %8795 = vmatmul.mubr.f32.gmra.mrb[0].mxu0 %v8705
    %v8796 = vpop.f32.mrb[0].mxu0
    %v8797 = vadd.f32 %v8668, %v8796
    %v8798 = vpop.f32.mrb[0].mxu0
    %8799 = vmatprep.mubr.f32.mxu0 0.0
    %8800 = vmatmul.mubr.f32.gmra.mrb[0].mxu0 %v8708
    %v8801 = vpop.f32.mrb[0].mxu0
    %v8802 = vadd.f32 %v8673, %v8801
    %v8803 = vpop.f32.mrb[0].mxu0
    %8804 = vmatprep.mubr.f32.mxu0 0.0
    %8805 = vmatmul.mubr.f32.gmra.mrb[0].mxu0 %v8711
    %v8806 = vpop.f32.mrb[0].mxu0
    %v8807 = vadd.f32 %v8678, %v8806
    %v8808 = vpop.f32.mrb[0].mxu0
    %8809 = vmatprep.mubr.f32.mxu0 0.0
    %8810 = vmatmul.mubr.f32.gmra.mrb[0].mxu0 %v8714
    %v8811 = vpop.f32.mrb[0].mxu0
    %v8812 = vadd.f32 %v8683, %v8811
    %v8813 = vpop.f32.mrb[0].mxu0
    %8814 = vmatprep.mubr.f32.mxu0 0.0
    %8815 = vmatmul.mubr.f32.gmra.mrb[0].mxu0 %v8717
    %v8816 = vpop.f32.mrb[0].mxu0
    %v8817 = vadd.f32 %v8688, %v8816
    %v8818 = vpop.f32.mrb[0].mxu0
    %8819 = vmatprep.mubr.f32.mxu0 0.0
    %8820 = vmatmul.mubr.f32.gmra.mrb[0].mxu0 %v8720
    %v8821 = vpop.f32.mrb[0].mxu0
    %v8822 = vadd.f32 %v8693, %v8821
    %v8823 = vpop.f32.mrb[0].mxu0
    %8824 = vmatprep.mubr.f32.mxu0 0.0
    %8825 = vmatmul.mubr.f32.gmra.mrb[0].mxu0 %v8723
    %v8826 = vpop.f32.mrb[0].mxu0
    %v8827 = vadd.f32 %v8698, %v8826
    %v8828 = vpop.f32.mrb[0].mxu0
    %8829 = vdwg.mxu0
    %v8830 = vld [vmem:[%s5777 + $0x82] sm:$0xff]
    %v8831 = vld [vmem:[%s5777 + $0x8a] sm:$0xff]
    %v8832 = vld [vmem:[%s5777 + $0x92] sm:$0xff]
    %v8833 = vld [vmem:[%s5777 + $0x9a] sm:$0xff]
    %v8834 = vld [vmem:[%s5777 + $0xa2] sm:$0xff]
    %v8835 = vld [vmem:[%s5777 + $0xaa] sm:$0xff]
    %v8836 = vld [vmem:[%s5777 + $0xb2] sm:$0xff]
    %v8837 = vld [vmem:[%s5777 + $0xba] sm:$0xff]
    %v8838 = vmul.f32 %v8830, %v166
    %v8839 = vmul.f32 %v8831, %v167
    %v8840 = vmul.f32 %v8832, %v168
    %v8841 = vmul.f32 %v8833, %v169
    %v8842 = vmul.f32 %v8834, %v170
    %v8843 = vmul.f32 %v8835, %v171
    %v8844 = vmul.f32 %v8836, %v172
    %v8845 = vmul.f32 %v8837, %v173
    %v8847 = vsel %vm201, %v8838, 0
    %v8850 = vsel %vm201, %v8839, 0
    %v8853 = vsel %vm201, %v8840, 0
    %v8856 = vsel %vm201, %v8841, 0
    %v8859 = vsel %vm201, %v8842, 0
    %v8862 = vsel %vm201, %v8843, 0
    %v8865 = vsel %vm201, %v8844, 0
    %v8868 = vsel %vm201, %v8845, 0
    %8870 = vmatprep.subr.mxu0 0.0
    %8871 = vmatpush1.msra.mxu0 %v6110
    %8872 = vmatprep.subr.mxu0 0.0
    %8873 = vmatpush1.msra.mxu0 0.0
    %8874 = vmatprep.subr.mxu0 0.0
    %8875 = vmatpush1.msra.mxu0 0.0
    %8876 = vmatprep.subr.mxu0 0.0
    %8877 = vmatpush1.msra.mxu0 0.0
    %8878 = vmatprep.subr.mxu0 0.0
    %8879 = vmatpush1.msra.mxu0 0.0
    %8880 = vmatprep.subr.mxu0 0.0
    %8881 = vmatpush1.msra.mxu0 0.0
    %8882 = vmatprep.subr.mxu0 0.0
    %8883 = vmatpush1.msra.mxu0 0.0
    %8884 = vmatprep.subr.mxu0 0.0
    %8885 = vmatpush1.msra.mxu0 0.0
    %8886 = vmatprep.subr.mxu0 0.0
    %8887 = vmatpush1.msra.mxu0 0.0
    %8888 = vmatprep.subr.mxu0 0.0
    %8889 = vmatpush1.msra.mxu0 0.0
    %8890 = vmatprep.subr.mxu0 0.0
    %8891 = vmatpush1.msra.mxu0 0.0
    %8892 = vmatprep.subr.mxu0 0.0
    %8893 = vmatpush1.msra.mxu0 0.0
    %8894 = vmatprep.subr.mxu0 0.0
    %8895 = vmatpush1.msra.mxu0 0.0
    %8896 = vmatprep.subr.mxu0 0.0
    %8897 = vmatpush1.msra.mxu0 0.0
    %8898 = vmatprep.subr.mxu0 0.0
    %8899 = vmatpush1.msra.mxu0 0.0
    %8900 = vmatprep.subr.mxu0 0.0
    %8901 = vmatpush1.msra.mxu0 0.0
    %8902 = vmatprep.subr.mxu0 0.0
    %8903 = vmatpush1.msra.mxu0 0.0
    %8904 = vmatprep.subr.mxu0 0.0
    %8905 = vmatpush1.msra.mxu0 0.0
    %8906 = vmatprep.subr.mxu0 0.0
    %8907 = vmatpush1.msra.mxu0 0.0
    %8908 = vmatprep.subr.mxu0 0.0
    %8909 = vmatpush1.msra.mxu0 0.0
    %8910 = vmatprep.subr.mxu0 0.0
    %8911 = vmatpush1.msra.mxu0 0.0
    %8912 = vmatprep.subr.mxu0 0.0
    %8913 = vmatpush1.msra.mxu0 0.0
    %8914 = vmatprep.subr.mxu0 0.0
    %8915 = vmatpush1.msra.mxu0 0.0
    %8916 = vmatprep.subr.mxu0 0.0
    %8917 = vmatpush1.msra.mxu0 0.0
    %8918 = vmatprep.subr.mxu0 0.0
    %8919 = vmatpush1.msra.mxu0 0.0
    %8920 = vmatprep.subr.mxu0 0.0
    %8921 = vmatpush1.msra.mxu0 0.0
    %8922 = vmatprep.subr.mxu0 0.0
    %8923 = vmatpush1.msra.mxu0 0.0
    %8924 = vmatprep.subr.mxu0 0.0
    %8925 = vmatpush1.msra.mxu0 0.0
    %8926 = vmatprep.subr.mxu0 0.0
    %8927 = vmatpush1.msra.mxu0 0.0
    %8928 = vmatprep.subr.mxu0 0.0
    %8929 = vmatpush1.msra.mxu0 0.0
    %8930 = vmatprep.subr.mxu0 0.0
    %8931 = vmatpush1.msra.mxu0 0.0
    %8932 = vmatprep.subr.mxu0 0.0
    %8933 = vmatpush1.msra.mxu0 0.0
    %8934 = vmatprep.mubr.f32.mxu0 0.0
    %8935 = vmatmul.mubr.f32.gmra.mrb[0].mxu0 %v8847
    %v8936 = vpop.f32.mrb[0].mxu0
    %v8937 = vadd.f32 0.0, %v8936
    %v8938 = vpop.f32.mrb[0].mxu0
    %8939 = vmatprep.mubr.f32.mxu0 0.0
    %8940 = vmatmul.mubr.f32.gmra.mrb[0].mxu0 %v8850
    %v8941 = vpop.f32.mrb[0].mxu0
    %v8942 = vadd.f32 0.0, %v8941
    %v8943 = vpop.f32.mrb[0].mxu0
    %8944 = vmatprep.mubr.f32.mxu0 0.0
    %8945 = vmatmul.mubr.f32.gmra.mrb[0].mxu0 %v8853
    %v8946 = vpop.f32.mrb[0].mxu0
    %v8947 = vadd.f32 0.0, %v8946
    %v8948 = vpop.f32.mrb[0].mxu0
    %8949 = vmatprep.mubr.f32.mxu0 0.0
    %8950 = vmatmul.mubr.f32.gmra.mrb[0].mxu0 %v8856
    %v8951 = vpop.f32.mrb[0].mxu0
    %v8952 = vadd.f32 0.0, %v8951
    %v8953 = vpop.f32.mrb[0].mxu0
    %8954 = vmatprep.mubr.f32.mxu0 0.0
    %8955 = vmatmul.mubr.f32.gmra.mrb[0].mxu0 %v8859
    %v8956 = vpop.f32.mrb[0].mxu0
    %v8957 = vadd.f32 0.0, %v8956
    %v8958 = vpop.f32.mrb[0].mxu0
    %8959 = vmatprep.mubr.f32.mxu0 0.0
    %8960 = vmatmul.mubr.f32.gmra.mrb[0].mxu0 %v8862
    %v8961 = vpop.f32.mrb[0].mxu0
    %v8962 = vadd.f32 0.0, %v8961
    %v8963 = vpop.f32.mrb[0].mxu0
    %8964 = vmatprep.mubr.f32.mxu0 0.0
    %8965 = vmatmul.mubr.f32.gmra.mrb[0].mxu0 %v8865
    %v8966 = vpop.f32.mrb[0].mxu0
    %v8967 = vadd.f32 0.0, %v8966
    %v8968 = vpop.f32.mrb[0].mxu0
    %8969 = vmatprep.mubr.f32.mxu0 0.0
    %8970 = vmatmul.mubr.f32.gmra.mrb[0].mxu0 %v8868
    %v8971 = vpop.f32.mrb[0].mxu0
    %v8972 = vadd.f32 0.0, %v8971
    %v8973 = vpop.f32.mrb[0].mxu0
    %8974 = vdwg.mxu0
    %v8975 = vadd.f32 %v8792, %v8937
    %v8976 = vadd.f32 %v8797, %v8942
    %v8977 = vadd.f32 %v8802, %v8947
    %v8978 = vadd.f32 %v8807, %v8952
    %v8979 = vadd.f32 %v8812, %v8957
    %v8980 = vadd.f32 %v8817, %v8962
    %v8981 = vadd.f32 %v8822, %v8967
    %v8982 = vadd.f32 %v8827, %v8972
    %v8983 = vld [vmem:[%s5777 + $0x90] sm:$0xff]
    %v8984 = vld [vmem:[%s5777 + $0x98] sm:$0xff]
    %v8985 = vld [vmem:[%s5777 + $0xa0] sm:$0xff]
    %v8986 = vld [vmem:[%s5777 + $0xa8] sm:$0xff]
    %v8987 = vld [vmem:[%s5777 + $0xb0] sm:$0xff]
    %v8988 = vld [vmem:[%s5777 + $0xb8] sm:$0xff]
    %v8989 = vld [vmem:[%s5777 + $0xc0] sm:$0xff]
    %v8990 = vld [vmem:[%s5777 + $0xc8] sm:$0xff]
    %v8991 = vmul.f32 %v8983, %v142
    %v8992 = vmul.f32 %v8984, %v143
    %v8993 = vmul.f32 %v8985, %v144
    %v8994 = vmul.f32 %v8986, %v145
    %v8995 = vmul.f32 %v8987, %v146
    %v8996 = vmul.f32 %v8988, %v147
    %v8997 = vmul.f32 %v8989, %v148
    %v8998 = vmul.f32 %v8990, %v149
    %v9000 = vsel %vm201, %v8991, 0
    %v9003 = vsel %vm201, %v8992, 0
    %v9006 = vsel %vm201, %v8993, 0
    %v9009 = vsel %vm201, %v8994, 0
    %v9012 = vsel %vm201, %v8995, 0
    %v9015 = vsel %vm201, %v8996, 0
    %v9018 = vsel %vm201, %v8997, 0
    %v9021 = vsel %vm201, %v8998, 0
    %9023 = vmatprep.subr.mxu0 0.0
    %9024 = vmatpush1.msra.mxu0 %v6267
    %9025 = vmatprep.subr.mxu0 0.0
    %9026 = vmatpush1.msra.mxu0 0.0
    %9027 = vmatprep.subr.mxu0 0.0
    %9028 = vmatpush1.msra.mxu0 0.0
    %9029 = vmatprep.subr.mxu0 0.0
    %9030 = vmatpush1.msra.mxu0 0.0
    %9031 = vmatprep.subr.mxu0 0.0
    %9032 = vmatpush1.msra.mxu0 0.0
    %9033 = vmatprep.subr.mxu0 0.0
    %9034 = vmatpush1.msra.mxu0 0.0
    %9035 = vmatprep.subr.mxu0 0.0
    %9036 = vmatpush1.msra.mxu0 0.0
    %9037 = vmatprep.subr.mxu0 0.0
    %9038 = vmatpush1.msra.mxu0 0.0
    %9039 = vmatprep.subr.mxu0 0.0
    %9040 = vmatpush1.msra.mxu0 0.0
    %9041 = vmatprep.subr.mxu0 0.0
    %9042 = vmatpush1.msra.mxu0 0.0
    %9043 = vmatprep.subr.mxu0 0.0
    %9044 = vmatpush1.msra.mxu0 0.0
    %9045 = vmatprep.subr.mxu0 0.0
    %9046 = vmatpush1.msra.mxu0 0.0
    %9047 = vmatprep.subr.mxu0 0.0
    %9048 = vmatpush1.msra.mxu0 0.0
    %9049 = vmatprep.subr.mxu0 0.0
    %9050 = vmatpush1.msra.mxu0 0.0
    %9051 = vmatprep.subr.mxu0 0.0
    %9052 = vmatpush1.msra.mxu0 0.0
    %9053 = vmatprep.subr.mxu0 0.0
    %9054 = vmatpush1.msra.mxu0 0.0
    %9055 = vmatprep.subr.mxu0 0.0
    %9056 = vmatpush1.msra.mxu0 0.0
    %9057 = vmatprep.subr.mxu0 0.0
    %9058 = vmatpush1.msra.mxu0 0.0
    %9059 = vmatprep.subr.mxu0 0.0
    %9060 = vmatpush1.msra.mxu0 0.0
    %9061 = vmatprep.subr.mxu0 0.0
    %9062 = vmatpush1.msra.mxu0 0.0
    %9063 = vmatprep.subr.mxu0 0.0
    %9064 = vmatpush1.msra.mxu0 0.0
    %9065 = vmatprep.subr.mxu0 0.0
    %9066 = vmatpush1.msra.mxu0 0.0
    %9067 = vmatprep.subr.mxu0 0.0
    %9068 = vmatpush1.msra.mxu0 0.0
    %9069 = vmatprep.subr.mxu0 0.0
    %9070 = vmatpush1.msra.mxu0 0.0
    %9071 = vmatprep.subr.mxu0 0.0
    %9072 = vmatpush1.msra.mxu0 0.0
    %9073 = vmatprep.subr.mxu0 0.0
    %9074 = vmatpush1.msra.mxu0 0.0
    %9075 = vmatprep.subr.mxu0 0.0
    %9076 = vmatpush1.msra.mxu0 0.0
    %9077 = vmatprep.subr.mxu0 0.0
    %9078 = vmatpush1.msra.mxu0 0.0
    %9079 = vmatprep.subr.mxu0 0.0
    %9080 = vmatpush1.msra.mxu0 0.0
    %9081 = vmatprep.subr.mxu0 0.0
    %9082 = vmatpush1.msra.mxu0 0.0
    %9083 = vmatprep.subr.mxu0 0.0
    %9084 = vmatpush1.msra.mxu0 0.0
    %9085 = vmatprep.subr.mxu0 0.0
    %9086 = vmatpush1.msra.mxu0 0.0
    %9087 = vmatprep.mubr.f32.mxu0 0.0
    %9088 = vmatmul.mubr.f32.gmra.mrb[0].mxu0 %v9000
    %v9089 = vpop.f32.mrb[0].mxu0
    %v9090 = vadd.f32 0.0, %v9089
    %v9091 = vpop.f32.mrb[0].mxu0
    %9092 = vmatprep.mubr.f32.mxu0 0.0
    %9093 = vmatmul.mubr.f32.gmra.mrb[0].mxu0 %v9003
    %v9094 = vpop.f32.mrb[0].mxu0
    %v9095 = vadd.f32 0.0, %v9094
    %v9096 = vpop.f32.mrb[0].mxu0
    %9097 = vmatprep.mubr.f32.mxu0 0.0
    %9098 = vmatmul.mubr.f32.gmra.mrb[0].mxu0 %v9006
    %v9099 = vpop.f32.mrb[0].mxu0
    %v9100 = vadd.f32 0.0, %v9099
    %v9101 = vpop.f32.mrb[0].mxu0
    %9102 = vmatprep.mubr.f32.mxu0 0.0
    %9103 = vmatmul.mubr.f32.gmra.mrb[0].mxu0 %v9009
    %v9104 = vpop.f32.mrb[0].mxu0
    %v9105 = vadd.f32 0.0, %v9104
    %v9106 = vpop.f32.mrb[0].mxu0
    %9107 = vmatprep.mubr.f32.mxu0 0.0
    %9108 = vmatmul.mubr.f32.gmra.mrb[0].mxu0 %v9012
    %v9109 = vpop.f32.mrb[0].mxu0
    %v9110 = vadd.f32 0.0, %v9109
    %v9111 = vpop.f32.mrb[0].mxu0
    %9112 = vmatprep.mubr.f32.mxu0 0.0
    %9113 = vmatmul.mubr.f32.gmra.mrb[0].mxu0 %v9015
    %v9114 = vpop.f32.mrb[0].mxu0
    %v9115 = vadd.f32 0.0, %v9114
    %v9116 = vpop.f32.mrb[0].mxu0
    %9117 = vmatprep.mubr.f32.mxu0 0.0
    %9118 = vmatmul.mubr.f32.gmra.mrb[0].mxu0 %v9018
    %v9119 = vpop.f32.mrb[0].mxu0
    %v9120 = vadd.f32 0.0, %v9119
    %v9121 = vpop.f32.mrb[0].mxu0
    %9122 = vmatprep.mubr.f32.mxu0 0.0
    %9123 = vmatmul.mubr.f32.gmra.mrb[0].mxu0 %v9021
    %v9124 = vpop.f32.mrb[0].mxu0
    %v9125 = vadd.f32 0.0, %v9124
    %v9126 = vpop.f32.mrb[0].mxu0
    %9127 = vdwg.mxu0
    %v9128 = vadd.f32 %v8975, %v9090
    %v9129 = vadd.f32 %v8976, %v9095
    %v9130 = vadd.f32 %v8977, %v9100
    %v9131 = vadd.f32 %v8978, %v9105
    %v9132 = vadd.f32 %v8979, %v9110
    %v9133 = vadd.f32 %v8980, %v9115
    %v9134 = vadd.f32 %v8981, %v9120
    %v9135 = vadd.f32 %v8982, %v9125
    %v9136 = vld [vmem:[%s5777 + $0x91] sm:$0xff]
    %v9137 = vld [vmem:[%s5777 + $0x99] sm:$0xff]
    %v9138 = vld [vmem:[%s5777 + $0xa1] sm:$0xff]
    %v9139 = vld [vmem:[%s5777 + $0xa9] sm:$0xff]
    %v9140 = vld [vmem:[%s5777 + $0xb1] sm:$0xff]
    %v9141 = vld [vmem:[%s5777 + $0xb9] sm:$0xff]
    %v9142 = vld [vmem:[%s5777 + $0xc1] sm:$0xff]
    %v9143 = vld [vmem:[%s5777 + $0xc9] sm:$0xff]
    %v9145 = vsel %vm201, %v9136, 0
    %v9148 = vsel %vm201, %v9137, 0
    %v9151 = vsel %vm201, %v9138, 0
    %v9154 = vsel %vm201, %v9139, 0
    %v9157 = vsel %vm201, %v9140, 0
    %v9160 = vsel %vm201, %v9141, 0
    %v9163 = vsel %vm201, %v9142, 0
    %v9166 = vsel %vm201, %v9143, 0
    %9168 = vmatprep.subr.mxu0 0.0
    %9169 = vmatpush1.msra.mxu0 %v6416
    %9170 = vmatprep.subr.mxu0 0.0
    %9171 = vmatpush1.msra.mxu0 0.0
    %9172 = vmatprep.subr.mxu0 0.0
    %9173 = vmatpush1.msra.mxu0 0.0
    %9174 = vmatprep.subr.mxu0 0.0
    %9175 = vmatpush1.msra.mxu0 0.0
    %9176 = vmatprep.subr.mxu0 0.0
    %9177 = vmatpush1.msra.mxu0 0.0
    %9178 = vmatprep.subr.mxu0 0.0
    %9179 = vmatpush1.msra.mxu0 0.0
    %9180 = vmatprep.subr.mxu0 0.0
    %9181 = vmatpush1.msra.mxu0 0.0
    %9182 = vmatprep.subr.mxu0 0.0
    %9183 = vmatpush1.msra.mxu0 0.0
    %9184 = vmatprep.subr.mxu0 0.0
    %9185 = vmatpush1.msra.mxu0 0.0
    %9186 = vmatprep.subr.mxu0 0.0
    %9187 = vmatpush1.msra.mxu0 0.0
    %9188 = vmatprep.subr.mxu0 0.0
    %9189 = vmatpush1.msra.mxu0 0.0
    %9190 = vmatprep.subr.mxu0 0.0
    %9191 = vmatpush1.msra.mxu0 0.0
    %9192 = vmatprep.subr.mxu0 0.0
    %9193 = vmatpush1.msra.mxu0 0.0
    %9194 = vmatprep.subr.mxu0 0.0
    %9195 = vmatpush1.msra.mxu0 0.0
    %9196 = vmatprep.subr.mxu0 0.0
    %9197 = vmatpush1.msra.mxu0 0.0
    %9198 = vmatprep.subr.mxu0 0.0
    %9199 = vmatpush1.msra.mxu0 0.0
    %9200 = vmatprep.subr.mxu0 0.0
    %9201 = vmatpush1.msra.mxu0 0.0
    %9202 = vmatprep.subr.mxu0 0.0
    %9203 = vmatpush1.msra.mxu0 0.0
    %9204 = vmatprep.subr.mxu0 0.0
    %9205 = vmatpush1.msra.mxu0 0.0
    %9206 = vmatprep.subr.mxu0 0.0
    %9207 = vmatpush1.msra.mxu0 0.0
    %9208 = vmatprep.subr.mxu0 0.0
    %9209 = vmatpush1.msra.mxu0 0.0
    %9210 = vmatprep.subr.mxu0 0.0
    %9211 = vmatpush1.msra.mxu0 0.0
    %9212 = vmatprep.subr.mxu0 0.0
    %9213 = vmatpush1.msra.mxu0 0.0
    %9214 = vmatprep.subr.mxu0 0.0
    %9215 = vmatpush1.msra.mxu0 0.0
    %9216 = vmatprep.subr.mxu0 0.0
    %9217 = vmatpush1.msra.mxu0 0.0
    %9218 = vmatprep.subr.mxu0 0.0
    %9219 = vmatpush1.msra.mxu0 0.0
    %9220 = vmatprep.subr.mxu0 0.0
    %9221 = vmatpush1.msra.mxu0 0.0
    %9222 = vmatprep.subr.mxu0 0.0
    %9223 = vmatpush1.msra.mxu0 0.0
    %9224 = vmatprep.subr.mxu0 0.0
    %9225 = vmatpush1.msra.mxu0 0.0
    %9226 = vmatprep.subr.mxu0 0.0
    %9227 = vmatpush1.msra.mxu0 0.0
    %9228 = vmatprep.subr.mxu0 0.0
    %9229 = vmatpush1.msra.mxu0 0.0
    %9230 = vmatprep.subr.mxu0 0.0
    %9231 = vmatpush1.msra.mxu0 0.0
    %9232 = vmatprep.mubr.f32.mxu0 0.0
    %9233 = vmatmul.mubr.f32.gmra.mrb[0].mxu0 %v9145
    %v9234 = vpop.f32.mrb[0].mxu0
    %v9235 = vadd.f32 0.0, %v9234
    %v9236 = vpop.f32.mrb[0].mxu0
    %9237 = vmatprep.mubr.f32.mxu0 0.0
    %9238 = vmatmul.mubr.f32.gmra.mrb[0].mxu0 %v9148
    %v9239 = vpop.f32.mrb[0].mxu0
    %v9240 = vadd.f32 0.0, %v9239
    %v9241 = vpop.f32.mrb[0].mxu0
    %9242 = vmatprep.mubr.f32.mxu0 0.0
    %9243 = vmatmul.mubr.f32.gmra.mrb[0].mxu0 %v9151
    %v9244 = vpop.f32.mrb[0].mxu0
    %v9245 = vadd.f32 0.0, %v9244
    %v9246 = vpop.f32.mrb[0].mxu0
    %9247 = vmatprep.mubr.f32.mxu0 0.0
    %9248 = vmatmul.mubr.f32.gmra.mrb[0].mxu0 %v9154
    %v9249 = vpop.f32.mrb[0].mxu0
    %v9250 = vadd.f32 0.0, %v9249
    %v9251 = vpop.f32.mrb[0].mxu0
    %9252 = vmatprep.mubr.f32.mxu0 0.0
    %9253 = vmatmul.mubr.f32.gmra.mrb[0].mxu0 %v9157
    %v9254 = vpop.f32.mrb[0].mxu0
    %v9255 = vadd.f32 0.0, %v9254
    %v9256 = vpop.f32.mrb[0].mxu0
    %9257 = vmatprep.mubr.f32.mxu0 0.0
    %9258 = vmatmul.mubr.f32.gmra.mrb[0].mxu0 %v9160
    %v9259 = vpop.f32.mrb[0].mxu0
    %v9260 = vadd.f32 0.0, %v9259
    %v9261 = vpop.f32.mrb[0].mxu0
    %9262 = vmatprep.mubr.f32.mxu0 0.0
    %9263 = vmatmul.mubr.f32.gmra.mrb[0].mxu0 %v9163
    %v9264 = vpop.f32.mrb[0].mxu0
    %v9265 = vadd.f32 0.0, %v9264
    %v9266 = vpop.f32.mrb[0].mxu0
    %9267 = vmatprep.mubr.f32.mxu0 0.0
    %9268 = vmatmul.mubr.f32.gmra.mrb[0].mxu0 %v9166
    %v9269 = vpop.f32.mrb[0].mxu0
    %v9270 = vadd.f32 0.0, %v9269
    %v9271 = vpop.f32.mrb[0].mxu0
    %9272 = vdwg.mxu0
    %v9273 = vadd.f32 %v9128, %v9235
    %v9274 = vadd.f32 %v9129, %v9240
    %v9275 = vadd.f32 %v9130, %v9245
    %v9276 = vadd.f32 %v9131, %v9250
    %v9277 = vadd.f32 %v9132, %v9255
    %v9278 = vadd.f32 %v9133, %v9260
    %v9279 = vadd.f32 %v9134, %v9265
    %v9280 = vadd.f32 %v9135, %v9270
    %v9281 = vld [vmem:[%s5777 + $0x92] sm:$0xff]
    %v9282 = vld [vmem:[%s5777 + $0x9a] sm:$0xff]
    %v9283 = vld [vmem:[%s5777 + $0xa2] sm:$0xff]
    %v9284 = vld [vmem:[%s5777 + $0xaa] sm:$0xff]
    %v9285 = vld [vmem:[%s5777 + $0xb2] sm:$0xff]
    %v9286 = vld [vmem:[%s5777 + $0xba] sm:$0xff]
    %v9287 = vld [vmem:[%s5777 + $0xc2] sm:$0xff]
    %v9288 = vld [vmem:[%s5777 + $0xca] sm:$0xff]
    %v9289 = vmul.f32 %v9281, %v166
    %v9290 = vmul.f32 %v9282, %v167
    %v9291 = vmul.f32 %v9283, %v168
    %v9292 = vmul.f32 %v9284, %v169
    %v9293 = vmul.f32 %v9285, %v170
    %v9294 = vmul.f32 %v9286, %v171
    %v9295 = vmul.f32 %v9287, %v172
    %v9296 = vmul.f32 %v9288, %v173
    %v9298 = vsel %vm201, %v9289, 0
    %v9301 = vsel %vm201, %v9290, 0
    %v9304 = vsel %vm201, %v9291, 0
    %v9307 = vsel %vm201, %v9292, 0
    %v9310 = vsel %vm201, %v9293, 0
    %v9313 = vsel %vm201, %v9294, 0
    %v9316 = vsel %vm201, %v9295, 0
    %v9319 = vsel %vm201, %v9296, 0
    %9321 = vmatprep.subr.mxu0 0.0
    %9322 = vmatpush1.msra.mxu0 %v6573
    %9323 = vmatprep.subr.mxu0 0.0
    %9324 = vmatpush1.msra.mxu0 0.0
    %9325 = vmatprep.subr.mxu0 0.0
    %9326 = vmatpush1.msra.mxu0 0.0
    %9327 = vmatprep.subr.mxu0 0.0
    %9328 = vmatpush1.msra.mxu0 0.0
    %9329 = vmatprep.subr.mxu0 0.0
    %9330 = vmatpush1.msra.mxu0 0.0
    %9331 = vmatprep.subr.mxu0 0.0
    %9332 = vmatpush1.msra.mxu0 0.0
    %9333 = vmatprep.subr.mxu0 0.0
    %9334 = vmatpush1.msra.mxu0 0.0
    %9335 = vmatprep.subr.mxu0 0.0
    %9336 = vmatpush1.msra.mxu0 0.0
    %9337 = vmatprep.subr.mxu0 0.0
    %9338 = vmatpush1.msra.mxu0 0.0
    %9339 = vmatprep.subr.mxu0 0.0
    %9340 = vmatpush1.msra.mxu0 0.0
    %9341 = vmatprep.subr.mxu0 0.0
    %9342 = vmatpush1.msra.mxu0 0.0
    %9343 = vmatprep.subr.mxu0 0.0
    %9344 = vmatpush1.msra.mxu0 0.0
    %9345 = vmatprep.subr.mxu0 0.0
    %9346 = vmatpush1.msra.mxu0 0.0
    %9347 = vmatprep.subr.mxu0 0.0
    %9348 = vmatpush1.msra.mxu0 0.0
    %9349 = vmatprep.subr.mxu0 0.0
    %9350 = vmatpush1.msra.mxu0 0.0
    %9351 = vmatprep.subr.mxu0 0.0
    %9352 = vmatpush1.msra.mxu0 0.0
    %9353 = vmatprep.subr.mxu0 0.0
    %9354 = vmatpush1.msra.mxu0 0.0
    %9355 = vmatprep.subr.mxu0 0.0
    %9356 = vmatpush1.msra.mxu0 0.0
    %9357 = vmatprep.subr.mxu0 0.0
    %9358 = vmatpush1.msra.mxu0 0.0
    %9359 = vmatprep.subr.mxu0 0.0
    %9360 = vmatpush1.msra.mxu0 0.0
    %9361 = vmatprep.subr.mxu0 0.0
    %9362 = vmatpush1.msra.mxu0 0.0
    %9363 = vmatprep.subr.mxu0 0.0
    %9364 = vmatpush1.msra.mxu0 0.0
    %9365 = vmatprep.subr.mxu0 0.0
    %9366 = vmatpush1.msra.mxu0 0.0
    %9367 = vmatprep.subr.mxu0 0.0
    %9368 = vmatpush1.msra.mxu0 0.0
    %9369 = vmatprep.subr.mxu0 0.0
    %9370 = vmatpush1.msra.mxu0 0.0
    %9371 = vmatprep.subr.mxu0 0.0
    %9372 = vmatpush1.msra.mxu0 0.0
    %9373 = vmatprep.subr.mxu0 0.0
    %9374 = vmatpush1.msra.mxu0 0.0
    %9375 = vmatprep.subr.mxu0 0.0
    %9376 = vmatpush1.msra.mxu0 0.0
    %9377 = vmatprep.subr.mxu0 0.0
    %9378 = vmatpush1.msra.mxu0 0.0
    %9379 = vmatprep.subr.mxu0 0.0
    %9380 = vmatpush1.msra.mxu0 0.0
    %9381 = vmatprep.subr.mxu0 0.0
    %9382 = vmatpush1.msra.mxu0 0.0
    %9383 = vmatprep.subr.mxu0 0.0
    %9384 = vmatpush1.msra.mxu0 0.0
    %9385 = vmatprep.mubr.f32.mxu0 0.0
    %9386 = vmatmul.mubr.f32.gmra.mrb[0].mxu0 %v9298
    %v9387 = vpop.f32.mrb[0].mxu0
    %v9388 = vadd.f32 0.0, %v9387
    %v9389 = vpop.f32.mrb[0].mxu0
    %9390 = vmatprep.mubr.f32.mxu0 0.0
    %9391 = vmatmul.mubr.f32.gmra.mrb[0].mxu0 %v9301
    %v9392 = vpop.f32.mrb[0].mxu0
    %v9393 = vadd.f32 0.0, %v9392
    %v9394 = vpop.f32.mrb[0].mxu0
    %9395 = vmatprep.mubr.f32.mxu0 0.0
    %9396 = vmatmul.mubr.f32.gmra.mrb[0].mxu0 %v9304
    %v9397 = vpop.f32.mrb[0].mxu0
    %v9398 = vadd.f32 0.0, %v9397
    %v9399 = vpop.f32.mrb[0].mxu0
    %9400 = vmatprep.mubr.f32.mxu0 0.0
    %9401 = vmatmul.mubr.f32.gmra.mrb[0].mxu0 %v9307
    %v9402 = vpop.f32.mrb[0].mxu0
    %v9403 = vadd.f32 0.0, %v9402
    %v9404 = vpop.f32.mrb[0].mxu0
    %9405 = vmatprep.mubr.f32.mxu0 0.0
    %9406 = vmatmul.mubr.f32.gmra.mrb[0].mxu0 %v9310
    %v9407 = vpop.f32.mrb[0].mxu0
    %v9408 = vadd.f32 0.0, %v9407
    %v9409 = vpop.f32.mrb[0].mxu0
    %9410 = vmatprep.mubr.f32.mxu0 0.0
    %9411 = vmatmul.mubr.f32.gmra.mrb[0].mxu0 %v9313
    %v9412 = vpop.f32.mrb[0].mxu0
    %v9413 = vadd.f32 0.0, %v9412
    %v9414 = vpop.f32.mrb[0].mxu0
    %9415 = vmatprep.mubr.f32.mxu0 0.0
    %9416 = vmatmul.mubr.f32.gmra.mrb[0].mxu0 %v9316
    %v9417 = vpop.f32.mrb[0].mxu0
    %v9418 = vadd.f32 0.0, %v9417
    %v9419 = vpop.f32.mrb[0].mxu0
    %9420 = vmatprep.mubr.f32.mxu0 0.0
    %9421 = vmatmul.mubr.f32.gmra.mrb[0].mxu0 %v9319
    %v9422 = vpop.f32.mrb[0].mxu0
    %v9423 = vadd.f32 0.0, %v9422
    %v9424 = vpop.f32.mrb[0].mxu0
    %9425 = vdwg.mxu0
    %v9426 = vadd.f32 %v9273, %v9388
    %v9427 = vadd.f32 %v9274, %v9393
    %v9428 = vadd.f32 %v9275, %v9398
    %v9429 = vadd.f32 %v9276, %v9403
    %v9430 = vadd.f32 %v9277, %v9408
    %v9431 = vadd.f32 %v9278, %v9413
    %v9432 = vadd.f32 %v9279, %v9418
    %v9433 = vadd.f32 %v9280, %v9423
    %v9434 = vld [vmem:[%s5777 + $0xa0] sm:$0xff]
    %v9435 = vld [vmem:[%s5777 + $0xa8] sm:$0xff]
    %v9436 = vld [vmem:[%s5777 + $0xb0] sm:$0xff]
    %v9437 = vld [vmem:[%s5777 + $0xb8] sm:$0xff]
    %v9438 = vld [vmem:[%s5777 + $0xc0] sm:$0xff]
    %v9439 = vld [vmem:[%s5777 + $0xc8] sm:$0xff]
    %v9440 = vld [vmem:[%s5777 + $0xd0] sm:$0xff]
    %v9441 = vld [vmem:[%s5777 + $0xd8] sm:$0xff]
    %v9442 = vmul.f32 %v9434, %v142
    %v9443 = vmul.f32 %v9435, %v143
    %v9444 = vmul.f32 %v9436, %v144
    %v9445 = vmul.f32 %v9437, %v145
    %v9446 = vmul.f32 %v9438, %v146
    %v9447 = vmul.f32 %v9439, %v147
    %v9448 = vmul.f32 %v9440, %v148
    %v9449 = vmul.f32 %v9441, %v149
    %v9451 = vsel %vm201, %v9442, 0
    %v9454 = vsel %vm201, %v9443, 0
    %v9457 = vsel %vm201, %v9444, 0
    %v9460 = vsel %vm201, %v9445, 0
    %v9463 = vsel %vm201, %v9446, 0
    %v9466 = vsel %vm201, %v9447, 0
    %v9469 = vsel %vm201, %v9448, 0
    %v9472 = vsel %vm201, %v9449, 0
    %9474 = vmatprep.subr.mxu0 0.0
    %9475 = vmatpush1.msra.mxu0 %v6730
    %9476 = vmatprep.subr.mxu0 0.0
    %9477 = vmatpush1.msra.mxu0 0.0
    %9478 = vmatprep.subr.mxu0 0.0
    %9479 = vmatpush1.msra.mxu0 0.0
    %9480 = vmatprep.subr.mxu0 0.0
    %9481 = vmatpush1.msra.mxu0 0.0
    %9482 = vmatprep.subr.mxu0 0.0
    %9483 = vmatpush1.msra.mxu0 0.0
    %9484 = vmatprep.subr.mxu0 0.0
    %9485 = vmatpush1.msra.mxu0 0.0
    %9486 = vmatprep.subr.mxu0 0.0
    %9487 = vmatpush1.msra.mxu0 0.0
    %9488 = vmatprep.subr.mxu0 0.0
    %9489 = vmatpush1.msra.mxu0 0.0
    %9490 = vmatprep.subr.mxu0 0.0
    %9491 = vmatpush1.msra.mxu0 0.0
    %9492 = vmatprep.subr.mxu0 0.0
    %9493 = vmatpush1.msra.mxu0 0.0
    %9494 = vmatprep.subr.mxu0 0.0
    %9495 = vmatpush1.msra.mxu0 0.0
    %9496 = vmatprep.subr.mxu0 0.0
    %9497 = vmatpush1.msra.mxu0 0.0
    %9498 = vmatprep.subr.mxu0 0.0
    %9499 = vmatpush1.msra.mxu0 0.0
    %9500 = vmatprep.subr.mxu0 0.0
    %9501 = vmatpush1.msra.mxu0 0.0
    %9502 = vmatprep.subr.mxu0 0.0
    %9503 = vmatpush1.msra.mxu0 0.0
    %9504 = vmatprep.subr.mxu0 0.0
    %9505 = vmatpush1.msra.mxu0 0.0
    %9506 = vmatprep.subr.mxu0 0.0
    %9507 = vmatpush1.msra.mxu0 0.0
    %9508 = vmatprep.subr.mxu0 0.0
    %9509 = vmatpush1.msra.mxu0 0.0
    %9510 = vmatprep.subr.mxu0 0.0
    %9511 = vmatpush1.msra.mxu0 0.0
    %9512 = vmatprep.subr.mxu0 0.0
    %9513 = vmatpush1.msra.mxu0 0.0
    %9514 = vmatprep.subr.mxu0 0.0
    %9515 = vmatpush1.msra.mxu0 0.0
    %9516 = vmatprep.subr.mxu0 0.0
    %9517 = vmatpush1.msra.mxu0 0.0
    %9518 = vmatprep.subr.mxu0 0.0
    %9519 = vmatpush1.msra.mxu0 0.0
    %9520 = vmatprep.subr.mxu0 0.0
    %9521 = vmatpush1.msra.mxu0 0.0
    %9522 = vmatprep.subr.mxu0 0.0
    %9523 = vmatpush1.msra.mxu0 0.0
    %9524 = vmatprep.subr.mxu0 0.0
    %9525 = vmatpush1.msra.mxu0 0.0
    %9526 = vmatprep.subr.mxu0 0.0
    %9527 = vmatpush1.msra.mxu0 0.0
    %9528 = vmatprep.subr.mxu0 0.0
    %9529 = vmatpush1.msra.mxu0 0.0
    %9530 = vmatprep.subr.mxu0 0.0
    %9531 = vmatpush1.msra.mxu0 0.0
    %9532 = vmatprep.subr.mxu0 0.0
    %9533 = vmatpush1.msra.mxu0 0.0
    %9534 = vmatprep.subr.mxu0 0.0
    %9535 = vmatpush1.msra.mxu0 0.0
    %9536 = vmatprep.subr.mxu0 0.0
    %9537 = vmatpush1.msra.mxu0 0.0
    %9538 = vmatprep.mubr.f32.mxu0 0.0
    %9539 = vmatmul.mubr.f32.gmra.mrb[0].mxu0 %v9451
    %v9540 = vpop.f32.mrb[0].mxu0
    %v9541 = vadd.f32 0.0, %v9540
    %v9542 = vpop.f32.mrb[0].mxu0
    %9543 = vmatprep.mubr.f32.mxu0 0.0
    %9544 = vmatmul.mubr.f32.gmra.mrb[0].mxu0 %v9454
    %v9545 = vpop.f32.mrb[0].mxu0
    %v9546 = vadd.f32 0.0, %v9545
    %v9547 = vpop.f32.mrb[0].mxu0
    %9548 = vmatprep.mubr.f32.mxu0 0.0
    %9549 = vmatmul.mubr.f32.gmra.mrb[0].mxu0 %v9457
    %v9550 = vpop.f32.mrb[0].mxu0
    %v9551 = vadd.f32 0.0, %v9550
    %v9552 = vpop.f32.mrb[0].mxu0
    %9553 = vmatprep.mubr.f32.mxu0 0.0
    %9554 = vmatmul.mubr.f32.gmra.mrb[0].mxu0 %v9460
    %v9555 = vpop.f32.mrb[0].mxu0
    %v9556 = vadd.f32 0.0, %v9555
    %v9557 = vpop.f32.mrb[0].mxu0
    %9558 = vmatprep.mubr.f32.mxu0 0.0
    %9559 = vmatmul.mubr.f32.gmra.mrb[0].mxu0 %v9463
    %v9560 = vpop.f32.mrb[0].mxu0
    %v9561 = vadd.f32 0.0, %v9560
    %v9562 = vpop.f32.mrb[0].mxu0
    %9563 = vmatprep.mubr.f32.mxu0 0.0
    %9564 = vmatmul.mubr.f32.gmra.mrb[0].mxu0 %v9466
    %v9565 = vpop.f32.mrb[0].mxu0
    %v9566 = vadd.f32 0.0, %v9565
    %v9567 = vpop.f32.mrb[0].mxu0
    %9568 = vmatprep.mubr.f32.mxu0 0.0
    %9569 = vmatmul.mubr.f32.gmra.mrb[0].mxu0 %v9469
    %v9570 = vpop.f32.mrb[0].mxu0
    %v9571 = vadd.f32 0.0, %v9570
    %v9572 = vpop.f32.mrb[0].mxu0
    %9573 = vmatprep.mubr.f32.mxu0 0.0
    %9574 = vmatmul.mubr.f32.gmra.mrb[0].mxu0 %v9472
    %v9575 = vpop.f32.mrb[0].mxu0
    %v9576 = vadd.f32 0.0, %v9575
    %v9577 = vpop.f32.mrb[0].mxu0
    %9578 = vdwg.mxu0
    %v9579 = vadd.f32 %v9426, %v9541
    %v9580 = vadd.f32 %v9427, %v9546
    %v9581 = vadd.f32 %v9428, %v9551
    %v9582 = vadd.f32 %v9429, %v9556
    %v9583 = vadd.f32 %v9430, %v9561
    %v9584 = vadd.f32 %v9431, %v9566
    %v9585 = vadd.f32 %v9432, %v9571
    %v9586 = vadd.f32 %v9433, %v9576
    %v9587 = vld [vmem:[%s5777 + $0xa1] sm:$0xff]
    %v9588 = vld [vmem:[%s5777 + $0xa9] sm:$0xff]
    %v9589 = vld [vmem:[%s5777 + $0xb1] sm:$0xff]
    %v9590 = vld [vmem:[%s5777 + $0xb9] sm:$0xff]
    %v9591 = vld [vmem:[%s5777 + $0xc1] sm:$0xff]
    %v9592 = vld [vmem:[%s5777 + $0xc9] sm:$0xff]
    %v9593 = vld [vmem:[%s5777 + $0xd1] sm:$0xff]
    %v9594 = vld [vmem:[%s5777 + $0xd9] sm:$0xff]
    %v9596 = vsel %vm201, %v9587, 0
    %v9599 = vsel %vm201, %v9588, 0
    %v9602 = vsel %vm201, %v9589, 0
    %v9605 = vsel %vm201, %v9590, 0
    %v9608 = vsel %vm201, %v9591, 0
    %v9611 = vsel %vm201, %v9592, 0
    %v9614 = vsel %vm201, %v9593, 0
    %v9617 = vsel %vm201, %v9594, 0
    %9619 = vmatprep.subr.mxu0 0.0
    %9620 = vmatpush1.msra.mxu0 %v6879
    %9621 = vmatprep.subr.mxu0 0.0
    %9622 = vmatpush1.msra.mxu0 0.0
    %9623 = vmatprep.subr.mxu0 0.0
    %9624 = vmatpush1.msra.mxu0 0.0
    %9625 = vmatprep.subr.mxu0 0.0
    %9626 = vmatpush1.msra.mxu0 0.0
    %9627 = vmatprep.subr.mxu0 0.0
    %9628 = vmatpush1.msra.mxu0 0.0
    %9629 = vmatprep.subr.mxu0 0.0
    %9630 = vmatpush1.msra.mxu0 0.0
    %9631 = vmatprep.subr.mxu0 0.0
    %9632 = vmatpush1.msra.mxu0 0.0
    %9633 = vmatprep.subr.mxu0 0.0
    %9634 = vmatpush1.msra.mxu0 0.0
    %9635 = vmatprep.subr.mxu0 0.0
    %9636 = vmatpush1.msra.mxu0 0.0
    %9637 = vmatprep.subr.mxu0 0.0
    %9638 = vmatpush1.msra.mxu0 0.0
    %9639 = vmatprep.subr.mxu0 0.0
    %9640 = vmatpush1.msra.mxu0 0.0
    %9641 = vmatprep.subr.mxu0 0.0
    %9642 = vmatpush1.msra.mxu0 0.0
    %9643 = vmatprep.subr.mxu0 0.0
    %9644 = vmatpush1.msra.mxu0 0.0
    %9645 = vmatprep.subr.mxu0 0.0
    %9646 = vmatpush1.msra.mxu0 0.0
    %9647 = vmatprep.subr.mxu0 0.0
    %9648 = vmatpush1.msra.mxu0 0.0
    %9649 = vmatprep.subr.mxu0 0.0
    %9650 = vmatpush1.msra.mxu0 0.0
    %9651 = vmatprep.subr.mxu0 0.0
    %9652 = vmatpush1.msra.mxu0 0.0
    %9653 = vmatprep.subr.mxu0 0.0
    %9654 = vmatpush1.msra.mxu0 0.0
    %9655 = vmatprep.subr.mxu0 0.0
    %9656 = vmatpush1.msra.mxu0 0.0
    %9657 = vmatprep.subr.mxu0 0.0
    %9658 = vmatpush1.msra.mxu0 0.0
    %9659 = vmatprep.subr.mxu0 0.0
    %9660 = vmatpush1.msra.mxu0 0.0
    %9661 = vmatprep.subr.mxu0 0.0
    %9662 = vmatpush1.msra.mxu0 0.0
    %9663 = vmatprep.subr.mxu0 0.0
    %9664 = vmatpush1.msra.mxu0 0.0
    %9665 = vmatprep.subr.mxu0 0.0
    %9666 = vmatpush1.msra.mxu0 0.0
    %9667 = vmatprep.subr.mxu0 0.0
    %9668 = vmatpush1.msra.mxu0 0.0
    %9669 = vmatprep.subr.mxu0 0.0
    %9670 = vmatpush1.msra.mxu0 0.0
    %9671 = vmatprep.subr.mxu0 0.0
    %9672 = vmatpush1.msra.mxu0 0.0
    %9673 = vmatprep.subr.mxu0 0.0
    %9674 = vmatpush1.msra.mxu0 0.0
    %9675 = vmatprep.subr.mxu0 0.0
    %9676 = vmatpush1.msra.mxu0 0.0
    %9677 = vmatprep.subr.mxu0 0.0
    %9678 = vmatpush1.msra.mxu0 0.0
    %9679 = vmatprep.subr.mxu0 0.0
    %9680 = vmatpush1.msra.mxu0 0.0
    %9681 = vmatprep.subr.mxu0 0.0
    %9682 = vmatpush1.msra.mxu0 0.0
    %9683 = vmatprep.mubr.f32.mxu0 0.0
    %9684 = vmatmul.mubr.f32.gmra.mrb[0].mxu0 %v9596
    %v9685 = vpop.f32.mrb[0].mxu0
    %v9686 = vadd.f32 0.0, %v9685
    %v9687 = vpop.f32.mrb[0].mxu0
    %9688 = vmatprep.mubr.f32.mxu0 0.0
    %9689 = vmatmul.mubr.f32.gmra.mrb[0].mxu0 %v9599
    %v9690 = vpop.f32.mrb[0].mxu0
    %v9691 = vadd.f32 0.0, %v9690
    %v9692 = vpop.f32.mrb[0].mxu0
    %9693 = vmatprep.mubr.f32.mxu0 0.0
    %9694 = vmatmul.mubr.f32.gmra.mrb[0].mxu0 %v9602
    %v9695 = vpop.f32.mrb[0].mxu0
    %v9696 = vadd.f32 0.0, %v9695
    %v9697 = vpop.f32.mrb[0].mxu0
    %9698 = vmatprep.mubr.f32.mxu0 0.0
    %9699 = vmatmul.mubr.f32.gmra.mrb[0].mxu0 %v9605
    %v9700 = vpop.f32.mrb[0].mxu0
    %v9701 = vadd.f32 0.0, %v9700
    %v9702 = vpop.f32.mrb[0].mxu0
    %9703 = vmatprep.mubr.f32.mxu0 0.0
    %9704 = vmatmul.mubr.f32.gmra.mrb[0].mxu0 %v9608
    %v9705 = vpop.f32.mrb[0].mxu0
    %v9706 = vadd.f32 0.0, %v9705
    %v9707 = vpop.f32.mrb[0].mxu0
    %9708 = vmatprep.mubr.f32.mxu0 0.0
    %9709 = vmatmul.mubr.f32.gmra.mrb[0].mxu0 %v9611
    %v9710 = vpop.f32.mrb[0].mxu0
    %v9711 = vadd.f32 0.0, %v9710
    %v9712 = vpop.f32.mrb[0].mxu0
    %9713 = vmatprep.mubr.f32.mxu0 0.0
    %9714 = vmatmul.mubr.f32.gmra.mrb[0].mxu0 %v9614
    %v9715 = vpop.f32.mrb[0].mxu0
    %v9716 = vadd.f32 0.0, %v9715
    %v9717 = vpop.f32.mrb[0].mxu0
    %9718 = vmatprep.mubr.f32.mxu0 0.0
    %9719 = vmatmul.mubr.f32.gmra.mrb[0].mxu0 %v9617
    %v9720 = vpop.f32.mrb[0].mxu0
    %v9721 = vadd.f32 0.0, %v9720
    %v9722 = vpop.f32.mrb[0].mxu0
    %9723 = vdwg.mxu0
    %v9724 = vadd.f32 %v9579, %v9686
    %v9725 = vadd.f32 %v9580, %v9691
    %v9726 = vadd.f32 %v9581, %v9696
    %v9727 = vadd.f32 %v9582, %v9701
    %v9728 = vadd.f32 %v9583, %v9706
    %v9729 = vadd.f32 %v9584, %v9711
    %v9730 = vadd.f32 %v9585, %v9716
    %v9731 = vadd.f32 %v9586, %v9721
    %v9732 = vld [vmem:[%s5777 + $0xa2] sm:$0xff]
    %v9733 = vld [vmem:[%s5777 + $0xaa] sm:$0xff]
    %v9734 = vld [vmem:[%s5777 + $0xb2] sm:$0xff]
    %v9735 = vld [vmem:[%s5777 + $0xba] sm:$0xff]
    %v9736 = vld [vmem:[%s5777 + $0xc2] sm:$0xff]
    %v9737 = vld [vmem:[%s5777 + $0xca] sm:$0xff]
    %v9738 = vld [vmem:[%s5777 + $0xd2] sm:$0xff]
    %v9739 = vld [vmem:[%s5777 + $0xda] sm:$0xff]
    %v9740 = vmul.f32 %v9732, %v166
    %v9741 = vmul.f32 %v9733, %v167
    %v9742 = vmul.f32 %v9734, %v168
    %v9743 = vmul.f32 %v9735, %v169
    %v9744 = vmul.f32 %v9736, %v170
    %v9745 = vmul.f32 %v9737, %v171
    %v9746 = vmul.f32 %v9738, %v172
    %v9747 = vmul.f32 %v9739, %v173
    %v9749 = vsel %vm201, %v9740, 0
    %v9752 = vsel %vm201, %v9741, 0
    %v9755 = vsel %vm201, %v9742, 0
    %v9758 = vsel %vm201, %v9743, 0
    %v9761 = vsel %vm201, %v9744, 0
    %v9764 = vsel %vm201, %v9745, 0
    %v9767 = vsel %vm201, %v9746, 0
    %v9770 = vsel %vm201, %v9747, 0
    %9772 = vmatprep.subr.mxu0 0.0
    %9773 = vmatpush1.msra.mxu0 %v7036
    %9774 = vmatprep.subr.mxu0 0.0
    %9775 = vmatpush1.msra.mxu0 0.0
    %9776 = vmatprep.subr.mxu0 0.0
    %9777 = vmatpush1.msra.mxu0 0.0
    %9778 = vmatprep.subr.mxu0 0.0
    %9779 = vmatpush1.msra.mxu0 0.0
    %9780 = vmatprep.subr.mxu0 0.0
    %9781 = vmatpush1.msra.mxu0 0.0
    %9782 = vmatprep.subr.mxu0 0.0
    %9783 = vmatpush1.msra.mxu0 0.0
    %9784 = vmatprep.subr.mxu0 0.0
    %9785 = vmatpush1.msra.mxu0 0.0
    %9786 = vmatprep.subr.mxu0 0.0
    %9787 = vmatpush1.msra.mxu0 0.0
    %9788 = vmatprep.subr.mxu0 0.0
    %9789 = vmatpush1.msra.mxu0 0.0
    %9790 = vmatprep.subr.mxu0 0.0
    %9791 = vmatpush1.msra.mxu0 0.0
    %9792 = vmatprep.subr.mxu0 0.0
    %9793 = vmatpush1.msra.mxu0 0.0
    %9794 = vmatprep.subr.mxu0 0.0
    %9795 = vmatpush1.msra.mxu0 0.0
    %9796 = vmatprep.subr.mxu0 0.0
    %9797 = vmatpush1.msra.mxu0 0.0
    %9798 = vmatprep.subr.mxu0 0.0
    %9799 = vmatpush1.msra.mxu0 0.0
    %9800 = vmatprep.subr.mxu0 0.0
    %9801 = vmatpush1.msra.mxu0 0.0
    %9802 = vmatprep.subr.mxu0 0.0
    %9803 = vmatpush1.msra.mxu0 0.0
    %9804 = vmatprep.subr.mxu0 0.0
    %9805 = vmatpush1.msra.mxu0 0.0
    %9806 = vmatprep.subr.mxu0 0.0
    %9807 = vmatpush1.msra.mxu0 0.0
    %9808 = vmatprep.subr.mxu0 0.0
    %9809 = vmatpush1.msra.mxu0 0.0
    %9810 = vmatprep.subr.mxu0 0.0
    %9811 = vmatpush1.msra.mxu0 0.0
    %9812 = vmatprep.subr.mxu0 0.0
    %9813 = vmatpush1.msra.mxu0 0.0
    %9814 = vmatprep.subr.mxu0 0.0
    %9815 = vmatpush1.msra.mxu0 0.0
    %9816 = vmatprep.subr.mxu0 0.0
    %9817 = vmatpush1.msra.mxu0 0.0
    %9818 = vmatprep.subr.mxu0 0.0
    %9819 = vmatpush1.msra.mxu0 0.0
    %9820 = vmatprep.subr.mxu0 0.0
    %9821 = vmatpush1.msra.mxu0 0.0
    %9822 = vmatprep.subr.mxu0 0.0
    %9823 = vmatpush1.msra.mxu0 0.0
    %9824 = vmatprep.subr.mxu0 0.0
    %9825 = vmatpush1.msra.mxu0 0.0
    %9826 = vmatprep.subr.mxu0 0.0
    %9827 = vmatpush1.msra.mxu0 0.0
    %9828 = vmatprep.subr.mxu0 0.0
    %9829 = vmatpush1.msra.mxu0 0.0
    %9830 = vmatprep.subr.mxu0 0.0
    %9831 = vmatpush1.msra.mxu0 0.0
    %9832 = vmatprep.subr.mxu0 0.0
    %9833 = vmatpush1.msra.mxu0 0.0
    %9834 = vmatprep.subr.mxu0 0.0
    %9835 = vmatpush1.msra.mxu0 0.0
    %9836 = vmatprep.mubr.f32.mxu0 0.0
    %9837 = vmatmul.mubr.f32.gmra.mrb[0].mxu0 %v9749
    %v9838 = vpop.f32.mrb[0].mxu0
    %v9839 = vadd.f32 0.0, %v9838
    %v9840 = vpop.f32.mrb[0].mxu0
    %9841 = vmatprep.mubr.f32.mxu0 0.0
    %9842 = vmatmul.mubr.f32.gmra.mrb[0].mxu0 %v9752
    %v9843 = vpop.f32.mrb[0].mxu0
    %v9844 = vadd.f32 0.0, %v9843
    %v9845 = vpop.f32.mrb[0].mxu0
    %9846 = vmatprep.mubr.f32.mxu0 0.0
    %9847 = vmatmul.mubr.f32.gmra.mrb[0].mxu0 %v9755
    %v9848 = vpop.f32.mrb[0].mxu0
    %v9849 = vadd.f32 0.0, %v9848
    %v9850 = vpop.f32.mrb[0].mxu0
    %9851 = vmatprep.mubr.f32.mxu0 0.0
    %9852 = vmatmul.mubr.f32.gmra.mrb[0].mxu0 %v9758
    %v9853 = vpop.f32.mrb[0].mxu0
    %v9854 = vadd.f32 0.0, %v9853
    %v9855 = vpop.f32.mrb[0].mxu0
    %9856 = vmatprep.mubr.f32.mxu0 0.0
    %9857 = vmatmul.mubr.f32.gmra.mrb[0].mxu0 %v9761
    %v9858 = vpop.f32.mrb[0].mxu0
    %v9859 = vadd.f32 0.0, %v9858
    %v9860 = vpop.f32.mrb[0].mxu0
    %9861 = vmatprep.mubr.f32.mxu0 0.0
    %9862 = vmatmul.mubr.f32.gmra.mrb[0].mxu0 %v9764
    %v9863 = vpop.f32.mrb[0].mxu0
    %v9864 = vadd.f32 0.0, %v9863
    %v9865 = vpop.f32.mrb[0].mxu0
    %9866 = vmatprep.mubr.f32.mxu0 0.0
    %9867 = vmatmul.mubr.f32.gmra.mrb[0].mxu0 %v9767
    %v9868 = vpop.f32.mrb[0].mxu0
    %v9869 = vadd.f32 0.0, %v9868
    %v9870 = vpop.f32.mrb[0].mxu0
    %9871 = vmatprep.mubr.f32.mxu0 0.0
    %9872 = vmatmul.mubr.f32.gmra.mrb[0].mxu0 %v9770
    %v9873 = vpop.f32.mrb[0].mxu0
    %v9874 = vadd.f32 0.0, %v9873
    %v9875 = vpop.f32.mrb[0].mxu0
    %9876 = vdwg.mxu0
    %v9877 = vadd.f32 %v9724, %v9839
    %v9878 = vadd.f32 %v9725, %v9844
    %v9879 = vadd.f32 %v9726, %v9849
    %v9880 = vadd.f32 %v9727, %v9854
    %v9881 = vadd.f32 %v9728, %v9859
    %v9882 = vadd.f32 %v9729, %v9864
    %v9883 = vadd.f32 %v9730, %v9869
    %v9884 = vadd.f32 %v9731, %v9874
    %v9885 = vadd.f32 %v9877, %v1554
    %v9886 = vadd.f32 %v9878, %v1554
    %v9887 = vadd.f32 %v9879, %v1554
    %v9888 = vadd.f32 %v9880, %v1554
    %v9889 = vadd.f32 %v9881, %v1554
    %v9890 = vadd.f32 %v9882, %v1554
    %v9891 = vadd.f32 %v9883, %v1554
    %v9892 = vadd.f32 %v9884, %v1554
    %v9893 = vmax.f32 %v9885, 0.0
    %v9894 = vmax.f32 %v9886, 0.0
    %v9895 = vmax.f32 %v9887, 0.0
    %v9896 = vmax.f32 %v9888, 0.0
    %v9897 = vmax.f32 %v9889, 0.0
    %v9898 = vmax.f32 %v9890, 0.0
    %v9899 = vmax.f32 %v9891, 0.0
    %v9900 = vmax.f32 %v9892, 0.0
    %v9901 = vadd.f32 %v9893, %v9894
    %v9902 = vadd.f32 %v9901, %v9895
    %v9903 = vadd.f32 %v9902, %v9896
    %v9904 = vadd.f32 %v9903, %v9897
    %v9905 = vadd.f32 %v9904, %v9898
    %v9906 = vadd.f32 %v9905, %v9899
    %v9907 = vadd.f32 %v9906, %v9900
    %v9908 = vrot.slane %v9907, 4
    %v9909 = vadd.f32 %v9907, %v9908
    %v9910 = vrot.slane %v9909, 2
    %v9911 = vadd.f32 %v9909, %v9910
    %v9912 = vrot.slane %v9911, 1
    %v9913 = vadd.f32 %v9911, %v9912
    %v9914 = vadd.f32 %v8547, %v9913
    %v9915 = vld [vmem:[%s5777 + $0xc0] sm:$0xff]
    %v9916 = vld [vmem:[%s5777 + $0xc8] sm:$0xff]
    %v9917 = vld [vmem:[%s5777 + $0xd0] sm:$0xff]
    %v9918 = vld [vmem:[%s5777 + $0xd8] sm:$0xff]
    %v9919 = vld [vmem:[%s5777 + $0xe0] sm:$0xff]
    %v9920 = vld [vmem:[%s5777 + $0xe8] sm:$0xff]
    %v9921 = vld [vmem:[%s5777 + $0xf0] sm:$0xff]
    %v9922 = vld [vmem:[%s5777 + $0xf8] sm:$0xff]
    %v9923 = vmul.f32 %v9915, %v142
    %v9924 = vmul.f32 %v9916, %v143
    %v9925 = vmul.f32 %v9917, %v144
    %v9926 = vmul.f32 %v9918, %v145
    %v9927 = vmul.f32 %v9919, %v146
    %v9928 = vmul.f32 %v9920, %v147
    %v9929 = vmul.f32 %v9921, %v148
    %v9930 = vmul.f32 %v9922, %v149
    %v9931 = vld [vmem:[%s5777 + $0xc1] sm:$0xff]
    %v9932 = vld [vmem:[%s5777 + $0xc9] sm:$0xff]
    %v9933 = vld [vmem:[%s5777 + $0xd1] sm:$0xff]
    %v9934 = vld [vmem:[%s5777 + $0xd9] sm:$0xff]
    %v9935 = vld [vmem:[%s5777 + $0xe1] sm:$0xff]
    %v9936 = vld [vmem:[%s5777 + $0xe9] sm:$0xff]
    %v9937 = vld [vmem:[%s5777 + $0xf1] sm:$0xff]
    %v9938 = vld [vmem:[%s5777 + $0xf9] sm:$0xff]
    %v9940 = vsel %vm201, %v9931, 0
    %v9943 = vsel %vm201, %v9932, 0
    %v9946 = vsel %vm201, %v9933, 0
    %v9949 = vsel %vm201, %v9934, 0
    %v9952 = vsel %vm201, %v9935, 0
    %v9955 = vsel %vm201, %v9936, 0
    %v9958 = vsel %vm201, %v9937, 0
    %v9961 = vsel %vm201, %v9938, 0
    %9963 = vmatprep.subr.mxu0 0.0
    %9964 = vmatpush1.msra.mxu0 %v5829
    %9965 = vmatprep.subr.mxu0 0.0
    %9966 = vmatpush1.msra.mxu0 0.0
    %9967 = vmatprep.subr.mxu0 0.0
    %9968 = vmatpush1.msra.mxu0 0.0
    %9969 = vmatprep.subr.mxu0 0.0
    %9970 = vmatpush1.msra.mxu0 0.0
    %9971 = vmatprep.subr.mxu0 0.0
    %9972 = vmatpush1.msra.mxu0 0.0
    %9973 = vmatprep.subr.mxu0 0.0
    %9974 = vmatpush1.msra.mxu0 0.0
    %9975 = vmatprep.subr.mxu0 0.0
    %9976 = vmatpush1.msra.mxu0 0.0
    %9977 = vmatprep.subr.mxu0 0.0
    %9978 = vmatpush1.msra.mxu0 0.0
    %9979 = vmatprep.subr.mxu0 0.0
    %9980 = vmatpush1.msra.mxu0 0.0
    %9981 = vmatprep.subr.mxu0 0.0
    %9982 = vmatpush1.msra.mxu0 0.0
    %9983 = vmatprep.subr.mxu0 0.0
    %9984 = vmatpush1.msra.mxu0 0.0
    %9985 = vmatprep.subr.mxu0 0.0
    %9986 = vmatpush1.msra.mxu0 0.0
    %9987 = vmatprep.subr.mxu0 0.0
    %9988 = vmatpush1.msra.mxu0 0.0
    %9989 = vmatprep.subr.mxu0 0.0
    %9990 = vmatpush1.msra.mxu0 0.0
    %9991 = vmatprep.subr.mxu0 0.0
    %9992 = vmatpush1.msra.mxu0 0.0
    %9993 = vmatprep.subr.mxu0 0.0
    %9994 = vmatpush1.msra.mxu0 0.0
    %9995 = vmatprep.subr.mxu0 0.0
    %9996 = vmatpush1.msra.mxu0 0.0
    %9997 = vmatprep.subr.mxu0 0.0
    %9998 = vmatpush1.msra.mxu0 0.0
    %9999 = vmatprep.subr.mxu0 0.0
    %10000 = vmatpush1.msra.mxu0 0.0
    %10001 = vmatprep.subr.mxu0 0.0
    %10002 = vmatpush1.msra.mxu0 0.0
    %10003 = vmatprep.subr.mxu0 0.0
    %10004 = vmatpush1.msra.mxu0 0.0
    %10005 = vmatprep.subr.mxu0 0.0
    %10006 = vmatpush1.msra.mxu0 0.0
    %10007 = vmatprep.subr.mxu0 0.0
    %10008 = vmatpush1.msra.mxu0 0.0
    %10009 = vmatprep.subr.mxu0 0.0
    %10010 = vmatpush1.msra.mxu0 0.0
    %10011 = vmatprep.subr.mxu0 0.0
    %10012 = vmatpush1.msra.mxu0 0.0
    %10013 = vmatprep.subr.mxu0 0.0
    %10014 = vmatpush1.msra.mxu0 0.0
    %10015 = vmatprep.subr.mxu0 0.0
    %10016 = vmatpush1.msra.mxu0 0.0
    %10017 = vmatprep.subr.mxu0 0.0
    %10018 = vmatpush1.msra.mxu0 0.0
    %10019 = vmatprep.subr.mxu0 0.0
    %10020 = vmatpush1.msra.mxu0 0.0
    %10021 = vmatprep.subr.mxu0 0.0
    %10022 = vmatpush1.msra.mxu0 0.0
    %10023 = vmatprep.subr.mxu0 0.0
    %10024 = vmatpush1.msra.mxu0 0.0
    %10025 = vmatprep.subr.mxu0 0.0
    %10026 = vmatpush1.msra.mxu0 0.0
    %10027 = vmatprep.mubr.f32.mxu0 0.0
    %10028 = vmatmul.mubr.f32.gmra.mrb[0].mxu0 %v9940
    %v10029 = vpop.f32.mrb[0].mxu0
    %v10030 = vadd.f32 0.0, %v10029
    %v10031 = vpop.f32.mrb[0].mxu0
    %10032 = vmatprep.mubr.f32.mxu0 0.0
    %10033 = vmatmul.mubr.f32.gmra.mrb[0].mxu0 %v9943
    %v10034 = vpop.f32.mrb[0].mxu0
    %v10035 = vadd.f32 0.0, %v10034
    %v10036 = vpop.f32.mrb[0].mxu0
    %10037 = vmatprep.mubr.f32.mxu0 0.0
    %10038 = vmatmul.mubr.f32.gmra.mrb[0].mxu0 %v9946
    %v10039 = vpop.f32.mrb[0].mxu0
    %v10040 = vadd.f32 0.0, %v10039
    %v10041 = vpop.f32.mrb[0].mxu0
    %10042 = vmatprep.mubr.f32.mxu0 0.0
    %10043 = vmatmul.mubr.f32.gmra.mrb[0].mxu0 %v9949
    %v10044 = vpop.f32.mrb[0].mxu0
    %v10045 = vadd.f32 0.0, %v10044
    %v10046 = vpop.f32.mrb[0].mxu0
    %10047 = vmatprep.mubr.f32.mxu0 0.0
    %10048 = vmatmul.mubr.f32.gmra.mrb[0].mxu0 %v9952
    %v10049 = vpop.f32.mrb[0].mxu0
    %v10050 = vadd.f32 0.0, %v10049
    %v10051 = vpop.f32.mrb[0].mxu0
    %10052 = vmatprep.mubr.f32.mxu0 0.0
    %10053 = vmatmul.mubr.f32.gmra.mrb[0].mxu0 %v9955
    %v10054 = vpop.f32.mrb[0].mxu0
    %v10055 = vadd.f32 0.0, %v10054
    %v10056 = vpop.f32.mrb[0].mxu0
    %10057 = vmatprep.mubr.f32.mxu0 0.0
    %10058 = vmatmul.mubr.f32.gmra.mrb[0].mxu0 %v9958
    %v10059 = vpop.f32.mrb[0].mxu0
    %v10060 = vadd.f32 0.0, %v10059
    %v10061 = vpop.f32.mrb[0].mxu0
    %10062 = vmatprep.mubr.f32.mxu0 0.0
    %10063 = vmatmul.mubr.f32.gmra.mrb[0].mxu0 %v9961
    %v10064 = vpop.f32.mrb[0].mxu0
    %v10065 = vadd.f32 0.0, %v10064
    %v10066 = vpop.f32.mrb[0].mxu0
    %10067 = vdwg.mxu0
    %v10069 = vsel %vm201, %v9923, 0
    %v10072 = vsel %vm201, %v9924, 0
    %v10075 = vsel %vm201, %v9925, 0
    %v10078 = vsel %vm201, %v9926, 0
    %v10081 = vsel %vm201, %v9927, 0
    %v10084 = vsel %vm201, %v9928, 0
    %v10087 = vsel %vm201, %v9929, 0
    %v10090 = vsel %vm201, %v9930, 0
    %10092 = vmatprep.subr.mxu0 0.0
    %10093 = vmatpush1.msra.mxu0 %v5961
    %10094 = vmatprep.subr.mxu0 0.0
    %10095 = vmatpush1.msra.mxu0 0.0
    %10096 = vmatprep.subr.mxu0 0.0
    %10097 = vmatpush1.msra.mxu0 0.0
    %10098 = vmatprep.subr.mxu0 0.0
    %10099 = vmatpush1.msra.mxu0 0.0
    %10100 = vmatprep.subr.mxu0 0.0
    %10101 = vmatpush1.msra.mxu0 0.0
    %10102 = vmatprep.subr.mxu0 0.0
    %10103 = vmatpush1.msra.mxu0 0.0
    %10104 = vmatprep.subr.mxu0 0.0
    %10105 = vmatpush1.msra.mxu0 0.0
    %10106 = vmatprep.subr.mxu0 0.0
    %10107 = vmatpush1.msra.mxu0 0.0
    %10108 = vmatprep.subr.mxu0 0.0
    %10109 = vmatpush1.msra.mxu0 0.0
    %10110 = vmatprep.subr.mxu0 0.0
    %10111 = vmatpush1.msra.mxu0 0.0
    %10112 = vmatprep.subr.mxu0 0.0
    %10113 = vmatpush1.msra.mxu0 0.0
    %10114 = vmatprep.subr.mxu0 0.0
    %10115 = vmatpush1.msra.mxu0 0.0
    %10116 = vmatprep.subr.mxu0 0.0
    %10117 = vmatpush1.msra.mxu0 0.0
    %10118 = vmatprep.subr.mxu0 0.0
    %10119 = vmatpush1.msra.mxu0 0.0
    %10120 = vmatprep.subr.mxu0 0.0
    %10121 = vmatpush1.msra.mxu0 0.0
    %10122 = vmatprep.subr.mxu0 0.0
    %10123 = vmatpush1.msra.mxu0 0.0
    %10124 = vmatprep.subr.mxu0 0.0
    %10125 = vmatpush1.msra.mxu0 0.0
    %10126 = vmatprep.subr.mxu0 0.0
    %10127 = vmatpush1.msra.mxu0 0.0
    %10128 = vmatprep.subr.mxu0 0.0
    %10129 = vmatpush1.msra.mxu0 0.0
    %10130 = vmatprep.subr.mxu0 0.0
    %10131 = vmatpush1.msra.mxu0 0.0
    %10132 = vmatprep.subr.mxu0 0.0
    %10133 = vmatpush1.msra.mxu0 0.0
    %10134 = vmatprep.subr.mxu0 0.0
    %10135 = vmatpush1.msra.mxu0 0.0
    %10136 = vmatprep.subr.mxu0 0.0
    %10137 = vmatpush1.msra.mxu0 0.0
    %10138 = vmatprep.subr.mxu0 0.0
    %10139 = vmatpush1.msra.mxu0 0.0
    %10140 = vmatprep.subr.mxu0 0.0
    %10141 = vmatpush1.msra.mxu0 0.0
    %10142 = vmatprep.subr.mxu0 0.0
    %10143 = vmatpush1.msra.mxu0 0.0
    %10144 = vmatprep.subr.mxu0 0.0
    %10145 = vmatpush1.msra.mxu0 0.0
    %10146 = vmatprep.subr.mxu0 0.0
    %10147 = vmatpush1.msra.mxu0 0.0
    %10148 = vmatprep.subr.mxu0 0.0
    %10149 = vmatpush1.msra.mxu0 0.0
    %10150 = vmatprep.subr.mxu0 0.0
    %10151 = vmatpush1.msra.mxu0 0.0
    %10152 = vmatprep.subr.mxu0 0.0
    %10153 = vmatpush1.msra.mxu0 0.0
    %10154 = vmatprep.subr.mxu0 0.0
    %10155 = vmatpush1.msra.mxu0 0.0
    %10156 = vmatprep.mubr.f32.mxu0 0.0
    %10157 = vmatmul.mubr.f32.gmra.mrb[0].mxu0 %v10069
    %v10158 = vpop.f32.mrb[0].mxu0
    %v10159 = vadd.f32 %v10030, %v10158
    %v10160 = vpop.f32.mrb[0].mxu0
    %10161 = vmatprep.mubr.f32.mxu0 0.0
    %10162 = vmatmul.mubr.f32.gmra.mrb[0].mxu0 %v10072
    %v10163 = vpop.f32.mrb[0].mxu0
    %v10164 = vadd.f32 %v10035, %v10163
    %v10165 = vpop.f32.mrb[0].mxu0
    %10166 = vmatprep.mubr.f32.mxu0 0.0
    %10167 = vmatmul.mubr.f32.gmra.mrb[0].mxu0 %v10075
    %v10168 = vpop.f32.mrb[0].mxu0
    %v10169 = vadd.f32 %v10040, %v10168
    %v10170 = vpop.f32.mrb[0].mxu0
    %10171 = vmatprep.mubr.f32.mxu0 0.0
    %10172 = vmatmul.mubr.f32.gmra.mrb[0].mxu0 %v10078
    %v10173 = vpop.f32.mrb[0].mxu0
    %v10174 = vadd.f32 %v10045, %v10173
    %v10175 = vpop.f32.mrb[0].mxu0
    %10176 = vmatprep.mubr.f32.mxu0 0.0
    %10177 = vmatmul.mubr.f32.gmra.mrb[0].mxu0 %v10081
    %v10178 = vpop.f32.mrb[0].mxu0
    %v10179 = vadd.f32 %v10050, %v10178
    %v10180 = vpop.f32.mrb[0].mxu0
    %10181 = vmatprep.mubr.f32.mxu0 0.0
    %10182 = vmatmul.mubr.f32.gmra.mrb[0].mxu0 %v10084
    %v10183 = vpop.f32.mrb[0].mxu0
    %v10184 = vadd.f32 %v10055, %v10183
    %v10185 = vpop.f32.mrb[0].mxu0
    %10186 = vmatprep.mubr.f32.mxu0 0.0
    %10187 = vmatmul.mubr.f32.gmra.mrb[0].mxu0 %v10087
    %v10188 = vpop.f32.mrb[0].mxu0
    %v10189 = vadd.f32 %v10060, %v10188
    %v10190 = vpop.f32.mrb[0].mxu0
    %10191 = vmatprep.mubr.f32.mxu0 0.0
    %10192 = vmatmul.mubr.f32.gmra.mrb[0].mxu0 %v10090
    %v10193 = vpop.f32.mrb[0].mxu0
    %v10194 = vadd.f32 %v10065, %v10193
    %v10195 = vpop.f32.mrb[0].mxu0
    %10196 = vdwg.mxu0
    %v10197 = vld [vmem:[%s5777 + $0xc2] sm:$0xff]
    %v10198 = vld [vmem:[%s5777 + $0xca] sm:$0xff]
    %v10199 = vld [vmem:[%s5777 + $0xd2] sm:$0xff]
    %v10200 = vld [vmem:[%s5777 + $0xda] sm:$0xff]
    %v10201 = vld [vmem:[%s5777 + $0xe2] sm:$0xff]
    %v10202 = vld [vmem:[%s5777 + $0xea] sm:$0xff]
    %v10203 = vld [vmem:[%s5777 + $0xf2] sm:$0xff]
    %v10204 = vld [vmem:[%s5777 + $0xfa] sm:$0xff]
    %v10205 = vmul.f32 %v10197, %v166
    %v10206 = vmul.f32 %v10198, %v167
    %v10207 = vmul.f32 %v10199, %v168
    %v10208 = vmul.f32 %v10200, %v169
    %v10209 = vmul.f32 %v10201, %v170
    %v10210 = vmul.f32 %v10202, %v171
    %v10211 = vmul.f32 %v10203, %v172
    %v10212 = vmul.f32 %v10204, %v173
    %v10214 = vsel %vm201, %v10205, 0
    %v10217 = vsel %vm201, %v10206, 0
    %v10220 = vsel %vm201, %v10207, 0
    %v10223 = vsel %vm201, %v10208, 0
    %v10226 = vsel %vm201, %v10209, 0
    %v10229 = vsel %vm201, %v10210, 0
    %v10232 = vsel %vm201, %v10211, 0
    %v10235 = vsel %vm201, %v10212, 0
    %10237 = vmatprep.subr.mxu0 0.0
    %10238 = vmatpush1.msra.mxu0 %v6110
    %10239 = vmatprep.subr.mxu0 0.0
    %10240 = vmatpush1.msra.mxu0 0.0
    %10241 = vmatprep.subr.mxu0 0.0
    %10242 = vmatpush1.msra.mxu0 0.0
    %10243 = vmatprep.subr.mxu0 0.0
    %10244 = vmatpush1.msra.mxu0 0.0
    %10245 = vmatprep.subr.mxu0 0.0
    %10246 = vmatpush1.msra.mxu0 0.0
    %10247 = vmatprep.subr.mxu0 0.0
    %10248 = vmatpush1.msra.mxu0 0.0
    %10249 = vmatprep.subr.mxu0 0.0
    %10250 = vmatpush1.msra.mxu0 0.0
    %10251 = vmatprep.subr.mxu0 0.0
    %10252 = vmatpush1.msra.mxu0 0.0
    %10253 = vmatprep.subr.mxu0 0.0
    %10254 = vmatpush1.msra.mxu0 0.0
    %10255 = vmatprep.subr.mxu0 0.0
    %10256 = vmatpush1.msra.mxu0 0.0
    %10257 = vmatprep.subr.mxu0 0.0
    %10258 = vmatpush1.msra.mxu0 0.0
    %10259 = vmatprep.subr.mxu0 0.0
    %10260 = vmatpush1.msra.mxu0 0.0
    %10261 = vmatprep.subr.mxu0 0.0
    %10262 = vmatpush1.msra.mxu0 0.0
    %10263 = vmatprep.subr.mxu0 0.0
    %10264 = vmatpush1.msra.mxu0 0.0
    %10265 = vmatprep.subr.mxu0 0.0
    %10266 = vmatpush1.msra.mxu0 0.0
    %10267 = vmatprep.subr.mxu0 0.0
    %10268 = vmatpush1.msra.mxu0 0.0
    %10269 = vmatprep.subr.mxu0 0.0
    %10270 = vmatpush1.msra.mxu0 0.0
    %10271 = vmatprep.subr.mxu0 0.0
    %10272 = vmatpush1.msra.mxu0 0.0
    %10273 = vmatprep.subr.mxu0 0.0
    %10274 = vmatpush1.msra.mxu0 0.0
    %10275 = vmatprep.subr.mxu0 0.0
    %10276 = vmatpush1.msra.mxu0 0.0
    %10277 = vmatprep.subr.mxu0 0.0
    %10278 = vmatpush1.msra.mxu0 0.0
    %10279 = vmatprep.subr.mxu0 0.0
    %10280 = vmatpush1.msra.mxu0 0.0
    %10281 = vmatprep.subr.mxu0 0.0
    %10282 = vmatpush1.msra.mxu0 0.0
    %10283 = vmatprep.subr.mxu0 0.0
    %10284 = vmatpush1.msra.mxu0 0.0
    %10285 = vmatprep.subr.mxu0 0.0
    %10286 = vmatpush1.msra.mxu0 0.0
    %10287 = vmatprep.subr.mxu0 0.0
    %10288 = vmatpush1.msra.mxu0 0.0
    %10289 = vmatprep.subr.mxu0 0.0
    %10290 = vmatpush1.msra.mxu0 0.0
    %10291 = vmatprep.subr.mxu0 0.0
    %10292 = vmatpush1.msra.mxu0 0.0
    %10293 = vmatprep.subr.mxu0 0.0
    %10294 = vmatpush1.msra.mxu0 0.0
    %10295 = vmatprep.subr.mxu0 0.0
    %10296 = vmatpush1.msra.mxu0 0.0
    %10297 = vmatprep.subr.mxu0 0.0
    %10298 = vmatpush1.msra.mxu0 0.0
    %10299 = vmatprep.subr.mxu0 0.0
    %10300 = vmatpush1.msra.mxu0 0.0
    %10301 = vmatprep.mubr.f32.mxu0 0.0
    %10302 = vmatmul.mubr.f32.gmra.mrb[0].mxu0 %v10214
    %v10303 = vpop.f32.mrb[0].mxu0
    %v10304 = vadd.f32 0.0, %v10303
    %v10305 = vpop.f32.mrb[0].mxu0
    %10306 = vmatprep.mubr.f32.mxu0 0.0
    %10307 = vmatmul.mubr.f32.gmra.mrb[0].mxu0 %v10217
    %v10308 = vpop.f32.mrb[0].mxu0
    %v10309 = vadd.f32 0.0, %v10308
    %v10310 = vpop.f32.mrb[0].mxu0
    %10311 = vmatprep.mubr.f32.mxu0 0.0
    %10312 = vmatmul.mubr.f32.gmra.mrb[0].mxu0 %v10220
    %v10313 = vpop.f32.mrb[0].mxu0
    %v10314 = vadd.f32 0.0, %v10313
    %v10315 = vpop.f32.mrb[0].mxu0
    %10316 = vmatprep.mubr.f32.mxu0 0.0
    %10317 = vmatmul.mubr.f32.gmra.mrb[0].mxu0 %v10223
    %v10318 = vpop.f32.mrb[0].mxu0
    %v10319 = vadd.f32 0.0, %v10318
    %v10320 = vpop.f32.mrb[0].mxu0
    %10321 = vmatprep.mubr.f32.mxu0 0.0
    %10322 = vmatmul.mubr.f32.gmra.mrb[0].mxu0 %v10226
    %v10323 = vpop.f32.mrb[0].mxu0
    %v10324 = vadd.f32 0.0, %v10323
    %v10325 = vpop.f32.mrb[0].mxu0
    %10326 = vmatprep.mubr.f32.mxu0 0.0
    %10327 = vmatmul.mubr.f32.gmra.mrb[0].mxu0 %v10229
    %v10328 = vpop.f32.mrb[0].mxu0
    %v10329 = vadd.f32 0.0, %v10328
    %v10330 = vpop.f32.mrb[0].mxu0
    %10331 = vmatprep.mubr.f32.mxu0 0.0
    %10332 = vmatmul.mubr.f32.gmra.mrb[0].mxu0 %v10232
    %v10333 = vpop.f32.mrb[0].mxu0
    %v10334 = vadd.f32 0.0, %v10333
    %v10335 = vpop.f32.mrb[0].mxu0
    %10336 = vmatprep.mubr.f32.mxu0 0.0
    %10337 = vmatmul.mubr.f32.gmra.mrb[0].mxu0 %v10235
    %v10338 = vpop.f32.mrb[0].mxu0
    %v10339 = vadd.f32 0.0, %v10338
    %v10340 = vpop.f32.mrb[0].mxu0
    %10341 = vdwg.mxu0
    %v10342 = vadd.f32 %v10159, %v10304
    %v10343 = vadd.f32 %v10164, %v10309
    %v10344 = vadd.f32 %v10169, %v10314
    %v10345 = vadd.f32 %v10174, %v10319
    %v10346 = vadd.f32 %v10179, %v10324
    %v10347 = vadd.f32 %v10184, %v10329
    %v10348 = vadd.f32 %v10189, %v10334
    %v10349 = vadd.f32 %v10194, %v10339
    %v10350 = vld [vmem:[%s5777 + $0xd0] sm:$0xff]
    %v10351 = vld [vmem:[%s5777 + $0xd8] sm:$0xff]
    %v10352 = vld [vmem:[%s5777 + $0xe0] sm:$0xff]
    %v10353 = vld [vmem:[%s5777 + $0xe8] sm:$0xff]
    %v10354 = vld [vmem:[%s5777 + $0xf0] sm:$0xff]
    %v10355 = vld [vmem:[%s5777 + $0xf8] sm:$0xff]
    %v10356 = vld [vmem:[%s5777 + $0x100] sm:$0xff]
    %v10357 = vld [vmem:[%s5777 + $0x108] sm:$0xff]
    %v10358 = vmul.f32 %v10350, %v142
    %v10359 = vmul.f32 %v10351, %v143
    %v10360 = vmul.f32 %v10352, %v144
    %v10361 = vmul.f32 %v10353, %v145
    %v10362 = vmul.f32 %v10354, %v146
    %v10363 = vmul.f32 %v10355, %v147
    %v10364 = vmul.f32 %v10356, %v148
    %v10365 = vmul.f32 %v10357, %v149
    %v10367 = vsel %vm201, %v10358, 0
    %v10370 = vsel %vm201, %v10359, 0
    %v10373 = vsel %vm201, %v10360, 0
    %v10376 = vsel %vm201, %v10361, 0
    %v10379 = vsel %vm201, %v10362, 0
    %v10382 = vsel %vm201, %v10363, 0
    %v10385 = vsel %vm201, %v10364, 0
    %v10388 = vsel %vm201, %v10365, 0
    %10390 = vmatprep.subr.mxu0 0.0
    %10391 = vmatpush1.msra.mxu0 %v6267
    %10392 = vmatprep.subr.mxu0 0.0
    %10393 = vmatpush1.msra.mxu0 0.0
    %10394 = vmatprep.subr.mxu0 0.0
    %10395 = vmatpush1.msra.mxu0 0.0
    %10396 = vmatprep.subr.mxu0 0.0
    %10397 = vmatpush1.msra.mxu0 0.0
    %10398 = vmatprep.subr.mxu0 0.0
    %10399 = vmatpush1.msra.mxu0 0.0
    %10400 = vmatprep.subr.mxu0 0.0
    %10401 = vmatpush1.msra.mxu0 0.0
    %10402 = vmatprep.subr.mxu0 0.0
    %10403 = vmatpush1.msra.mxu0 0.0
    %10404 = vmatprep.subr.mxu0 0.0
    %10405 = vmatpush1.msra.mxu0 0.0
    %10406 = vmatprep.subr.mxu0 0.0
    %10407 = vmatpush1.msra.mxu0 0.0
    %10408 = vmatprep.subr.mxu0 0.0
    %10409 = vmatpush1.msra.mxu0 0.0
    %10410 = vmatprep.subr.mxu0 0.0
    %10411 = vmatpush1.msra.mxu0 0.0
    %10412 = vmatprep.subr.mxu0 0.0
    %10413 = vmatpush1.msra.mxu0 0.0
    %10414 = vmatprep.subr.mxu0 0.0
    %10415 = vmatpush1.msra.mxu0 0.0
    %10416 = vmatprep.subr.mxu0 0.0
    %10417 = vmatpush1.msra.mxu0 0.0
    %10418 = vmatprep.subr.mxu0 0.0
    %10419 = vmatpush1.msra.mxu0 0.0
    %10420 = vmatprep.subr.mxu0 0.0
    %10421 = vmatpush1.msra.mxu0 0.0
    %10422 = vmatprep.subr.mxu0 0.0
    %10423 = vmatpush1.msra.mxu0 0.0
    %10424 = vmatprep.subr.mxu0 0.0
    %10425 = vmatpush1.msra.mxu0 0.0
    %10426 = vmatprep.subr.mxu0 0.0
    %10427 = vmatpush1.msra.mxu0 0.0
    %10428 = vmatprep.subr.mxu0 0.0
    %10429 = vmatpush1.msra.mxu0 0.0
    %10430 = vmatprep.subr.mxu0 0.0
    %10431 = vmatpush1.msra.mxu0 0.0
    %10432 = vmatprep.subr.mxu0 0.0
    %10433 = vmatpush1.msra.mxu0 0.0
    %10434 = vmatprep.subr.mxu0 0.0
    %10435 = vmatpush1.msra.mxu0 0.0
    %10436 = vmatprep.subr.mxu0 0.0
    %10437 = vmatpush1.msra.mxu0 0.0
    %10438 = vmatprep.subr.mxu0 0.0
    %10439 = vmatpush1.msra.mxu0 0.0
    %10440 = vmatprep.subr.mxu0 0.0
    %10441 = vmatpush1.msra.mxu0 0.0
    %10442 = vmatprep.subr.mxu0 0.0
    %10443 = vmatpush1.msra.mxu0 0.0
    %10444 = vmatprep.subr.mxu0 0.0
    %10445 = vmatpush1.msra.mxu0 0.0
    %10446 = vmatprep.subr.mxu0 0.0
    %10447 = vmatpush1.msra.mxu0 0.0
    %10448 = vmatprep.subr.mxu0 0.0
    %10449 = vmatpush1.msra.mxu0 0.0
    %10450 = vmatprep.subr.mxu0 0.0
    %10451 = vmatpush1.msra.mxu0 0.0
    %10452 = vmatprep.subr.mxu0 0.0
    %10453 = vmatpush1.msra.mxu0 0.0
    %10454 = vmatprep.mubr.f32.mxu0 0.0
    %10455 = vmatmul.mubr.f32.gmra.mrb[0].mxu0 %v10367
    %v10456 = vpop.f32.mrb[0].mxu0
    %v10457 = vadd.f32 0.0, %v10456
    %v10458 = vpop.f32.mrb[0].mxu0
    %10459 = vmatprep.mubr.f32.mxu0 0.0
    %10460 = vmatmul.mubr.f32.gmra.mrb[0].mxu0 %v10370
    %v10461 = vpop.f32.mrb[0].mxu0
    %v10462 = vadd.f32 0.0, %v10461
    %v10463 = vpop.f32.mrb[0].mxu0
    %10464 = vmatprep.mubr.f32.mxu0 0.0
    %10465 = vmatmul.mubr.f32.gmra.mrb[0].mxu0 %v10373
    %v10466 = vpop.f32.mrb[0].mxu0
    %v10467 = vadd.f32 0.0, %v10466
    %v10468 = vpop.f32.mrb[0].mxu0
    %10469 = vmatprep.mubr.f32.mxu0 0.0
    %10470 = vmatmul.mubr.f32.gmra.mrb[0].mxu0 %v10376
    %v10471 = vpop.f32.mrb[0].mxu0
    %v10472 = vadd.f32 0.0, %v10471
    %v10473 = vpop.f32.mrb[0].mxu0
    %10474 = vmatprep.mubr.f32.mxu0 0.0
    %10475 = vmatmul.mubr.f32.gmra.mrb[0].mxu0 %v10379
    %v10476 = vpop.f32.mrb[0].mxu0
    %v10477 = vadd.f32 0.0, %v10476
    %v10478 = vpop.f32.mrb[0].mxu0
    %10479 = vmatprep.mubr.f32.mxu0 0.0
    %10480 = vmatmul.mubr.f32.gmra.mrb[0].mxu0 %v10382
    %v10481 = vpop.f32.mrb[0].mxu0
    %v10482 = vadd.f32 0.0, %v10481
    %v10483 = vpop.f32.mrb[0].mxu0
    %10484 = vmatprep.mubr.f32.mxu0 0.0
    %10485 = vmatmul.mubr.f32.gmra.mrb[0].mxu0 %v10385
    %v10486 = vpop.f32.mrb[0].mxu0
    %v10487 = vadd.f32 0.0, %v10486
    %v10488 = vpop.f32.mrb[0].mxu0
    %10489 = vmatprep.mubr.f32.mxu0 0.0
    %10490 = vmatmul.mubr.f32.gmra.mrb[0].mxu0 %v10388
    %v10491 = vpop.f32.mrb[0].mxu0
    %v10492 = vadd.f32 0.0, %v10491
    %v10493 = vpop.f32.mrb[0].mxu0
    %10494 = vdwg.mxu0
    %v10495 = vadd.f32 %v10342, %v10457
    %v10496 = vadd.f32 %v10343, %v10462
    %v10497 = vadd.f32 %v10344, %v10467
    %v10498 = vadd.f32 %v10345, %v10472
    %v10499 = vadd.f32 %v10346, %v10477
    %v10500 = vadd.f32 %v10347, %v10482
    %v10501 = vadd.f32 %v10348, %v10487
    %v10502 = vadd.f32 %v10349, %v10492
    %v10503 = vld [vmem:[%s5777 + $0xd1] sm:$0xff]
    %v10504 = vld [vmem:[%s5777 + $0xd9] sm:$0xff]
    %v10505 = vld [vmem:[%s5777 + $0xe1] sm:$0xff]
    %v10506 = vld [vmem:[%s5777 + $0xe9] sm:$0xff]
    %v10507 = vld [vmem:[%s5777 + $0xf1] sm:$0xff]
    %v10508 = vld [vmem:[%s5777 + $0xf9] sm:$0xff]
    %v10509 = vld [vmem:[%s5777 + $0x101] sm:$0xff]
    %v10510 = vld [vmem:[%s5777 + $0x109] sm:$0xff]
    %v10512 = vsel %vm201, %v10503, 0
    %v10515 = vsel %vm201, %v10504, 0
    %v10518 = vsel %vm201, %v10505, 0
    %v10521 = vsel %vm201, %v10506, 0
    %v10524 = vsel %vm201, %v10507, 0
    %v10527 = vsel %vm201, %v10508, 0
    %v10530 = vsel %vm201, %v10509, 0
    %v10533 = vsel %vm201, %v10510, 0
    %10535 = vmatprep.subr.mxu0 0.0
    %10536 = vmatpush1.msra.mxu0 %v6416
    %10537 = vmatprep.subr.mxu0 0.0
    %10538 = vmatpush1.msra.mxu0 0.0
    %10539 = vmatprep.subr.mxu0 0.0
    %10540 = vmatpush1.msra.mxu0 0.0
    %10541 = vmatprep.subr.mxu0 0.0
    %10542 = vmatpush1.msra.mxu0 0.0
    %10543 = vmatprep.subr.mxu0 0.0
    %10544 = vmatpush1.msra.mxu0 0.0
    %10545 = vmatprep.subr.mxu0 0.0
    %10546 = vmatpush1.msra.mxu0 0.0
    %10547 = vmatprep.subr.mxu0 0.0
    %10548 = vmatpush1.msra.mxu0 0.0
    %10549 = vmatprep.subr.mxu0 0.0
    %10550 = vmatpush1.msra.mxu0 0.0
    %10551 = vmatprep.subr.mxu0 0.0
    %10552 = vmatpush1.msra.mxu0 0.0
    %10553 = vmatprep.subr.mxu0 0.0
    %10554 = vmatpush1.msra.mxu0 0.0
    %10555 = vmatprep.subr.mxu0 0.0
    %10556 = vmatpush1.msra.mxu0 0.0
    %10557 = vmatprep.subr.mxu0 0.0
    %10558 = vmatpush1.msra.mxu0 0.0
    %10559 = vmatprep.subr.mxu0 0.0
    %10560 = vmatpush1.msra.mxu0 0.0
    %10561 = vmatprep.subr.mxu0 0.0
    %10562 = vmatpush1.msra.mxu0 0.0
    %10563 = vmatprep.subr.mxu0 0.0
    %10564 = vmatpush1.msra.mxu0 0.0
    %10565 = vmatprep.subr.mxu0 0.0
    %10566 = vmatpush1.msra.mxu0 0.0
    %10567 = vmatprep.subr.mxu0 0.0
    %10568 = vmatpush1.msra.mxu0 0.0
    %10569 = vmatprep.subr.mxu0 0.0
    %10570 = vmatpush1.msra.mxu0 0.0
    %10571 = vmatprep.subr.mxu0 0.0
    %10572 = vmatpush1.msra.mxu0 0.0
    %10573 = vmatprep.subr.mxu0 0.0
    %10574 = vmatpush1.msra.mxu0 0.0
    %10575 = vmatprep.subr.mxu0 0.0
    %10576 = vmatpush1.msra.mxu0 0.0
    %10577 = vmatprep.subr.mxu0 0.0
    %10578 = vmatpush1.msra.mxu0 0.0
    %10579 = vmatprep.subr.mxu0 0.0
    %10580 = vmatpush1.msra.mxu0 0.0
    %10581 = vmatprep.subr.mxu0 0.0
    %10582 = vmatpush1.msra.mxu0 0.0
    %10583 = vmatprep.subr.mxu0 0.0
    %10584 = vmatpush1.msra.mxu0 0.0
    %10585 = vmatprep.subr.mxu0 0.0
    %10586 = vmatpush1.msra.mxu0 0.0
    %10587 = vmatprep.subr.mxu0 0.0
    %10588 = vmatpush1.msra.mxu0 0.0
    %10589 = vmatprep.subr.mxu0 0.0
    %10590 = vmatpush1.msra.mxu0 0.0
    %10591 = vmatprep.subr.mxu0 0.0
    %10592 = vmatpush1.msra.mxu0 0.0
    %10593 = vmatprep.subr.mxu0 0.0
    %10594 = vmatpush1.msra.mxu0 0.0
    %10595 = vmatprep.subr.mxu0 0.0
    %10596 = vmatpush1.msra.mxu0 0.0
    %10597 = vmatprep.subr.mxu0 0.0
    %10598 = vmatpush1.msra.mxu0 0.0
    %10599 = vmatprep.mubr.f32.mxu0 0.0
    %10600 = vmatmul.mubr.f32.gmra.mrb[0].mxu0 %v10512
    %v10601 = vpop.f32.mrb[0].mxu0
    %v10602 = vadd.f32 0.0, %v10601
    %v10603 = vpop.f32.mrb[0].mxu0
    %10604 = vmatprep.mubr.f32.mxu0 0.0
    %10605 = vmatmul.mubr.f32.gmra.mrb[0].mxu0 %v10515
    %v10606 = vpop.f32.mrb[0].mxu0
    %v10607 = vadd.f32 0.0, %v10606
    %v10608 = vpop.f32.mrb[0].mxu0
    %10609 = vmatprep.mubr.f32.mxu0 0.0
    %10610 = vmatmul.mubr.f32.gmra.mrb[0].mxu0 %v10518
    %v10611 = vpop.f32.mrb[0].mxu0
    %v10612 = vadd.f32 0.0, %v10611
    %v10613 = vpop.f32.mrb[0].mxu0
    %10614 = vmatprep.mubr.f32.mxu0 0.0
    %10615 = vmatmul.mubr.f32.gmra.mrb[0].mxu0 %v10521
    %v10616 = vpop.f32.mrb[0].mxu0
    %v10617 = vadd.f32 0.0, %v10616
    %v10618 = vpop.f32.mrb[0].mxu0
    %10619 = vmatprep.mubr.f32.mxu0 0.0
    %10620 = vmatmul.mubr.f32.gmra.mrb[0].mxu0 %v10524
    %v10621 = vpop.f32.mrb[0].mxu0
    %v10622 = vadd.f32 0.0, %v10621
    %v10623 = vpop.f32.mrb[0].mxu0
    %10624 = vmatprep.mubr.f32.mxu0 0.0
    %10625 = vmatmul.mubr.f32.gmra.mrb[0].mxu0 %v10527
    %v10626 = vpop.f32.mrb[0].mxu0
    %v10627 = vadd.f32 0.0, %v10626
    %v10628 = vpop.f32.mrb[0].mxu0
    %10629 = vmatprep.mubr.f32.mxu0 0.0
    %10630 = vmatmul.mubr.f32.gmra.mrb[0].mxu0 %v10530
    %v10631 = vpop.f32.mrb[0].mxu0
    %v10632 = vadd.f32 0.0, %v10631
    %v10633 = vpop.f32.mrb[0].mxu0
    %10634 = vmatprep.mubr.f32.mxu0 0.0
    %10635 = vmatmul.mubr.f32.gmra.mrb[0].mxu0 %v10533
    %v10636 = vpop.f32.mrb[0].mxu0
    %v10637 = vadd.f32 0.0, %v10636
    %v10638 = vpop.f32.mrb[0].mxu0
    %10639 = vdwg.mxu0
    %v10640 = vadd.f32 %v10495, %v10602
    %v10641 = vadd.f32 %v10496, %v10607
    %v10642 = vadd.f32 %v10497, %v10612
    %v10643 = vadd.f32 %v10498, %v10617
    %v10644 = vadd.f32 %v10499, %v10622
    %v10645 = vadd.f32 %v10500, %v10627
    %v10646 = vadd.f32 %v10501, %v10632
    %v10647 = vadd.f32 %v10502, %v10637
    %v10648 = vld [vmem:[%s5777 + $0xd2] sm:$0xff]
    %v10649 = vld [vmem:[%s5777 + $0xda] sm:$0xff]
    %v10650 = vld [vmem:[%s5777 + $0xe2] sm:$0xff]
    %v10651 = vld [vmem:[%s5777 + $0xea] sm:$0xff]
    %v10652 = vld [vmem:[%s5777 + $0xf2] sm:$0xff]
    %v10653 = vld [vmem:[%s5777 + $0xfa] sm:$0xff]
    %v10654 = vld [vmem:[%s5777 + $0x102] sm:$0xff]
    %v10655 = vld [vmem:[%s5777 + $0x10a] sm:$0xff]
    %v10656 = vmul.f32 %v10648, %v166
    %v10657 = vmul.f32 %v10649, %v167
    %v10658 = vmul.f32 %v10650, %v168
    %v10659 = vmul.f32 %v10651, %v169
    %v10660 = vmul.f32 %v10652, %v170
    %v10661 = vmul.f32 %v10653, %v171
    %v10662 = vmul.f32 %v10654, %v172
    %v10663 = vmul.f32 %v10655, %v173
    %v10665 = vsel %vm201, %v10656, 0
    %v10668 = vsel %vm201, %v10657, 0
    %v10671 = vsel %vm201, %v10658, 0
    %v10674 = vsel %vm201, %v10659, 0
    %v10677 = vsel %vm201, %v10660, 0
    %v10680 = vsel %vm201, %v10661, 0
    %v10683 = vsel %vm201, %v10662, 0
    %v10686 = vsel %vm201, %v10663, 0
    %10688 = vmatprep.subr.mxu0 0.0
    %10689 = vmatpush1.msra.mxu0 %v6573
    %10690 = vmatprep.subr.mxu0 0.0
    %10691 = vmatpush1.msra.mxu0 0.0
    %10692 = vmatprep.subr.mxu0 0.0
    %10693 = vmatpush1.msra.mxu0 0.0
    %10694 = vmatprep.subr.mxu0 0.0
    %10695 = vmatpush1.msra.mxu0 0.0
    %10696 = vmatprep.subr.mxu0 0.0
    %10697 = vmatpush1.msra.mxu0 0.0
    %10698 = vmatprep.subr.mxu0 0.0
    %10699 = vmatpush1.msra.mxu0 0.0
    %10700 = vmatprep.subr.mxu0 0.0
    %10701 = vmatpush1.msra.mxu0 0.0
    %10702 = vmatprep.subr.mxu0 0.0
    %10703 = vmatpush1.msra.mxu0 0.0
    %10704 = vmatprep.subr.mxu0 0.0
    %10705 = vmatpush1.msra.mxu0 0.0
    %10706 = vmatprep.subr.mxu0 0.0
    %10707 = vmatpush1.msra.mxu0 0.0
    %10708 = vmatprep.subr.mxu0 0.0
    %10709 = vmatpush1.msra.mxu0 0.0
    %10710 = vmatprep.subr.mxu0 0.0
    %10711 = vmatpush1.msra.mxu0 0.0
    %10712 = vmatprep.subr.mxu0 0.0
    %10713 = vmatpush1.msra.mxu0 0.0
    %10714 = vmatprep.subr.mxu0 0.0
    %10715 = vmatpush1.msra.mxu0 0.0
    %10716 = vmatprep.subr.mxu0 0.0
    %10717 = vmatpush1.msra.mxu0 0.0
    %10718 = vmatprep.subr.mxu0 0.0
    %10719 = vmatpush1.msra.mxu0 0.0
    %10720 = vmatprep.subr.mxu0 0.0
    %10721 = vmatpush1.msra.mxu0 0.0
    %10722 = vmatprep.subr.mxu0 0.0
    %10723 = vmatpush1.msra.mxu0 0.0
    %10724 = vmatprep.subr.mxu0 0.0
    %10725 = vmatpush1.msra.mxu0 0.0
    %10726 = vmatprep.subr.mxu0 0.0
    %10727 = vmatpush1.msra.mxu0 0.0
    %10728 = vmatprep.subr.mxu0 0.0
    %10729 = vmatpush1.msra.mxu0 0.0
    %10730 = vmatprep.subr.mxu0 0.0
    %10731 = vmatpush1.msra.mxu0 0.0
    %10732 = vmatprep.subr.mxu0 0.0
    %10733 = vmatpush1.msra.mxu0 0.0
    %10734 = vmatprep.subr.mxu0 0.0
    %10735 = vmatpush1.msra.mxu0 0.0
    %10736 = vmatprep.subr.mxu0 0.0
    %10737 = vmatpush1.msra.mxu0 0.0
    %10738 = vmatprep.subr.mxu0 0.0
    %10739 = vmatpush1.msra.mxu0 0.0
    %10740 = vmatprep.subr.mxu0 0.0
    %10741 = vmatpush1.msra.mxu0 0.0
    %10742 = vmatprep.subr.mxu0 0.0
    %10743 = vmatpush1.msra.mxu0 0.0
    %10744 = vmatprep.subr.mxu0 0.0
    %10745 = vmatpush1.msra.mxu0 0.0
    %10746 = vmatprep.subr.mxu0 0.0
    %10747 = vmatpush1.msra.mxu0 0.0
    %10748 = vmatprep.subr.mxu0 0.0
    %10749 = vmatpush1.msra.mxu0 0.0
    %10750 = vmatprep.subr.mxu0 0.0
    %10751 = vmatpush1.msra.mxu0 0.0
    %10752 = vmatprep.mubr.f32.mxu0 0.0
    %10753 = vmatmul.mubr.f32.gmra.mrb[0].mxu0 %v10665
    %v10754 = vpop.f32.mrb[0].mxu0
    %v10755 = vadd.f32 0.0, %v10754
    %v10756 = vpop.f32.mrb[0].mxu0
    %10757 = vmatprep.mubr.f32.mxu0 0.0
    %10758 = vmatmul.mubr.f32.gmra.mrb[0].mxu0 %v10668
    %v10759 = vpop.f32.mrb[0].mxu0
    %v10760 = vadd.f32 0.0, %v10759
    %v10761 = vpop.f32.mrb[0].mxu0
    %10762 = vmatprep.mubr.f32.mxu0 0.0
    %10763 = vmatmul.mubr.f32.gmra.mrb[0].mxu0 %v10671
    %v10764 = vpop.f32.mrb[0].mxu0
    %v10765 = vadd.f32 0.0, %v10764
    %v10766 = vpop.f32.mrb[0].mxu0
    %10767 = vmatprep.mubr.f32.mxu0 0.0
    %10768 = vmatmul.mubr.f32.gmra.mrb[0].mxu0 %v10674
    %v10769 = vpop.f32.mrb[0].mxu0
    %v10770 = vadd.f32 0.0, %v10769
    %v10771 = vpop.f32.mrb[0].mxu0
    %10772 = vmatprep.mubr.f32.mxu0 0.0
    %10773 = vmatmul.mubr.f32.gmra.mrb[0].mxu0 %v10677
    %v10774 = vpop.f32.mrb[0].mxu0
    %v10775 = vadd.f32 0.0, %v10774
    %v10776 = vpop.f32.mrb[0].mxu0
    %10777 = vmatprep.mubr.f32.mxu0 0.0
    %10778 = vmatmul.mubr.f32.gmra.mrb[0].mxu0 %v10680
    %v10779 = vpop.f32.mrb[0].mxu0
    %v10780 = vadd.f32 0.0, %v10779
    %v10781 = vpop.f32.mrb[0].mxu0
    %10782 = vmatprep.mubr.f32.mxu0 0.0
    %10783 = vmatmul.mubr.f32.gmra.mrb[0].mxu0 %v10683
    %v10784 = vpop.f32.mrb[0].mxu0
    %v10785 = vadd.f32 0.0, %v10784
    %v10786 = vpop.f32.mrb[0].mxu0
    %10787 = vmatprep.mubr.f32.mxu0 0.0
    %10788 = vmatmul.mubr.f32.gmra.mrb[0].mxu0 %v10686
    %v10789 = vpop.f32.mrb[0].mxu0
    %v10790 = vadd.f32 0.0, %v10789
    %v10791 = vpop.f32.mrb[0].mxu0
    %10792 = vdwg.mxu0
    %v10793 = vadd.f32 %v10640, %v10755
    %v10794 = vadd.f32 %v10641, %v10760
    %v10795 = vadd.f32 %v10642, %v10765
    %v10796 = vadd.f32 %v10643, %v10770
    %v10797 = vadd.f32 %v10644, %v10775
    %v10798 = vadd.f32 %v10645, %v10780
    %v10799 = vadd.f32 %v10646, %v10785
    %v10800 = vadd.f32 %v10647, %v10790
    %v10801 = vld [vmem:[%s5777 + $0xe0] sm:$0xff]
    %v10802 = vld [vmem:[%s5777 + $0xe8] sm:$0xff]
    %v10803 = vld [vmem:[%s5777 + $0xf0] sm:$0xff]
    %v10804 = vld [vmem:[%s5777 + $0xf8] sm:$0xff]
    %v10805 = vld [vmem:[%s5777 + $0x100] sm:$0xff]
    %v10806 = vld [vmem:[%s5777 + $0x108] sm:$0xff]
    %v10807 = vld [vmem:[%s5777 + $0x110] sm:$0xff]
    %v10808 = vld [vmem:[%s5777 + $0x118] sm:$0xff]
    %v10809 = vmul.f32 %v10801, %v142
    %v10810 = vmul.f32 %v10802, %v143
    %v10811 = vmul.f32 %v10803, %v144
    %v10812 = vmul.f32 %v10804, %v145
    %v10813 = vmul.f32 %v10805, %v146
    %v10814 = vmul.f32 %v10806, %v147
    %v10815 = vmul.f32 %v10807, %v148
    %v10816 = vmul.f32 %v10808, %v149
    %v10818 = vsel %vm201, %v10809, 0
    %v10821 = vsel %vm201, %v10810, 0
    %v10824 = vsel %vm201, %v10811, 0
    %v10827 = vsel %vm201, %v10812, 0
    %v10830 = vsel %vm201, %v10813, 0
    %v10833 = vsel %vm201, %v10814, 0
    %v10836 = vsel %vm201, %v10815, 0
    %v10839 = vsel %vm201, %v10816, 0
    %10841 = vmatprep.subr.mxu0 0.0
    %10842 = vmatpush1.msra.mxu0 %v6730
    %10843 = vmatprep.subr.mxu0 0.0
    %10844 = vmatpush1.msra.mxu0 0.0
    %10845 = vmatprep.subr.mxu0 0.0
    %10846 = vmatpush1.msra.mxu0 0.0
    %10847 = vmatprep.subr.mxu0 0.0
    %10848 = vmatpush1.msra.mxu0 0.0
    %10849 = vmatprep.subr.mxu0 0.0
    %10850 = vmatpush1.msra.mxu0 0.0
    %10851 = vmatprep.subr.mxu0 0.0
    %10852 = vmatpush1.msra.mxu0 0.0
    %10853 = vmatprep.subr.mxu0 0.0
    %10854 = vmatpush1.msra.mxu0 0.0
    %10855 = vmatprep.subr.mxu0 0.0
    %10856 = vmatpush1.msra.mxu0 0.0
    %10857 = vmatprep.subr.mxu0 0.0
    %10858 = vmatpush1.msra.mxu0 0.0
    %10859 = vmatprep.subr.mxu0 0.0
    %10860 = vmatpush1.msra.mxu0 0.0
    %10861 = vmatprep.subr.mxu0 0.0
    %10862 = vmatpush1.msra.mxu0 0.0
    %10863 = vmatprep.subr.mxu0 0.0
    %10864 = vmatpush1.msra.mxu0 0.0
    %10865 = vmatprep.subr.mxu0 0.0
    %10866 = vmatpush1.msra.mxu0 0.0
    %10867 = vmatprep.subr.mxu0 0.0
    %10868 = vmatpush1.msra.mxu0 0.0
    %10869 = vmatprep.subr.mxu0 0.0
    %10870 = vmatpush1.msra.mxu0 0.0
    %10871 = vmatprep.subr.mxu0 0.0
    %10872 = vmatpush1.msra.mxu0 0.0
    %10873 = vmatprep.subr.mxu0 0.0
    %10874 = vmatpush1.msra.mxu0 0.0
    %10875 = vmatprep.subr.mxu0 0.0
    %10876 = vmatpush1.msra.mxu0 0.0
    %10877 = vmatprep.subr.mxu0 0.0
    %10878 = vmatpush1.msra.mxu0 0.0
    %10879 = vmatprep.subr.mxu0 0.0
    %10880 = vmatpush1.msra.mxu0 0.0
    %10881 = vmatprep.subr.mxu0 0.0
    %10882 = vmatpush1.msra.mxu0 0.0
    %10883 = vmatprep.subr.mxu0 0.0
    %10884 = vmatpush1.msra.mxu0 0.0
    %10885 = vmatprep.subr.mxu0 0.0
    %10886 = vmatpush1.msra.mxu0 0.0
    %10887 = vmatprep.subr.mxu0 0.0
    %10888 = vmatpush1.msra.mxu0 0.0
    %10889 = vmatprep.subr.mxu0 0.0
    %10890 = vmatpush1.msra.mxu0 0.0
    %10891 = vmatprep.subr.mxu0 0.0
    %10892 = vmatpush1.msra.mxu0 0.0
    %10893 = vmatprep.subr.mxu0 0.0
    %10894 = vmatpush1.msra.mxu0 0.0
    %10895 = vmatprep.subr.mxu0 0.0
    %10896 = vmatpush1.msra.mxu0 0.0
    %10897 = vmatprep.subr.mxu0 0.0
    %10898 = vmatpush1.msra.mxu0 0.0
    %10899 = vmatprep.subr.mxu0 0.0
    %10900 = vmatpush1.msra.mxu0 0.0
    %10901 = vmatprep.subr.mxu0 0.0
    %10902 = vmatpush1.msra.mxu0 0.0
    %10903 = vmatprep.subr.mxu0 0.0
    %10904 = vmatpush1.msra.mxu0 0.0
    %10905 = vmatprep.mubr.f32.mxu0 0.0
    %10906 = vmatmul.mubr.f32.gmra.mrb[0].mxu0 %v10818
    %v10907 = vpop.f32.mrb[0].mxu0
    %v10908 = vadd.f32 0.0, %v10907
    %v10909 = vpop.f32.mrb[0].mxu0
    %10910 = vmatprep.mubr.f32.mxu0 0.0
    %10911 = vmatmul.mubr.f32.gmra.mrb[0].mxu0 %v10821
    %v10912 = vpop.f32.mrb[0].mxu0
    %v10913 = vadd.f32 0.0, %v10912
    %v10914 = vpop.f32.mrb[0].mxu0
    %10915 = vmatprep.mubr.f32.mxu0 0.0
    %10916 = vmatmul.mubr.f32.gmra.mrb[0].mxu0 %v10824
    %v10917 = vpop.f32.mrb[0].mxu0
    %v10918 = vadd.f32 0.0, %v10917
    %v10919 = vpop.f32.mrb[0].mxu0
    %10920 = vmatprep.mubr.f32.mxu0 0.0
    %10921 = vmatmul.mubr.f32.gmra.mrb[0].mxu0 %v10827
    %v10922 = vpop.f32.mrb[0].mxu0
    %v10923 = vadd.f32 0.0, %v10922
    %v10924 = vpop.f32.mrb[0].mxu0
    %10925 = vmatprep.mubr.f32.mxu0 0.0
    %10926 = vmatmul.mubr.f32.gmra.mrb[0].mxu0 %v10830
    %v10927 = vpop.f32.mrb[0].mxu0
    %v10928 = vadd.f32 0.0, %v10927
    %v10929 = vpop.f32.mrb[0].mxu0
    %10930 = vmatprep.mubr.f32.mxu0 0.0
    %10931 = vmatmul.mubr.f32.gmra.mrb[0].mxu0 %v10833
    %v10932 = vpop.f32.mrb[0].mxu0
    %v10933 = vadd.f32 0.0, %v10932
    %v10934 = vpop.f32.mrb[0].mxu0
    %10935 = vmatprep.mubr.f32.mxu0 0.0
    %10936 = vmatmul.mubr.f32.gmra.mrb[0].mxu0 %v10836
    %v10937 = vpop.f32.mrb[0].mxu0
    %v10938 = vadd.f32 0.0, %v10937
    %v10939 = vpop.f32.mrb[0].mxu0
    %10940 = vmatprep.mubr.f32.mxu0 0.0
    %10941 = vmatmul.mubr.f32.gmra.mrb[0].mxu0 %v10839
    %v10942 = vpop.f32.mrb[0].mxu0
    %v10943 = vadd.f32 0.0, %v10942
    %v10944 = vpop.f32.mrb[0].mxu0
    %10945 = vdwg.mxu0
    %v10946 = vadd.f32 %v10793, %v10908
    %v10947 = vadd.f32 %v10794, %v10913
    %v10948 = vadd.f32 %v10795, %v10918
    %v10949 = vadd.f32 %v10796, %v10923
    %v10950 = vadd.f32 %v10797, %v10928
    %v10951 = vadd.f32 %v10798, %v10933
    %v10952 = vadd.f32 %v10799, %v10938
    %v10953 = vadd.f32 %v10800, %v10943
    %v10954 = vld [vmem:[%s5777 + $0xe1] sm:$0xff]
    %v10955 = vld [vmem:[%s5777 + $0xe9] sm:$0xff]
    %v10956 = vld [vmem:[%s5777 + $0xf1] sm:$0xff]
    %v10957 = vld [vmem:[%s5777 + $0xf9] sm:$0xff]
    %v10958 = vld [vmem:[%s5777 + $0x101] sm:$0xff]
    %v10959 = vld [vmem:[%s5777 + $0x109] sm:$0xff]
    %v10960 = vld [vmem:[%s5777 + $0x111] sm:$0xff]
    %v10961 = vld [vmem:[%s5777 + $0x119] sm:$0xff]
    %v10963 = vsel %vm201, %v10954, 0
    %v10966 = vsel %vm201, %v10955, 0
    %v10969 = vsel %vm201, %v10956, 0
    %v10972 = vsel %vm201, %v10957, 0
    %v10975 = vsel %vm201, %v10958, 0
    %v10978 = vsel %vm201, %v10959, 0
    %v10981 = vsel %vm201, %v10960, 0
    %v10984 = vsel %vm201, %v10961, 0
    %10986 = vmatprep.subr.mxu0 0.0
    %10987 = vmatpush1.msra.mxu0 %v6879
    %10988 = vmatprep.subr.mxu0 0.0
    %10989 = vmatpush1.msra.mxu0 0.0
    %10990 = vmatprep.subr.mxu0 0.0
    %10991 = vmatpush1.msra.mxu0 0.0
    %10992 = vmatprep.subr.mxu0 0.0
    %10993 = vmatpush1.msra.mxu0 0.0
    %10994 = vmatprep.subr.mxu0 0.0
    %10995 = vmatpush1.msra.mxu0 0.0
    %10996 = vmatprep.subr.mxu0 0.0
    %10997 = vmatpush1.msra.mxu0 0.0
    %10998 = vmatprep.subr.mxu0 0.0
    %10999 = vmatpush1.msra.mxu0 0.0
    %11000 = vmatprep.subr.mxu0 0.0
    %11001 = vmatpush1.msra.mxu0 0.0
    %11002 = vmatprep.subr.mxu0 0.0
    %11003 = vmatpush1.msra.mxu0 0.0
    %11004 = vmatprep.subr.mxu0 0.0
    %11005 = vmatpush1.msra.mxu0 0.0
    %11006 = vmatprep.subr.mxu0 0.0
    %11007 = vmatpush1.msra.mxu0 0.0
    %11008 = vmatprep.subr.mxu0 0.0
    %11009 = vmatpush1.msra.mxu0 0.0
    %11010 = vmatprep.subr.mxu0 0.0
    %11011 = vmatpush1.msra.mxu0 0.0
    %11012 = vmatprep.subr.mxu0 0.0
    %11013 = vmatpush1.msra.mxu0 0.0
    %11014 = vmatprep.subr.mxu0 0.0
    %11015 = vmatpush1.msra.mxu0 0.0
    %11016 = vmatprep.subr.mxu0 0.0
    %11017 = vmatpush1.msra.mxu0 0.0
    %11018 = vmatprep.subr.mxu0 0.0
    %11019 = vmatpush1.msra.mxu0 0.0
    %11020 = vmatprep.subr.mxu0 0.0
    %11021 = vmatpush1.msra.mxu0 0.0
    %11022 = vmatprep.subr.mxu0 0.0
    %11023 = vmatpush1.msra.mxu0 0.0
    %11024 = vmatprep.subr.mxu0 0.0
    %11025 = vmatpush1.msra.mxu0 0.0
    %11026 = vmatprep.subr.mxu0 0.0
    %11027 = vmatpush1.msra.mxu0 0.0
    %11028 = vmatprep.subr.mxu0 0.0
    %11029 = vmatpush1.msra.mxu0 0.0
    %11030 = vmatprep.subr.mxu0 0.0
    %11031 = vmatpush1.msra.mxu0 0.0
    %11032 = vmatprep.subr.mxu0 0.0
    %11033 = vmatpush1.msra.mxu0 0.0
    %11034 = vmatprep.subr.mxu0 0.0
    %11035 = vmatpush1.msra.mxu0 0.0
    %11036 = vmatprep.subr.mxu0 0.0
    %11037 = vmatpush1.msra.mxu0 0.0
    %11038 = vmatprep.subr.mxu0 0.0
    %11039 = vmatpush1.msra.mxu0 0.0
    %11040 = vmatprep.subr.mxu0 0.0
    %11041 = vmatpush1.msra.mxu0 0.0
    %11042 = vmatprep.subr.mxu0 0.0
    %11043 = vmatpush1.msra.mxu0 0.0
    %11044 = vmatprep.subr.mxu0 0.0
    %11045 = vmatpush1.msra.mxu0 0.0
    %11046 = vmatprep.subr.mxu0 0.0
    %11047 = vmatpush1.msra.mxu0 0.0
    %11048 = vmatprep.subr.mxu0 0.0
    %11049 = vmatpush1.msra.mxu0 0.0
    %11050 = vmatprep.mubr.f32.mxu0 0.0
    %11051 = vmatmul.mubr.f32.gmra.mrb[0].mxu0 %v10963
    %v11052 = vpop.f32.mrb[0].mxu0
    %v11053 = vadd.f32 0.0, %v11052
    %v11054 = vpop.f32.mrb[0].mxu0
    %11055 = vmatprep.mubr.f32.mxu0 0.0
    %11056 = vmatmul.mubr.f32.gmra.mrb[0].mxu0 %v10966
    %v11057 = vpop.f32.mrb[0].mxu0
    %v11058 = vadd.f32 0.0, %v11057
    %v11059 = vpop.f32.mrb[0].mxu0
    %11060 = vmatprep.mubr.f32.mxu0 0.0
    %11061 = vmatmul.mubr.f32.gmra.mrb[0].mxu0 %v10969
    %v11062 = vpop.f32.mrb[0].mxu0
    %v11063 = vadd.f32 0.0, %v11062
    %v11064 = vpop.f32.mrb[0].mxu0
    %11065 = vmatprep.mubr.f32.mxu0 0.0
    %11066 = vmatmul.mubr.f32.gmra.mrb[0].mxu0 %v10972
    %v11067 = vpop.f32.mrb[0].mxu0
    %v11068 = vadd.f32 0.0, %v11067
    %v11069 = vpop.f32.mrb[0].mxu0
    %11070 = vmatprep.mubr.f32.mxu0 0.0
    %11071 = vmatmul.mubr.f32.gmra.mrb[0].mxu0 %v10975
    %v11072 = vpop.f32.mrb[0].mxu0
    %v11073 = vadd.f32 0.0, %v11072
    %v11074 = vpop.f32.mrb[0].mxu0
    %11075 = vmatprep.mubr.f32.mxu0 0.0
    %11076 = vmatmul.mubr.f32.gmra.mrb[0].mxu0 %v10978
    %v11077 = vpop.f32.mrb[0].mxu0
    %v11078 = vadd.f32 0.0, %v11077
    %v11079 = vpop.f32.mrb[0].mxu0
    %11080 = vmatprep.mubr.f32.mxu0 0.0
    %11081 = vmatmul.mubr.f32.gmra.mrb[0].mxu0 %v10981
    %v11082 = vpop.f32.mrb[0].mxu0
    %v11083 = vadd.f32 0.0, %v11082
    %v11084 = vpop.f32.mrb[0].mxu0
    %11085 = vmatprep.mubr.f32.mxu0 0.0
    %11086 = vmatmul.mubr.f32.gmra.mrb[0].mxu0 %v10984
    %v11087 = vpop.f32.mrb[0].mxu0
    %v11088 = vadd.f32 0.0, %v11087
    %v11089 = vpop.f32.mrb[0].mxu0
    %11090 = vdwg.mxu0
    %v11091 = vadd.f32 %v10946, %v11053
    %v11092 = vadd.f32 %v10947, %v11058
    %v11093 = vadd.f32 %v10948, %v11063
    %v11094 = vadd.f32 %v10949, %v11068
    %v11095 = vadd.f32 %v10950, %v11073
    %v11096 = vadd.f32 %v10951, %v11078
    %v11097 = vadd.f32 %v10952, %v11083
    %v11098 = vadd.f32 %v10953, %v11088
    %v11099 = vld [vmem:[%s5777 + $0xe2] sm:$0xff]
    %v11100 = vld [vmem:[%s5777 + $0xea] sm:$0xff]
    %v11101 = vld [vmem:[%s5777 + $0xf2] sm:$0xff]
    %v11102 = vld [vmem:[%s5777 + $0xfa] sm:$0xff]
    %v11103 = vld [vmem:[%s5777 + $0x102] sm:$0xff]
    %v11104 = vld [vmem:[%s5777 + $0x10a] sm:$0xff]
    %v11105 = vld [vmem:[%s5777 + $0x112] sm:$0xff]
    %v11106 = vld [vmem:[%s5777 + $0x11a] sm:$0xff]
    %v11107 = vmul.f32 %v11099, %v166
    %v11108 = vmul.f32 %v11100, %v167
    %v11109 = vmul.f32 %v11101, %v168
    %v11110 = vmul.f32 %v11102, %v169
    %v11111 = vmul.f32 %v11103, %v170
    %v11112 = vmul.f32 %v11104, %v171
    %v11113 = vmul.f32 %v11105, %v172
    %v11114 = vmul.f32 %v11106, %v173
    %v11116 = vsel %vm201, %v11107, 0
    %v11119 = vsel %vm201, %v11108, 0
    %v11122 = vsel %vm201, %v11109, 0
    %v11125 = vsel %vm201, %v11110, 0
    %v11128 = vsel %vm201, %v11111, 0
    %v11131 = vsel %vm201, %v11112, 0
    %v11134 = vsel %vm201, %v11113, 0
    %v11137 = vsel %vm201, %v11114, 0
    %11139 = vmatprep.subr.mxu0 0.0
    %11140 = vmatpush1.msra.mxu0 %v7036
    %11141 = vmatprep.subr.mxu0 0.0
    %11142 = vmatpush1.msra.mxu0 0.0
    %11143 = vmatprep.subr.mxu0 0.0
    %11144 = vmatpush1.msra.mxu0 0.0
    %11145 = vmatprep.subr.mxu0 0.0
    %11146 = vmatpush1.msra.mxu0 0.0
    %11147 = vmatprep.subr.mxu0 0.0
    %11148 = vmatpush1.msra.mxu0 0.0
    %11149 = vmatprep.subr.mxu0 0.0
    %11150 = vmatpush1.msra.mxu0 0.0
    %11151 = vmatprep.subr.mxu0 0.0
    %11152 = vmatpush1.msra.mxu0 0.0
    %11153 = vmatprep.subr.mxu0 0.0
    %11154 = vmatpush1.msra.mxu0 0.0
    %11155 = vmatprep.subr.mxu0 0.0
    %11156 = vmatpush1.msra.mxu0 0.0
    %11157 = vmatprep.subr.mxu0 0.0
    %11158 = vmatpush1.msra.mxu0 0.0
    %11159 = vmatprep.subr.mxu0 0.0
    %11160 = vmatpush1.msra.mxu0 0.0
    %11161 = vmatprep.subr.mxu0 0.0
    %11162 = vmatpush1.msra.mxu0 0.0
    %11163 = vmatprep.subr.mxu0 0.0
    %11164 = vmatpush1.msra.mxu0 0.0
    %11165 = vmatprep.subr.mxu0 0.0
    %11166 = vmatpush1.msra.mxu0 0.0
    %11167 = vmatprep.subr.mxu0 0.0
    %11168 = vmatpush1.msra.mxu0 0.0
    %11169 = vmatprep.subr.mxu0 0.0
    %11170 = vmatpush1.msra.mxu0 0.0
    %11171 = vmatprep.subr.mxu0 0.0
    %11172 = vmatpush1.msra.mxu0 0.0
    %11173 = vmatprep.subr.mxu0 0.0
    %11174 = vmatpush1.msra.mxu0 0.0
    %11175 = vmatprep.subr.mxu0 0.0
    %11176 = vmatpush1.msra.mxu0 0.0
    %11177 = vmatprep.subr.mxu0 0.0
    %11178 = vmatpush1.msra.mxu0 0.0
    %11179 = vmatprep.subr.mxu0 0.0
    %11180 = vmatpush1.msra.mxu0 0.0
    %11181 = vmatprep.subr.mxu0 0.0
    %11182 = vmatpush1.msra.mxu0 0.0
    %11183 = vmatprep.subr.mxu0 0.0
    %11184 = vmatpush1.msra.mxu0 0.0
    %11185 = vmatprep.subr.mxu0 0.0
    %11186 = vmatpush1.msra.mxu0 0.0
    %11187 = vmatprep.subr.mxu0 0.0
    %11188 = vmatpush1.msra.mxu0 0.0
    %11189 = vmatprep.subr.mxu0 0.0
    %11190 = vmatpush1.msra.mxu0 0.0
    %11191 = vmatprep.subr.mxu0 0.0
    %11192 = vmatpush1.msra.mxu0 0.0
    %11193 = vmatprep.subr.mxu0 0.0
    %11194 = vmatpush1.msra.mxu0 0.0
    %11195 = vmatprep.subr.mxu0 0.0
    %11196 = vmatpush1.msra.mxu0 0.0
    %11197 = vmatprep.subr.mxu0 0.0
    %11198 = vmatpush1.msra.mxu0 0.0
    %11199 = vmatprep.subr.mxu0 0.0
    %11200 = vmatpush1.msra.mxu0 0.0
    %11201 = vmatprep.subr.mxu0 0.0
    %11202 = vmatpush1.msra.mxu0 0.0
    %11203 = vmatprep.mubr.f32.mxu0 0.0
    %11204 = vmatmul.mubr.f32.gmra.mrb[0].mxu0 %v11116
    %v11205 = vpop.f32.mrb[0].mxu0
    %v11206 = vadd.f32 0.0, %v11205
    %v11207 = vpop.f32.mrb[0].mxu0
    %11208 = vmatprep.mubr.f32.mxu0 0.0
    %11209 = vmatmul.mubr.f32.gmra.mrb[0].mxu0 %v11119
    %v11210 = vpop.f32.mrb[0].mxu0
    %v11211 = vadd.f32 0.0, %v11210
    %v11212 = vpop.f32.mrb[0].mxu0
    %11213 = vmatprep.mubr.f32.mxu0 0.0
    %11214 = vmatmul.mubr.f32.gmra.mrb[0].mxu0 %v11122
    %v11215 = vpop.f32.mrb[0].mxu0
    %v11216 = vadd.f32 0.0, %v11215
    %v11217 = vpop.f32.mrb[0].mxu0
    %11218 = vmatprep.mubr.f32.mxu0 0.0
    %11219 = vmatmul.mubr.f32.gmra.mrb[0].mxu0 %v11125
    %v11220 = vpop.f32.mrb[0].mxu0
    %v11221 = vadd.f32 0.0, %v11220
    %v11222 = vpop.f32.mrb[0].mxu0
    %11223 = vmatprep.mubr.f32.mxu0 0.0
    %11224 = vmatmul.mubr.f32.gmra.mrb[0].mxu0 %v11128
    %v11225 = vpop.f32.mrb[0].mxu0
    %v11226 = vadd.f32 0.0, %v11225
    %v11227 = vpop.f32.mrb[0].mxu0
    %11228 = vmatprep.mubr.f32.mxu0 0.0
    %11229 = vmatmul.mubr.f32.gmra.mrb[0].mxu0 %v11131
    %v11230 = vpop.f32.mrb[0].mxu0
    %v11231 = vadd.f32 0.0, %v11230
    %v11232 = vpop.f32.mrb[0].mxu0
    %11233 = vmatprep.mubr.f32.mxu0 0.0
    %11234 = vmatmul.mubr.f32.gmra.mrb[0].mxu0 %v11134
    %v11235 = vpop.f32.mrb[0].mxu0
    %v11236 = vadd.f32 0.0, %v11235
    %v11237 = vpop.f32.mrb[0].mxu0
    %11238 = vmatprep.mubr.f32.mxu0 0.0
    %11239 = vmatmul.mubr.f32.gmra.mrb[0].mxu0 %v11137
    %v11240 = vpop.f32.mrb[0].mxu0
    %v11241 = vadd.f32 0.0, %v11240
    %v11242 = vpop.f32.mrb[0].mxu0
    %11243 = vdwg.mxu0
    %v11244 = vadd.f32 %v11091, %v11206
    %v11245 = vadd.f32 %v11092, %v11211
    %v11246 = vadd.f32 %v11093, %v11216
    %v11247 = vadd.f32 %v11094, %v11221
    %v11248 = vadd.f32 %v11095, %v11226
    %v11249 = vadd.f32 %v11096, %v11231
    %v11250 = vadd.f32 %v11097, %v11236
    %v11251 = vadd.f32 %v11098, %v11241
    %v11252 = vadd.f32 %v11244, %v1554
    %v11253 = vadd.f32 %v11245, %v1554
    %v11254 = vadd.f32 %v11246, %v1554
    %v11255 = vadd.f32 %v11247, %v1554
    %v11256 = vadd.f32 %v11248, %v1554
    %v11257 = vadd.f32 %v11249, %v1554
    %v11258 = vadd.f32 %v11250, %v1554
    %v11259 = vadd.f32 %v11251, %v1554
    %v11260 = vmax.f32 %v11252, 0.0
    %v11261 = vmax.f32 %v11253, 0.0
    %v11262 = vmax.f32 %v11254, 0.0
    %v11263 = vmax.f32 %v11255, 0.0
    %v11264 = vmax.f32 %v11256, 0.0
    %v11265 = vmax.f32 %v11257, 0.0
    %v11266 = vmax.f32 %v11258, 0.0
    %v11267 = vmax.f32 %v11259, 0.0
    %v11268 = vadd.f32 %v11260, %v11261
    %v11269 = vadd.f32 %v11268, %v11262
    %v11270 = vadd.f32 %v11269, %v11263
    %v11271 = vadd.f32 %v11270, %v11264
    %v11272 = vadd.f32 %v11271, %v11265
    %v11273 = vadd.f32 %v11272, %v11266
    %v11274 = vadd.f32 %v11273, %v11267
    %v11275 = vrot.slane %v11274, 4
    %v11276 = vadd.f32 %v11274, %v11275
    %v11277 = vrot.slane %v11276, 2
    %v11278 = vadd.f32 %v11276, %v11277
    %v11279 = vrot.slane %v11278, 1
    %v11280 = vadd.f32 %v11278, %v11279
    %v11281 = vadd.f32 %v9914, %v11280
    %v11282 = vmul.f32 %v11281, 0.00390625
    %v11283 = vld [vmem:[%s3] sm:$0xff]
    %v11284 = vld [vmem:[%s3 + $0x8] sm:$0xff]
    %v11285 = vld [vmem:[%s3 + $0x10] sm:$0xff]
    %v11286 = vld [vmem:[%s3 + $0x18] sm:$0xff]
    %v11287 = vld [vmem:[%s3 + $0x20] sm:$0xff]
    %v11288 = vld [vmem:[%s3 + $0x28] sm:$0xff]
    %v11289 = vld [vmem:[%s3 + $0x30] sm:$0xff]
    %v11290 = vld [vmem:[%s3 + $0x38] sm:$0xff]
    %v11291 = vld [vmem:[%s3 + $0x40] sm:$0xff]
    %v11292 = vld [vmem:[%s3 + $0x48] sm:$0xff]
    %v11293 = vld [vmem:[%s3 + $0x50] sm:$0xff]
    %v11294 = vld [vmem:[%s3 + $0x58] sm:$0xff]
    %v11295 = vld [vmem:[%s3 + $0x60] sm:$0xff]
    %v11296 = vld [vmem:[%s3 + $0x68] sm:$0xff]
    %v11297 = vld [vmem:[%s3 + $0x70] sm:$0xff]
    %v11298 = vld [vmem:[%s3 + $0x78] sm:$0xff]
    %v11299 = vld [vmem:[%s4] sm:$0x1]
    %11300 = vmatprep.subr.mxu0 0.0
    %11301 = vmatpush1.msra.mxu0 %v11283
    %11302 = vmatprep.subr.mxu0 0.0
    %11303 = vmatpush1.msra.mxu0 %v11284
    %11304 = vmatprep.subr.mxu0 0.0
    %11305 = vmatpush1.msra.mxu0 %v11285
    %11306 = vmatprep.subr.mxu0 0.0
    %11307 = vmatpush1.msra.mxu0 %v11286
    %11308 = vmatprep.subr.mxu0 0.0
    %11309 = vmatpush1.msra.mxu0 %v11287
    %11310 = vmatprep.subr.mxu0 0.0
    %11311 = vmatpush1.msra.mxu0 %v11288
    %11312 = vmatprep.subr.mxu0 0.0
    %11313 = vmatpush1.msra.mxu0 %v11289
    %11314 = vmatprep.subr.mxu0 0.0
    %11315 = vmatpush1.msra.mxu0 %v11290
    %11316 = vmatprep.subr.mxu0 0.0
    %11317 = vmatpush1.msra.mxu0 %v11291
    %11318 = vmatprep.subr.mxu0 0.0
    %11319 = vmatpush1.msra.mxu0 %v11292
    %11320 = vmatprep.subr.mxu0 0.0
    %11321 = vmatpush1.msra.mxu0 %v11293
    %11322 = vmatprep.subr.mxu0 0.0
    %11323 = vmatpush1.msra.mxu0 %v11294
    %11324 = vmatprep.subr.mxu0 0.0
    %11325 = vmatpush1.msra.mxu0 %v11295
    %11326 = vmatprep.subr.mxu0 0.0
    %11327 = vmatpush1.msra.mxu0 %v11296
    %11328 = vmatprep.subr.mxu0 0.0
    %11329 = vmatpush1.msra.mxu0 %v11297
    %11330 = vmatprep.subr.mxu0 0.0
    %11331 = vmatpush1.msra.mxu0 %v11298
    %11332 = vmatprep.subr.mxu0 0.0
    %11333 = vmatpush1.msra.mxu0 0.0
    %11334 = vmatprep.subr.mxu0 0.0
    %11335 = vmatpush1.msra.mxu0 0.0
    %11336 = vmatprep.subr.mxu0 0.0
    %11337 = vmatpush1.msra.mxu0 0.0
    %11338 = vmatprep.subr.mxu0 0.0
    %11339 = vmatpush1.msra.mxu0 0.0
    %11340 = vmatprep.subr.mxu0 0.0
    %11341 = vmatpush1.msra.mxu0 0.0
    %11342 = vmatprep.subr.mxu0 0.0
    %11343 = vmatpush1.msra.mxu0 0.0
    %11344 = vmatprep.subr.mxu0 0.0
    %11345 = vmatpush1.msra.mxu0 0.0
    %11346 = vmatprep.subr.mxu0 0.0
    %11347 = vmatpush1.msra.mxu0 0.0
    %11348 = vmatprep.subr.mxu0 0.0
    %11349 = vmatpush1.msra.mxu0 0.0
    %11350 = vmatprep.subr.mxu0 0.0
    %11351 = vmatpush1.msra.mxu0 0.0
    %11352 = vmatprep.subr.mxu0 0.0
    %11353 = vmatpush1.msra.mxu0 0.0
    %11354 = vmatprep.subr.mxu0 0.0
    %11355 = vmatpush1.msra.mxu0 0.0
    %11356 = vmatprep.subr.mxu0 0.0
    %11357 = vmatpush1.msra.mxu0 0.0
    %11358 = vmatprep.subr.mxu0 0.0
    %11359 = vmatpush1.msra.mxu0 0.0
    %11360 = vmatprep.subr.mxu0 0.0
    %11361 = vmatpush1.msra.mxu0 0.0
    %11362 = vmatprep.subr.mxu0 0.0
    %11363 = vmatpush1.msra.mxu0 0.0
    %11364 = vmatprep.mubr.f32.mxu0 0.0
    %11365 = vmatmul.mubr.f32.gmra.mrb[0].mxu0 %v11282
    %v11366 = vpop.f32.mrb[0].mxu0
    %v11367 = vadd.f32 %v11299, %v11366
    %v11368 = vpop.f32.mrb[0].mxu0
    %11369 = vdwg.mxu0
    %11370 = vst.msk [vmem:[#allocation2 + $0x1] sm:$0x1] %vm5775, %v11367
    // Predicated region
    $region22: #{tpu_custom_call.1} parent=1 // pred_check
      _
    $region23: #{tpu_custom_call.1} parent=1 // pred_check_branch
      %11372 = sbr.rel (0) target = $region25
    $region24: #{tpu_custom_call.1} parent=1 // pred_region
      %s11374 = ssub.s32 32, 32
      %11375 = vsyncadd [#allocation3], %s11374
      %s11377 = sshll.u32 [#allocation2], 4
      %s11378 = int_to_ptr.vmem [resolvable:$true] %s11377
      %11380 = dma.vmem_to_hbm [thread:$0]  %s11378, 32, %s5, [#allocation3]
    $region25: #{tpu_custom_call.1} parent=1 // pred_fallthru
      _
    // Predicated region
    $region26: #{tpu_custom_call.1} parent=1 // pred_check
      _
    $region27: #{tpu_custom_call.1} parent=1 // pred_check_branch
      %11382 = sbr.rel (0) target = $region29
    $region28: #{tpu_custom_call.1} parent=1 // pred_region
      %11383 = dma.done [#allocation3], 32
    $region29: #{tpu_custom_call.1} parent=1 // pred_fallthru
      _
    %11384 = vsyncpa [#allocation3], 1

</llo_original>
